<compile_context>
chip_gen: v5e
topology: v5e:2x2
jax: 0.10.0
libtpu: 0.0.40
codegen_flags: <defaults>
</compile_context>

<pallas_src>
import functools
import math

import jax
import jax.numpy as jnp
from jax.experimental import pallas as pl
from jax.experimental.pallas import tpu as pltpu


# ----------------------------------------------------------------------------
# Sublane-aligned padded-flat layout
# ----------------------------------------------------------------------------
def _round_up(x, m):
    return (x + m - 1) // m * m


def _layout_dims(H, W):
    """The (H, W) image is embedded in an (H+2, Wp) zero-padded grid and
    flattened row-major to L rows.  Data pixel (y, x) sits at grid (y+1, x);
    grid rows 0 / H+1 and columns [W, Wp) are zeros.  Wp and the margin M are
    multiples of 8 so all in-kernel tap slices / stores are sublane aligned."""
    Wp = _round_up(W + 2, 8)          # row pitch (>= 2 zero cols for tap wrap)
    L = (H + 2) * Wp                  # flat length of the padded grid
    M = _round_up(Wp + 1, 8)          # margin rows (covers every tap shift)
    return Wp, L, M


def _conv1_im2col(x_nhwc, H, W):
    """(N, H, W, Cin) f32 -> (N, L, 9*Cin) bf16: conv1's 9 taps K-packed per
    flat position of the padded grid (conv1 becomes a single MXU matmul)."""
    n, _, _, c = x_nhwc.shape
    Wp, L, _ = _layout_dims(H, W)
    # pad so that padded[gy+ky, gx+kx] == image[gy+ky-2, gx+kx-1] (0 outside)
    xp = jnp.pad(x_nhwc, ((0, 0), (2, 2), (1, Wp + 1 - W), (0, 0)))
    taps = [xp[:, ky:ky + H + 2, kx:kx + Wp, :]
            for ky in range(3) for kx in range(3)]
    cat = jnp.concatenate(taps, axis=-1)                 # (N, H+2, Wp, 9*Cin)
    return cat.reshape(n, L, 9 * c).astype(jnp.bfloat16)


# ----------------------------------------------------------------------------
# Fused kernel: Conv3x3+GN+ReLU -> Conv3x3+GN+ReLU -> ConvTranspose2x2(+bias)
# ----------------------------------------------------------------------------
def _upsampling_unit_kernel(x1_ref, w1_ref, g1_ref, b1_ref,
                            w2_ref, g2_ref, b2_ref,
                            wt_ref, bt_ref, o_ref, a1p_ref,
                            *, H, W, Wp, L, M, eps):
    cu = w1_ref.shape[-1]                 # unit channels
    cout2 = o_ref.shape[-1]               # 2 * out channels
    inv_count = 1.0 / float(H * W)

    # -- validity mask of the padded grid, built in-kernel (no DMA stream).
    #    f32 floor trick avoids vector integer div; exact for the sizes used.
    ridx = jax.lax.broadcasted_iota(jnp.int32, (L, 1), 0)
    rf = ridx.astype(jnp.float32)
    rowf = jnp.floor(rf * (1.0 / Wp) + 1e-4)
    colf = rf - rowf * float(Wp)
    valid = (ridx >= Wp) & (ridx < Wp * (H + 1)) & (colf < (W - 0.5))
    mask = jnp.where(valid, 1.0, 0.0)                         # (L, 1) f32

    def gn_relu(acc, gamma, beta):
        # GroupNorm(num_groups == C): per-channel stats over valid pixels,
        # single-pass E[x^2]-mean^2 in f32 (clamped), affine, ReLU.
        xm = acc * mask
        s1 = jnp.sum(xm, axis=0, keepdims=True)
        s2 = jnp.sum(xm * xm, axis=0, keepdims=True)
        mean = s1 * inv_count
        var = jnp.maximum(s2 * inv_count - mean * mean, 0.0)  # biased, like PyTorch
        scale = jax.lax.rsqrt(var + eps) * gamma
        shift = beta - mean * scale
        return jnp.maximum(acc * scale + shift, 0.0)

    # ---- layer 1: 3x3 conv as ONE K-packed matmul (K = 9*Cin) + GN + ReLU --
    acc1 = jnp.dot(x1_ref[0], w1_ref[...], preferred_element_type=jnp.float32)
    y1 = (gn_relu(acc1, g1_ref[...], b1_ref[...]) * mask).astype(jnp.bfloat16)

    # ---- chain through VMEM: write y1 three times, horizontally pre-shifted,
    #      so conv2's taps become three ALIGNED K=3*Cu slabs.
    #      a1p[r, j*Cu:(j+1)*Cu] = y1_zero_extended[r - M + (j - 1)]
    zeros_m = jnp.zeros((M + 1, 3 * cu), jnp.bfloat16)
    a1p_ref[pl.ds(0, M + 1), :] = zeros_m              # zero halos (include the
    a1p_ref[pl.ds(M + L - 1, M + 1), :] = zeros_m      # never-written edge rows)
    for j in range(3):
        a1p_ref[pl.ds(M + 1 - j, L), j * cu:(j + 1) * cu] = y1

    # ---- layer 2: 3x3 conv as 3 aligned matmuls with K = 3*Cu + GN + ReLU --
    acc2 = jnp.dot(a1p_ref[pl.ds(M - Wp, L), :], w2_ref[0],
                   preferred_element_type=jnp.float32)
    acc2 = acc2 + jnp.dot(a1p_ref[pl.ds(M, L), :], w2_ref[1],
                          preferred_element_type=jnp.float32)
    acc2 = acc2 + jnp.dot(a1p_ref[pl.ds(M + Wp, L), :], w2_ref[2],
                          preferred_element_type=jnp.float32)
    y2 = gn_relu(acc2, g2_ref[...], b2_ref[...])  # junk rows/cols never read below

    # ---- ConvTranspose2d(k=2, s=2, bias): one matmul, 2x2 phases in lanes ---
    slab = y2[Wp:Wp + H * Wp, :].astype(jnp.bfloat16)          # interior rows
    r = jnp.dot(slab, wt_ref[...], preferred_element_type=jnp.float32) + bt_ref[...]
    for y0 in range(H):                                        # aligned slices/stores
        rowv = r[y0 * Wp:y0 * Wp + W, :]                       # (W, 4*Cout)
        o_ref[0, 2 * y0, :, :] = rowv[:, :cout2].astype(o_ref.dtype)
        o_ref[0, 2 * y0 + 1, :, :] = rowv[:, cout2:].astype(o_ref.dtype)


# ----------------------------------------------------------------------------
# Wrapper
# ----------------------------------------------------------------------------
def upsampling_unit_forward(params, x_nchw, eps=1e-5):
    n, cin, H, W = x_nchw.shape
    cu = params['w1'].shape[-1]
    cout = params['wt'].shape[1]
    Wp, L, M = _layout_dims(H, W)

    x = jnp.transpose(x_nchw, (0, 2, 3, 1)).astype(jnp.float32)     # NHWC
    x1p = _conv1_im2col(x, H, W)                                    # (N, L, 9*Cin) bf16

    w1p = params['w1'].reshape(9 * cin, cu).astype(jnp.bfloat16)
    w2p = params['w2'].reshape(3, 3 * cu, cu).astype(jnp.bfloat16)
    # ConvT weight (Cu, Cout, 2, 2) -> (Cu, 4*Cout), column = i*2*Cout+j*Cout+co
    wtp = jnp.transpose(params['wt'], (0, 2, 3, 1)).reshape(cu, 4 * cout)
    wtp = wtp.astype(jnp.bfloat16)
    bt4 = jnp.tile(params['bt'], 4)[None, :].astype(jnp.float32)

    kernel = functools.partial(_upsampling_unit_kernel,
                               H=H, W=W, Wp=Wp, L=L, M=M, eps=eps)
    out = pl.pallas_call(
        kernel,
        out_shape=jax.ShapeDtypeStruct((n, 2 * H, W, 2 * cout), jnp.float32),
        grid=(n,),
        in_specs=[
            pl.BlockSpec((1, L, 9 * cin), lambda i: (i, 0, 0)),
            pl.BlockSpec((9 * cin, cu), lambda i: (0, 0)),
            pl.BlockSpec((1, cu), lambda i: (0, 0)),
            pl.BlockSpec((1, cu), lambda i: (0, 0)),
            pl.BlockSpec((3, 3 * cu, cu), lambda i: (0, 0, 0)),
            pl.BlockSpec((1, cu), lambda i: (0, 0)),
            pl.BlockSpec((1, cu), lambda i: (0, 0)),
            pl.BlockSpec((cu, 4 * cout), lambda i: (0, 0)),
            pl.BlockSpec((1, 4 * cout), lambda i: (0, 0)),
        ],
        out_specs=pl.BlockSpec((1, 2 * H, W, 2 * cout), lambda i: (i, 0, 0, 0)),
        scratch_shapes=[pltpu.VMEM((L + 2 * M, 3 * cu), jnp.bfloat16)],
        compiler_params=pltpu.CompilerParams(
            dimension_semantics=("parallel",)),
    )(x1p, w1p, params['g1'][None, :], params['b1'][None, :],
      w2p, params['g2'][None, :], params['b2'][None, :], wtp, bt4)

    # (N, 2H, W, 2*Cout) and (N, 2H, 2W, Cout) share the identical flat layout,
    # so this reshape is free (no pixel-shuffle transpose / HBM copy).
    y = out.reshape(n, 2 * H, 2 * W, cout)
    return jnp.transpose(y, (0, 3, 1, 2))                          # -> NCHW


def init_params(key, cin, cu, cout):
    k1, k2, k3, k4 = jax.random.split(key, 4)
    return dict(
        w1=jax.random.normal(k1, (3, 3, cin, cu), jnp.float32) / math.sqrt(9 * cin),
        g1=jnp.ones((cu,), jnp.float32), b1=jnp.zeros((cu,), jnp.float32),
        w2=jax.random.normal(k2, (3, 3, cu, cu), jnp.float32) / math.sqrt(9 * cu),
        g2=jnp.ones((cu,), jnp.float32), b2=jnp.zeros((cu,), jnp.float32),
        wt=jax.random.normal(k3, (cu, cout, 2, 2), jnp.float32) / math.sqrt(4 * cu),
        bt=jax.random.normal(k4, (cout,), jnp.float32) * 0.01,
    )


def reference_forward(params, x_nchw, eps=1e-5):
    """Pure-JAX (XLA) reference mirroring the PyTorch module, f32 throughout."""
    x = jnp.transpose(x_nchw, (0, 2, 3, 1)).astype(jnp.float32)
    dn = ('NHWC', 'HWIO', 'NHWC')

    def conv(v, w):
        return jax.lax.conv_general_dilated(
            v, w, window_strides=(1, 1), padding='SAME',
            dimension_numbers=dn, precision=jax.lax.Precision.HIGHEST)

    def gn_relu(v, g, b):
        m = jnp.mean(v, axis=(1, 2), keepdims=True)
        var = jnp.mean((v - m) ** 2, axis=(1, 2), keepdims=True)
        return jnp.maximum((v - m) * jax.lax.rsqrt(var + eps) * g + b, 0.0)

    f = gn_relu(conv(x, params['w1']), params['g1'], params['b1'])
    f = gn_relu(conv(f, params['w2']), params['g2'], params['b2'])
    up = jnp.einsum('nhwc,cdij->nhiwjd', f, params['wt'],
                    precision=jax.lax.Precision.HIGHEST)
    n, H, _, W, _, co = up.shape
    up = up.reshape(n, 2 * H, 2 * W, co) + params['bt']
    return jnp.transpose(up, (0, 3, 1, 2))


# ----------------------------------------------------------------------------
if __name__ == "__main__":
    IN_C, UNIT_C, OUT_C = 4, 128, 64
    N, H, W = 2, 16, 16

    key = jax.random.PRNGKey(0)
    pkey, xkey = jax.random.split(key)
    params = init_params(pkey, IN_C, UNIT_C, OUT_C)
    x = jax.random.normal(xkey, (N, IN_C, H, W), jnp.float32)

    fwd = jax.jit(upsampling_unit_forward)
    y = jax.block_until_ready(fwd(params, x))

    assert y.shape == (N, OUT_C, 2 * H, 2 * W), y.shape
    assert bool(jnp.all(jnp.isfinite(y)))

    # Numerical sanity vs an f32 XLA reference (kernel uses bf16 MXU operands,
    # so the tolerance is loose but far below any structural-bug magnitude).
    y_ref = jax.block_until_ready(jax.jit(reference_forward)(params, x))
    err = float(jnp.max(jnp.abs(y - y_ref)))
    assert err < 0.2, f"max abs err vs reference: {err}"

    print("KERNEL_OK")
</pallas_src>

<mosaic_0001>
module attributes {stable_mosaic.version = 11 : i64} {
  func.func @_upsampling_unit_kernel(%arg0: i32, %arg1: memref<1x432x36xbf16, #tpu.memory_space<vmem>>, %arg2: memref<36x128xbf16, #tpu.memory_space<vmem>>, %arg3: memref<1x128xf32, #tpu.memory_space<vmem>>, %arg4: memref<1x128xf32, #tpu.memory_space<vmem>>, %arg5: memref<3x384x128xbf16, #tpu.memory_space<vmem>>, %arg6: memref<1x128xf32, #tpu.memory_space<vmem>>, %arg7: memref<1x128xf32, #tpu.memory_space<vmem>>, %arg8: memref<128x256xbf16, #tpu.memory_space<vmem>>, %arg9: memref<1x256xf32, #tpu.memory_space<vmem>>, %arg10: memref<1x32x16x128xf32, #tpu.memory_space<vmem>>, %arg11: memref<496x384xbf16, #tpu.memory_space<vmem>>) attributes {dimension_semantics = [#tpu.dimension_semantics<parallel>], iteration_bounds = array<i64: 2>, scalar_prefetch = 0 : i64, scratch_operands = 1 : i64, tpu.core_type = #tpu.core_type<tc>, window_params = [{transform_indices = @transform_0, window_bounds = array<i64: 1, 432, 36>}, {pipeline_mode = #tpu.pipeline_mode<synchronous>, transform_indices = @transform_1, window_bounds = array<i64: 36, 128>}, {pipeline_mode = #tpu.pipeline_mode<synchronous>, transform_indices = @transform_2, window_bounds = array<i64: 1, 128>}, {pipeline_mode = #tpu.pipeline_mode<synchronous>, transform_indices = @transform_3, window_bounds = array<i64: 1, 128>}, {pipeline_mode = #tpu.pipeline_mode<synchronous>, transform_indices = @transform_4, window_bounds = array<i64: 3, 384, 128>}, {pipeline_mode = #tpu.pipeline_mode<synchronous>, transform_indices = @transform_5, window_bounds = array<i64: 1, 128>}, {pipeline_mode = #tpu.pipeline_mode<synchronous>, transform_indices = @transform_6, window_bounds = array<i64: 1, 128>}, {pipeline_mode = #tpu.pipeline_mode<synchronous>, transform_indices = @transform_7, window_bounds = array<i64: 128, 256>}, {pipeline_mode = #tpu.pipeline_mode<synchronous>, transform_indices = @transform_8, window_bounds = array<i64: 1, 256>}, {transform_indices = @transform_9, window_bounds = array<i64: 1, 32, 16, 128>}]} {
    %0 = tpu.iota {dimensions = array<i32: 0>} : vector<432x1xi32>
    %1 = arith.sitofp %0 : vector<432x1xi32> to vector<432x1xf32>
    %cst = arith.constant 0.0416666679 : f32
    %2 = vector.broadcast %cst : f32 to vector<432x1xf32>
    %3 = arith.mulf %1, %2 : vector<432x1xf32>
    %cst_0 = arith.constant 9.99999974E-5 : f32
    %4 = vector.broadcast %cst_0 : f32 to vector<432x1xf32>
    %5 = arith.addf %3, %4 : vector<432x1xf32>
    %6 = math.floor %5 : vector<432x1xf32>
    %cst_1 = arith.constant 2.400000e+01 : f32
    %7 = vector.broadcast %cst_1 : f32 to vector<432x1xf32>
    %8 = arith.mulf %6, %7 : vector<432x1xf32>
    %9 = arith.subf %1, %8 : vector<432x1xf32>
    %c24_i32 = arith.constant 24 : i32
    %10 = vector.broadcast %c24_i32 : i32 to vector<432x1xi32>
    %11 = arith.cmpi sge, %0, %10 : vector<432x1xi32>
    %c408_i32 = arith.constant 408 : i32
    %12 = vector.broadcast %c408_i32 : i32 to vector<432x1xi32>
    %13 = arith.cmpi slt, %0, %12 : vector<432x1xi32>
    %14 = arith.andi %11, %13 : vector<432x1xi1>
    %cst_2 = arith.constant 1.550000e+01 : f32
    %15 = vector.broadcast %cst_2 : f32 to vector<432x1xf32>
    %16 = arith.cmpf olt, %9, %15 : vector<432x1xf32>
    %17 = arith.andi %14, %16 : vector<432x1xi1>
    %cst_3 = arith.constant 1.000000e+00 : f32
    %cst_4 = arith.constant 0.000000e+00 : f32
    %18 = vector.broadcast %cst_3 : f32 to vector<432x1xf32>
    %19 = vector.broadcast %cst_4 : f32 to vector<432x1xf32>
    %20 = arith.select %17, %18, %19 : vector<432x1xi1>, vector<432x1xf32>
    %c0 = arith.constant 0 : index
    %c0_5 = arith.constant 0 : index
    %c0_6 = arith.constant 0 : index
    %21 = vector.load %arg1[%c0, %c0_5, %c0_6] : memref<1x432x36xbf16, #tpu.memory_space<vmem>>, vector<1x432x36xbf16>
    %22 = vector.shape_cast %21 : vector<1x432x36xbf16> to vector<432x36xbf16>
    %c0_7 = arith.constant 0 : index
    %c0_8 = arith.constant 0 : index
    %23 = vector.load %arg2[%c0_7, %c0_8] : memref<36x128xbf16, #tpu.memory_space<vmem>>, vector<36x128xbf16>
    %cst_9 = arith.constant dense<0.000000e+00> : vector<432x128xf32>
    %24 = tpu.matmul %22, %23, %cst_9 {dimension_numbers = #tpu.dot_dimension_numbers<[1], [0], [0], [1], [0, 0, 1, 1], [], []>} : vector<432x36xbf16>, vector<36x128xbf16>, vector<432x128xf32> -> vector<432x128xf32>
    %c0_10 = arith.constant 0 : index
    %c0_11 = arith.constant 0 : index
    %25 = vector.load %arg3[%c0_10, %c0_11] : memref<1x128xf32, #tpu.memory_space<vmem>>, vector<1x128xf32>
    %c0_12 = arith.constant 0 : index
    %c0_13 = arith.constant 0 : index
    %26 = vector.load %arg4[%c0_12, %c0_13] : memref<1x128xf32, #tpu.memory_space<vmem>>, vector<1x128xf32>
    %27 = vector.broadcast %20 : vector<432x1xf32> to vector<432x128xf32>
    %28 = arith.mulf %24, %27 : vector<432x128xf32>
    %cst_14 = arith.constant dense<0.000000e+00> : vector<128xf32>
    %29 = vector.multi_reduction <add>, %28, %cst_14 [0] : vector<432x128xf32> to vector<128xf32>
    %30 = vector.shape_cast %29 : vector<128xf32> to vector<1x128xf32>
    %31 = arith.mulf %28, %28 : vector<432x128xf32>
    %cst_15 = arith.constant dense<0.000000e+00> : vector<128xf32>
    %32 = vector.multi_reduction <add>, %31, %cst_15 [0] : vector<432x128xf32> to vector<128xf32>
    %33 = vector.shape_cast %32 : vector<128xf32> to vector<1x128xf32>
    %cst_16 = arith.constant 3.906250e-03 : f32
    %34 = vector.broadcast %cst_16 : f32 to vector<1x128xf32>
    %35 = arith.mulf %30, %34 : vector<1x128xf32>
    %cst_17 = arith.constant 3.906250e-03 : f32
    %36 = vector.broadcast %cst_17 : f32 to vector<1x128xf32>
    %37 = arith.mulf %33, %36 : vector<1x128xf32>
    %38 = arith.mulf %35, %35 : vector<1x128xf32>
    %39 = arith.subf %37, %38 : vector<1x128xf32>
    %cst_18 = arith.constant 0.000000e+00 : f32
    %40 = vector.broadcast %cst_18 : f32 to vector<1x128xf32>
    %41 = arith.maximumf %39, %40 : vector<1x128xf32>
    %cst_19 = arith.constant 9.99999974E-6 : f32
    %42 = vector.broadcast %cst_19 : f32 to vector<1x128xf32>
    %43 = arith.addf %41, %42 : vector<1x128xf32>
    %44 = math.rsqrt %43 : vector<1x128xf32>
    %45 = arith.mulf %44, %25 : vector<1x128xf32>
    %46 = arith.mulf %35, %45 : vector<1x128xf32>
    %47 = arith.subf %26, %46 : vector<1x128xf32>
    %48 = vector.broadcast %45 : vector<1x128xf32> to vector<432x128xf32>
    %49 = arith.mulf %24, %48 : vector<432x128xf32>
    %50 = vector.broadcast %47 : vector<1x128xf32> to vector<432x128xf32>
    %51 = arith.addf %49, %50 : vector<432x128xf32>
    %cst_20 = arith.constant 0.000000e+00 : f32
    %52 = vector.broadcast %cst_20 : f32 to vector<432x128xf32>
    %53 = arith.maximumf %51, %52 : vector<432x128xf32>
    %54 = vector.broadcast %20 : vector<432x1xf32> to vector<432x128xf32>
    %55 = arith.mulf %53, %54 : vector<432x128xf32>
    %56 = arith.truncf %55 : vector<432x128xf32> to vector<432x128xbf16>
    %cst_21 = arith.constant 0.000000e+00 : bf16
    %57 = vector.broadcast %cst_21 : bf16 to vector<33x384xbf16>
    %c0_22 = arith.constant 0 : index
    %c0_23 = arith.constant 0 : index
    %58 = vector.load %arg11[%c0_22, %c0_23] : memref<496x384xbf16, #tpu.memory_space<vmem>>, vector<33x384xbf16>
    tpu.vector_store %arg11[%c0_22, %c0_23], %57 {strides = array<i32>} : memref<496x384xbf16, #tpu.memory_space<vmem>>, vector<33x384xbf16>,
    %c463 = arith.constant 463 : index
    %c0_24 = arith.constant 0 : index
    %59 = vector.load %arg11[%c463, %c0_24] : memref<496x384xbf16, #tpu.memory_space<vmem>>, vector<33x384xbf16>
    tpu.vector_store %arg11[%c463, %c0_24], %57 {strides = array<i32>} : memref<496x384xbf16, #tpu.memory_space<vmem>>, vector<33x384xbf16>,
    %c33 = arith.constant 33 : index
    %c0_25 = arith.constant 0 : index
    %60 = vector.load %arg11[%c33, %c0_25] : memref<496x384xbf16, #tpu.memory_space<vmem>>, vector<432x128xbf16>
    tpu.vector_store %arg11[%c33, %c0_25], %56 {strides = array<i32>} : memref<496x384xbf16, #tpu.memory_space<vmem>>, vector<432x128xbf16>,
    %c32 = arith.constant 32 : index
    %c128 = arith.constant 128 : index
    %61 = vector.load %arg11[%c32, %c128] : memref<496x384xbf16, #tpu.memory_space<vmem>>, vector<432x128xbf16>
    tpu.vector_store %arg11[%c32, %c128], %56 {strides = array<i32>} : memref<496x384xbf16, #tpu.memory_space<vmem>>, vector<432x128xbf16>,
    %c31 = arith.constant 31 : index
    %c256 = arith.constant 256 : index
    %62 = vector.load %arg11[%c31, %c256] : memref<496x384xbf16, #tpu.memory_space<vmem>>, vector<432x128xbf16>
    tpu.vector_store %arg11[%c31, %c256], %56 {strides = array<i32>} : memref<496x384xbf16, #tpu.memory_space<vmem>>, vector<432x128xbf16>,
    %c8 = arith.constant 8 : index
    %c0_26 = arith.constant 0 : index
    %63 = vector.load %arg11[%c8, %c0_26] : memref<496x384xbf16, #tpu.memory_space<vmem>>, vector<432x384xbf16>
    %c0_27 = arith.constant 0 : index
    %c0_28 = arith.constant 0 : index
    %c0_29 = arith.constant 0 : index
    %64 = vector.load %arg5[%c0_27, %c0_28, %c0_29] : memref<3x384x128xbf16, #tpu.memory_space<vmem>>, vector<1x384x128xbf16>
    %65 = vector.shape_cast %64 : vector<1x384x128xbf16> to vector<384x128xbf16>
    %cst_30 = arith.constant dense<0.000000e+00> : vector<432x128xf32>
    %66 = tpu.matmul %63, %65, %cst_30 {dimension_numbers = #tpu.dot_dimension_numbers<[1], [0], [0], [1], [0, 0, 1, 1], [], []>} : vector<432x384xbf16>, vector<384x128xbf16>, vector<432x128xf32> -> vector<432x128xf32>
    %c32_31 = arith.constant 32 : index
    %c0_32 = arith.constant 0 : index
    %67 = vector.load %arg11[%c32_31, %c0_32] : memref<496x384xbf16, #tpu.memory_space<vmem>>, vector<432x384xbf16>
    %c1 = arith.constant 1 : index
    %c0_33 = arith.constant 0 : index
    %c0_34 = arith.constant 0 : index
    %68 = vector.load %arg5[%c1, %c0_33, %c0_34] : memref<3x384x128xbf16, #tpu.memory_space<vmem>>, vector<1x384x128xbf16>
    %69 = vector.shape_cast %68 : vector<1x384x128xbf16> to vector<384x128xbf16>
    %cst_35 = arith.constant dense<0.000000e+00> : vector<432x128xf32>
    %70 = tpu.matmul %67, %69, %cst_35 {dimension_numbers = #tpu.dot_dimension_numbers<[1], [0], [0], [1], [0, 0, 1, 1], [], []>} : vector<432x384xbf16>, vector<384x128xbf16>, vector<432x128xf32> -> vector<432x128xf32>
    %71 = arith.addf %66, %70 : vector<432x128xf32>
    %c56 = arith.constant 56 : index
    %c0_36 = arith.constant 0 : index
    %72 = vector.load %arg11[%c56, %c0_36] : memref<496x384xbf16, #tpu.memory_space<vmem>>, vector<432x384xbf16>
    %c2 = arith.constant 2 : index
    %c0_37 = arith.constant 0 : index
    %c0_38 = arith.constant 0 : index
    %73 = vector.load %arg5[%c2, %c0_37, %c0_38] : memref<3x384x128xbf16, #tpu.memory_space<vmem>>, vector<1x384x128xbf16>
    %74 = vector.shape_cast %73 : vector<1x384x128xbf16> to vector<384x128xbf16>
    %cst_39 = arith.constant dense<0.000000e+00> : vector<432x128xf32>
    %75 = tpu.matmul %72, %74, %cst_39 {dimension_numbers = #tpu.dot_dimension_numbers<[1], [0], [0], [1], [0, 0, 1, 1], [], []>} : vector<432x384xbf16>, vector<384x128xbf16>, vector<432x128xf32> -> vector<432x128xf32>
    %76 = arith.addf %71, %75 : vector<432x128xf32>
    %c0_40 = arith.constant 0 : index
    %c0_41 = arith.constant 0 : index
    %77 = vector.load %arg6[%c0_40, %c0_41] : memref<1x128xf32, #tpu.memory_space<vmem>>, vector<1x128xf32>
    %c0_42 = arith.constant 0 : index
    %c0_43 = arith.constant 0 : index
    %78 = vector.load %arg7[%c0_42, %c0_43] : memref<1x128xf32, #tpu.memory_space<vmem>>, vector<1x128xf32>
    %79 = vector.broadcast %20 : vector<432x1xf32> to vector<432x128xf32>
    %80 = arith.mulf %76, %79 : vector<432x128xf32>
    %cst_44 = arith.constant dense<0.000000e+00> : vector<128xf32>
    %81 = vector.multi_reduction <add>, %80, %cst_44 [0] : vector<432x128xf32> to vector<128xf32>
    %82 = vector.shape_cast %81 : vector<128xf32> to vector<1x128xf32>
    %83 = arith.mulf %80, %80 : vector<432x128xf32>
    %cst_45 = arith.constant dense<0.000000e+00> : vector<128xf32>
    %84 = vector.multi_reduction <add>, %83, %cst_45 [0] : vector<432x128xf32> to vector<128xf32>
    %85 = vector.shape_cast %84 : vector<128xf32> to vector<1x128xf32>
    %cst_46 = arith.constant 3.906250e-03 : f32
    %86 = vector.broadcast %cst_46 : f32 to vector<1x128xf32>
    %87 = arith.mulf %82, %86 : vector<1x128xf32>
    %cst_47 = arith.constant 3.906250e-03 : f32
    %88 = vector.broadcast %cst_47 : f32 to vector<1x128xf32>
    %89 = arith.mulf %85, %88 : vector<1x128xf32>
    %90 = arith.mulf %87, %87 : vector<1x128xf32>
    %91 = arith.subf %89, %90 : vector<1x128xf32>
    %cst_48 = arith.constant 0.000000e+00 : f32
    %92 = vector.broadcast %cst_48 : f32 to vector<1x128xf32>
    %93 = arith.maximumf %91, %92 : vector<1x128xf32>
    %cst_49 = arith.constant 9.99999974E-6 : f32
    %94 = vector.broadcast %cst_49 : f32 to vector<1x128xf32>
    %95 = arith.addf %93, %94 : vector<1x128xf32>
    %96 = math.rsqrt %95 : vector<1x128xf32>
    %97 = arith.mulf %96, %77 : vector<1x128xf32>
    %98 = arith.mulf %87, %97 : vector<1x128xf32>
    %99 = arith.subf %78, %98 : vector<1x128xf32>
    %100 = vector.broadcast %97 : vector<1x128xf32> to vector<432x128xf32>
    %101 = arith.mulf %76, %100 : vector<432x128xf32>
    %102 = vector.broadcast %99 : vector<1x128xf32> to vector<432x128xf32>
    %103 = arith.addf %101, %102 : vector<432x128xf32>
    %cst_50 = arith.constant 0.000000e+00 : f32
    %104 = vector.broadcast %cst_50 : f32 to vector<432x128xf32>
    %105 = arith.maximumf %103, %104 : vector<432x128xf32>
    %106 = vector.extract_strided_slice %105 {offsets = [24, 0], sizes = [384, 128], strides = [1, 1]} : vector<432x128xf32> to vector<384x128xf32>
    %107 = arith.truncf %106 : vector<384x128xf32> to vector<384x128xbf16>
    %c0_51 = arith.constant 0 : index
    %c0_52 = arith.constant 0 : index
    %108 = vector.load %arg8[%c0_51, %c0_52] : memref<128x256xbf16, #tpu.memory_space<vmem>>, vector<128x256xbf16>
    %cst_53 = arith.constant dense<0.000000e+00> : vector<384x256xf32>
    %109 = tpu.matmul %107, %108, %cst_53 {dimension_numbers = #tpu.dot_dimension_numbers<[1], [0], [0], [1], [0, 0, 1, 1], [], []>} : vector<384x128xbf16>, vector<128x256xbf16>, vector<384x256xf32> -> vector<384x256xf32>
    %c0_54 = arith.constant 0 : index
    %c0_55 = arith.constant 0 : index
    %110 = vector.load %arg9[%c0_54, %c0_55] : memref<1x256xf32, #tpu.memory_space<vmem>>, vector<1x256xf32>
    %111 = vector.broadcast %110 : vector<1x256xf32> to vector<384x256xf32>
    %112 = arith.addf %109, %111 : vector<384x256xf32>
    %113 = vector.extract_strided_slice %112 {offsets = [0, 0], sizes = [16, 256], strides = [1, 1]} : vector<384x256xf32> to vector<16x256xf32>
    %114 = vector.extract_strided_slice %113 {offsets = [0, 0], sizes = [16, 128], strides = [1, 1]} : vector<16x256xf32> to vector<16x128xf32>
    %c0_56 = arith.constant 0 : index
    %c0_57 = arith.constant 0 : index
    %c0_58 = arith.constant 0 : index
    %c0_59 = arith.constant 0 : index
    %115 = vector.load %arg10[%c0_56, %c0_57, %c0_58, %c0_59] : memref<1x32x16x128xf32, #tpu.memory_space<vmem>>, vector<1x1x16x128xf32>
    %116 = vector.shape_cast %115 : vector<1x1x16x128xf32> to vector<16x128xf32>
    %117 = vector.shape_cast %114 : vector<16x128xf32> to vector<1x1x16x128xf32>
    tpu.vector_store %arg10[%c0_56, %c0_57, %c0_58, %c0_59], %117 {strides = array<i32>} : memref<1x32x16x128xf32, #tpu.memory_space<vmem>>, vector<1x1x16x128xf32>,
    %118 = vector.extract_strided_slice %113 {offsets = [0, 128], sizes = [16, 128], strides = [1, 1]} : vector<16x256xf32> to vector<16x128xf32>
    %c0_60 = arith.constant 0 : index
    %c1_61 = arith.constant 1 : index
    %c0_62 = arith.constant 0 : index
    %c0_63 = arith.constant 0 : index
    %119 = vector.load %arg10[%c0_60, %c1_61, %c0_62, %c0_63] : memref<1x32x16x128xf32, #tpu.memory_space<vmem>>, vector<1x1x16x128xf32>
    %120 = vector.shape_cast %119 : vector<1x1x16x128xf32> to vector<16x128xf32>
    %121 = vector.shape_cast %118 : vector<16x128xf32> to vector<1x1x16x128xf32>
    tpu.vector_store %arg10[%c0_60, %c1_61, %c0_62, %c0_63], %121 {strides = array<i32>} : memref<1x32x16x128xf32, #tpu.memory_space<vmem>>, vector<1x1x16x128xf32>,
    %122 = vector.extract_strided_slice %112 {offsets = [24, 0], sizes = [16, 256], strides = [1, 1]} : vector<384x256xf32> to vector<16x256xf32>
    %123 = vector.extract_strided_slice %122 {offsets = [0, 0], sizes = [16, 128], strides = [1, 1]} : vector<16x256xf32> to vector<16x128xf32>
    %c0_64 = arith.constant 0 : index
    %c2_65 = arith.constant 2 : index
    %c0_66 = arith.constant 0 : index
    %c0_67 = arith.constant 0 : index
    %124 = vector.load %arg10[%c0_64, %c2_65, %c0_66, %c0_67] : memref<1x32x16x128xf32, #tpu.memory_space<vmem>>, vector<1x1x16x128xf32>
    %125 = vector.shape_cast %124 : vector<1x1x16x128xf32> to vector<16x128xf32>
    %126 = vector.shape_cast %123 : vector<16x128xf32> to vector<1x1x16x128xf32>
    tpu.vector_store %arg10[%c0_64, %c2_65, %c0_66, %c0_67], %126 {strides = array<i32>} : memref<1x32x16x128xf32, #tpu.memory_space<vmem>>, vector<1x1x16x128xf32>,
    %127 = vector.extract_strided_slice %122 {offsets = [0, 128], sizes = [16, 128], strides = [1, 1]} : vector<16x256xf32> to vector<16x128xf32>
    %c0_68 = arith.constant 0 : index
    %c3 = arith.constant 3 : index
    %c0_69 = arith.constant 0 : index
    %c0_70 = arith.constant 0 : index
    %128 = vector.load %arg10[%c0_68, %c3, %c0_69, %c0_70] : memref<1x32x16x128xf32, #tpu.memory_space<vmem>>, vector<1x1x16x128xf32>
    %129 = vector.shape_cast %128 : vector<1x1x16x128xf32> to vector<16x128xf32>
    %130 = vector.shape_cast %127 : vector<16x128xf32> to vector<1x1x16x128xf32>
    tpu.vector_store %arg10[%c0_68, %c3, %c0_69, %c0_70], %130 {strides = array<i32>} : memref<1x32x16x128xf32, #tpu.memory_space<vmem>>, vector<1x1x16x128xf32>,
    %131 = vector.extract_strided_slice %112 {offsets = [48, 0], sizes = [16, 256], strides = [1, 1]} : vector<384x256xf32> to vector<16x256xf32>
    %132 = vector.extract_strided_slice %131 {offsets = [0, 0], sizes = [16, 128], strides = [1, 1]} : vector<16x256xf32> to vector<16x128xf32>
    %c0_71 = arith.constant 0 : index
    %c4 = arith.constant 4 : index
    %c0_72 = arith.constant 0 : index
    %c0_73 = arith.constant 0 : index
    %133 = vector.load %arg10[%c0_71, %c4, %c0_72, %c0_73] : memref<1x32x16x128xf32, #tpu.memory_space<vmem>>, vector<1x1x16x128xf32>
    %134 = vector.shape_cast %133 : vector<1x1x16x128xf32> to vector<16x128xf32>
    %135 = vector.shape_cast %132 : vector<16x128xf32> to vector<1x1x16x128xf32>
    tpu.vector_store %arg10[%c0_71, %c4, %c0_72, %c0_73], %135 {strides = array<i32>} : memref<1x32x16x128xf32, #tpu.memory_space<vmem>>, vector<1x1x16x128xf32>,
    %136 = vector.extract_strided_slice %131 {offsets = [0, 128], sizes = [16, 128], strides = [1, 1]} : vector<16x256xf32> to vector<16x128xf32>
    %c0_74 = arith.constant 0 : index
    %c5 = arith.constant 5 : index
    %c0_75 = arith.constant 0 : index
    %c0_76 = arith.constant 0 : index
    %137 = vector.load %arg10[%c0_74, %c5, %c0_75, %c0_76] : memref<1x32x16x128xf32, #tpu.memory_space<vmem>>, vector<1x1x16x128xf32>
    %138 = vector.shape_cast %137 : vector<1x1x16x128xf32> to vector<16x128xf32>
    %139 = vector.shape_cast %136 : vector<16x128xf32> to vector<1x1x16x128xf32>
    tpu.vector_store %arg10[%c0_74, %c5, %c0_75, %c0_76], %139 {strides = array<i32>} : memref<1x32x16x128xf32, #tpu.memory_space<vmem>>, vector<1x1x16x128xf32>,
    %140 = vector.extract_strided_slice %112 {offsets = [72, 0], sizes = [16, 256], strides = [1, 1]} : vector<384x256xf32> to vector<16x256xf32>
    %141 = vector.extract_strided_slice %140 {offsets = [0, 0], sizes = [16, 128], strides = [1, 1]} : vector<16x256xf32> to vector<16x128xf32>
    %c0_77 = arith.constant 0 : index
    %c6 = arith.constant 6 : index
    %c0_78 = arith.constant 0 : index
    %c0_79 = arith.constant 0 : index
    %142 = vector.load %arg10[%c0_77, %c6, %c0_78, %c0_79] : memref<1x32x16x128xf32, #tpu.memory_space<vmem>>, vector<1x1x16x128xf32>
    %143 = vector.shape_cast %142 : vector<1x1x16x128xf32> to vector<16x128xf32>
    %144 = vector.shape_cast %141 : vector<16x128xf32> to vector<1x1x16x128xf32>
    tpu.vector_store %arg10[%c0_77, %c6, %c0_78, %c0_79], %144 {strides = array<i32>} : memref<1x32x16x128xf32, #tpu.memory_space<vmem>>, vector<1x1x16x128xf32>,
    %145 = vector.extract_strided_slice %140 {offsets = [0, 128], sizes = [16, 128], strides = [1, 1]} : vector<16x256xf32> to vector<16x128xf32>
    %c0_80 = arith.constant 0 : index
    %c7 = arith.constant 7 : index
    %c0_81 = arith.constant 0 : index
    %c0_82 = arith.constant 0 : index
    %146 = vector.load %arg10[%c0_80, %c7, %c0_81, %c0_82] : memref<1x32x16x128xf32, #tpu.memory_space<vmem>>, vector<1x1x16x128xf32>
    %147 = vector.shape_cast %146 : vector<1x1x16x128xf32> to vector<16x128xf32>
    %148 = vector.shape_cast %145 : vector<16x128xf32> to vector<1x1x16x128xf32>
    tpu.vector_store %arg10[%c0_80, %c7, %c0_81, %c0_82], %148 {strides = array<i32>} : memref<1x32x16x128xf32, #tpu.memory_space<vmem>>, vector<1x1x16x128xf32>,
    %149 = vector.extract_strided_slice %112 {offsets = [96, 0], sizes = [16, 256], strides = [1, 1]} : vector<384x256xf32> to vector<16x256xf32>
    %150 = vector.extract_strided_slice %149 {offsets = [0, 0], sizes = [16, 128], strides = [1, 1]} : vector<16x256xf32> to vector<16x128xf32>
    %c0_83 = arith.constant 0 : index
    %c8_84 = arith.constant 8 : index
    %c0_85 = arith.constant 0 : index
    %c0_86 = arith.constant 0 : index
    %151 = vector.load %arg10[%c0_83, %c8_84, %c0_85, %c0_86] : memref<1x32x16x128xf32, #tpu.memory_space<vmem>>, vector<1x1x16x128xf32>
    %152 = vector.shape_cast %151 : vector<1x1x16x128xf32> to vector<16x128xf32>
    %153 = vector.shape_cast %150 : vector<16x128xf32> to vector<1x1x16x128xf32>
    tpu.vector_store %arg10[%c0_83, %c8_84, %c0_85, %c0_86], %153 {strides = array<i32>} : memref<1x32x16x128xf32, #tpu.memory_space<vmem>>, vector<1x1x16x128xf32>,
    %154 = vector.extract_strided_slice %149 {offsets = [0, 128], sizes = [16, 128], strides = [1, 1]} : vector<16x256xf32> to vector<16x128xf32>
    %c0_87 = arith.constant 0 : index
    %c9 = arith.constant 9 : index
    %c0_88 = arith.constant 0 : index
    %c0_89 = arith.constant 0 : index
    %155 = vector.load %arg10[%c0_87, %c9, %c0_88, %c0_89] : memref<1x32x16x128xf32, #tpu.memory_space<vmem>>, vector<1x1x16x128xf32>
    %156 = vector.shape_cast %155 : vector<1x1x16x128xf32> to vector<16x128xf32>
    %157 = vector.shape_cast %154 : vector<16x128xf32> to vector<1x1x16x128xf32>
    tpu.vector_store %arg10[%c0_87, %c9, %c0_88, %c0_89], %157 {strides = array<i32>} : memref<1x32x16x128xf32, #tpu.memory_space<vmem>>, vector<1x1x16x128xf32>,
    %158 = vector.extract_strided_slice %112 {offsets = [120, 0], sizes = [16, 256], strides = [1, 1]} : vector<384x256xf32> to vector<16x256xf32>
    %159 = vector.extract_strided_slice %158 {offsets = [0, 0], sizes = [16, 128], strides = [1, 1]} : vector<16x256xf32> to vector<16x128xf32>
    %c0_90 = arith.constant 0 : index
    %c10 = arith.constant 10 : index
    %c0_91 = arith.constant 0 : index
    %c0_92 = arith.constant 0 : index
    %160 = vector.load %arg10[%c0_90, %c10, %c0_91, %c0_92] : memref<1x32x16x128xf32, #tpu.memory_space<vmem>>, vector<1x1x16x128xf32>
    %161 = vector.shape_cast %160 : vector<1x1x16x128xf32> to vector<16x128xf32>
    %162 = vector.shape_cast %159 : vector<16x128xf32> to vector<1x1x16x128xf32>
    tpu.vector_store %arg10[%c0_90, %c10, %c0_91, %c0_92], %162 {strides = array<i32>} : memref<1x32x16x128xf32, #tpu.memory_space<vmem>>, vector<1x1x16x128xf32>,
    %163 = vector.extract_strided_slice %158 {offsets = [0, 128], sizes = [16, 128], strides = [1, 1]} : vector<16x256xf32> to vector<16x128xf32>
    %c0_93 = arith.constant 0 : index
    %c11 = arith.constant 11 : index
    %c0_94 = arith.constant 0 : index
    %c0_95 = arith.constant 0 : index
    %164 = vector.load %arg10[%c0_93, %c11, %c0_94, %c0_95] : memref<1x32x16x128xf32, #tpu.memory_space<vmem>>, vector<1x1x16x128xf32>
    %165 = vector.shape_cast %164 : vector<1x1x16x128xf32> to vector<16x128xf32>
    %166 = vector.shape_cast %163 : vector<16x128xf32> to vector<1x1x16x128xf32>
    tpu.vector_store %arg10[%c0_93, %c11, %c0_94, %c0_95], %166 {strides = array<i32>} : memref<1x32x16x128xf32, #tpu.memory_space<vmem>>, vector<1x1x16x128xf32>,
    %167 = vector.extract_strided_slice %112 {offsets = [144, 0], sizes = [16, 256], strides = [1, 1]} : vector<384x256xf32> to vector<16x256xf32>
    %168 = vector.extract_strided_slice %167 {offsets = [0, 0], sizes = [16, 128], strides = [1, 1]} : vector<16x256xf32> to vector<16x128xf32>
    %c0_96 = arith.constant 0 : index
    %c12 = arith.constant 12 : index
    %c0_97 = arith.constant 0 : index
    %c0_98 = arith.constant 0 : index
    %169 = vector.load %arg10[%c0_96, %c12, %c0_97, %c0_98] : memref<1x32x16x128xf32, #tpu.memory_space<vmem>>, vector<1x1x16x128xf32>
    %170 = vector.shape_cast %169 : vector<1x1x16x128xf32> to vector<16x128xf32>
    %171 = vector.shape_cast %168 : vector<16x128xf32> to vector<1x1x16x128xf32>
    tpu.vector_store %arg10[%c0_96, %c12, %c0_97, %c0_98], %171 {strides = array<i32>} : memref<1x32x16x128xf32, #tpu.memory_space<vmem>>, vector<1x1x16x128xf32>,
    %172 = vector.extract_strided_slice %167 {offsets = [0, 128], sizes = [16, 128], strides = [1, 1]} : vector<16x256xf32> to vector<16x128xf32>
    %c0_99 = arith.constant 0 : index
    %c13 = arith.constant 13 : index
    %c0_100 = arith.constant 0 : index
    %c0_101 = arith.constant 0 : index
    %173 = vector.load %arg10[%c0_99, %c13, %c0_100, %c0_101] : memref<1x32x16x128xf32, #tpu.memory_space<vmem>>, vector<1x1x16x128xf32>
    %174 = vector.shape_cast %173 : vector<1x1x16x128xf32> to vector<16x128xf32>
    %175 = vector.shape_cast %172 : vector<16x128xf32> to vector<1x1x16x128xf32>
    tpu.vector_store %arg10[%c0_99, %c13, %c0_100, %c0_101], %175 {strides = array<i32>} : memref<1x32x16x128xf32, #tpu.memory_space<vmem>>, vector<1x1x16x128xf32>,
    %176 = vector.extract_strided_slice %112 {offsets = [168, 0], sizes = [16, 256], strides = [1, 1]} : vector<384x256xf32> to vector<16x256xf32>
    %177 = vector.extract_strided_slice %176 {offsets = [0, 0], sizes = [16, 128], strides = [1, 1]} : vector<16x256xf32> to vector<16x128xf32>
    %c0_102 = arith.constant 0 : index
    %c14 = arith.constant 14 : index
    %c0_103 = arith.constant 0 : index
    %c0_104 = arith.constant 0 : index
    %178 = vector.load %arg10[%c0_102, %c14, %c0_103, %c0_104] : memref<1x32x16x128xf32, #tpu.memory_space<vmem>>, vector<1x1x16x128xf32>
    %179 = vector.shape_cast %178 : vector<1x1x16x128xf32> to vector<16x128xf32>
    %180 = vector.shape_cast %177 : vector<16x128xf32> to vector<1x1x16x128xf32>
    tpu.vector_store %arg10[%c0_102, %c14, %c0_103, %c0_104], %180 {strides = array<i32>} : memref<1x32x16x128xf32, #tpu.memory_space<vmem>>, vector<1x1x16x128xf32>,
    %181 = vector.extract_strided_slice %176 {offsets = [0, 128], sizes = [16, 128], strides = [1, 1]} : vector<16x256xf32> to vector<16x128xf32>
    %c0_105 = arith.constant 0 : index
    %c15 = arith.constant 15 : index
    %c0_106 = arith.constant 0 : index
    %c0_107 = arith.constant 0 : index
    %182 = vector.load %arg10[%c0_105, %c15, %c0_106, %c0_107] : memref<1x32x16x128xf32, #tpu.memory_space<vmem>>, vector<1x1x16x128xf32>
    %183 = vector.shape_cast %182 : vector<1x1x16x128xf32> to vector<16x128xf32>
    %184 = vector.shape_cast %181 : vector<16x128xf32> to vector<1x1x16x128xf32>
    tpu.vector_store %arg10[%c0_105, %c15, %c0_106, %c0_107], %184 {strides = array<i32>} : memref<1x32x16x128xf32, #tpu.memory_space<vmem>>, vector<1x1x16x128xf32>,
    %185 = vector.extract_strided_slice %112 {offsets = [192, 0], sizes = [16, 256], strides = [1, 1]} : vector<384x256xf32> to vector<16x256xf32>
    %186 = vector.extract_strided_slice %185 {offsets = [0, 0], sizes = [16, 128], strides = [1, 1]} : vector<16x256xf32> to vector<16x128xf32>
    %c0_108 = arith.constant 0 : index
    %c16 = arith.constant 16 : index
    %c0_109 = arith.constant 0 : index
    %c0_110 = arith.constant 0 : index
    %187 = vector.load %arg10[%c0_108, %c16, %c0_109, %c0_110] : memref<1x32x16x128xf32, #tpu.memory_space<vmem>>, vector<1x1x16x128xf32>
    %188 = vector.shape_cast %187 : vector<1x1x16x128xf32> to vector<16x128xf32>
    %189 = vector.shape_cast %186 : vector<16x128xf32> to vector<1x1x16x128xf32>
    tpu.vector_store %arg10[%c0_108, %c16, %c0_109, %c0_110], %189 {strides = array<i32>} : memref<1x32x16x128xf32, #tpu.memory_space<vmem>>, vector<1x1x16x128xf32>,
    %190 = vector.extract_strided_slice %185 {offsets = [0, 128], sizes = [16, 128], strides = [1, 1]} : vector<16x256xf32> to vector<16x128xf32>
    %c0_111 = arith.constant 0 : index
    %c17 = arith.constant 17 : index
    %c0_112 = arith.constant 0 : index
    %c0_113 = arith.constant 0 : index
    %191 = vector.load %arg10[%c0_111, %c17, %c0_112, %c0_113] : memref<1x32x16x128xf32, #tpu.memory_space<vmem>>, vector<1x1x16x128xf32>
    %192 = vector.shape_cast %191 : vector<1x1x16x128xf32> to vector<16x128xf32>
    %193 = vector.shape_cast %190 : vector<16x128xf32> to vector<1x1x16x128xf32>
    tpu.vector_store %arg10[%c0_111, %c17, %c0_112, %c0_113], %193 {strides = array<i32>} : memref<1x32x16x128xf32, #tpu.memory_space<vmem>>, vector<1x1x16x128xf32>,
    %194 = vector.extract_strided_slice %112 {offsets = [216, 0], sizes = [16, 256], strides = [1, 1]} : vector<384x256xf32> to vector<16x256xf32>
    %195 = vector.extract_strided_slice %194 {offsets = [0, 0], sizes = [16, 128], strides = [1, 1]} : vector<16x256xf32> to vector<16x128xf32>
    %c0_114 = arith.constant 0 : index
    %c18 = arith.constant 18 : index
    %c0_115 = arith.constant 0 : index
    %c0_116 = arith.constant 0 : index
    %196 = vector.load %arg10[%c0_114, %c18, %c0_115, %c0_116] : memref<1x32x16x128xf32, #tpu.memory_space<vmem>>, vector<1x1x16x128xf32>
    %197 = vector.shape_cast %196 : vector<1x1x16x128xf32> to vector<16x128xf32>
    %198 = vector.shape_cast %195 : vector<16x128xf32> to vector<1x1x16x128xf32>
    tpu.vector_store %arg10[%c0_114, %c18, %c0_115, %c0_116], %198 {strides = array<i32>} : memref<1x32x16x128xf32, #tpu.memory_space<vmem>>, vector<1x1x16x128xf32>,
    %199 = vector.extract_strided_slice %194 {offsets = [0, 128], sizes = [16, 128], strides = [1, 1]} : vector<16x256xf32> to vector<16x128xf32>
    %c0_117 = arith.constant 0 : index
    %c19 = arith.constant 19 : index
    %c0_118 = arith.constant 0 : index
    %c0_119 = arith.constant 0 : index
    %200 = vector.load %arg10[%c0_117, %c19, %c0_118, %c0_119] : memref<1x32x16x128xf32, #tpu.memory_space<vmem>>, vector<1x1x16x128xf32>
    %201 = vector.shape_cast %200 : vector<1x1x16x128xf32> to vector<16x128xf32>
    %202 = vector.shape_cast %199 : vector<16x128xf32> to vector<1x1x16x128xf32>
    tpu.vector_store %arg10[%c0_117, %c19, %c0_118, %c0_119], %202 {strides = array<i32>} : memref<1x32x16x128xf32, #tpu.memory_space<vmem>>, vector<1x1x16x128xf32>,
    %203 = vector.extract_strided_slice %112 {offsets = [240, 0], sizes = [16, 256], strides = [1, 1]} : vector<384x256xf32> to vector<16x256xf32>
    %204 = vector.extract_strided_slice %203 {offsets = [0, 0], sizes = [16, 128], strides = [1, 1]} : vector<16x256xf32> to vector<16x128xf32>
    %c0_120 = arith.constant 0 : index
    %c20 = arith.constant 20 : index
    %c0_121 = arith.constant 0 : index
    %c0_122 = arith.constant 0 : index
    %205 = vector.load %arg10[%c0_120, %c20, %c0_121, %c0_122] : memref<1x32x16x128xf32, #tpu.memory_space<vmem>>, vector<1x1x16x128xf32>
    %206 = vector.shape_cast %205 : vector<1x1x16x128xf32> to vector<16x128xf32>
    %207 = vector.shape_cast %204 : vector<16x128xf32> to vector<1x1x16x128xf32>
    tpu.vector_store %arg10[%c0_120, %c20, %c0_121, %c0_122], %207 {strides = array<i32>} : memref<1x32x16x128xf32, #tpu.memory_space<vmem>>, vector<1x1x16x128xf32>,
    %208 = vector.extract_strided_slice %203 {offsets = [0, 128], sizes = [16, 128], strides = [1, 1]} : vector<16x256xf32> to vector<16x128xf32>
    %c0_123 = arith.constant 0 : index
    %c21 = arith.constant 21 : index
    %c0_124 = arith.constant 0 : index
    %c0_125 = arith.constant 0 : index
    %209 = vector.load %arg10[%c0_123, %c21, %c0_124, %c0_125] : memref<1x32x16x128xf32, #tpu.memory_space<vmem>>, vector<1x1x16x128xf32>
    %210 = vector.shape_cast %209 : vector<1x1x16x128xf32> to vector<16x128xf32>
    %211 = vector.shape_cast %208 : vector<16x128xf32> to vector<1x1x16x128xf32>
    tpu.vector_store %arg10[%c0_123, %c21, %c0_124, %c0_125], %211 {strides = array<i32>} : memref<1x32x16x128xf32, #tpu.memory_space<vmem>>, vector<1x1x16x128xf32>,
    %212 = vector.extract_strided_slice %112 {offsets = [264, 0], sizes = [16, 256], strides = [1, 1]} : vector<384x256xf32> to vector<16x256xf32>
    %213 = vector.extract_strided_slice %212 {offsets = [0, 0], sizes = [16, 128], strides = [1, 1]} : vector<16x256xf32> to vector<16x128xf32>
    %c0_126 = arith.constant 0 : index
    %c22 = arith.constant 22 : index
    %c0_127 = arith.constant 0 : index
    %c0_128 = arith.constant 0 : index
    %214 = vector.load %arg10[%c0_126, %c22, %c0_127, %c0_128] : memref<1x32x16x128xf32, #tpu.memory_space<vmem>>, vector<1x1x16x128xf32>
    %215 = vector.shape_cast %214 : vector<1x1x16x128xf32> to vector<16x128xf32>
    %216 = vector.shape_cast %213 : vector<16x128xf32> to vector<1x1x16x128xf32>
    tpu.vector_store %arg10[%c0_126, %c22, %c0_127, %c0_128], %216 {strides = array<i32>} : memref<1x32x16x128xf32, #tpu.memory_space<vmem>>, vector<1x1x16x128xf32>,
    %217 = vector.extract_strided_slice %212 {offsets = [0, 128], sizes = [16, 128], strides = [1, 1]} : vector<16x256xf32> to vector<16x128xf32>
    %c0_129 = arith.constant 0 : index
    %c23 = arith.constant 23 : index
    %c0_130 = arith.constant 0 : index
    %c0_131 = arith.constant 0 : index
    %218 = vector.load %arg10[%c0_129, %c23, %c0_130, %c0_131] : memref<1x32x16x128xf32, #tpu.memory_space<vmem>>, vector<1x1x16x128xf32>
    %219 = vector.shape_cast %218 : vector<1x1x16x128xf32> to vector<16x128xf32>
    %220 = vector.shape_cast %217 : vector<16x128xf32> to vector<1x1x16x128xf32>
    tpu.vector_store %arg10[%c0_129, %c23, %c0_130, %c0_131], %220 {strides = array<i32>} : memref<1x32x16x128xf32, #tpu.memory_space<vmem>>, vector<1x1x16x128xf32>,
    %221 = vector.extract_strided_slice %112 {offsets = [288, 0], sizes = [16, 256], strides = [1, 1]} : vector<384x256xf32> to vector<16x256xf32>
    %222 = vector.extract_strided_slice %221 {offsets = [0, 0], sizes = [16, 128], strides = [1, 1]} : vector<16x256xf32> to vector<16x128xf32>
    %c0_132 = arith.constant 0 : index
    %c24 = arith.constant 24 : index
    %c0_133 = arith.constant 0 : index
    %c0_134 = arith.constant 0 : index
    %223 = vector.load %arg10[%c0_132, %c24, %c0_133, %c0_134] : memref<1x32x16x128xf32, #tpu.memory_space<vmem>>, vector<1x1x16x128xf32>
    %224 = vector.shape_cast %223 : vector<1x1x16x128xf32> to vector<16x128xf32>
    %225 = vector.shape_cast %222 : vector<16x128xf32> to vector<1x1x16x128xf32>
    tpu.vector_store %arg10[%c0_132, %c24, %c0_133, %c0_134], %225 {strides = array<i32>} : memref<1x32x16x128xf32, #tpu.memory_space<vmem>>, vector<1x1x16x128xf32>,
    %226 = vector.extract_strided_slice %221 {offsets = [0, 128], sizes = [16, 128], strides = [1, 1]} : vector<16x256xf32> to vector<16x128xf32>
    %c0_135 = arith.constant 0 : index
    %c25 = arith.constant 25 : index
    %c0_136 = arith.constant 0 : index
    %c0_137 = arith.constant 0 : index
    %227 = vector.load %arg10[%c0_135, %c25, %c0_136, %c0_137] : memref<1x32x16x128xf32, #tpu.memory_space<vmem>>, vector<1x1x16x128xf32>
    %228 = vector.shape_cast %227 : vector<1x1x16x128xf32> to vector<16x128xf32>
    %229 = vector.shape_cast %226 : vector<16x128xf32> to vector<1x1x16x128xf32>
    tpu.vector_store %arg10[%c0_135, %c25, %c0_136, %c0_137], %229 {strides = array<i32>} : memref<1x32x16x128xf32, #tpu.memory_space<vmem>>, vector<1x1x16x128xf32>,
    %230 = vector.extract_strided_slice %112 {offsets = [312, 0], sizes = [16, 256], strides = [1, 1]} : vector<384x256xf32> to vector<16x256xf32>
    %231 = vector.extract_strided_slice %230 {offsets = [0, 0], sizes = [16, 128], strides = [1, 1]} : vector<16x256xf32> to vector<16x128xf32>
    %c0_138 = arith.constant 0 : index
    %c26 = arith.constant 26 : index
    %c0_139 = arith.constant 0 : index
    %c0_140 = arith.constant 0 : index
    %232 = vector.load %arg10[%c0_138, %c26, %c0_139, %c0_140] : memref<1x32x16x128xf32, #tpu.memory_space<vmem>>, vector<1x1x16x128xf32>
    %233 = vector.shape_cast %232 : vector<1x1x16x128xf32> to vector<16x128xf32>
    %234 = vector.shape_cast %231 : vector<16x128xf32> to vector<1x1x16x128xf32>
    tpu.vector_store %arg10[%c0_138, %c26, %c0_139, %c0_140], %234 {strides = array<i32>} : memref<1x32x16x128xf32, #tpu.memory_space<vmem>>, vector<1x1x16x128xf32>,
    %235 = vector.extract_strided_slice %230 {offsets = [0, 128], sizes = [16, 128], strides = [1, 1]} : vector<16x256xf32> to vector<16x128xf32>
    %c0_141 = arith.constant 0 : index
    %c27 = arith.constant 27 : index
    %c0_142 = arith.constant 0 : index
    %c0_143 = arith.constant 0 : index
    %236 = vector.load %arg10[%c0_141, %c27, %c0_142, %c0_143] : memref<1x32x16x128xf32, #tpu.memory_space<vmem>>, vector<1x1x16x128xf32>
    %237 = vector.shape_cast %236 : vector<1x1x16x128xf32> to vector<16x128xf32>
    %238 = vector.shape_cast %235 : vector<16x128xf32> to vector<1x1x16x128xf32>
    tpu.vector_store %arg10[%c0_141, %c27, %c0_142, %c0_143], %238 {strides = array<i32>} : memref<1x32x16x128xf32, #tpu.memory_space<vmem>>, vector<1x1x16x128xf32>,
    %239 = vector.extract_strided_slice %112 {offsets = [336, 0], sizes = [16, 256], strides = [1, 1]} : vector<384x256xf32> to vector<16x256xf32>
    %240 = vector.extract_strided_slice %239 {offsets = [0, 0], sizes = [16, 128], strides = [1, 1]} : vector<16x256xf32> to vector<16x128xf32>
    %c0_144 = arith.constant 0 : index
    %c28 = arith.constant 28 : index
    %c0_145 = arith.constant 0 : index
    %c0_146 = arith.constant 0 : index
    %241 = vector.load %arg10[%c0_144, %c28, %c0_145, %c0_146] : memref<1x32x16x128xf32, #tpu.memory_space<vmem>>, vector<1x1x16x128xf32>
    %242 = vector.shape_cast %241 : vector<1x1x16x128xf32> to vector<16x128xf32>
    %243 = vector.shape_cast %240 : vector<16x128xf32> to vector<1x1x16x128xf32>
    tpu.vector_store %arg10[%c0_144, %c28, %c0_145, %c0_146], %243 {strides = array<i32>} : memref<1x32x16x128xf32, #tpu.memory_space<vmem>>, vector<1x1x16x128xf32>,
    %244 = vector.extract_strided_slice %239 {offsets = [0, 128], sizes = [16, 128], strides = [1, 1]} : vector<16x256xf32> to vector<16x128xf32>
    %c0_147 = arith.constant 0 : index
    %c29 = arith.constant 29 : index
    %c0_148 = arith.constant 0 : index
    %c0_149 = arith.constant 0 : index
    %245 = vector.load %arg10[%c0_147, %c29, %c0_148, %c0_149] : memref<1x32x16x128xf32, #tpu.memory_space<vmem>>, vector<1x1x16x128xf32>
    %246 = vector.shape_cast %245 : vector<1x1x16x128xf32> to vector<16x128xf32>
    %247 = vector.shape_cast %244 : vector<16x128xf32> to vector<1x1x16x128xf32>
    tpu.vector_store %arg10[%c0_147, %c29, %c0_148, %c0_149], %247 {strides = array<i32>} : memref<1x32x16x128xf32, #tpu.memory_space<vmem>>, vector<1x1x16x128xf32>,
    %248 = vector.extract_strided_slice %112 {offsets = [360, 0], sizes = [16, 256], strides = [1, 1]} : vector<384x256xf32> to vector<16x256xf32>
    %249 = vector.extract_strided_slice %248 {offsets = [0, 0], sizes = [16, 128], strides = [1, 1]} : vector<16x256xf32> to vector<16x128xf32>
    %c0_150 = arith.constant 0 : index
    %c30 = arith.constant 30 : index
    %c0_151 = arith.constant 0 : index
    %c0_152 = arith.constant 0 : index
    %250 = vector.load %arg10[%c0_150, %c30, %c0_151, %c0_152] : memref<1x32x16x128xf32, #tpu.memory_space<vmem>>, vector<1x1x16x128xf32>
    %251 = vector.shape_cast %250 : vector<1x1x16x128xf32> to vector<16x128xf32>
    %252 = vector.shape_cast %249 : vector<16x128xf32> to vector<1x1x16x128xf32>
    tpu.vector_store %arg10[%c0_150, %c30, %c0_151, %c0_152], %252 {strides = array<i32>} : memref<1x32x16x128xf32, #tpu.memory_space<vmem>>, vector<1x1x16x128xf32>,
    %253 = vector.extract_strided_slice %248 {offsets = [0, 128], sizes = [16, 128], strides = [1, 1]} : vector<16x256xf32> to vector<16x128xf32>
    %c0_153 = arith.constant 0 : index
    %c31_154 = arith.constant 31 : index
    %c0_155 = arith.constant 0 : index
    %c0_156 = arith.constant 0 : index
    %254 = vector.load %arg10[%c0_153, %c31_154, %c0_155, %c0_156] : memref<1x32x16x128xf32, #tpu.memory_space<vmem>>, vector<1x1x16x128xf32>
    %255 = vector.shape_cast %254 : vector<1x1x16x128xf32> to vector<16x128xf32>
    %256 = vector.shape_cast %253 : vector<16x128xf32> to vector<1x1x16x128xf32>
    tpu.vector_store %arg10[%c0_153, %c31_154, %c0_155, %c0_156], %256 {strides = array<i32>} : memref<1x32x16x128xf32, #tpu.memory_space<vmem>>, vector<1x1x16x128xf32>,
    return
  }
  func.func @transform_0(%arg0: i32) -> (i32, i32, i32) {
    %c0_i32 = arith.constant 0 : i32
    %c0_i32_0 = arith.constant 0 : i32
    %c0_i32_1 = arith.constant 0 : i32
    return %arg0, %c0_i32, %c0_i32_0 : i32, i32, i32
  }
  func.func @transform_1(%arg0: i32) -> (i32, i32) {
    %c0_i32 = arith.constant 0 : i32
    %c0_i32_0 = arith.constant 0 : i32
    %c0_i32_1 = arith.constant 0 : i32
    return %c0_i32, %c0_i32_0 : i32, i32
  }
  func.func @transform_2(%arg0: i32) -> (i32, i32) {
    %c0_i32 = arith.constant 0 : i32
    %c0_i32_0 = arith.constant 0 : i32
    %c0_i32_1 = arith.constant 0 : i32
    return %c0_i32, %c0_i32_0 : i32, i32
  }
  func.func @transform_3(%arg0: i32) -> (i32, i32) {
    %c0_i32 = arith.constant 0 : i32
    %c0_i32_0 = arith.constant 0 : i32
    %c0_i32_1 = arith.constant 0 : i32
    return %c0_i32, %c0_i32_0 : i32, i32
  }
  func.func @transform_4(%arg0: i32) -> (i32, i32, i32) {
    %c0_i32 = arith.constant 0 : i32
    %c0_i32_0 = arith.constant 0 : i32
    %c0_i32_1 = arith.constant 0 : i32
    %c0_i32_2 = arith.constant 0 : i32
    return %c0_i32, %c0_i32_0, %c0_i32_1 : i32, i32, i32
  }
  func.func @transform_5(%arg0: i32) -> (i32, i32) {
    %c0_i32 = arith.constant 0 : i32
    %c0_i32_0 = arith.constant 0 : i32
    %c0_i32_1 = arith.constant 0 : i32
    return %c0_i32, %c0_i32_0 : i32, i32
  }
  func.func @transform_6(%arg0: i32) -> (i32, i32) {
    %c0_i32 = arith.constant 0 : i32
    %c0_i32_0 = arith.constant 0 : i32
    %c0_i32_1 = arith.constant 0 : i32
    return %c0_i32, %c0_i32_0 : i32, i32
  }
  func.func @transform_7(%arg0: i32) -> (i32, i32) {
    %c0_i32 = arith.constant 0 : i32
    %c0_i32_0 = arith.constant 0 : i32
    %c0_i32_1 = arith.constant 0 : i32
    return %c0_i32, %c0_i32_0 : i32, i32
  }
  func.func @transform_8(%arg0: i32) -> (i32, i32) {
    %c0_i32 = arith.constant 0 : i32
    %c0_i32_0 = arith.constant 0 : i32
    %c0_i32_1 = arith.constant 0 : i32
    return %c0_i32, %c0_i32_0 : i32, i32
  }
  func.func @transform_9(%arg0: i32) -> (i32, i32, i32, i32) {
    %c0_i32 = arith.constant 0 : i32
    %c0_i32_0 = arith.constant 0 : i32
    %c0_i32_1 = arith.constant 0 : i32
    %c0_i32_2 = arith.constant 0 : i32
    return %arg0, %c0_i32, %c0_i32_0, %c0_i32_1 : i32, i32, i32, i32
  }
}

</mosaic_0001>

<llo_original>
// kernel: tile.9
$region0: #{tile.9}
  %s0 = inlined_call_operand.vmem [shape: f32[4,64], index: 0, kind: input, shape index: {}]
  %s1 = inlined_call_operand.vmem [shape: f32[1,256], index: 1, kind: output, shape index: {}]
  $region1: #{tile.9} parent=0
    #allocation0 [shape = 'u8[8192]{0}', space=vmem, size = 0x2000, scoped, tag = 'scoped mem for output reshape']
    #allocation1 [shape = 'u8[4096]{0}', space=vmem, size = 0x1000, scoped, tag = 'scoped mem for input reshape']
    %s3 = ssub.s32 16, 1
    %v4 = vld [vmem:[%s0] sm:%s3]
    %5 = vst [vmem:[#allocation1] sm:%s3] %v4
    %s6 = smov 3
    %v7 = vld [vmem:[#allocation1] ss:$2 sm:%s6]
    %vm8 = vcmask 523264
    %9 = vst.msk [vmem:[#allocation0] ss:$8 sm:$0x3] %vm8, %v7
    %s10 = scalar_lea.vmem [#allocation1], 1
    %s11 = smov 3
    %v12 = vld [vmem:[%s10] ss:$2 sm:%s11]
    %13 = vrot.lane.b32.xlu0 %v12, 64
    %v14 = vpop.permute.xlu0 %13
    %vm15 = vcmask 1048064
    %16 = vst.msk [vmem:[#allocation0] ss:$8 sm:$0x3] %vm15, %v14
    %s18 = ssub.s32 2, 1
    %v19 = vld [vmem:[#allocation0] sm:%s18]
    %s21 = ssub.s32 2, 1
    %22 = vst [vmem:[%s1] sm:%s21] %v19
    %s23 = scalar_lea.vmem [#allocation0], 8
    %v24 = vld [vmem:[%s23] sm:%s18]
    %s26 = ssub.s32 2, 1
    %s27 = scalar_lea.vmem %s1, 1
    %28 = vst [vmem:[%s27] sm:%s26] %v24

// kernel: tile.8
$region0: #{tile.8}
  #allocation2 [shape = 's32[1]{0}', space=sflag, size = 0x4, scoped, tag = 'scoped memory for tile.8']
  %s0 = inlined_call_operand.hbm [shape: f32[64], index: 0, kind: input, shape index: {}]
  %s1 = inlined_call_operand.vmem [shape: f32[4,64], index: 1, kind: output, shape index: {}]
  $region1: #{tile.8} parent=0
    #allocation0 [shape = 'u8[512]{0}', space=vmem, size = 0x400, scoped, tag = 'operand span for operand 0']
    #allocation1 [shape = 's32[1]{0}', space=sflag, size = 0x4, scoped, tag = 'scoped memory for tile.8']
    %2 = vsyncpa [#allocation1], 0
    // Predicated region
    $region2: #{tile.8} parent=1 // pred_check
      _
    $region3: #{tile.8} parent=1 // pred_check_branch
      %4 = sbr.rel (0) target = $region5
    $region4: #{tile.8} parent=1 // pred_region
      %6 = vsyncadd [#allocation1], 0
      %s8 = sshll.u32 %s0, 4
      %s9 = int_to_ptr.hbm [resolvable:$true] %s8
      %s10 = sshll.u32 [#allocation0], 4
      %s11 = int_to_ptr.vmem [resolvable:$true] %s10
      %13 = dma.hbm_to_vmem [thread:$0]  %s9, 16, %s11, [#allocation1]
    $region5: #{tile.8} parent=1 // pred_fallthru
      _
    // Predicated region
    $region6: #{tile.8} parent=1 // pred_check
      _
    $region7: #{tile.8} parent=1 // pred_check_branch
      %15 = sbr.rel (0) target = $region9
    $region8: #{tile.8} parent=1 // pred_region
      %17 = dma.done [#allocation1], 16
    $region9: #{tile.8} parent=1 // pred_fallthru
      _
    %v18 = vld [vmem:[#allocation0] ss:$0 sm:$0xff]
    %19 = vst [vmem:[%s1] sm:$0xf] %v18
    %20 = vsyncpa [#allocation1], 1

// kernel: upsampling_unit_forward.1
$region0: #{upsampling_unit_forward.1}
  #allocation0 [shape = 'u32[]', space=smem, size = 0x4, offset = 0x4, fixed_abs, tag = 'smem constant byte address 0x4 - core index']
  #allocation1 [shape = 'u32[72,128]{1,0:T(1,128)}', space=vmem, size = 0x9000, scoped, tag = 'internal scratch']
  #allocation2 [shape = 'bf16[496,384]{1,0:T(8,128)(2,1)}', space=vmem, size = 0x5d000, scoped, tag = 'scratch operand']
  %s0 = inlined_call_operand.vmem [shape: bf16[2,432,36], index: 0, kind: input, shape index: {}]
  %s1 = inlined_call_operand.vmem [shape: bf16[36,128], index: 1, kind: input, shape index: {}]
  %s2 = inlined_call_operand.vmem [shape: f32[1,128], index: 2, kind: input, shape index: {}]
  %s3 = inlined_call_operand.vmem [shape: f32[1,128], index: 3, kind: input, shape index: {}]
  %s4 = inlined_call_operand.vmem [shape: bf16[3,384,128], index: 4, kind: input, shape index: {}]
  %s5 = inlined_call_operand.vmem [shape: f32[1,128], index: 5, kind: input, shape index: {}]
  %s6 = inlined_call_operand.vmem [shape: f32[1,128], index: 6, kind: input, shape index: {}]
  %s7 = inlined_call_operand.vmem [shape: bf16[128,256], index: 7, kind: input, shape index: {}]
  %s8 = inlined_call_operand.vmem [shape: f32[1,256], index: 8, kind: input, shape index: {}]
  %s9 = inlined_call_operand.vmem [shape: f32[2,32,16,128], index: 9, kind: output, shape index: {}]
  %s10 = sld [smem:[#allocation0]]
  $region69: #{upsampling_unit_forward.1} parent=0
    _
  %s12 = ssub.s32 1, %s10
  %s13 = scalar_select 0, %s12, %s10
  loop: start=0, step=1, limit=4
  $region2: #{upsampling_unit_forward.1} parent=0 // loop_pre_header
    _
  $region3: #{upsampling_unit_forward.1} parent=0 // loop_header
    %s15 = sphi 0, %s19
    %p16 = scmp.ge.s32.totalorder %s15, 4
    %s25 = sphi 0, %s27
    %s28 = sphi 0, %s25
    %s29 = sphi 0, %s28
    %s45 = sphi 0, %s29
    %s49 = sphi 0, %s49
    %s51 = sphi 0, %s49
    %s52 = sphi 0, %s51
    %s66 = sphi 0, %s52
    %s70 = sphi 0, %s70
    %s72 = sphi 0, %s70
    %s73 = sphi 0, %s72
    %s87 = sphi 0, %s73
    %s91 = sphi 0, %s91
    %s93 = sphi 0, %s91
    %s94 = sphi 0, %s93
    %s108 = sphi 0, %s94
    %s112 = sphi 0, %s112
    %s114 = sphi 0, %s112
    %s115 = sphi 0, %s114
    %s129 = sphi 0, %s115
    %s133 = sphi 0, %s133
    %s135 = sphi 0, %s133
    %s136 = sphi 0, %s135
    %s150 = sphi 0, %s136
    %s154 = sphi 0, %s154
    %s156 = sphi 0, %s154
    %s157 = sphi 0, %s156
    %s171 = sphi 0, %s157
    %s175 = sphi 0, %s175
    %s177 = sphi 0, %s175
    %s178 = sphi 0, %s177
    %s192 = sphi 0, %s178
    %s196 = sphi 0, %s196
    %s198 = sphi 0, %s196
    %s199 = sphi 0, %s198
    %s213 = sphi 0, %s199
    %s219 = sphi 0, %s221
    %s222 = sphi 0, %s219
    %s223 = sphi 0, %s222
    %s239 = sphi 0, %s223
  $region4: #{upsampling_unit_forward.1} parent=0 // loop_header_branch
    %18 = sbr.rel (%p16) target = $region8
  $region5: #{upsampling_unit_forward.1} parent=0 // loop_body
    %s20 = ssub.s32 %s15, 1
    %s21 = ssub.s32 %s15, 2
    %s22 = sadd.s32 %s15, 1
    %s23 = ssub.s32 %s15, %s22
    %p24 = scmp.eq.s32.totalorder %s23, 0
    %s26 = sadd.s32 %s25, 1
    %s27 = scalar_select %p24, %s25, %s26
    %p30 = pneg %p24
    %p31 = scmp.eq.s32.totalorder %s15, 1
    %p32 = por %p30, %p31
    %p33 = scmp.ne.s32.totalorder %s25, %s28
    %p34 = scmp.eq.s32.totalorder %s15, 0
    %p35 = por %p33, %p34
    %p36 = scmp.ne.s32.totalorder %s25, %s28
    %p37 = scmp.eq.s32.totalorder %s20, 1
    %p38 = por %p36, %p37
    %p39 = scmp.ne.s32.totalorder %s28, %s29
    %p40 = scmp.eq.s32.totalorder %s20, 0
    %p41 = por %p39, %p40
    %p42 = scmp.ne.s32.totalorder %s28, %s29
    %p43 = scmp.eq.s32.totalorder %s21, 1
    %p44 = por %p42, %p43
    %p46 = scmp.ne.s32.totalorder %s29, %s45
    %p47 = scmp.eq.s32.totalorder %s21, 0
    %p48 = por %p46, %p47
    %s50 = sadd.s32 %s49, 1
    %p53 = scmp.eq.s32.totalorder %s15, 1
    %p54 = scmp.ne.s32.totalorder %s49, %s51
    %p55 = scmp.eq.s32.totalorder %s15, 0
    %p56 = por %p54, %p55
    %p57 = scmp.ne.s32.totalorder %s49, %s51
    %p58 = scmp.eq.s32.totalorder %s20, 1
    %p59 = por %p57, %p58
    %p60 = scmp.ne.s32.totalorder %s51, %s52
    %p61 = scmp.eq.s32.totalorder %s20, 0
    %p62 = por %p60, %p61
    %p63 = scmp.ne.s32.totalorder %s51, %s52
    %p64 = scmp.eq.s32.totalorder %s21, 1
    %p65 = por %p63, %p64
    %p67 = scmp.ne.s32.totalorder %s52, %s66
    %p68 = scmp.eq.s32.totalorder %s21, 0
    %p69 = por %p67, %p68
    %s71 = sadd.s32 %s70, 1
    %p74 = scmp.eq.s32.totalorder %s15, 1
    %p75 = scmp.ne.s32.totalorder %s70, %s72
    %p76 = scmp.eq.s32.totalorder %s15, 0
    %p77 = por %p75, %p76
    %p78 = scmp.ne.s32.totalorder %s70, %s72
    %p79 = scmp.eq.s32.totalorder %s20, 1
    %p80 = por %p78, %p79
    %p81 = scmp.ne.s32.totalorder %s72, %s73
    %p82 = scmp.eq.s32.totalorder %s20, 0
    %p83 = por %p81, %p82
    %p84 = scmp.ne.s32.totalorder %s72, %s73
    %p85 = scmp.eq.s32.totalorder %s21, 1
    %p86 = por %p84, %p85
    %p88 = scmp.ne.s32.totalorder %s73, %s87
    %p89 = scmp.eq.s32.totalorder %s21, 0
    %p90 = por %p88, %p89
    %s92 = sadd.s32 %s91, 1
    %p95 = scmp.eq.s32.totalorder %s15, 1
    %p96 = scmp.ne.s32.totalorder %s91, %s93
    %p97 = scmp.eq.s32.totalorder %s15, 0
    %p98 = por %p96, %p97
    %p99 = scmp.ne.s32.totalorder %s91, %s93
    %p100 = scmp.eq.s32.totalorder %s20, 1
    %p101 = por %p99, %p100
    %p102 = scmp.ne.s32.totalorder %s93, %s94
    %p103 = scmp.eq.s32.totalorder %s20, 0
    %p104 = por %p102, %p103
    %p105 = scmp.ne.s32.totalorder %s93, %s94
    %p106 = scmp.eq.s32.totalorder %s21, 1
    %p107 = por %p105, %p106
    %p109 = scmp.ne.s32.totalorder %s94, %s108
    %p110 = scmp.eq.s32.totalorder %s21, 0
    %p111 = por %p109, %p110
    %s113 = sadd.s32 %s112, 1
    %p116 = scmp.eq.s32.totalorder %s15, 1
    %p117 = scmp.ne.s32.totalorder %s112, %s114
    %p118 = scmp.eq.s32.totalorder %s15, 0
    %p119 = por %p117, %p118
    %p120 = scmp.ne.s32.totalorder %s112, %s114
    %p121 = scmp.eq.s32.totalorder %s20, 1
    %p122 = por %p120, %p121
    %p123 = scmp.ne.s32.totalorder %s114, %s115
    %p124 = scmp.eq.s32.totalorder %s20, 0
    %p125 = por %p123, %p124
    %p126 = scmp.ne.s32.totalorder %s114, %s115
    %p127 = scmp.eq.s32.totalorder %s21, 1
    %p128 = por %p126, %p127
    %p130 = scmp.ne.s32.totalorder %s115, %s129
    %p131 = scmp.eq.s32.totalorder %s21, 0
    %p132 = por %p130, %p131
    %s134 = sadd.s32 %s133, 1
    %p137 = scmp.eq.s32.totalorder %s15, 1
    %p138 = scmp.ne.s32.totalorder %s133, %s135
    %p139 = scmp.eq.s32.totalorder %s15, 0
    %p140 = por %p138, %p139
    %p141 = scmp.ne.s32.totalorder %s133, %s135
    %p142 = scmp.eq.s32.totalorder %s20, 1
    %p143 = por %p141, %p142
    %p144 = scmp.ne.s32.totalorder %s135, %s136
    %p145 = scmp.eq.s32.totalorder %s20, 0
    %p146 = por %p144, %p145
    %p147 = scmp.ne.s32.totalorder %s135, %s136
    %p148 = scmp.eq.s32.totalorder %s21, 1
    %p149 = por %p147, %p148
    %p151 = scmp.ne.s32.totalorder %s136, %s150
    %p152 = scmp.eq.s32.totalorder %s21, 0
    %p153 = por %p151, %p152
    %s155 = sadd.s32 %s154, 1
    %p158 = scmp.eq.s32.totalorder %s15, 1
    %p159 = scmp.ne.s32.totalorder %s154, %s156
    %p160 = scmp.eq.s32.totalorder %s15, 0
    %p161 = por %p159, %p160
    %p162 = scmp.ne.s32.totalorder %s154, %s156
    %p163 = scmp.eq.s32.totalorder %s20, 1
    %p164 = por %p162, %p163
    %p165 = scmp.ne.s32.totalorder %s156, %s157
    %p166 = scmp.eq.s32.totalorder %s20, 0
    %p167 = por %p165, %p166
    %p168 = scmp.ne.s32.totalorder %s156, %s157
    %p169 = scmp.eq.s32.totalorder %s21, 1
    %p170 = por %p168, %p169
    %p172 = scmp.ne.s32.totalorder %s157, %s171
    %p173 = scmp.eq.s32.totalorder %s21, 0
    %p174 = por %p172, %p173
    %s176 = sadd.s32 %s175, 1
    %p179 = scmp.eq.s32.totalorder %s15, 1
    %p180 = scmp.ne.s32.totalorder %s175, %s177
    %p181 = scmp.eq.s32.totalorder %s15, 0
    %p182 = por %p180, %p181
    %p183 = scmp.ne.s32.totalorder %s175, %s177
    %p184 = scmp.eq.s32.totalorder %s20, 1
    %p185 = por %p183, %p184
    %p186 = scmp.ne.s32.totalorder %s177, %s178
    %p187 = scmp.eq.s32.totalorder %s20, 0
    %p188 = por %p186, %p187
    %p189 = scmp.ne.s32.totalorder %s177, %s178
    %p190 = scmp.eq.s32.totalorder %s21, 1
    %p191 = por %p189, %p190
    %p193 = scmp.ne.s32.totalorder %s178, %s192
    %p194 = scmp.eq.s32.totalorder %s21, 0
    %p195 = por %p193, %p194
    %s197 = sadd.s32 %s196, 1
    %p200 = scmp.eq.s32.totalorder %s15, 1
    %p201 = scmp.ne.s32.totalorder %s196, %s198
    %p202 = scmp.eq.s32.totalorder %s15, 0
    %p203 = por %p201, %p202
    %p204 = scmp.ne.s32.totalorder %s196, %s198
    %p205 = scmp.eq.s32.totalorder %s20, 1
    %p206 = por %p204, %p205
    %p207 = scmp.ne.s32.totalorder %s198, %s199
    %p208 = scmp.eq.s32.totalorder %s20, 0
    %p209 = por %p207, %p208
    %p210 = scmp.ne.s32.totalorder %s198, %s199
    %p211 = scmp.eq.s32.totalorder %s21, 1
    %p212 = por %p210, %p211
    %p214 = scmp.ne.s32.totalorder %s199, %s213
    %p215 = scmp.eq.s32.totalorder %s21, 0
    %p216 = por %p214, %p215
    %s217 = ssub.s32 %s15, %s22
    %p218 = scmp.eq.s32.totalorder %s217, 0
    %s220 = sadd.s32 %s219, 1
    %s221 = scalar_select %p218, %s219, %s220
    %p224 = pneg %p218
    %p225 = scmp.eq.s32.totalorder %s15, 1
    %p226 = por %p224, %p225
    %p227 = scmp.ne.s32.totalorder %s219, %s222
    %p228 = scmp.eq.s32.totalorder %s15, 0
    %p229 = por %p227, %p228
    %p230 = scmp.ne.s32.totalorder %s219, %s222
    %p231 = scmp.eq.s32.totalorder %s20, 1
    %p232 = por %p230, %p231
    %p233 = scmp.ne.s32.totalorder %s222, %s223
    %p234 = scmp.eq.s32.totalorder %s20, 0
    %p235 = por %p233, %p234
    %p236 = scmp.ne.s32.totalorder %s222, %s223
    %p237 = scmp.eq.s32.totalorder %s21, 1
    %p238 = por %p236, %p237
    %p240 = scmp.ne.s32.totalorder %s223, %s239
    %p241 = scmp.eq.s32.totalorder %s21, 0
    %p242 = por %p240, %p241
    %p243 = scmp.le.s32.totalorder 1, %s15
    %p244 = scmp.lt.s32.totalorder %s15, 3
    %p245 = pnand %p243, %p244
    %p246 = pneg %p245
    // Predicated region
    $region9: #{upsampling_unit_forward.1} parent=5 // pred_check
      _
    $region10: #{upsampling_unit_forward.1} parent=5 // pred_check_branch
      %248 = sbr.rel (%p245) target = $region12
    $region11: #{upsampling_unit_forward.1} parent=5 // pred_region
      %s249 = ssub.s32 %s15, 1
      // Predicated region
      $region13: #{upsampling_unit_forward.1} parent=11 // pred_check
        %p250 = pneg %p62
      $region14: #{upsampling_unit_forward.1} parent=11 // pred_check_branch
        %252 = sbr.rel (%p250) target = $region16
      $region15: #{upsampling_unit_forward.1} parent=11 // pred_region
        _
      $region16: #{upsampling_unit_forward.1} parent=11 // pred_fallthru
        _
      // Predicated region
      $region17: #{upsampling_unit_forward.1} parent=11 // pred_check
        %p253 = pneg %p83
      $region18: #{upsampling_unit_forward.1} parent=11 // pred_check_branch
        %255 = sbr.rel (%p253) target = $region20
      $region19: #{upsampling_unit_forward.1} parent=11 // pred_region
        _
      $region20: #{upsampling_unit_forward.1} parent=11 // pred_fallthru
        _
      // Predicated region
      $region21: #{upsampling_unit_forward.1} parent=11 // pred_check
        %p256 = pneg %p104
      $region22: #{upsampling_unit_forward.1} parent=11 // pred_check_branch
        %258 = sbr.rel (%p256) target = $region24
      $region23: #{upsampling_unit_forward.1} parent=11 // pred_region
        _
      $region24: #{upsampling_unit_forward.1} parent=11 // pred_fallthru
        _
      // Predicated region
      $region25: #{upsampling_unit_forward.1} parent=11 // pred_check
        %p259 = pneg %p125
      $region26: #{upsampling_unit_forward.1} parent=11 // pred_check_branch
        %261 = sbr.rel (%p259) target = $region28
      $region27: #{upsampling_unit_forward.1} parent=11 // pred_region
        _
      $region28: #{upsampling_unit_forward.1} parent=11 // pred_fallthru
        _
      // Predicated region
      $region29: #{upsampling_unit_forward.1} parent=11 // pred_check
        %p262 = pneg %p146
      $region30: #{upsampling_unit_forward.1} parent=11 // pred_check_branch
        %264 = sbr.rel (%p262) target = $region32
      $region31: #{upsampling_unit_forward.1} parent=11 // pred_region
        _
      $region32: #{upsampling_unit_forward.1} parent=11 // pred_fallthru
        _
      // Predicated region
      $region33: #{upsampling_unit_forward.1} parent=11 // pred_check
        %p265 = pneg %p167
      $region34: #{upsampling_unit_forward.1} parent=11 // pred_check_branch
        %267 = sbr.rel (%p265) target = $region36
      $region35: #{upsampling_unit_forward.1} parent=11 // pred_region
        _
      $region36: #{upsampling_unit_forward.1} parent=11 // pred_fallthru
        _
      // Predicated region
      $region37: #{upsampling_unit_forward.1} parent=11 // pred_check
        %p268 = pneg %p188
      $region38: #{upsampling_unit_forward.1} parent=11 // pred_check_branch
        %270 = sbr.rel (%p268) target = $region40
      $region39: #{upsampling_unit_forward.1} parent=11 // pred_region
        _
      $region40: #{upsampling_unit_forward.1} parent=11 // pred_fallthru
        _
      // Predicated region
      $region41: #{upsampling_unit_forward.1} parent=11 // pred_check
        %p271 = pneg %p209
      $region42: #{upsampling_unit_forward.1} parent=11 // pred_check_branch
        %273 = sbr.rel (%p271) target = $region44
      $region43: #{upsampling_unit_forward.1} parent=11 // pred_region
        _
      $region44: #{upsampling_unit_forward.1} parent=11 // pred_fallthru
        _
    $region12: #{upsampling_unit_forward.1} parent=5 // pred_fallthru
      _
    %p274 = scmp.lt.s32.totalorder %s15, 2
    // Predicated region
    $region45: #{upsampling_unit_forward.1} parent=5 // pred_check
      %p275 = pneg %p274
    $region46: #{upsampling_unit_forward.1} parent=5 // pred_check_branch
      %277 = sbr.rel (%p275) target = $region48
    $region47: #{upsampling_unit_forward.1} parent=5 // pred_region
      // Predicated region
      $region49: #{upsampling_unit_forward.1} parent=47 // pred_check
        %p278 = pneg %p35
      $region50: #{upsampling_unit_forward.1} parent=47 // pred_check_branch
        %280 = sbr.rel (%p278) target = $region52
      $region51: #{upsampling_unit_forward.1} parent=47 // pred_region
        %p281 = scmp.lt.s32.totalorder %s15, 1
        %s282 = scalar_select %p281, %s15, 1
        %s283 = smul.addr %s282, 54
        %s284 = smul.addr %s283, 4
        %s285 = scalar_lea.vmem %s0, %s284
      $region52: #{upsampling_unit_forward.1} parent=47 // pred_fallthru
        _
    $region48: #{upsampling_unit_forward.1} parent=5 // pred_fallthru
      _
    %p286 = scmp.le.s32.totalorder 1, %s15
    %p287 = scmp.lt.s32.totalorder %s15, 3
    %p288 = pnand %p286, %p287
    %p289 = pneg %p288
    // Predicated region
    $region53: #{upsampling_unit_forward.1} parent=5 // pred_check
      _
    $region54: #{upsampling_unit_forward.1} parent=5 // pred_check_branch
      %291 = sbr.rel (%p288) target = $region56
    $region55: #{upsampling_unit_forward.1} parent=5 // pred_region
      %s292 = ssub.s32 %s15, 1
      %p293 = scmp.lt.s32.totalorder %s20, 1
      %s294 = scalar_select %p293, %s20, 1
      %s295 = smul.addr %s294, 54
      %s296 = smul.addr %s295, 4
      %s297 = scalar_lea.vmem %s0, %s296
      %p298 = pneg %p41
      %p299 = pneg %p38
      %p300 = pneg %p62
      %p301 = pneg %p59
      %p302 = pneg %p83
      %p303 = pneg %p80
      %p304 = pneg %p104
      %p305 = pneg %p101
      %p306 = pneg %p125
      %p307 = pneg %p122
      %p308 = pneg %p146
      %p309 = pneg %p143
      %p310 = pneg %p167
      %p311 = pneg %p164
      %p312 = pneg %p188
      %p313 = pneg %p185
      %p314 = pneg %p209
      %p315 = pneg %p206
      %p316 = pneg %p235
      %p317 = pneg %p232
      %p318 = scmp.lt.s32.totalorder %s20, 1
      %s319 = scalar_select %p318, %s20, 1
      %s320 = smul.addr %s319, 64
      %s321 = smul.addr %s320, 8
      %s322 = scalar_lea.vmem %s9, %s321
      %p323 = scmp.lt.s32.totalorder %s20, 1
      %s324 = scalar_select %p323, %s20, 1
      %s325 = smul.addr %s324, 54
      %s326 = smul.addr %s325, 4
      %s327 = scalar_lea.vmem %s0, %s326
      %p328 = scmp.lt.s32.totalorder %s20, 1
      %s329 = scalar_select %p328, %s20, 1
      %s330 = smul.addr %s329, 64
      %s331 = smul.addr %s330, 8
      %s332 = scalar_lea.vmem %s9, %s331
      %v334 = vlaneseq
      %v335 = vshrl.u32 %v334, 7
      %v336 = vadd.s32 %v335, 8
      %v337 = vadd.s32 %v335, 16
      %v338 = vadd.s32 %v335, 24
      %v339 = vadd.s32 %v335, 32
      %v340 = vadd.s32 %v335, 40
      %v341 = vadd.s32 %v335, 48
      %v342 = vadd.s32 %v335, 56
      %v343 = vadd.s32 %v335, 64
      %v344 = vadd.s32 %v335, 72
      %v345 = vadd.s32 %v335, 80
      %v346 = vadd.s32 %v335, 88
      %v347 = vadd.s32 %v335, 96
      %v348 = vadd.s32 %v335, 104
      %v349 = vadd.s32 %v335, 112
      %v350 = vadd.s32 %v335, 120
      %v351 = vadd.s32 %v335, 128
      %v352 = vadd.s32 %v335, 136
      %v353 = vadd.s32 %v335, 144
      %v354 = vadd.s32 %v335, 152
      %v355 = vadd.s32 %v335, 160
      %v356 = vadd.s32 %v335, 168
      %v357 = vadd.s32 %v335, 176
      %v358 = vadd.s32 %v335, 184
      %v359 = vadd.s32 %v335, 192
      %v360 = vadd.s32 %v335, 200
      %v361 = vadd.s32 %v335, 208
      %v362 = vadd.s32 %v335, 216
      %v363 = vadd.s32 %v335, 224
      %v364 = vadd.s32 %v335, 232
      %v365 = vadd.s32 %v335, 240
      %v366 = vadd.s32 %v335, 248
      %v367 = vadd.s32 %v335, 256
      %v368 = vadd.s32 %v335, 264
      %v369 = vadd.s32 %v335, 272
      %v370 = vadd.s32 %v335, 280
      %v371 = vadd.s32 %v335, 288
      %v372 = vadd.s32 %v335, 296
      %v373 = vadd.s32 %v335, 304
      %v374 = vadd.s32 %v335, 312
      %v375 = vadd.s32 %v335, 320
      %v376 = vadd.s32 %v335, 328
      %v377 = vadd.s32 %v335, 336
      %v378 = vadd.s32 %v335, 344
      %v379 = vadd.s32 %v335, 352
      %v380 = vadd.s32 %v335, 360
      %v381 = vadd.s32 %v335, 368
      %v382 = vadd.s32 %v335, 376
      %v383 = vadd.s32 %v335, 384
      %v384 = vadd.s32 %v335, 392
      %v385 = vadd.s32 %v335, 400
      %v386 = vadd.s32 %v335, 408
      %v387 = vadd.s32 %v335, 416
      %v388 = vadd.s32 %v335, 424
      %v389 = vcvt.s32.f32 %v335
      %v390 = vcvt.s32.f32 %v336
      %v391 = vcvt.s32.f32 %v337
      %v392 = vcvt.s32.f32 %v338
      %v393 = vcvt.s32.f32 %v339
      %v394 = vcvt.s32.f32 %v340
      %v395 = vcvt.s32.f32 %v341
      %v396 = vcvt.s32.f32 %v342
      %v397 = vcvt.s32.f32 %v343
      %v398 = vcvt.s32.f32 %v344
      %v399 = vcvt.s32.f32 %v345
      %v400 = vcvt.s32.f32 %v346
      %v401 = vcvt.s32.f32 %v347
      %v402 = vcvt.s32.f32 %v348
      %v403 = vcvt.s32.f32 %v349
      %v404 = vcvt.s32.f32 %v350
      %v405 = vcvt.s32.f32 %v351
      %v406 = vcvt.s32.f32 %v352
      %v407 = vcvt.s32.f32 %v353
      %v408 = vcvt.s32.f32 %v354
      %v409 = vcvt.s32.f32 %v355
      %v410 = vcvt.s32.f32 %v356
      %v411 = vcvt.s32.f32 %v357
      %v412 = vcvt.s32.f32 %v358
      %v413 = vcvt.s32.f32 %v359
      %v414 = vcvt.s32.f32 %v360
      %v415 = vcvt.s32.f32 %v361
      %v416 = vcvt.s32.f32 %v362
      %v417 = vcvt.s32.f32 %v363
      %v418 = vcvt.s32.f32 %v364
      %v419 = vcvt.s32.f32 %v365
      %v420 = vcvt.s32.f32 %v366
      %v421 = vcvt.s32.f32 %v367
      %v422 = vcvt.s32.f32 %v368
      %v423 = vcvt.s32.f32 %v369
      %v424 = vcvt.s32.f32 %v370
      %v425 = vcvt.s32.f32 %v371
      %v426 = vcvt.s32.f32 %v372
      %v427 = vcvt.s32.f32 %v373
      %v428 = vcvt.s32.f32 %v374
      %v429 = vcvt.s32.f32 %v375
      %v430 = vcvt.s32.f32 %v376
      %v431 = vcvt.s32.f32 %v377
      %v432 = vcvt.s32.f32 %v378
      %v433 = vcvt.s32.f32 %v379
      %v434 = vcvt.s32.f32 %v380
      %v435 = vcvt.s32.f32 %v381
      %v436 = vcvt.s32.f32 %v382
      %v437 = vcvt.s32.f32 %v383
      %v438 = vcvt.s32.f32 %v384
      %v439 = vcvt.s32.f32 %v385
      %v440 = vcvt.s32.f32 %v386
      %v441 = vcvt.s32.f32 %v387
      %v442 = vcvt.s32.f32 %v388
      %v443 = vmul.f32 %v389, 0.041666668
      %v444 = vmul.f32 %v390, 0.041666668
      %v445 = vmul.f32 %v391, 0.041666668
      %v446 = vmul.f32 %v392, 0.041666668
      %v447 = vmul.f32 %v393, 0.041666668
      %v448 = vmul.f32 %v394, 0.041666668
      %v449 = vmul.f32 %v395, 0.041666668
      %v450 = vmul.f32 %v396, 0.041666668
      %v451 = vmul.f32 %v397, 0.041666668
      %v452 = vmul.f32 %v398, 0.041666668
      %v453 = vmul.f32 %v399, 0.041666668
      %v454 = vmul.f32 %v400, 0.041666668
      %v455 = vmul.f32 %v401, 0.041666668
      %v456 = vmul.f32 %v402, 0.041666668
      %v457 = vmul.f32 %v403, 0.041666668
      %v458 = vmul.f32 %v404, 0.041666668
      %v459 = vmul.f32 %v405, 0.041666668
      %v460 = vmul.f32 %v406, 0.041666668
      %v461 = vmul.f32 %v407, 0.041666668
      %v462 = vmul.f32 %v408, 0.041666668
      %v463 = vmul.f32 %v409, 0.041666668
      %v464 = vmul.f32 %v410, 0.041666668
      %v465 = vmul.f32 %v411, 0.041666668
      %v466 = vmul.f32 %v412, 0.041666668
      %v467 = vmul.f32 %v413, 0.041666668
      %v468 = vmul.f32 %v414, 0.041666668
      %v469 = vmul.f32 %v415, 0.041666668
      %v470 = vmul.f32 %v416, 0.041666668
      %v471 = vmul.f32 %v417, 0.041666668
      %v472 = vmul.f32 %v418, 0.041666668
      %v473 = vmul.f32 %v419, 0.041666668
      %v474 = vmul.f32 %v420, 0.041666668
      %v475 = vmul.f32 %v421, 0.041666668
      %v476 = vmul.f32 %v422, 0.041666668
      %v477 = vmul.f32 %v423, 0.041666668
      %v478 = vmul.f32 %v424, 0.041666668
      %v479 = vmul.f32 %v425, 0.041666668
      %v480 = vmul.f32 %v426, 0.041666668
      %v481 = vmul.f32 %v427, 0.041666668
      %v482 = vmul.f32 %v428, 0.041666668
      %v483 = vmul.f32 %v429, 0.041666668
      %v484 = vmul.f32 %v430, 0.041666668
      %v485 = vmul.f32 %v431, 0.041666668
      %v486 = vmul.f32 %v432, 0.041666668
      %v487 = vmul.f32 %v433, 0.041666668
      %v488 = vmul.f32 %v434, 0.041666668
      %v489 = vmul.f32 %v435, 0.041666668
      %v490 = vmul.f32 %v436, 0.041666668
      %v491 = vmul.f32 %v437, 0.041666668
      %v492 = vmul.f32 %v438, 0.041666668
      %v493 = vmul.f32 %v439, 0.041666668
      %v494 = vmul.f32 %v440, 0.041666668
      %v495 = vmul.f32 %v441, 0.041666668
      %v496 = vmul.f32 %v442, 0.041666668
      %v497 = vadd.f32 %v443, 0.0001
      %v498 = vadd.f32 %v444, 0.0001
      %v499 = vadd.f32 %v445, 0.0001
      %v500 = vadd.f32 %v446, 0.0001
      %v501 = vadd.f32 %v447, 0.0001
      %v502 = vadd.f32 %v448, 0.0001
      %v503 = vadd.f32 %v449, 0.0001
      %v504 = vadd.f32 %v450, 0.0001
      %v505 = vadd.f32 %v451, 0.0001
      %v506 = vadd.f32 %v452, 0.0001
      %v507 = vadd.f32 %v453, 0.0001
      %v508 = vadd.f32 %v454, 0.0001
      %v509 = vadd.f32 %v455, 0.0001
      %v510 = vadd.f32 %v456, 0.0001
      %v511 = vadd.f32 %v457, 0.0001
      %v512 = vadd.f32 %v458, 0.0001
      %v513 = vadd.f32 %v459, 0.0001
      %v514 = vadd.f32 %v460, 0.0001
      %v515 = vadd.f32 %v461, 0.0001
      %v516 = vadd.f32 %v462, 0.0001
      %v517 = vadd.f32 %v463, 0.0001
      %v518 = vadd.f32 %v464, 0.0001
      %v519 = vadd.f32 %v465, 0.0001
      %v520 = vadd.f32 %v466, 0.0001
      %v521 = vadd.f32 %v467, 0.0001
      %v522 = vadd.f32 %v468, 0.0001
      %v523 = vadd.f32 %v469, 0.0001
      %v524 = vadd.f32 %v470, 0.0001
      %v525 = vadd.f32 %v471, 0.0001
      %v526 = vadd.f32 %v472, 0.0001
      %v527 = vadd.f32 %v473, 0.0001
      %v528 = vadd.f32 %v474, 0.0001
      %v529 = vadd.f32 %v475, 0.0001
      %v530 = vadd.f32 %v476, 0.0001
      %v531 = vadd.f32 %v477, 0.0001
      %v532 = vadd.f32 %v478, 0.0001
      %v533 = vadd.f32 %v479, 0.0001
      %v534 = vadd.f32 %v480, 0.0001
      %v535 = vadd.f32 %v481, 0.0001
      %v536 = vadd.f32 %v482, 0.0001
      %v537 = vadd.f32 %v483, 0.0001
      %v538 = vadd.f32 %v484, 0.0001
      %v539 = vadd.f32 %v485, 0.0001
      %v540 = vadd.f32 %v486, 0.0001
      %v541 = vadd.f32 %v487, 0.0001
      %v542 = vadd.f32 %v488, 0.0001
      %v543 = vadd.f32 %v489, 0.0001
      %v544 = vadd.f32 %v490, 0.0001
      %v545 = vadd.f32 %v491, 0.0001
      %v546 = vadd.f32 %v492, 0.0001
      %v547 = vadd.f32 %v493, 0.0001
      %v548 = vadd.f32 %v494, 0.0001
      %v549 = vadd.f32 %v495, 0.0001
      %v550 = vadd.f32 %v496, 0.0001
      %v551 = vfloor.f32 %v497
      %v552 = vfloor.f32 %v498
      %v553 = vfloor.f32 %v499
      %v554 = vfloor.f32 %v500
      %v555 = vfloor.f32 %v501
      %v556 = vfloor.f32 %v502
      %v557 = vfloor.f32 %v503
      %v558 = vfloor.f32 %v504
      %v559 = vfloor.f32 %v505
      %v560 = vfloor.f32 %v506
      %v561 = vfloor.f32 %v507
      %v562 = vfloor.f32 %v508
      %v563 = vfloor.f32 %v509
      %v564 = vfloor.f32 %v510
      %v565 = vfloor.f32 %v511
      %v566 = vfloor.f32 %v512
      %v567 = vfloor.f32 %v513
      %v568 = vfloor.f32 %v514
      %v569 = vfloor.f32 %v515
      %v570 = vfloor.f32 %v516
      %v571 = vfloor.f32 %v517
      %v572 = vfloor.f32 %v518
      %v573 = vfloor.f32 %v519
      %v574 = vfloor.f32 %v520
      %v575 = vfloor.f32 %v521
      %v576 = vfloor.f32 %v522
      %v577 = vfloor.f32 %v523
      %v578 = vfloor.f32 %v524
      %v579 = vfloor.f32 %v525
      %v580 = vfloor.f32 %v526
      %v581 = vfloor.f32 %v527
      %v582 = vfloor.f32 %v528
      %v583 = vfloor.f32 %v529
      %v584 = vfloor.f32 %v530
      %v585 = vfloor.f32 %v531
      %v586 = vfloor.f32 %v532
      %v587 = vfloor.f32 %v533
      %v588 = vfloor.f32 %v534
      %v589 = vfloor.f32 %v535
      %v590 = vfloor.f32 %v536
      %v591 = vfloor.f32 %v537
      %v592 = vfloor.f32 %v538
      %v593 = vfloor.f32 %v539
      %v594 = vfloor.f32 %v540
      %v595 = vfloor.f32 %v541
      %v596 = vfloor.f32 %v542
      %v597 = vfloor.f32 %v543
      %v598 = vfloor.f32 %v544
      %v599 = vfloor.f32 %v545
      %v600 = vfloor.f32 %v546
      %v601 = vfloor.f32 %v547
      %v602 = vfloor.f32 %v548
      %v603 = vfloor.f32 %v549
      %v604 = vfloor.f32 %v550
      %v605 = vmul.f32 %v551, 24.0
      %v606 = vmul.f32 %v552, 24.0
      %v607 = vmul.f32 %v553, 24.0
      %v608 = vmul.f32 %v554, 24.0
      %v609 = vmul.f32 %v555, 24.0
      %v610 = vmul.f32 %v556, 24.0
      %v611 = vmul.f32 %v557, 24.0
      %v612 = vmul.f32 %v558, 24.0
      %v613 = vmul.f32 %v559, 24.0
      %v614 = vmul.f32 %v560, 24.0
      %v615 = vmul.f32 %v561, 24.0
      %v616 = vmul.f32 %v562, 24.0
      %v617 = vmul.f32 %v563, 24.0
      %v618 = vmul.f32 %v564, 24.0
      %v619 = vmul.f32 %v565, 24.0
      %v620 = vmul.f32 %v566, 24.0
      %v621 = vmul.f32 %v567, 24.0
      %v622 = vmul.f32 %v568, 24.0
      %v623 = vmul.f32 %v569, 24.0
      %v624 = vmul.f32 %v570, 24.0
      %v625 = vmul.f32 %v571, 24.0
      %v626 = vmul.f32 %v572, 24.0
      %v627 = vmul.f32 %v573, 24.0
      %v628 = vmul.f32 %v574, 24.0
      %v629 = vmul.f32 %v575, 24.0
      %v630 = vmul.f32 %v576, 24.0
      %v631 = vmul.f32 %v577, 24.0
      %v632 = vmul.f32 %v578, 24.0
      %v633 = vmul.f32 %v579, 24.0
      %v634 = vmul.f32 %v580, 24.0
      %v635 = vmul.f32 %v581, 24.0
      %v636 = vmul.f32 %v582, 24.0
      %v637 = vmul.f32 %v583, 24.0
      %v638 = vmul.f32 %v584, 24.0
      %v639 = vmul.f32 %v585, 24.0
      %v640 = vmul.f32 %v586, 24.0
      %v641 = vmul.f32 %v587, 24.0
      %v642 = vmul.f32 %v588, 24.0
      %v643 = vmul.f32 %v589, 24.0
      %v644 = vmul.f32 %v590, 24.0
      %v645 = vmul.f32 %v591, 24.0
      %v646 = vmul.f32 %v592, 24.0
      %v647 = vmul.f32 %v593, 24.0
      %v648 = vmul.f32 %v594, 24.0
      %v649 = vmul.f32 %v595, 24.0
      %v650 = vmul.f32 %v596, 24.0
      %v651 = vmul.f32 %v597, 24.0
      %v652 = vmul.f32 %v598, 24.0
      %v653 = vmul.f32 %v599, 24.0
      %v654 = vmul.f32 %v600, 24.0
      %v655 = vmul.f32 %v601, 24.0
      %v656 = vmul.f32 %v602, 24.0
      %v657 = vmul.f32 %v603, 24.0
      %v658 = vmul.f32 %v604, 24.0
      %v659 = vsub.f32 %v389, %v605
      %v660 = vsub.f32 %v390, %v606
      %v661 = vsub.f32 %v391, %v607
      %v662 = vsub.f32 %v392, %v608
      %v663 = vsub.f32 %v393, %v609
      %v664 = vsub.f32 %v394, %v610
      %v665 = vsub.f32 %v395, %v611
      %v666 = vsub.f32 %v396, %v612
      %v667 = vsub.f32 %v397, %v613
      %v668 = vsub.f32 %v398, %v614
      %v669 = vsub.f32 %v399, %v615
      %v670 = vsub.f32 %v400, %v616
      %v671 = vsub.f32 %v401, %v617
      %v672 = vsub.f32 %v402, %v618
      %v673 = vsub.f32 %v403, %v619
      %v674 = vsub.f32 %v404, %v620
      %v675 = vsub.f32 %v405, %v621
      %v676 = vsub.f32 %v406, %v622
      %v677 = vsub.f32 %v407, %v623
      %v678 = vsub.f32 %v408, %v624
      %v679 = vsub.f32 %v409, %v625
      %v680 = vsub.f32 %v410, %v626
      %v681 = vsub.f32 %v411, %v627
      %v682 = vsub.f32 %v412, %v628
      %v683 = vsub.f32 %v413, %v629
      %v684 = vsub.f32 %v414, %v630
      %v685 = vsub.f32 %v415, %v631
      %v686 = vsub.f32 %v416, %v632
      %v687 = vsub.f32 %v417, %v633
      %v688 = vsub.f32 %v418, %v634
      %v689 = vsub.f32 %v419, %v635
      %v690 = vsub.f32 %v420, %v636
      %v691 = vsub.f32 %v421, %v637
      %v692 = vsub.f32 %v422, %v638
      %v693 = vsub.f32 %v423, %v639
      %v694 = vsub.f32 %v424, %v640
      %v695 = vsub.f32 %v425, %v641
      %v696 = vsub.f32 %v426, %v642
      %v697 = vsub.f32 %v427, %v643
      %v698 = vsub.f32 %v428, %v644
      %v699 = vsub.f32 %v429, %v645
      %v700 = vsub.f32 %v430, %v646
      %v701 = vsub.f32 %v431, %v647
      %v702 = vsub.f32 %v432, %v648
      %v703 = vsub.f32 %v433, %v649
      %v704 = vsub.f32 %v434, %v650
      %v705 = vsub.f32 %v435, %v651
      %v706 = vsub.f32 %v436, %v652
      %v707 = vsub.f32 %v437, %v653
      %v708 = vsub.f32 %v438, %v654
      %v709 = vsub.f32 %v439, %v655
      %v710 = vsub.f32 %v440, %v656
      %v711 = vsub.f32 %v441, %v657
      %v712 = vsub.f32 %v442, %v658
      %vm713 = vcmp.ge.s32.totalorder %v335, 24
      %vm714 = vcmp.ge.s32.totalorder %v336, 24
      %vm715 = vcmp.ge.s32.totalorder %v337, 24
      %vm716 = vcmp.ge.s32.totalorder %v338, 24
      %vm717 = vcmp.ge.s32.totalorder %v339, 24
      %vm718 = vcmp.ge.s32.totalorder %v340, 24
      %vm719 = vcmp.ge.s32.totalorder %v341, 24
      %vm720 = vcmp.ge.s32.totalorder %v342, 24
      %vm721 = vcmp.ge.s32.totalorder %v343, 24
      %vm722 = vcmp.ge.s32.totalorder %v344, 24
      %vm723 = vcmp.ge.s32.totalorder %v345, 24
      %vm724 = vcmp.ge.s32.totalorder %v346, 24
      %vm725 = vcmp.ge.s32.totalorder %v347, 24
      %vm726 = vcmp.ge.s32.totalorder %v348, 24
      %vm727 = vcmp.ge.s32.totalorder %v349, 24
      %vm728 = vcmp.ge.s32.totalorder %v350, 24
      %vm729 = vcmp.ge.s32.totalorder %v351, 24
      %vm730 = vcmp.ge.s32.totalorder %v352, 24
      %vm731 = vcmp.ge.s32.totalorder %v353, 24
      %vm732 = vcmp.ge.s32.totalorder %v354, 24
      %vm733 = vcmp.ge.s32.totalorder %v355, 24
      %vm734 = vcmp.ge.s32.totalorder %v356, 24
      %vm735 = vcmp.ge.s32.totalorder %v357, 24
      %vm736 = vcmp.ge.s32.totalorder %v358, 24
      %vm737 = vcmp.ge.s32.totalorder %v359, 24
      %vm738 = vcmp.ge.s32.totalorder %v360, 24
      %vm739 = vcmp.ge.s32.totalorder %v361, 24
      %vm740 = vcmp.ge.s32.totalorder %v362, 24
      %vm741 = vcmp.ge.s32.totalorder %v363, 24
      %vm742 = vcmp.ge.s32.totalorder %v364, 24
      %vm743 = vcmp.ge.s32.totalorder %v365, 24
      %vm744 = vcmp.ge.s32.totalorder %v366, 24
      %vm745 = vcmp.ge.s32.totalorder %v367, 24
      %vm746 = vcmp.ge.s32.totalorder %v368, 24
      %vm747 = vcmp.ge.s32.totalorder %v369, 24
      %vm748 = vcmp.ge.s32.totalorder %v370, 24
      %vm749 = vcmp.ge.s32.totalorder %v371, 24
      %vm750 = vcmp.ge.s32.totalorder %v372, 24
      %vm751 = vcmp.ge.s32.totalorder %v373, 24
      %vm752 = vcmp.ge.s32.totalorder %v374, 24
      %vm753 = vcmp.ge.s32.totalorder %v375, 24
      %vm754 = vcmp.ge.s32.totalorder %v376, 24
      %vm755 = vcmp.ge.s32.totalorder %v377, 24
      %vm756 = vcmp.ge.s32.totalorder %v378, 24
      %vm757 = vcmp.ge.s32.totalorder %v379, 24
      %vm758 = vcmp.ge.s32.totalorder %v380, 24
      %vm759 = vcmp.ge.s32.totalorder %v381, 24
      %vm760 = vcmp.ge.s32.totalorder %v382, 24
      %vm761 = vcmp.ge.s32.totalorder %v383, 24
      %vm762 = vcmp.ge.s32.totalorder %v384, 24
      %vm763 = vcmp.ge.s32.totalorder %v385, 24
      %vm764 = vcmp.ge.s32.totalorder %v386, 24
      %vm765 = vcmp.ge.s32.totalorder %v387, 24
      %vm766 = vcmp.ge.s32.totalorder %v388, 24
      %vm767 = vcmp.lt.s32.totalorder %v335, 408
      %vm768 = vcmp.lt.s32.totalorder %v336, 408
      %vm769 = vcmp.lt.s32.totalorder %v337, 408
      %vm770 = vcmp.lt.s32.totalorder %v338, 408
      %vm771 = vcmp.lt.s32.totalorder %v339, 408
      %vm772 = vcmp.lt.s32.totalorder %v340, 408
      %vm773 = vcmp.lt.s32.totalorder %v341, 408
      %vm774 = vcmp.lt.s32.totalorder %v342, 408
      %vm775 = vcmp.lt.s32.totalorder %v343, 408
      %vm776 = vcmp.lt.s32.totalorder %v344, 408
      %vm777 = vcmp.lt.s32.totalorder %v345, 408
      %vm778 = vcmp.lt.s32.totalorder %v346, 408
      %vm779 = vcmp.lt.s32.totalorder %v347, 408
      %vm780 = vcmp.lt.s32.totalorder %v348, 408
      %vm781 = vcmp.lt.s32.totalorder %v349, 408
      %vm782 = vcmp.lt.s32.totalorder %v350, 408
      %vm783 = vcmp.lt.s32.totalorder %v351, 408
      %vm784 = vcmp.lt.s32.totalorder %v352, 408
      %vm785 = vcmp.lt.s32.totalorder %v353, 408
      %vm786 = vcmp.lt.s32.totalorder %v354, 408
      %vm787 = vcmp.lt.s32.totalorder %v355, 408
      %vm788 = vcmp.lt.s32.totalorder %v356, 408
      %vm789 = vcmp.lt.s32.totalorder %v357, 408
      %vm790 = vcmp.lt.s32.totalorder %v358, 408
      %vm791 = vcmp.lt.s32.totalorder %v359, 408
      %vm792 = vcmp.lt.s32.totalorder %v360, 408
      %vm793 = vcmp.lt.s32.totalorder %v361, 408
      %vm794 = vcmp.lt.s32.totalorder %v362, 408
      %vm795 = vcmp.lt.s32.totalorder %v363, 408
      %vm796 = vcmp.lt.s32.totalorder %v364, 408
      %vm797 = vcmp.lt.s32.totalorder %v365, 408
      %vm798 = vcmp.lt.s32.totalorder %v366, 408
      %vm799 = vcmp.lt.s32.totalorder %v367, 408
      %vm800 = vcmp.lt.s32.totalorder %v368, 408
      %vm801 = vcmp.lt.s32.totalorder %v369, 408
      %vm802 = vcmp.lt.s32.totalorder %v370, 408
      %vm803 = vcmp.lt.s32.totalorder %v371, 408
      %vm804 = vcmp.lt.s32.totalorder %v372, 408
      %vm805 = vcmp.lt.s32.totalorder %v373, 408
      %vm806 = vcmp.lt.s32.totalorder %v374, 408
      %vm807 = vcmp.lt.s32.totalorder %v375, 408
      %vm808 = vcmp.lt.s32.totalorder %v376, 408
      %vm809 = vcmp.lt.s32.totalorder %v377, 408
      %vm810 = vcmp.lt.s32.totalorder %v378, 408
      %vm811 = vcmp.lt.s32.totalorder %v379, 408
      %vm812 = vcmp.lt.s32.totalorder %v380, 408
      %vm813 = vcmp.lt.s32.totalorder %v381, 408
      %vm814 = vcmp.lt.s32.totalorder %v382, 408
      %vm815 = vcmp.lt.s32.totalorder %v383, 408
      %vm816 = vcmp.lt.s32.totalorder %v384, 408
      %vm817 = vcmp.lt.s32.totalorder %v385, 408
      %vm818 = vcmp.lt.s32.totalorder %v386, 408
      %vm819 = vcmp.lt.s32.totalorder %v387, 408
      %vm820 = vcmp.lt.s32.totalorder %v388, 408
      %vm821 = vmand %vm713, %vm767
      %vm822 = vmand %vm714, %vm768
      %vm823 = vmand %vm715, %vm769
      %vm824 = vmand %vm716, %vm770
      %vm825 = vmand %vm717, %vm771
      %vm826 = vmand %vm718, %vm772
      %vm827 = vmand %vm719, %vm773
      %vm828 = vmand %vm720, %vm774
      %vm829 = vmand %vm721, %vm775
      %vm830 = vmand %vm722, %vm776
      %vm831 = vmand %vm723, %vm777
      %vm832 = vmand %vm724, %vm778
      %vm833 = vmand %vm725, %vm779
      %vm834 = vmand %vm726, %vm780
      %vm835 = vmand %vm727, %vm781
      %vm836 = vmand %vm728, %vm782
      %vm837 = vmand %vm729, %vm783
      %vm838 = vmand %vm730, %vm784
      %vm839 = vmand %vm731, %vm785
      %vm840 = vmand %vm732, %vm786
      %vm841 = vmand %vm733, %vm787
      %vm842 = vmand %vm734, %vm788
      %vm843 = vmand %vm735, %vm789
      %vm844 = vmand %vm736, %vm790
      %vm845 = vmand %vm737, %vm791
      %vm846 = vmand %vm738, %vm792
      %vm847 = vmand %vm739, %vm793
      %vm848 = vmand %vm740, %vm794
      %vm849 = vmand %vm741, %vm795
      %vm850 = vmand %vm742, %vm796
      %vm851 = vmand %vm743, %vm797
      %vm852 = vmand %vm744, %vm798
      %vm853 = vmand %vm745, %vm799
      %vm854 = vmand %vm746, %vm800
      %vm855 = vmand %vm747, %vm801
      %vm856 = vmand %vm748, %vm802
      %vm857 = vmand %vm749, %vm803
      %vm858 = vmand %vm750, %vm804
      %vm859 = vmand %vm751, %vm805
      %vm860 = vmand %vm752, %vm806
      %vm861 = vmand %vm753, %vm807
      %vm862 = vmand %vm754, %vm808
      %vm863 = vmand %vm755, %vm809
      %vm864 = vmand %vm756, %vm810
      %vm865 = vmand %vm757, %vm811
      %vm866 = vmand %vm758, %vm812
      %vm867 = vmand %vm759, %vm813
      %vm868 = vmand %vm760, %vm814
      %vm869 = vmand %vm761, %vm815
      %vm870 = vmand %vm762, %vm816
      %vm871 = vmand %vm763, %vm817
      %vm872 = vmand %vm764, %vm818
      %vm873 = vmand %vm765, %vm819
      %vm874 = vmand %vm766, %vm820
      %vm875 = vcmp.lt.f32.partialorder %v659, 15.5
      %vm876 = vcmp.lt.f32.partialorder %v660, 15.5
      %vm877 = vcmp.lt.f32.partialorder %v661, 15.5
      %vm878 = vcmp.lt.f32.partialorder %v662, 15.5
      %vm879 = vcmp.lt.f32.partialorder %v663, 15.5
      %vm880 = vcmp.lt.f32.partialorder %v664, 15.5
      %vm881 = vcmp.lt.f32.partialorder %v665, 15.5
      %vm882 = vcmp.lt.f32.partialorder %v666, 15.5
      %vm883 = vcmp.lt.f32.partialorder %v667, 15.5
      %vm884 = vcmp.lt.f32.partialorder %v668, 15.5
      %vm885 = vcmp.lt.f32.partialorder %v669, 15.5
      %vm886 = vcmp.lt.f32.partialorder %v670, 15.5
      %vm887 = vcmp.lt.f32.partialorder %v671, 15.5
      %vm888 = vcmp.lt.f32.partialorder %v672, 15.5
      %vm889 = vcmp.lt.f32.partialorder %v673, 15.5
      %vm890 = vcmp.lt.f32.partialorder %v674, 15.5
      %vm891 = vcmp.lt.f32.partialorder %v675, 15.5
      %vm892 = vcmp.lt.f32.partialorder %v676, 15.5
      %vm893 = vcmp.lt.f32.partialorder %v677, 15.5
      %vm894 = vcmp.lt.f32.partialorder %v678, 15.5
      %vm895 = vcmp.lt.f32.partialorder %v679, 15.5
      %vm896 = vcmp.lt.f32.partialorder %v680, 15.5
      %vm897 = vcmp.lt.f32.partialorder %v681, 15.5
      %vm898 = vcmp.lt.f32.partialorder %v682, 15.5
      %vm899 = vcmp.lt.f32.partialorder %v683, 15.5
      %vm900 = vcmp.lt.f32.partialorder %v684, 15.5
      %vm901 = vcmp.lt.f32.partialorder %v685, 15.5
      %vm902 = vcmp.lt.f32.partialorder %v686, 15.5
      %vm903 = vcmp.lt.f32.partialorder %v687, 15.5
      %vm904 = vcmp.lt.f32.partialorder %v688, 15.5
      %vm905 = vcmp.lt.f32.partialorder %v689, 15.5
      %vm906 = vcmp.lt.f32.partialorder %v690, 15.5
      %vm907 = vcmp.lt.f32.partialorder %v691, 15.5
      %vm908 = vcmp.lt.f32.partialorder %v692, 15.5
      %vm909 = vcmp.lt.f32.partialorder %v693, 15.5
      %vm910 = vcmp.lt.f32.partialorder %v694, 15.5
      %vm911 = vcmp.lt.f32.partialorder %v695, 15.5
      %vm912 = vcmp.lt.f32.partialorder %v696, 15.5
      %vm913 = vcmp.lt.f32.partialorder %v697, 15.5
      %vm914 = vcmp.lt.f32.partialorder %v698, 15.5
      %vm915 = vcmp.lt.f32.partialorder %v699, 15.5
      %vm916 = vcmp.lt.f32.partialorder %v700, 15.5
      %vm917 = vcmp.lt.f32.partialorder %v701, 15.5
      %vm918 = vcmp.lt.f32.partialorder %v702, 15.5
      %vm919 = vcmp.lt.f32.partialorder %v703, 15.5
      %vm920 = vcmp.lt.f32.partialorder %v704, 15.5
      %vm921 = vcmp.lt.f32.partialorder %v705, 15.5
      %vm922 = vcmp.lt.f32.partialorder %v706, 15.5
      %vm923 = vcmp.lt.f32.partialorder %v707, 15.5
      %vm924 = vcmp.lt.f32.partialorder %v708, 15.5
      %vm925 = vcmp.lt.f32.partialorder %v709, 15.5
      %vm926 = vcmp.lt.f32.partialorder %v710, 15.5
      %vm927 = vcmp.lt.f32.partialorder %v711, 15.5
      %vm928 = vcmp.lt.f32.partialorder %v712, 15.5
      %vm929 = vmand %vm821, %vm875
      %vm930 = vmand %vm822, %vm876
      %vm931 = vmand %vm823, %vm877
      %vm932 = vmand %vm824, %vm878
      %vm933 = vmand %vm825, %vm879
      %vm934 = vmand %vm826, %vm880
      %vm935 = vmand %vm827, %vm881
      %vm936 = vmand %vm828, %vm882
      %vm937 = vmand %vm829, %vm883
      %vm938 = vmand %vm830, %vm884
      %vm939 = vmand %vm831, %vm885
      %vm940 = vmand %vm832, %vm886
      %vm941 = vmand %vm833, %vm887
      %vm942 = vmand %vm834, %vm888
      %vm943 = vmand %vm835, %vm889
      %vm944 = vmand %vm836, %vm890
      %vm945 = vmand %vm837, %vm891
      %vm946 = vmand %vm838, %vm892
      %vm947 = vmand %vm839, %vm893
      %vm948 = vmand %vm840, %vm894
      %vm949 = vmand %vm841, %vm895
      %vm950 = vmand %vm842, %vm896
      %vm951 = vmand %vm843, %vm897
      %vm952 = vmand %vm844, %vm898
      %vm953 = vmand %vm845, %vm899
      %vm954 = vmand %vm846, %vm900
      %vm955 = vmand %vm847, %vm901
      %vm956 = vmand %vm848, %vm902
      %vm957 = vmand %vm849, %vm903
      %vm958 = vmand %vm850, %vm904
      %vm959 = vmand %vm851, %vm905
      %vm960 = vmand %vm852, %vm906
      %vm961 = vmand %vm853, %vm907
      %vm962 = vmand %vm854, %vm908
      %vm963 = vmand %vm855, %vm909
      %vm964 = vmand %vm856, %vm910
      %vm965 = vmand %vm857, %vm911
      %vm966 = vmand %vm858, %vm912
      %vm967 = vmand %vm859, %vm913
      %vm968 = vmand %vm860, %vm914
      %vm969 = vmand %vm861, %vm915
      %vm970 = vmand %vm862, %vm916
      %vm971 = vmand %vm863, %vm917
      %vm972 = vmand %vm864, %vm918
      %vm973 = vmand %vm865, %vm919
      %vm974 = vmand %vm866, %vm920
      %vm975 = vmand %vm867, %vm921
      %vm976 = vmand %vm868, %vm922
      %vm977 = vmand %vm869, %vm923
      %vm978 = vmand %vm870, %vm924
      %vm979 = vmand %vm871, %vm925
      %vm980 = vmand %vm872, %vm926
      %vm981 = vmand %vm873, %vm927
      %vm982 = vmand %vm874, %vm928
      %v983 = vsel %vm929, 1.0, 0.0
      %v984 = vsel %vm930, 1.0, 0.0
      %v985 = vsel %vm931, 1.0, 0.0
      %v986 = vsel %vm932, 1.0, 0.0
      %v987 = vsel %vm933, 1.0, 0.0
      %v988 = vsel %vm934, 1.0, 0.0
      %v989 = vsel %vm935, 1.0, 0.0
      %v990 = vsel %vm936, 1.0, 0.0
      %v991 = vsel %vm937, 1.0, 0.0
      %v992 = vsel %vm938, 1.0, 0.0
      %v993 = vsel %vm939, 1.0, 0.0
      %v994 = vsel %vm940, 1.0, 0.0
      %v995 = vsel %vm941, 1.0, 0.0
      %v996 = vsel %vm942, 1.0, 0.0
      %v997 = vsel %vm943, 1.0, 0.0
      %v998 = vsel %vm944, 1.0, 0.0
      %v999 = vsel %vm945, 1.0, 0.0
      %v1000 = vsel %vm946, 1.0, 0.0
      %v1001 = vsel %vm947, 1.0, 0.0
      %v1002 = vsel %vm948, 1.0, 0.0
      %v1003 = vsel %vm949, 1.0, 0.0
      %v1004 = vsel %vm950, 1.0, 0.0
      %v1005 = vsel %vm951, 1.0, 0.0
      %v1006 = vsel %vm952, 1.0, 0.0
      %v1007 = vsel %vm953, 1.0, 0.0
      %v1008 = vsel %vm954, 1.0, 0.0
      %v1009 = vsel %vm955, 1.0, 0.0
      %v1010 = vsel %vm956, 1.0, 0.0
      %v1011 = vsel %vm957, 1.0, 0.0
      %v1012 = vsel %vm958, 1.0, 0.0
      %v1013 = vsel %vm959, 1.0, 0.0
      %v1014 = vsel %vm960, 1.0, 0.0
      %v1015 = vsel %vm961, 1.0, 0.0
      %v1016 = vsel %vm962, 1.0, 0.0
      %v1017 = vsel %vm963, 1.0, 0.0
      %v1018 = vsel %vm964, 1.0, 0.0
      %v1019 = vsel %vm965, 1.0, 0.0
      %v1020 = vsel %vm966, 1.0, 0.0
      %v1021 = vsel %vm967, 1.0, 0.0
      %v1022 = vsel %vm968, 1.0, 0.0
      %v1023 = vsel %vm969, 1.0, 0.0
      %v1024 = vsel %vm970, 1.0, 0.0
      %v1025 = vsel %vm971, 1.0, 0.0
      %v1026 = vsel %vm972, 1.0, 0.0
      %v1027 = vsel %vm973, 1.0, 0.0
      %v1028 = vsel %vm974, 1.0, 0.0
      %v1029 = vsel %vm975, 1.0, 0.0
      %v1030 = vsel %vm976, 1.0, 0.0
      %v1031 = vsel %vm977, 1.0, 0.0
      %v1032 = vsel %vm978, 1.0, 0.0
      %v1033 = vsel %vm979, 1.0, 0.0
      %v1034 = vsel %vm980, 1.0, 0.0
      %v1035 = vsel %vm981, 1.0, 0.0
      %v1036 = vsel %vm982, 1.0, 0.0
      %v1037 = vld [vmem:[%s327] sm:$0xf]
      %v1038 = vld [vmem:[%s327 + $0x4] sm:$0xf]
      %v1039 = vld [vmem:[%s327 + $0x8] sm:$0xf]
      %v1040 = vld [vmem:[%s327 + $0xc] sm:$0xf]
      %v1041 = vld [vmem:[%s327 + $0x10] sm:$0xf]
      %v1042 = vld [vmem:[%s327 + $0x14] sm:$0xf]
      %v1043 = vld [vmem:[%s327 + $0x18] sm:$0xf]
      %v1044 = vld [vmem:[%s327 + $0x1c] sm:$0xf]
      %v1045 = vld [vmem:[%s327 + $0x20] sm:$0xf]
      %v1046 = vld [vmem:[%s327 + $0x24] sm:$0xf]
      %v1047 = vld [vmem:[%s327 + $0x28] sm:$0xf]
      %v1048 = vld [vmem:[%s327 + $0x2c] sm:$0xf]
      %v1049 = vld [vmem:[%s327 + $0x30] sm:$0xf]
      %v1050 = vld [vmem:[%s327 + $0x34] sm:$0xf]
      %v1051 = vld [vmem:[%s327 + $0x38] sm:$0xf]
      %v1052 = vld [vmem:[%s327 + $0x3c] sm:$0xf]
      %v1053 = vld [vmem:[%s327 + $0x40] sm:$0xf]
      %v1054 = vld [vmem:[%s327 + $0x44] sm:$0xf]
      %v1055 = vld [vmem:[%s327 + $0x48] sm:$0xf]
      %v1056 = vld [vmem:[%s327 + $0x4c] sm:$0xf]
      %v1057 = vld [vmem:[%s327 + $0x50] sm:$0xf]
      %v1058 = vld [vmem:[%s327 + $0x54] sm:$0xf]
      %v1059 = vld [vmem:[%s327 + $0x58] sm:$0xf]
      %v1060 = vld [vmem:[%s327 + $0x5c] sm:$0xf]
      %v1061 = vld [vmem:[%s327 + $0x60] sm:$0xf]
      %v1062 = vld [vmem:[%s327 + $0x64] sm:$0xf]
      %v1063 = vld [vmem:[%s327 + $0x68] sm:$0xf]
      %v1064 = vld [vmem:[%s327 + $0x6c] sm:$0xf]
      %v1065 = vld [vmem:[%s327 + $0x70] sm:$0xf]
      %v1066 = vld [vmem:[%s327 + $0x74] sm:$0xf]
      %v1067 = vld [vmem:[%s327 + $0x78] sm:$0xf]
      %v1068 = vld [vmem:[%s327 + $0x7c] sm:$0xf]
      %v1069 = vld [vmem:[%s327 + $0x80] sm:$0xf]
      %v1070 = vld [vmem:[%s327 + $0x84] sm:$0xf]
      %v1071 = vld [vmem:[%s327 + $0x88] sm:$0xf]
      %v1072 = vld [vmem:[%s327 + $0x8c] sm:$0xf]
      %v1073 = vld [vmem:[%s327 + $0x90] sm:$0xf]
      %v1074 = vld [vmem:[%s327 + $0x94] sm:$0xf]
      %v1075 = vld [vmem:[%s327 + $0x98] sm:$0xf]
      %v1076 = vld [vmem:[%s327 + $0x9c] sm:$0xf]
      %v1077 = vld [vmem:[%s327 + $0xa0] sm:$0xf]
      %v1078 = vld [vmem:[%s327 + $0xa4] sm:$0xf]
      %v1079 = vld [vmem:[%s327 + $0xa8] sm:$0xf]
      %v1080 = vld [vmem:[%s327 + $0xac] sm:$0xf]
      %v1081 = vld [vmem:[%s327 + $0xb0] sm:$0xf]
      %v1082 = vld [vmem:[%s327 + $0xb4] sm:$0xf]
      %v1083 = vld [vmem:[%s327 + $0xb8] sm:$0xf]
      %v1084 = vld [vmem:[%s327 + $0xbc] sm:$0xf]
      %v1085 = vld [vmem:[%s327 + $0xc0] sm:$0xf]
      %v1086 = vld [vmem:[%s327 + $0xc4] sm:$0xf]
      %v1087 = vld [vmem:[%s327 + $0xc8] sm:$0xf]
      %v1088 = vld [vmem:[%s327 + $0xcc] sm:$0xf]
      %v1089 = vld [vmem:[%s327 + $0xd0] sm:$0xf]
      %v1090 = vld [vmem:[%s327 + $0xd4] sm:$0xf]
      %v1091 = vld [vmem:[%s1] sm:$0xf]
      %v1092 = vld [vmem:[%s1 + $0x4] sm:$0xf]
      %v1093 = vld [vmem:[%s1 + $0x8] sm:$0xf]
      %v1094 = vld [vmem:[%s1 + $0xc] sm:$0xf]
      %v1095 = vld [vmem:[%s1 + $0x10] sm:$0x3]
      %v1150 = vunpack.c.l.b16 %v1037
      %v1151 = vunpack.c.l.b16 %v1038
      %v1152 = vunpack.c.l.b16 %v1039
      %v1153 = vunpack.c.l.b16 %v1040
      %v1154 = vunpack.c.l.b16 %v1041
      %v1155 = vunpack.c.l.b16 %v1042
      %v1156 = vunpack.c.l.b16 %v1043
      %v1157 = vunpack.c.l.b16 %v1044
      %v1158 = vunpack.c.l.b16 %v1045
      %v1159 = vunpack.c.l.b16 %v1046
      %v1160 = vunpack.c.l.b16 %v1047
      %v1161 = vunpack.c.l.b16 %v1048
      %v1162 = vunpack.c.l.b16 %v1049
      %v1163 = vunpack.c.l.b16 %v1050
      %v1164 = vunpack.c.l.b16 %v1051
      %v1165 = vunpack.c.l.b16 %v1052
      %v1166 = vunpack.c.l.b16 %v1053
      %v1167 = vunpack.c.l.b16 %v1054
      %v1168 = vunpack.c.l.b16 %v1055
      %v1169 = vunpack.c.l.b16 %v1056
      %v1170 = vunpack.c.l.b16 %v1057
      %v1171 = vunpack.c.l.b16 %v1058
      %v1172 = vunpack.c.l.b16 %v1059
      %v1173 = vunpack.c.l.b16 %v1060
      %v1174 = vunpack.c.l.b16 %v1061
      %v1175 = vunpack.c.l.b16 %v1062
      %v1176 = vunpack.c.l.b16 %v1063
      %v1177 = vunpack.c.l.b16 %v1064
      %v1178 = vunpack.c.l.b16 %v1065
      %v1179 = vunpack.c.l.b16 %v1066
      %v1180 = vunpack.c.l.b16 %v1067
      %v1181 = vunpack.c.l.b16 %v1068
      %v1182 = vunpack.c.l.b16 %v1069
      %v1183 = vunpack.c.l.b16 %v1070
      %v1184 = vunpack.c.l.b16 %v1071
      %v1185 = vunpack.c.l.b16 %v1072
      %v1186 = vunpack.c.l.b16 %v1073
      %v1187 = vunpack.c.l.b16 %v1074
      %v1188 = vunpack.c.l.b16 %v1075
      %v1189 = vunpack.c.l.b16 %v1076
      %v1190 = vunpack.c.l.b16 %v1077
      %v1191 = vunpack.c.l.b16 %v1078
      %v1192 = vunpack.c.l.b16 %v1079
      %v1193 = vunpack.c.l.b16 %v1080
      %v1194 = vunpack.c.l.b16 %v1081
      %v1195 = vunpack.c.l.b16 %v1082
      %v1196 = vunpack.c.l.b16 %v1083
      %v1197 = vunpack.c.l.b16 %v1084
      %v1198 = vunpack.c.l.b16 %v1085
      %v1199 = vunpack.c.l.b16 %v1086
      %v1200 = vunpack.c.l.b16 %v1087
      %v1201 = vunpack.c.l.b16 %v1088
      %v1202 = vunpack.c.l.b16 %v1089
      %v1203 = vunpack.c.l.b16 %v1090
      %v1204 = vpack.c.b16 %v1151, %v1150
      %v1205 = vpack.c.b16 %v1153, %v1152
      %v1206 = vpack.c.b16 %v1155, %v1154
      %v1207 = vpack.c.b16 %v1157, %v1156
      %v1208 = vpack.c.b16 %v1159, %v1158
      %v1209 = vpack.c.b16 %v1161, %v1160
      %v1210 = vpack.c.b16 %v1163, %v1162
      %v1211 = vpack.c.b16 %v1165, %v1164
      %v1212 = vpack.c.b16 %v1167, %v1166
      %v1213 = vpack.c.b16 %v1169, %v1168
      %v1214 = vpack.c.b16 %v1171, %v1170
      %v1215 = vpack.c.b16 %v1173, %v1172
      %v1216 = vpack.c.b16 %v1175, %v1174
      %v1217 = vpack.c.b16 %v1177, %v1176
      %v1218 = vpack.c.b16 %v1179, %v1178
      %v1219 = vpack.c.b16 %v1181, %v1180
      %v1220 = vpack.c.b16 %v1183, %v1182
      %v1221 = vpack.c.b16 %v1185, %v1184
      %v1222 = vpack.c.b16 %v1187, %v1186
      %v1223 = vpack.c.b16 %v1189, %v1188
      %v1224 = vpack.c.b16 %v1191, %v1190
      %v1225 = vpack.c.b16 %v1193, %v1192
      %v1226 = vpack.c.b16 %v1195, %v1194
      %v1227 = vpack.c.b16 %v1197, %v1196
      %v1228 = vpack.c.b16 %v1199, %v1198
      %v1229 = vpack.c.b16 %v1201, %v1200
      %v1230 = vpack.c.b16 %v1203, %v1202
      %v1236 = vunpack.c.l.b16 %v1091
      %v1237 = vunpack.c.l.b16 %v1092
      %v1238 = vunpack.c.l.b16 %v1093
      %v1239 = vunpack.c.l.b16 %v1094
      %v1240 = vunpack.c.l.b16 %v1095
      %v1241 = vpack.c.b16 %v1237, %v1236
      %v1242 = vpack.c.b16 %v1239, %v1238
      %v1243 = vpack.c.b16 %v1240, %v1240
      %vm1246 = vcmask 293888
      %v1248 = vsel %vm1246, %v1204, 0
      %v1251 = vsel %vm1246, %v1205, 0
      %v1254 = vsel %vm1246, %v1206, 0
      %v1257 = vsel %vm1246, %v1207, 0
      %v1260 = vsel %vm1246, %v1208, 0
      %v1263 = vsel %vm1246, %v1209, 0
      %v1266 = vsel %vm1246, %v1210, 0
      %v1269 = vsel %vm1246, %v1211, 0
      %v1272 = vsel %vm1246, %v1212, 0
      %v1275 = vsel %vm1246, %v1213, 0
      %v1278 = vsel %vm1246, %v1214, 0
      %v1281 = vsel %vm1246, %v1215, 0
      %v1284 = vsel %vm1246, %v1216, 0
      %v1287 = vsel %vm1246, %v1217, 0
      %v1290 = vsel %vm1246, %v1218, 0
      %v1293 = vsel %vm1246, %v1219, 0
      %v1296 = vsel %vm1246, %v1220, 0
      %v1299 = vsel %vm1246, %v1221, 0
      %v1302 = vsel %vm1246, %v1222, 0
      %v1305 = vsel %vm1246, %v1223, 0
      %v1308 = vsel %vm1246, %v1224, 0
      %v1311 = vsel %vm1246, %v1225, 0
      %v1314 = vsel %vm1246, %v1226, 0
      %v1317 = vsel %vm1246, %v1227, 0
      %v1320 = vsel %vm1246, %v1228, 0
      %v1323 = vsel %vm1246, %v1229, 0
      %v1326 = vsel %vm1246, %v1230, 0
      %vm1328 = vcmask 1041408
      %v1330 = vsel %vm1328, %v1243, 0
      %1332 = vmatpush.bf16.msra.mxu0 0
      %1333 = vmatpush.bf16.msra.mxu0 0
      %1334 = vmatpush.bf16.msra.mxu0 0
      %1335 = vmatpush.bf16.msra.mxu0 0
      %1336 = vmatpush.bf16.msra.mxu0 0
      %1337 = vmatpush.bf16.msra.mxu0 %v1330
      %1338 = vmatpush.bf16.msra.mxu0 %v1242
      %1339 = vmatpush.bf16.msra.mxu0 %v1241
      %1340 = vmatmul.bf16.gmra.mxu0 %v1248
      %v1341 = vpop.f32.mrf.mxu0
      %v1342 = vadd.f32 0.0, %v1341
      %v1343 = vpop.f32.mrf.mxu0
      %v1344 = vadd.f32 0.0, %v1343
      %1345 = vmatmul.bf16.gmra.mxu0 %v1251
      %v1346 = vpop.f32.mrf.mxu0
      %v1347 = vadd.f32 0.0, %v1346
      %v1348 = vpop.f32.mrf.mxu0
      %v1349 = vadd.f32 0.0, %v1348
      %1350 = vmatmul.bf16.gmra.mxu0 %v1254
      %v1351 = vpop.f32.mrf.mxu0
      %v1352 = vadd.f32 0.0, %v1351
      %v1353 = vpop.f32.mrf.mxu0
      %v1354 = vadd.f32 0.0, %v1353
      %1355 = vmatmul.bf16.gmra.mxu0 %v1257
      %v1356 = vpop.f32.mrf.mxu0
      %v1357 = vadd.f32 0.0, %v1356
      %v1358 = vpop.f32.mrf.mxu0
      %v1359 = vadd.f32 0.0, %v1358
      %1360 = vmatmul.bf16.gmra.mxu0 %v1260
      %v1361 = vpop.f32.mrf.mxu0
      %v1362 = vadd.f32 0.0, %v1361
      %v1363 = vpop.f32.mrf.mxu0
      %v1364 = vadd.f32 0.0, %v1363
      %1365 = vmatmul.bf16.gmra.mxu0 %v1263
      %v1366 = vpop.f32.mrf.mxu0
      %v1367 = vadd.f32 0.0, %v1366
      %v1368 = vpop.f32.mrf.mxu0
      %v1369 = vadd.f32 0.0, %v1368
      %1370 = vmatmul.bf16.gmra.mxu0 %v1266
      %v1371 = vpop.f32.mrf.mxu0
      %v1372 = vadd.f32 0.0, %v1371
      %v1373 = vpop.f32.mrf.mxu0
      %v1374 = vadd.f32 0.0, %v1373
      %1375 = vmatmul.bf16.gmra.mxu0 %v1269
      %v1376 = vpop.f32.mrf.mxu0
      %v1377 = vadd.f32 0.0, %v1376
      %v1378 = vpop.f32.mrf.mxu0
      %v1379 = vadd.f32 0.0, %v1378
      %1380 = vmatmul.bf16.gmra.mxu0 %v1272
      %v1381 = vpop.f32.mrf.mxu0
      %v1382 = vadd.f32 0.0, %v1381
      %v1383 = vpop.f32.mrf.mxu0
      %v1384 = vadd.f32 0.0, %v1383
      %1385 = vmatmul.bf16.gmra.mxu0 %v1275
      %v1386 = vpop.f32.mrf.mxu0
      %v1387 = vadd.f32 0.0, %v1386
      %v1388 = vpop.f32.mrf.mxu0
      %v1389 = vadd.f32 0.0, %v1388
      %1390 = vmatmul.bf16.gmra.mxu0 %v1278
      %v1391 = vpop.f32.mrf.mxu0
      %v1392 = vadd.f32 0.0, %v1391
      %v1393 = vpop.f32.mrf.mxu0
      %v1394 = vadd.f32 0.0, %v1393
      %1395 = vmatmul.bf16.gmra.mxu0 %v1281
      %v1396 = vpop.f32.mrf.mxu0
      %v1397 = vadd.f32 0.0, %v1396
      %v1398 = vpop.f32.mrf.mxu0
      %v1399 = vadd.f32 0.0, %v1398
      %1400 = vmatmul.bf16.gmra.mxu0 %v1284
      %v1401 = vpop.f32.mrf.mxu0
      %v1402 = vadd.f32 0.0, %v1401
      %v1403 = vpop.f32.mrf.mxu0
      %v1404 = vadd.f32 0.0, %v1403
      %1405 = vmatmul.bf16.gmra.mxu0 %v1287
      %v1406 = vpop.f32.mrf.mxu0
      %v1407 = vadd.f32 0.0, %v1406
      %v1408 = vpop.f32.mrf.mxu0
      %v1409 = vadd.f32 0.0, %v1408
      %1410 = vmatmul.bf16.gmra.mxu0 %v1290
      %v1411 = vpop.f32.mrf.mxu0
      %v1412 = vadd.f32 0.0, %v1411
      %v1413 = vpop.f32.mrf.mxu0
      %v1414 = vadd.f32 0.0, %v1413
      %1415 = vmatmul.bf16.gmra.mxu0 %v1293
      %v1416 = vpop.f32.mrf.mxu0
      %v1417 = vadd.f32 0.0, %v1416
      %v1418 = vpop.f32.mrf.mxu0
      %v1419 = vadd.f32 0.0, %v1418
      %1420 = vmatmul.bf16.gmra.mxu0 %v1296
      %v1421 = vpop.f32.mrf.mxu0
      %v1422 = vadd.f32 0.0, %v1421
      %v1423 = vpop.f32.mrf.mxu0
      %v1424 = vadd.f32 0.0, %v1423
      %1425 = vmatmul.bf16.gmra.mxu0 %v1299
      %v1426 = vpop.f32.mrf.mxu0
      %v1427 = vadd.f32 0.0, %v1426
      %v1428 = vpop.f32.mrf.mxu0
      %v1429 = vadd.f32 0.0, %v1428
      %1430 = vmatmul.bf16.gmra.mxu0 %v1302
      %v1431 = vpop.f32.mrf.mxu0
      %v1432 = vadd.f32 0.0, %v1431
      %v1433 = vpop.f32.mrf.mxu0
      %v1434 = vadd.f32 0.0, %v1433
      %1435 = vmatmul.bf16.gmra.mxu0 %v1305
      %v1436 = vpop.f32.mrf.mxu0
      %v1437 = vadd.f32 0.0, %v1436
      %v1438 = vpop.f32.mrf.mxu0
      %v1439 = vadd.f32 0.0, %v1438
      %1440 = vmatmul.bf16.gmra.mxu0 %v1308
      %v1441 = vpop.f32.mrf.mxu0
      %v1442 = vadd.f32 0.0, %v1441
      %v1443 = vpop.f32.mrf.mxu0
      %v1444 = vadd.f32 0.0, %v1443
      %1445 = vmatmul.bf16.gmra.mxu0 %v1311
      %v1446 = vpop.f32.mrf.mxu0
      %v1447 = vadd.f32 0.0, %v1446
      %v1448 = vpop.f32.mrf.mxu0
      %v1449 = vadd.f32 0.0, %v1448
      %1450 = vmatmul.bf16.gmra.mxu0 %v1314
      %v1451 = vpop.f32.mrf.mxu0
      %v1452 = vadd.f32 0.0, %v1451
      %v1453 = vpop.f32.mrf.mxu0
      %v1454 = vadd.f32 0.0, %v1453
      %1455 = vmatmul.bf16.gmra.mxu0 %v1317
      %v1456 = vpop.f32.mrf.mxu0
      %v1457 = vadd.f32 0.0, %v1456
      %v1458 = vpop.f32.mrf.mxu0
      %v1459 = vadd.f32 0.0, %v1458
      %1460 = vmatmul.bf16.gmra.mxu0 %v1320
      %v1461 = vpop.f32.mrf.mxu0
      %v1462 = vadd.f32 0.0, %v1461
      %v1463 = vpop.f32.mrf.mxu0
      %v1464 = vadd.f32 0.0, %v1463
      %1465 = vmatmul.bf16.gmra.mxu0 %v1323
      %v1466 = vpop.f32.mrf.mxu0
      %v1467 = vadd.f32 0.0, %v1466
      %v1468 = vpop.f32.mrf.mxu0
      %v1469 = vadd.f32 0.0, %v1468
      %1470 = vmatmul.bf16.gmra.mxu0 %v1326
      %v1471 = vpop.f32.mrf.mxu0
      %v1472 = vadd.f32 0.0, %v1471
      %v1473 = vpop.f32.mrf.mxu0
      %v1474 = vadd.f32 0.0, %v1473
      %1475 = vdwg.mxu0
      %v1476 = vld [vmem:[%s2] sm:$0x1]
      %v1477 = vld [vmem:[%s3] sm:$0x1]
      %v1478 = vmul.f32 %v1342, %v983
      %v1479 = vmul.f32 %v1344, %v984
      %v1480 = vmul.f32 %v1347, %v985
      %v1481 = vmul.f32 %v1349, %v986
      %v1482 = vmul.f32 %v1352, %v987
      %v1483 = vmul.f32 %v1354, %v988
      %v1484 = vmul.f32 %v1357, %v989
      %v1485 = vmul.f32 %v1359, %v990
      %v1486 = vmul.f32 %v1362, %v991
      %v1487 = vmul.f32 %v1364, %v992
      %v1488 = vmul.f32 %v1367, %v993
      %v1489 = vmul.f32 %v1369, %v994
      %v1490 = vmul.f32 %v1372, %v995
      %v1491 = vmul.f32 %v1374, %v996
      %v1492 = vmul.f32 %v1377, %v997
      %v1493 = vmul.f32 %v1379, %v998
      %v1494 = vmul.f32 %v1382, %v999
      %v1495 = vmul.f32 %v1384, %v1000
      %v1496 = vmul.f32 %v1387, %v1001
      %v1497 = vmul.f32 %v1389, %v1002
      %v1498 = vmul.f32 %v1392, %v1003
      %v1499 = vmul.f32 %v1394, %v1004
      %v1500 = vmul.f32 %v1397, %v1005
      %v1501 = vmul.f32 %v1399, %v1006
      %v1502 = vmul.f32 %v1402, %v1007
      %v1503 = vmul.f32 %v1404, %v1008
      %v1504 = vmul.f32 %v1407, %v1009
      %v1505 = vmul.f32 %v1409, %v1010
      %v1506 = vmul.f32 %v1412, %v1011
      %v1507 = vmul.f32 %v1414, %v1012
      %v1508 = vmul.f32 %v1417, %v1013
      %v1509 = vmul.f32 %v1419, %v1014
      %v1510 = vmul.f32 %v1422, %v1015
      %v1511 = vmul.f32 %v1424, %v1016
      %v1512 = vmul.f32 %v1427, %v1017
      %v1513 = vmul.f32 %v1429, %v1018
      %v1514 = vmul.f32 %v1432, %v1019
      %v1515 = vmul.f32 %v1434, %v1020
      %v1516 = vmul.f32 %v1437, %v1021
      %v1517 = vmul.f32 %v1439, %v1022
      %v1518 = vmul.f32 %v1442, %v1023
      %v1519 = vmul.f32 %v1444, %v1024
      %v1520 = vmul.f32 %v1447, %v1025
      %v1521 = vmul.f32 %v1449, %v1026
      %v1522 = vmul.f32 %v1452, %v1027
      %v1523 = vmul.f32 %v1454, %v1028
      %v1524 = vmul.f32 %v1457, %v1029
      %v1525 = vmul.f32 %v1459, %v1030
      %v1526 = vmul.f32 %v1462, %v1031
      %v1527 = vmul.f32 %v1464, %v1032
      %v1528 = vmul.f32 %v1467, %v1033
      %v1529 = vmul.f32 %v1469, %v1034
      %v1530 = vmul.f32 %v1472, %v1035
      %v1531 = vmul.f32 %v1474, %v1036
      %v1532 = vadd.f32 %v1478, %v1479
      %v1533 = vadd.f32 %v1532, %v1480
      %v1534 = vadd.f32 %v1533, %v1481
      %v1535 = vadd.f32 %v1534, %v1482
      %v1536 = vadd.f32 %v1535, %v1483
      %v1537 = vadd.f32 %v1536, %v1484
      %v1538 = vadd.f32 %v1537, %v1485
      %v1539 = vadd.f32 %v1538, %v1486
      %v1540 = vadd.f32 %v1539, %v1487
      %v1541 = vadd.f32 %v1540, %v1488
      %v1542 = vadd.f32 %v1541, %v1489
      %v1543 = vadd.f32 %v1542, %v1490
      %v1544 = vadd.f32 %v1543, %v1491
      %v1545 = vadd.f32 %v1544, %v1492
      %v1546 = vadd.f32 %v1545, %v1493
      %v1547 = vadd.f32 %v1546, %v1494
      %v1548 = vadd.f32 %v1547, %v1495
      %v1549 = vadd.f32 %v1548, %v1496
      %v1550 = vadd.f32 %v1549, %v1497
      %v1551 = vadd.f32 %v1550, %v1498
      %v1552 = vadd.f32 %v1551, %v1499
      %v1553 = vadd.f32 %v1552, %v1500
      %v1554 = vadd.f32 %v1553, %v1501
      %v1555 = vadd.f32 %v1554, %v1502
      %v1556 = vadd.f32 %v1555, %v1503
      %v1557 = vadd.f32 %v1556, %v1504
      %v1558 = vadd.f32 %v1557, %v1505
      %v1559 = vadd.f32 %v1558, %v1506
      %v1560 = vadd.f32 %v1559, %v1507
      %v1561 = vadd.f32 %v1560, %v1508
      %v1562 = vadd.f32 %v1561, %v1509
      %v1563 = vadd.f32 %v1562, %v1510
      %v1564 = vadd.f32 %v1563, %v1511
      %v1565 = vadd.f32 %v1564, %v1512
      %v1566 = vadd.f32 %v1565, %v1513
      %v1567 = vadd.f32 %v1566, %v1514
      %v1568 = vadd.f32 %v1567, %v1515
      %v1569 = vadd.f32 %v1568, %v1516
      %v1570 = vadd.f32 %v1569, %v1517
      %v1571 = vadd.f32 %v1570, %v1518
      %v1572 = vadd.f32 %v1571, %v1519
      %v1573 = vadd.f32 %v1572, %v1520
      %v1574 = vadd.f32 %v1573, %v1521
      %v1575 = vadd.f32 %v1574, %v1522
      %v1576 = vadd.f32 %v1575, %v1523
      %v1577 = vadd.f32 %v1576, %v1524
      %v1578 = vadd.f32 %v1577, %v1525
      %v1579 = vadd.f32 %v1578, %v1526
      %v1580 = vadd.f32 %v1579, %v1527
      %v1581 = vadd.f32 %v1580, %v1528
      %v1582 = vadd.f32 %v1581, %v1529
      %v1583 = vadd.f32 %v1582, %v1530
      %v1584 = vadd.f32 %v1583, %v1531
      %v1585 = vrot.slane %v1584, 4
      %v1586 = vadd.f32 %v1584, %v1585
      %v1587 = vrot.slane %v1586, 2
      %v1588 = vadd.f32 %v1586, %v1587
      %v1589 = vrot.slane %v1588, 1
      %v1590 = vadd.f32 %v1588, %v1589
      %v1591 = vmul.f32 %v1478, %v1478
      %v1592 = vmul.f32 %v1479, %v1479
      %v1593 = vmul.f32 %v1480, %v1480
      %v1594 = vmul.f32 %v1481, %v1481
      %v1595 = vmul.f32 %v1482, %v1482
      %v1596 = vmul.f32 %v1483, %v1483
      %v1597 = vmul.f32 %v1484, %v1484
      %v1598 = vmul.f32 %v1485, %v1485
      %v1599 = vmul.f32 %v1486, %v1486
      %v1600 = vmul.f32 %v1487, %v1487
      %v1601 = vmul.f32 %v1488, %v1488
      %v1602 = vmul.f32 %v1489, %v1489
      %v1603 = vmul.f32 %v1490, %v1490
      %v1604 = vmul.f32 %v1491, %v1491
      %v1605 = vmul.f32 %v1492, %v1492
      %v1606 = vmul.f32 %v1493, %v1493
      %v1607 = vmul.f32 %v1494, %v1494
      %v1608 = vmul.f32 %v1495, %v1495
      %v1609 = vmul.f32 %v1496, %v1496
      %v1610 = vmul.f32 %v1497, %v1497
      %v1611 = vmul.f32 %v1498, %v1498
      %v1612 = vmul.f32 %v1499, %v1499
      %v1613 = vmul.f32 %v1500, %v1500
      %v1614 = vmul.f32 %v1501, %v1501
      %v1615 = vmul.f32 %v1502, %v1502
      %v1616 = vmul.f32 %v1503, %v1503
      %v1617 = vmul.f32 %v1504, %v1504
      %v1618 = vmul.f32 %v1505, %v1505
      %v1619 = vmul.f32 %v1506, %v1506
      %v1620 = vmul.f32 %v1507, %v1507
      %v1621 = vmul.f32 %v1508, %v1508
      %v1622 = vmul.f32 %v1509, %v1509
      %v1623 = vmul.f32 %v1510, %v1510
      %v1624 = vmul.f32 %v1511, %v1511
      %v1625 = vmul.f32 %v1512, %v1512
      %v1626 = vmul.f32 %v1513, %v1513
      %v1627 = vmul.f32 %v1514, %v1514
      %v1628 = vmul.f32 %v1515, %v1515
      %v1629 = vmul.f32 %v1516, %v1516
      %v1630 = vmul.f32 %v1517, %v1517
      %v1631 = vmul.f32 %v1518, %v1518
      %v1632 = vmul.f32 %v1519, %v1519
      %v1633 = vmul.f32 %v1520, %v1520
      %v1634 = vmul.f32 %v1521, %v1521
      %v1635 = vmul.f32 %v1522, %v1522
      %v1636 = vmul.f32 %v1523, %v1523
      %v1637 = vmul.f32 %v1524, %v1524
      %v1638 = vmul.f32 %v1525, %v1525
      %v1639 = vmul.f32 %v1526, %v1526
      %v1640 = vmul.f32 %v1527, %v1527
      %v1641 = vmul.f32 %v1528, %v1528
      %v1642 = vmul.f32 %v1529, %v1529
      %v1643 = vmul.f32 %v1530, %v1530
      %v1644 = vmul.f32 %v1531, %v1531
      %v1645 = vadd.f32 %v1591, %v1592
      %v1646 = vadd.f32 %v1645, %v1593
      %v1647 = vadd.f32 %v1646, %v1594
      %v1648 = vadd.f32 %v1647, %v1595
      %v1649 = vadd.f32 %v1648, %v1596
      %v1650 = vadd.f32 %v1649, %v1597
      %v1651 = vadd.f32 %v1650, %v1598
      %v1652 = vadd.f32 %v1651, %v1599
      %v1653 = vadd.f32 %v1652, %v1600
      %v1654 = vadd.f32 %v1653, %v1601
      %v1655 = vadd.f32 %v1654, %v1602
      %v1656 = vadd.f32 %v1655, %v1603
      %v1657 = vadd.f32 %v1656, %v1604
      %v1658 = vadd.f32 %v1657, %v1605
      %v1659 = vadd.f32 %v1658, %v1606
      %v1660 = vadd.f32 %v1659, %v1607
      %v1661 = vadd.f32 %v1660, %v1608
      %v1662 = vadd.f32 %v1661, %v1609
      %v1663 = vadd.f32 %v1662, %v1610
      %v1664 = vadd.f32 %v1663, %v1611
      %v1665 = vadd.f32 %v1664, %v1612
      %v1666 = vadd.f32 %v1665, %v1613
      %v1667 = vadd.f32 %v1666, %v1614
      %v1668 = vadd.f32 %v1667, %v1615
      %v1669 = vadd.f32 %v1668, %v1616
      %v1670 = vadd.f32 %v1669, %v1617
      %v1671 = vadd.f32 %v1670, %v1618
      %v1672 = vadd.f32 %v1671, %v1619
      %v1673 = vadd.f32 %v1672, %v1620
      %v1674 = vadd.f32 %v1673, %v1621
      %v1675 = vadd.f32 %v1674, %v1622
      %v1676 = vadd.f32 %v1675, %v1623
      %v1677 = vadd.f32 %v1676, %v1624
      %v1678 = vadd.f32 %v1677, %v1625
      %v1679 = vadd.f32 %v1678, %v1626
      %v1680 = vadd.f32 %v1679, %v1627
      %v1681 = vadd.f32 %v1680, %v1628
      %v1682 = vadd.f32 %v1681, %v1629
      %v1683 = vadd.f32 %v1682, %v1630
      %v1684 = vadd.f32 %v1683, %v1631
      %v1685 = vadd.f32 %v1684, %v1632
      %v1686 = vadd.f32 %v1685, %v1633
      %v1687 = vadd.f32 %v1686, %v1634
      %v1688 = vadd.f32 %v1687, %v1635
      %v1689 = vadd.f32 %v1688, %v1636
      %v1690 = vadd.f32 %v1689, %v1637
      %v1691 = vadd.f32 %v1690, %v1638
      %v1692 = vadd.f32 %v1691, %v1639
      %v1693 = vadd.f32 %v1692, %v1640
      %v1694 = vadd.f32 %v1693, %v1641
      %v1695 = vadd.f32 %v1694, %v1642
      %v1696 = vadd.f32 %v1695, %v1643
      %v1697 = vadd.f32 %v1696, %v1644
      %v1698 = vrot.slane %v1697, 4
      %v1699 = vadd.f32 %v1697, %v1698
      %v1700 = vrot.slane %v1699, 2
      %v1701 = vadd.f32 %v1699, %v1700
      %v1702 = vrot.slane %v1701, 1
      %v1703 = vadd.f32 %v1701, %v1702
      %v1704 = vmul.f32 %v1590, 0.00390625
      %v1705 = vmul.f32 %v1703, 0.00390625
      %v1706 = vmul.f32 %v1704, %v1704
      %v1707 = vsub.f32 %v1705, %v1706
      %v1708 = vmax.f32 %v1707, 0.0
      %v1709 = vadd.f32 %v1708, 1e-05
      %v1710 = vrsqrt.pop %v1709
      %v1711 = vmul.f32 %v1710, %v1709
      %v1712 = vmul.f32 %v1711, %v1710
      %v1713 = vmul.f32 0.5, %v1712
      %v1714 = vsub.f32 1.5, %v1713
      %v1715 = vmul.f32 %v1710, %v1714
      %vm1716 = vweird.f32 %v1709
      %vm1717 = vweird.f32 %v1710
      %vm1718 = vmor %vm1716, %vm1717
      %v1719 = vsel %vm1718, %v1710, %v1715
      %v1720 = vmul.f32 %v1719, %v1476
      %v1721 = vmul.f32 %v1704, %v1720
      %v1722 = vsub.f32 %v1477, %v1721
      %v1723 = vperm.slane %v1720, 0
      %v1724 = vmul.f32 %v1342, %v1723
      %v1725 = vmul.f32 %v1344, %v1723
      %v1726 = vmul.f32 %v1347, %v1723
      %v1727 = vmul.f32 %v1349, %v1723
      %v1728 = vmul.f32 %v1352, %v1723
      %v1729 = vmul.f32 %v1354, %v1723
      %v1730 = vmul.f32 %v1357, %v1723
      %v1731 = vmul.f32 %v1359, %v1723
      %v1732 = vmul.f32 %v1362, %v1723
      %v1733 = vmul.f32 %v1364, %v1723
      %v1734 = vmul.f32 %v1367, %v1723
      %v1735 = vmul.f32 %v1369, %v1723
      %v1736 = vmul.f32 %v1372, %v1723
      %v1737 = vmul.f32 %v1374, %v1723
      %v1738 = vmul.f32 %v1377, %v1723
      %v1739 = vmul.f32 %v1379, %v1723
      %v1740 = vmul.f32 %v1382, %v1723
      %v1741 = vmul.f32 %v1384, %v1723
      %v1742 = vmul.f32 %v1387, %v1723
      %v1743 = vmul.f32 %v1389, %v1723
      %v1744 = vmul.f32 %v1392, %v1723
      %v1745 = vmul.f32 %v1394, %v1723
      %v1746 = vmul.f32 %v1397, %v1723
      %v1747 = vmul.f32 %v1399, %v1723
      %v1748 = vmul.f32 %v1402, %v1723
      %v1749 = vmul.f32 %v1404, %v1723
      %v1750 = vmul.f32 %v1407, %v1723
      %v1751 = vmul.f32 %v1409, %v1723
      %v1752 = vmul.f32 %v1412, %v1723
      %v1753 = vmul.f32 %v1414, %v1723
      %v1754 = vmul.f32 %v1417, %v1723
      %v1755 = vmul.f32 %v1419, %v1723
      %v1756 = vmul.f32 %v1422, %v1723
      %v1757 = vmul.f32 %v1424, %v1723
      %v1758 = vmul.f32 %v1427, %v1723
      %v1759 = vmul.f32 %v1429, %v1723
      %v1760 = vmul.f32 %v1432, %v1723
      %v1761 = vmul.f32 %v1434, %v1723
      %v1762 = vmul.f32 %v1437, %v1723
      %v1763 = vmul.f32 %v1439, %v1723
      %v1764 = vmul.f32 %v1442, %v1723
      %v1765 = vmul.f32 %v1444, %v1723
      %v1766 = vmul.f32 %v1447, %v1723
      %v1767 = vmul.f32 %v1449, %v1723
      %v1768 = vmul.f32 %v1452, %v1723
      %v1769 = vmul.f32 %v1454, %v1723
      %v1770 = vmul.f32 %v1457, %v1723
      %v1771 = vmul.f32 %v1459, %v1723
      %v1772 = vmul.f32 %v1462, %v1723
      %v1773 = vmul.f32 %v1464, %v1723
      %v1774 = vmul.f32 %v1467, %v1723
      %v1775 = vmul.f32 %v1469, %v1723
      %v1776 = vmul.f32 %v1472, %v1723
      %v1777 = vmul.f32 %v1474, %v1723
      %v1779 = vperm.slane %v1722, 0
      %v1781 = vadd.f32 %v1724, %v1779
      %v1782 = vadd.f32 %v1725, %v1779
      %v1783 = vadd.f32 %v1726, %v1779
      %v1784 = vadd.f32 %v1727, %v1779
      %v1785 = vadd.f32 %v1728, %v1779
      %v1786 = vadd.f32 %v1729, %v1779
      %v1787 = vadd.f32 %v1730, %v1779
      %v1788 = vadd.f32 %v1731, %v1779
      %v1789 = vadd.f32 %v1732, %v1779
      %v1790 = vadd.f32 %v1733, %v1779
      %v1791 = vadd.f32 %v1734, %v1779
      %v1792 = vadd.f32 %v1735, %v1779
      %v1793 = vadd.f32 %v1736, %v1779
      %v1794 = vadd.f32 %v1737, %v1779
      %v1795 = vadd.f32 %v1738, %v1779
      %v1796 = vadd.f32 %v1739, %v1779
      %v1797 = vadd.f32 %v1740, %v1779
      %v1798 = vadd.f32 %v1741, %v1779
      %v1799 = vadd.f32 %v1742, %v1779
      %v1800 = vadd.f32 %v1743, %v1779
      %v1801 = vadd.f32 %v1744, %v1779
      %v1802 = vadd.f32 %v1745, %v1779
      %v1803 = vadd.f32 %v1746, %v1779
      %v1804 = vadd.f32 %v1747, %v1779
      %v1805 = vadd.f32 %v1748, %v1779
      %v1806 = vadd.f32 %v1749, %v1779
      %v1807 = vadd.f32 %v1750, %v1779
      %v1808 = vadd.f32 %v1751, %v1779
      %v1809 = vadd.f32 %v1752, %v1779
      %v1810 = vadd.f32 %v1753, %v1779
      %v1811 = vadd.f32 %v1754, %v1779
      %v1812 = vadd.f32 %v1755, %v1779
      %v1813 = vadd.f32 %v1756, %v1779
      %v1814 = vadd.f32 %v1757, %v1779
      %v1815 = vadd.f32 %v1758, %v1779
      %v1816 = vadd.f32 %v1759, %v1779
      %v1817 = vadd.f32 %v1760, %v1779
      %v1818 = vadd.f32 %v1761, %v1779
      %v1819 = vadd.f32 %v1762, %v1779
      %v1820 = vadd.f32 %v1763, %v1779
      %v1821 = vadd.f32 %v1764, %v1779
      %v1822 = vadd.f32 %v1765, %v1779
      %v1823 = vadd.f32 %v1766, %v1779
      %v1824 = vadd.f32 %v1767, %v1779
      %v1825 = vadd.f32 %v1768, %v1779
      %v1826 = vadd.f32 %v1769, %v1779
      %v1827 = vadd.f32 %v1770, %v1779
      %v1828 = vadd.f32 %v1771, %v1779
      %v1829 = vadd.f32 %v1772, %v1779
      %v1830 = vadd.f32 %v1773, %v1779
      %v1831 = vadd.f32 %v1774, %v1779
      %v1832 = vadd.f32 %v1775, %v1779
      %v1833 = vadd.f32 %v1776, %v1779
      %v1834 = vadd.f32 %v1777, %v1779
      %v1835 = vmax.f32 %v1781, 0.0
      %v1836 = vmax.f32 %v1782, 0.0
      %v1837 = vmax.f32 %v1783, 0.0
      %v1838 = vmax.f32 %v1784, 0.0
      %v1839 = vmax.f32 %v1785, 0.0
      %v1840 = vmax.f32 %v1786, 0.0
      %v1841 = vmax.f32 %v1787, 0.0
      %v1842 = vmax.f32 %v1788, 0.0
      %v1843 = vmax.f32 %v1789, 0.0
      %v1844 = vmax.f32 %v1790, 0.0
      %v1845 = vmax.f32 %v1791, 0.0
      %v1846 = vmax.f32 %v1792, 0.0
      %v1847 = vmax.f32 %v1793, 0.0
      %v1848 = vmax.f32 %v1794, 0.0
      %v1849 = vmax.f32 %v1795, 0.0
      %v1850 = vmax.f32 %v1796, 0.0
      %v1851 = vmax.f32 %v1797, 0.0
      %v1852 = vmax.f32 %v1798, 0.0
      %v1853 = vmax.f32 %v1799, 0.0
      %v1854 = vmax.f32 %v1800, 0.0
      %v1855 = vmax.f32 %v1801, 0.0
      %v1856 = vmax.f32 %v1802, 0.0
      %v1857 = vmax.f32 %v1803, 0.0
      %v1858 = vmax.f32 %v1804, 0.0
      %v1859 = vmax.f32 %v1805, 0.0
      %v1860 = vmax.f32 %v1806, 0.0
      %v1861 = vmax.f32 %v1807, 0.0
      %v1862 = vmax.f32 %v1808, 0.0
      %v1863 = vmax.f32 %v1809, 0.0
      %v1864 = vmax.f32 %v1810, 0.0
      %v1865 = vmax.f32 %v1811, 0.0
      %v1866 = vmax.f32 %v1812, 0.0
      %v1867 = vmax.f32 %v1813, 0.0
      %v1868 = vmax.f32 %v1814, 0.0
      %v1869 = vmax.f32 %v1815, 0.0
      %v1870 = vmax.f32 %v1816, 0.0
      %v1871 = vmax.f32 %v1817, 0.0
      %v1872 = vmax.f32 %v1818, 0.0
      %v1873 = vmax.f32 %v1819, 0.0
      %v1874 = vmax.f32 %v1820, 0.0
      %v1875 = vmax.f32 %v1821, 0.0
      %v1876 = vmax.f32 %v1822, 0.0
      %v1877 = vmax.f32 %v1823, 0.0
      %v1878 = vmax.f32 %v1824, 0.0
      %v1879 = vmax.f32 %v1825, 0.0
      %v1880 = vmax.f32 %v1826, 0.0
      %v1881 = vmax.f32 %v1827, 0.0
      %v1882 = vmax.f32 %v1828, 0.0
      %v1883 = vmax.f32 %v1829, 0.0
      %v1884 = vmax.f32 %v1830, 0.0
      %v1885 = vmax.f32 %v1831, 0.0
      %v1886 = vmax.f32 %v1832, 0.0
      %v1887 = vmax.f32 %v1833, 0.0
      %v1888 = vmax.f32 %v1834, 0.0
      %v1889 = vmul.f32 %v1835, %v983
      %v1890 = vmul.f32 %v1836, %v984
      %v1891 = vmul.f32 %v1837, %v985
      %v1892 = vmul.f32 %v1838, %v986
      %v1893 = vmul.f32 %v1839, %v987
      %v1894 = vmul.f32 %v1840, %v988
      %v1895 = vmul.f32 %v1841, %v989
      %v1896 = vmul.f32 %v1842, %v990
      %v1897 = vmul.f32 %v1843, %v991
      %v1898 = vmul.f32 %v1844, %v992
      %v1899 = vmul.f32 %v1845, %v993
      %v1900 = vmul.f32 %v1846, %v994
      %v1901 = vmul.f32 %v1847, %v995
      %v1902 = vmul.f32 %v1848, %v996
      %v1903 = vmul.f32 %v1849, %v997
      %v1904 = vmul.f32 %v1850, %v998
      %v1905 = vmul.f32 %v1851, %v999
      %v1906 = vmul.f32 %v1852, %v1000
      %v1907 = vmul.f32 %v1853, %v1001
      %v1908 = vmul.f32 %v1854, %v1002
      %v1909 = vmul.f32 %v1855, %v1003
      %v1910 = vmul.f32 %v1856, %v1004
      %v1911 = vmul.f32 %v1857, %v1005
      %v1912 = vmul.f32 %v1858, %v1006
      %v1913 = vmul.f32 %v1859, %v1007
      %v1914 = vmul.f32 %v1860, %v1008
      %v1915 = vmul.f32 %v1861, %v1009
      %v1916 = vmul.f32 %v1862, %v1010
      %v1917 = vmul.f32 %v1863, %v1011
      %v1918 = vmul.f32 %v1864, %v1012
      %v1919 = vmul.f32 %v1865, %v1013
      %v1920 = vmul.f32 %v1866, %v1014
      %v1921 = vmul.f32 %v1867, %v1015
      %v1922 = vmul.f32 %v1868, %v1016
      %v1923 = vmul.f32 %v1869, %v1017
      %v1924 = vmul.f32 %v1870, %v1018
      %v1925 = vmul.f32 %v1871, %v1019
      %v1926 = vmul.f32 %v1872, %v1020
      %v1927 = vmul.f32 %v1873, %v1021
      %v1928 = vmul.f32 %v1874, %v1022
      %v1929 = vmul.f32 %v1875, %v1023
      %v1930 = vmul.f32 %v1876, %v1024
      %v1931 = vmul.f32 %v1877, %v1025
      %v1932 = vmul.f32 %v1878, %v1026
      %v1933 = vmul.f32 %v1879, %v1027
      %v1934 = vmul.f32 %v1880, %v1028
      %v1935 = vmul.f32 %v1881, %v1029
      %v1936 = vmul.f32 %v1882, %v1030
      %v1937 = vmul.f32 %v1883, %v1031
      %v1938 = vmul.f32 %v1884, %v1032
      %v1939 = vmul.f32 %v1885, %v1033
      %v1940 = vmul.f32 %v1886, %v1034
      %v1941 = vmul.f32 %v1887, %v1035
      %v1942 = vmul.f32 %v1888, %v1036
      %v1943 = vpack.c.bf16 %v1889, %v1889
      %v1944 = vpack.c.bf16 %v1890, %v1890
      %v1945 = vpack.c.bf16 %v1891, %v1891
      %v1946 = vpack.c.bf16 %v1892, %v1892
      %v1947 = vpack.c.bf16 %v1893, %v1893
      %v1948 = vpack.c.bf16 %v1894, %v1894
      %v1949 = vpack.c.bf16 %v1895, %v1895
      %v1950 = vpack.c.bf16 %v1896, %v1896
      %v1951 = vpack.c.bf16 %v1897, %v1897
      %v1952 = vpack.c.bf16 %v1898, %v1898
      %v1953 = vpack.c.bf16 %v1899, %v1899
      %v1954 = vpack.c.bf16 %v1900, %v1900
      %v1955 = vpack.c.bf16 %v1901, %v1901
      %v1956 = vpack.c.bf16 %v1902, %v1902
      %v1957 = vpack.c.bf16 %v1903, %v1903
      %v1958 = vpack.c.bf16 %v1904, %v1904
      %v1959 = vpack.c.bf16 %v1905, %v1905
      %v1960 = vpack.c.bf16 %v1906, %v1906
      %v1961 = vpack.c.bf16 %v1907, %v1907
      %v1962 = vpack.c.bf16 %v1908, %v1908
      %v1963 = vpack.c.bf16 %v1909, %v1909
      %v1964 = vpack.c.bf16 %v1910, %v1910
      %v1965 = vpack.c.bf16 %v1911, %v1911
      %v1966 = vpack.c.bf16 %v1912, %v1912
      %v1967 = vpack.c.bf16 %v1913, %v1913
      %v1968 = vpack.c.bf16 %v1914, %v1914
      %v1969 = vpack.c.bf16 %v1915, %v1915
      %v1970 = vpack.c.bf16 %v1916, %v1916
      %v1971 = vpack.c.bf16 %v1917, %v1917
      %v1972 = vpack.c.bf16 %v1918, %v1918
      %v1973 = vpack.c.bf16 %v1919, %v1919
      %v1974 = vpack.c.bf16 %v1920, %v1920
      %v1975 = vpack.c.bf16 %v1921, %v1921
      %v1976 = vpack.c.bf16 %v1922, %v1922
      %v1977 = vpack.c.bf16 %v1923, %v1923
      %v1978 = vpack.c.bf16 %v1924, %v1924
      %v1979 = vpack.c.bf16 %v1925, %v1925
      %v1980 = vpack.c.bf16 %v1926, %v1926
      %v1981 = vpack.c.bf16 %v1927, %v1927
      %v1982 = vpack.c.bf16 %v1928, %v1928
      %v1983 = vpack.c.bf16 %v1929, %v1929
      %v1984 = vpack.c.bf16 %v1930, %v1930
      %v1985 = vpack.c.bf16 %v1931, %v1931
      %v1986 = vpack.c.bf16 %v1932, %v1932
      %v1987 = vpack.c.bf16 %v1933, %v1933
      %v1988 = vpack.c.bf16 %v1934, %v1934
      %v1989 = vpack.c.bf16 %v1935, %v1935
      %v1990 = vpack.c.bf16 %v1936, %v1936
      %v1991 = vpack.c.bf16 %v1937, %v1937
      %v1992 = vpack.c.bf16 %v1938, %v1938
      %v1993 = vpack.c.bf16 %v1939, %v1939
      %v1994 = vpack.c.bf16 %v1940, %v1940
      %v1995 = vpack.c.bf16 %v1941, %v1941
      %v1996 = vpack.c.bf16 %v1942, %v1942
      %1997 = vst [vmem:[#allocation2] sm:$0xff] 0
      %1998 = vst [vmem:[#allocation2 + $0x8] sm:$0xf] 0
      %1999 = vst [vmem:[#allocation2 + $0xc] sm:$0xff] 0
      %2000 = vst [vmem:[#allocation2 + $0x14] sm:$0xf] 0
      %2001 = vst [vmem:[#allocation2 + $0x18] sm:$0xff] 0
      %2002 = vst [vmem:[#allocation2 + $0x20] sm:$0xf] 0
      %2003 = vst [vmem:[#allocation2 + $0x24] sm:$0xff] 0
      %2004 = vst [vmem:[#allocation2 + $0x2c] sm:$0xf] 0
      %vm2005 = vcmask 1040384
      %vm2006 = vsmask.f32 256
      %vm2007 = vmand %vm2005, %vm2006
      %vm2008 = vcmask 1044484
      %vm2009 = vsmask.f32 4352
      %vm2010 = vmand %vm2008, %vm2009
      %vm2011 = vmor %vm2010, %vm2007
      %v2012 = vld [vmem:[#allocation2 + $0x30] sm:$0x11]
      %v2013 = vsel %vm2011, 0, %v2012
      %2014 = vst [vmem:[#allocation2 + $0x30] sm:$0x11] %v2013
      %v2015 = vld [vmem:[#allocation2 + $0x38] sm:$0x1]
      %v2016 = vsel %vm2007, 0, %v2015
      %2017 = vst [vmem:[#allocation2 + $0x38] sm:$0x1] %v2016
      %vm2018 = vcmask 1043459
      %vm2019 = vsmask.f32 7950
      %vm2020 = vmand %vm2018, %vm2019
      %vm2021 = vcmask 1047559
      %vm2022 = vsmask.f32 7966
      %vm2023 = vmand %vm2021, %vm2022
      %vm2024 = vmor %vm2023, %vm2020
      %v2025 = vld [vmem:[#allocation2 + $0x2ac] sm:$0x88]
      %v2026 = vsel %vm2024, 0, %v2025
      %2027 = vst [vmem:[#allocation2 + $0x2ac] sm:$0x88] %v2026
      %v2028 = vld [vmem:[#allocation2 + $0x2b4] sm:$0x8]
      %v2029 = vsel %vm2020, 0, %v2028
      %2030 = vst [vmem:[#allocation2 + $0x2b4] sm:$0x8] %v2029
      %2031 = vst [vmem:[#allocation2 + $0x2b8] sm:$0xff] 0
      %2032 = vst [vmem:[#allocation2 + $0x2c0] sm:$0xf] 0
      %2033 = vst [vmem:[#allocation2 + $0x2c4] sm:$0xff] 0
      %2034 = vst [vmem:[#allocation2 + $0x2cc] sm:$0xf] 0
      %2035 = vst [vmem:[#allocation2 + $0x2d0] sm:$0xff] 0
      %2036 = vst [vmem:[#allocation2 + $0x2d8] sm:$0xf] 0
      %2037 = vst [vmem:[#allocation2 + $0x2dc] sm:$0xff] 0
      %2038 = vst [vmem:[#allocation2 + $0x2e4] sm:$0xf] 0
      %vm2039 = vsmask.f32 4368
      %vm2040 = vmor %vm2006, %vm2039
      %v2042 = vshrl.u32 %v1943, 16
      %v2044 = vrot.slane %v2042, 7
      %v2045 = vshll.u32 %v1943, 16
      %v2047 = vor.u32 %v2044, %v2045
      %v2048 = vrot.slane %v2044, 4
      %v2050 = vshrl.u32 %v1944, 16
      %v2052 = vrot.slane %v2050, 7
      %v2053 = vshll.u32 %v1944, 16
      %v2055 = vor.u32 %v2052, %v2053
      %v2056 = vsel %vm2040, %v2048, %v2055
      %v2057 = vrot.slane %v2052, 4
      %v2059 = vshrl.u32 %v1945, 16
      %v2061 = vrot.slane %v2059, 7
      %v2062 = vshll.u32 %v1945, 16
      %v2064 = vor.u32 %v2061, %v2062
      %v2065 = vsel %vm2040, %v2057, %v2064
      %v2066 = vrot.slane %v2061, 4
      %v2068 = vshrl.u32 %v1946, 16
      %v2070 = vrot.slane %v2068, 7
      %v2071 = vshll.u32 %v1946, 16
      %v2073 = vor.u32 %v2070, %v2071
      %v2074 = vsel %vm2040, %v2066, %v2073
      %v2075 = vrot.slane %v2070, 4
      %v2077 = vshrl.u32 %v1947, 16
      %v2079 = vrot.slane %v2077, 7
      %v2080 = vshll.u32 %v1947, 16
      %v2082 = vor.u32 %v2079, %v2080
      %v2083 = vsel %vm2040, %v2075, %v2082
      %v2084 = vrot.slane %v2079, 4
      %v2086 = vshrl.u32 %v1948, 16
      %v2088 = vrot.slane %v2086, 7
      %v2089 = vshll.u32 %v1948, 16
      %v2091 = vor.u32 %v2088, %v2089
      %v2092 = vsel %vm2040, %v2084, %v2091
      %v2093 = vrot.slane %v2088, 4
      %v2095 = vshrl.u32 %v1949, 16
      %v2097 = vrot.slane %v2095, 7
      %v2098 = vshll.u32 %v1949, 16
      %v2100 = vor.u32 %v2097, %v2098
      %v2101 = vsel %vm2040, %v2093, %v2100
      %v2102 = vrot.slane %v2097, 4
      %v2104 = vshrl.u32 %v1950, 16
      %v2106 = vrot.slane %v2104, 7
      %v2107 = vshll.u32 %v1950, 16
      %v2109 = vor.u32 %v2106, %v2107
      %v2110 = vsel %vm2040, %v2102, %v2109
      %v2111 = vrot.slane %v2106, 4
      %v2113 = vshrl.u32 %v1951, 16
      %v2115 = vrot.slane %v2113, 7
      %v2116 = vshll.u32 %v1951, 16
      %v2118 = vor.u32 %v2115, %v2116
      %v2119 = vsel %vm2040, %v2111, %v2118
      %v2120 = vrot.slane %v2115, 4
      %v2122 = vshrl.u32 %v1952, 16
      %v2124 = vrot.slane %v2122, 7
      %v2125 = vshll.u32 %v1952, 16
      %v2127 = vor.u32 %v2124, %v2125
      %v2128 = vsel %vm2040, %v2120, %v2127
      %v2129 = vrot.slane %v2124, 4
      %v2131 = vshrl.u32 %v1953, 16
      %v2133 = vrot.slane %v2131, 7
      %v2134 = vshll.u32 %v1953, 16
      %v2136 = vor.u32 %v2133, %v2134
      %v2137 = vsel %vm2040, %v2129, %v2136
      %v2138 = vrot.slane %v2133, 4
      %v2140 = vshrl.u32 %v1954, 16
      %v2142 = vrot.slane %v2140, 7
      %v2143 = vshll.u32 %v1954, 16
      %v2145 = vor.u32 %v2142, %v2143
      %v2146 = vsel %vm2040, %v2138, %v2145
      %v2147 = vrot.slane %v2142, 4
      %v2149 = vshrl.u32 %v1955, 16
      %v2151 = vrot.slane %v2149, 7
      %v2152 = vshll.u32 %v1955, 16
      %v2154 = vor.u32 %v2151, %v2152
      %v2155 = vsel %vm2040, %v2147, %v2154
      %v2156 = vrot.slane %v2151, 4
      %v2158 = vshrl.u32 %v1956, 16
      %v2160 = vrot.slane %v2158, 7
      %v2161 = vshll.u32 %v1956, 16
      %v2163 = vor.u32 %v2160, %v2161
      %v2164 = vsel %vm2040, %v2156, %v2163
      %v2165 = vrot.slane %v2160, 4
      %v2167 = vshrl.u32 %v1957, 16
      %v2169 = vrot.slane %v2167, 7
      %v2170 = vshll.u32 %v1957, 16
      %v2172 = vor.u32 %v2169, %v2170
      %v2173 = vsel %vm2040, %v2165, %v2172
      %v2174 = vrot.slane %v2169, 4
      %v2176 = vshrl.u32 %v1958, 16
      %v2178 = vrot.slane %v2176, 7
      %v2179 = vshll.u32 %v1958, 16
      %v2181 = vor.u32 %v2178, %v2179
      %v2182 = vsel %vm2040, %v2174, %v2181
      %v2183 = vrot.slane %v2178, 4
      %v2185 = vshrl.u32 %v1959, 16
      %v2187 = vrot.slane %v2185, 7
      %v2188 = vshll.u32 %v1959, 16
      %v2190 = vor.u32 %v2187, %v2188
      %v2191 = vsel %vm2040, %v2183, %v2190
      %v2192 = vrot.slane %v2187, 4
      %v2194 = vshrl.u32 %v1960, 16
      %v2196 = vrot.slane %v2194, 7
      %v2197 = vshll.u32 %v1960, 16
      %v2199 = vor.u32 %v2196, %v2197
      %v2200 = vsel %vm2040, %v2192, %v2199
      %v2201 = vrot.slane %v2196, 4
      %v2203 = vshrl.u32 %v1961, 16
      %v2205 = vrot.slane %v2203, 7
      %v2206 = vshll.u32 %v1961, 16
      %v2208 = vor.u32 %v2205, %v2206
      %v2209 = vsel %vm2040, %v2201, %v2208
      %v2210 = vrot.slane %v2205, 4
      %v2212 = vshrl.u32 %v1962, 16
      %v2214 = vrot.slane %v2212, 7
      %v2215 = vshll.u32 %v1962, 16
      %v2217 = vor.u32 %v2214, %v2215
      %v2218 = vsel %vm2040, %v2210, %v2217
      %v2219 = vrot.slane %v2214, 4
      %v2221 = vshrl.u32 %v1963, 16
      %v2223 = vrot.slane %v2221, 7
      %v2224 = vshll.u32 %v1963, 16
      %v2226 = vor.u32 %v2223, %v2224
      %v2227 = vsel %vm2040, %v2219, %v2226
      %v2228 = vrot.slane %v2223, 4
      %v2230 = vshrl.u32 %v1964, 16
      %v2232 = vrot.slane %v2230, 7
      %v2233 = vshll.u32 %v1964, 16
      %v2235 = vor.u32 %v2232, %v2233
      %v2236 = vsel %vm2040, %v2228, %v2235
      %v2237 = vrot.slane %v2232, 4
      %v2239 = vshrl.u32 %v1965, 16
      %v2241 = vrot.slane %v2239, 7
      %v2242 = vshll.u32 %v1965, 16
      %v2244 = vor.u32 %v2241, %v2242
      %v2245 = vsel %vm2040, %v2237, %v2244
      %v2246 = vrot.slane %v2241, 4
      %v2248 = vshrl.u32 %v1966, 16
      %v2250 = vrot.slane %v2248, 7
      %v2251 = vshll.u32 %v1966, 16
      %v2253 = vor.u32 %v2250, %v2251
      %v2254 = vsel %vm2040, %v2246, %v2253
      %v2255 = vrot.slane %v2250, 4
      %v2257 = vshrl.u32 %v1967, 16
      %v2259 = vrot.slane %v2257, 7
      %v2260 = vshll.u32 %v1967, 16
      %v2262 = vor.u32 %v2259, %v2260
      %v2263 = vsel %vm2040, %v2255, %v2262
      %v2264 = vrot.slane %v2259, 4
      %v2266 = vshrl.u32 %v1968, 16
      %v2268 = vrot.slane %v2266, 7
      %v2269 = vshll.u32 %v1968, 16
      %v2271 = vor.u32 %v2268, %v2269
      %v2272 = vsel %vm2040, %v2264, %v2271
      %v2273 = vrot.slane %v2268, 4
      %v2275 = vshrl.u32 %v1969, 16
      %v2277 = vrot.slane %v2275, 7
      %v2278 = vshll.u32 %v1969, 16
      %v2280 = vor.u32 %v2277, %v2278
      %v2281 = vsel %vm2040, %v2273, %v2280
      %v2282 = vrot.slane %v2277, 4
      %v2284 = vshrl.u32 %v1970, 16
      %v2286 = vrot.slane %v2284, 7
      %v2287 = vshll.u32 %v1970, 16
      %v2289 = vor.u32 %v2286, %v2287
      %v2290 = vsel %vm2040, %v2282, %v2289
      %v2291 = vrot.slane %v2286, 4
      %v2293 = vshrl.u32 %v1971, 16
      %v2295 = vrot.slane %v2293, 7
      %v2296 = vshll.u32 %v1971, 16
      %v2298 = vor.u32 %v2295, %v2296
      %v2299 = vsel %vm2040, %v2291, %v2298
      %v2300 = vrot.slane %v2295, 4
      %v2302 = vshrl.u32 %v1972, 16
      %v2304 = vrot.slane %v2302, 7
      %v2305 = vshll.u32 %v1972, 16
      %v2307 = vor.u32 %v2304, %v2305
      %v2308 = vsel %vm2040, %v2300, %v2307
      %v2309 = vrot.slane %v2304, 4
      %v2311 = vshrl.u32 %v1973, 16
      %v2313 = vrot.slane %v2311, 7
      %v2314 = vshll.u32 %v1973, 16
      %v2316 = vor.u32 %v2313, %v2314
      %v2317 = vsel %vm2040, %v2309, %v2316
      %v2318 = vrot.slane %v2313, 4
      %v2320 = vshrl.u32 %v1974, 16
      %v2322 = vrot.slane %v2320, 7
      %v2323 = vshll.u32 %v1974, 16
      %v2325 = vor.u32 %v2322, %v2323
      %v2326 = vsel %vm2040, %v2318, %v2325
      %v2327 = vrot.slane %v2322, 4
      %v2329 = vshrl.u32 %v1975, 16
      %v2331 = vrot.slane %v2329, 7
      %v2332 = vshll.u32 %v1975, 16
      %v2334 = vor.u32 %v2331, %v2332
      %v2335 = vsel %vm2040, %v2327, %v2334
      %v2336 = vrot.slane %v2331, 4
      %v2338 = vshrl.u32 %v1976, 16
      %v2340 = vrot.slane %v2338, 7
      %v2341 = vshll.u32 %v1976, 16
      %v2343 = vor.u32 %v2340, %v2341
      %v2344 = vsel %vm2040, %v2336, %v2343
      %v2345 = vrot.slane %v2340, 4
      %v2347 = vshrl.u32 %v1977, 16
      %v2349 = vrot.slane %v2347, 7
      %v2350 = vshll.u32 %v1977, 16
      %v2352 = vor.u32 %v2349, %v2350
      %v2353 = vsel %vm2040, %v2345, %v2352
      %v2354 = vrot.slane %v2349, 4
      %v2356 = vshrl.u32 %v1978, 16
      %v2358 = vrot.slane %v2356, 7
      %v2359 = vshll.u32 %v1978, 16
      %v2361 = vor.u32 %v2358, %v2359
      %v2362 = vsel %vm2040, %v2354, %v2361
      %v2363 = vrot.slane %v2358, 4
      %v2365 = vshrl.u32 %v1979, 16
      %v2367 = vrot.slane %v2365, 7
      %v2368 = vshll.u32 %v1979, 16
      %v2370 = vor.u32 %v2367, %v2368
      %v2371 = vsel %vm2040, %v2363, %v2370
      %v2372 = vrot.slane %v2367, 4
      %v2374 = vshrl.u32 %v1980, 16
      %v2376 = vrot.slane %v2374, 7
      %v2377 = vshll.u32 %v1980, 16
      %v2379 = vor.u32 %v2376, %v2377
      %v2380 = vsel %vm2040, %v2372, %v2379
      %v2381 = vrot.slane %v2376, 4
      %v2383 = vshrl.u32 %v1981, 16
      %v2385 = vrot.slane %v2383, 7
      %v2386 = vshll.u32 %v1981, 16
      %v2388 = vor.u32 %v2385, %v2386
      %v2389 = vsel %vm2040, %v2381, %v2388
      %v2390 = vrot.slane %v2385, 4
      %v2392 = vshrl.u32 %v1982, 16
      %v2394 = vrot.slane %v2392, 7
      %v2395 = vshll.u32 %v1982, 16
      %v2397 = vor.u32 %v2394, %v2395
      %v2398 = vsel %vm2040, %v2390, %v2397
      %v2399 = vrot.slane %v2394, 4
      %v2401 = vshrl.u32 %v1983, 16
      %v2403 = vrot.slane %v2401, 7
      %v2404 = vshll.u32 %v1983, 16
      %v2406 = vor.u32 %v2403, %v2404
      %v2407 = vsel %vm2040, %v2399, %v2406
      %v2408 = vrot.slane %v2403, 4
      %v2410 = vshrl.u32 %v1984, 16
      %v2412 = vrot.slane %v2410, 7
      %v2413 = vshll.u32 %v1984, 16
      %v2415 = vor.u32 %v2412, %v2413
      %v2416 = vsel %vm2040, %v2408, %v2415
      %v2417 = vrot.slane %v2412, 4
      %v2419 = vshrl.u32 %v1985, 16
      %v2421 = vrot.slane %v2419, 7
      %v2422 = vshll.u32 %v1985, 16
      %v2424 = vor.u32 %v2421, %v2422
      %v2425 = vsel %vm2040, %v2417, %v2424
      %v2426 = vrot.slane %v2421, 4
      %v2428 = vshrl.u32 %v1986, 16
      %v2430 = vrot.slane %v2428, 7
      %v2431 = vshll.u32 %v1986, 16
      %v2433 = vor.u32 %v2430, %v2431
      %v2434 = vsel %vm2040, %v2426, %v2433
      %v2435 = vrot.slane %v2430, 4
      %v2437 = vshrl.u32 %v1987, 16
      %v2439 = vrot.slane %v2437, 7
      %v2440 = vshll.u32 %v1987, 16
      %v2442 = vor.u32 %v2439, %v2440
      %v2443 = vsel %vm2040, %v2435, %v2442
      %v2444 = vrot.slane %v2439, 4
      %v2446 = vshrl.u32 %v1988, 16
      %v2448 = vrot.slane %v2446, 7
      %v2449 = vshll.u32 %v1988, 16
      %v2451 = vor.u32 %v2448, %v2449
      %v2452 = vsel %vm2040, %v2444, %v2451
      %v2453 = vrot.slane %v2448, 4
      %v2455 = vshrl.u32 %v1989, 16
      %v2457 = vrot.slane %v2455, 7
      %v2458 = vshll.u32 %v1989, 16
      %v2460 = vor.u32 %v2457, %v2458
      %v2461 = vsel %vm2040, %v2453, %v2460
      %v2462 = vrot.slane %v2457, 4
      %v2464 = vshrl.u32 %v1990, 16
      %v2466 = vrot.slane %v2464, 7
      %v2467 = vshll.u32 %v1990, 16
      %v2469 = vor.u32 %v2466, %v2467
      %v2470 = vsel %vm2040, %v2462, %v2469
      %v2471 = vrot.slane %v2466, 4
      %v2473 = vshrl.u32 %v1991, 16
      %v2475 = vrot.slane %v2473, 7
      %v2476 = vshll.u32 %v1991, 16
      %v2478 = vor.u32 %v2475, %v2476
      %v2479 = vsel %vm2040, %v2471, %v2478
      %v2480 = vrot.slane %v2475, 4
      %v2482 = vshrl.u32 %v1992, 16
      %v2484 = vrot.slane %v2482, 7
      %v2485 = vshll.u32 %v1992, 16
      %v2487 = vor.u32 %v2484, %v2485
      %v2488 = vsel %vm2040, %v2480, %v2487
      %v2489 = vrot.slane %v2484, 4
      %v2491 = vshrl.u32 %v1993, 16
      %v2493 = vrot.slane %v2491, 7
      %v2494 = vshll.u32 %v1993, 16
      %v2496 = vor.u32 %v2493, %v2494
      %v2497 = vsel %vm2040, %v2489, %v2496
      %v2498 = vrot.slane %v2493, 4
      %v2500 = vshrl.u32 %v1994, 16
      %v2502 = vrot.slane %v2500, 7
      %v2503 = vshll.u32 %v1994, 16
      %v2505 = vor.u32 %v2502, %v2503
      %v2506 = vsel %vm2040, %v2498, %v2505
      %v2507 = vrot.slane %v2502, 4
      %v2509 = vshrl.u32 %v1995, 16
      %v2511 = vrot.slane %v2509, 7
      %v2512 = vshll.u32 %v1995, 16
      %v2514 = vor.u32 %v2511, %v2512
      %v2515 = vsel %vm2040, %v2507, %v2514
      %v2516 = vrot.slane %v2511, 4
      %v2518 = vshrl.u32 %v1996, 16
      %v2520 = vrot.slane %v2518, 7
      %v2521 = vshll.u32 %v1996, 16
      %v2523 = vor.u32 %v2520, %v2521
      %v2524 = vsel %vm2040, %v2516, %v2523
      %v2525 = vrot.slane %v2520, 4
      %vm2581 = vcmask 1043456
      %vm2582 = vsmask.f32 7938
      %vm2583 = vmand %vm2581, %vm2582
      %v2584 = vld [vmem:[#allocation2 + $0x30] sm:$0xf]
      %v2585 = vsel %vm2583, %v2047, %v2584
      %2586 = vst [vmem:[#allocation2 + $0x30] sm:$0xf] %v2585
      %2587 = vst [vmem:[#allocation2 + $0x3c] sm:$0xf] %v2056
      %2588 = vst [vmem:[#allocation2 + $0x48] sm:$0xf] %v2065
      %2589 = vst [vmem:[#allocation2 + $0x54] sm:$0xf] %v2074
      %2590 = vst [vmem:[#allocation2 + $0x60] sm:$0xf] %v2083
      %2591 = vst [vmem:[#allocation2 + $0x6c] sm:$0xf] %v2092
      %2592 = vst [vmem:[#allocation2 + $0x78] sm:$0xf] %v2101
      %2593 = vst [vmem:[#allocation2 + $0x84] sm:$0xf] %v2110
      %2594 = vst [vmem:[#allocation2 + $0x90] sm:$0xf] %v2119
      %2595 = vst [vmem:[#allocation2 + $0x9c] sm:$0xf] %v2128
      %2596 = vst [vmem:[#allocation2 + $0xa8] sm:$0xf] %v2137
      %2597 = vst [vmem:[#allocation2 + $0xb4] sm:$0xf] %v2146
      %2598 = vst [vmem:[#allocation2 + $0xc0] sm:$0xf] %v2155
      %2599 = vst [vmem:[#allocation2 + $0xcc] sm:$0xf] %v2164
      %2600 = vst [vmem:[#allocation2 + $0xd8] sm:$0xf] %v2173
      %2601 = vst [vmem:[#allocation2 + $0xe4] sm:$0xf] %v2182
      %2602 = vst [vmem:[#allocation2 + $0xf0] sm:$0xf] %v2191
      %2603 = vst [vmem:[#allocation2 + $0xfc] sm:$0xf] %v2200
      %2604 = vst [vmem:[#allocation2 + $0x108] sm:$0xf] %v2209
      %2605 = vst [vmem:[#allocation2 + $0x114] sm:$0xf] %v2218
      %2606 = vst [vmem:[#allocation2 + $0x120] sm:$0xf] %v2227
      %2607 = vst [vmem:[#allocation2 + $0x12c] sm:$0xf] %v2236
      %2608 = vst [vmem:[#allocation2 + $0x138] sm:$0xf] %v2245
      %2609 = vst [vmem:[#allocation2 + $0x144] sm:$0xf] %v2254
      %2610 = vst [vmem:[#allocation2 + $0x150] sm:$0xf] %v2263
      %2611 = vst [vmem:[#allocation2 + $0x15c] sm:$0xf] %v2272
      %2612 = vst [vmem:[#allocation2 + $0x168] sm:$0xf] %v2281
      %2613 = vst [vmem:[#allocation2 + $0x174] sm:$0xf] %v2290
      %2614 = vst [vmem:[#allocation2 + $0x180] sm:$0xf] %v2299
      %2615 = vst [vmem:[#allocation2 + $0x18c] sm:$0xf] %v2308
      %2616 = vst [vmem:[#allocation2 + $0x198] sm:$0xf] %v2317
      %2617 = vst [vmem:[#allocation2 + $0x1a4] sm:$0xf] %v2326
      %2618 = vst [vmem:[#allocation2 + $0x1b0] sm:$0xf] %v2335
      %2619 = vst [vmem:[#allocation2 + $0x1bc] sm:$0xf] %v2344
      %2620 = vst [vmem:[#allocation2 + $0x1c8] sm:$0xf] %v2353
      %2621 = vst [vmem:[#allocation2 + $0x1d4] sm:$0xf] %v2362
      %2622 = vst [vmem:[#allocation2 + $0x1e0] sm:$0xf] %v2371
      %2623 = vst [vmem:[#allocation2 + $0x1ec] sm:$0xf] %v2380
      %2624 = vst [vmem:[#allocation2 + $0x1f8] sm:$0xf] %v2389
      %2625 = vst [vmem:[#allocation2 + $0x204] sm:$0xf] %v2398
      %2626 = vst [vmem:[#allocation2 + $0x210] sm:$0xf] %v2407
      %2627 = vst [vmem:[#allocation2 + $0x21c] sm:$0xf] %v2416
      %2628 = vst [vmem:[#allocation2 + $0x228] sm:$0xf] %v2425
      %2629 = vst [vmem:[#allocation2 + $0x234] sm:$0xf] %v2434
      %2630 = vst [vmem:[#allocation2 + $0x240] sm:$0xf] %v2443
      %2631 = vst [vmem:[#allocation2 + $0x24c] sm:$0xf] %v2452
      %2632 = vst [vmem:[#allocation2 + $0x258] sm:$0xf] %v2461
      %2633 = vst [vmem:[#allocation2 + $0x264] sm:$0xf] %v2470
      %2634 = vst [vmem:[#allocation2 + $0x270] sm:$0xf] %v2479
      %2635 = vst [vmem:[#allocation2 + $0x27c] sm:$0xf] %v2488
      %2636 = vst [vmem:[#allocation2 + $0x288] sm:$0xf] %v2497
      %2637 = vst [vmem:[#allocation2 + $0x294] sm:$0xf] %v2506
      %2638 = vst [vmem:[#allocation2 + $0x2a0] sm:$0xf] %v2515
      %2639 = vst [vmem:[#allocation2 + $0x2ac] sm:$0xf] %v2524
      %v2640 = vld [vmem:[#allocation2 + $0x2b8] sm:$0x1]
      %v2641 = vsel %vm2007, %v2525, %v2640
      %2642 = vst [vmem:[#allocation2 + $0x2b8] sm:$0x1] %v2641
      %2643 = vst [vmem:[#allocation2 + $0x34] sm:$0xf] %v1943
      %2644 = vst [vmem:[#allocation2 + $0x40] sm:$0xf] %v1944
      %2645 = vst [vmem:[#allocation2 + $0x4c] sm:$0xf] %v1945
      %2646 = vst [vmem:[#allocation2 + $0x58] sm:$0xf] %v1946
      %2647 = vst [vmem:[#allocation2 + $0x64] sm:$0xf] %v1947
      %2648 = vst [vmem:[#allocation2 + $0x70] sm:$0xf] %v1948
      %2649 = vst [vmem:[#allocation2 + $0x7c] sm:$0xf] %v1949
      %2650 = vst [vmem:[#allocation2 + $0x88] sm:$0xf] %v1950
      %2651 = vst [vmem:[#allocation2 + $0x94] sm:$0xf] %v1951
      %2652 = vst [vmem:[#allocation2 + $0xa0] sm:$0xf] %v1952
      %2653 = vst [vmem:[#allocation2 + $0xac] sm:$0xf] %v1953
      %2654 = vst [vmem:[#allocation2 + $0xb8] sm:$0xf] %v1954
      %2655 = vst [vmem:[#allocation2 + $0xc4] sm:$0xf] %v1955
      %2656 = vst [vmem:[#allocation2 + $0xd0] sm:$0xf] %v1956
      %2657 = vst [vmem:[#allocation2 + $0xdc] sm:$0xf] %v1957
      %2658 = vst [vmem:[#allocation2 + $0xe8] sm:$0xf] %v1958
      %2659 = vst [vmem:[#allocation2 + $0xf4] sm:$0xf] %v1959
      %2660 = vst [vmem:[#allocation2 + $0x100] sm:$0xf] %v1960
      %2661 = vst [vmem:[#allocation2 + $0x10c] sm:$0xf] %v1961
      %2662 = vst [vmem:[#allocation2 + $0x118] sm:$0xf] %v1962
      %2663 = vst [vmem:[#allocation2 + $0x124] sm:$0xf] %v1963
      %2664 = vst [vmem:[#allocation2 + $0x130] sm:$0xf] %v1964
      %2665 = vst [vmem:[#allocation2 + $0x13c] sm:$0xf] %v1965
      %2666 = vst [vmem:[#allocation2 + $0x148] sm:$0xf] %v1966
      %2667 = vst [vmem:[#allocation2 + $0x154] sm:$0xf] %v1967
      %2668 = vst [vmem:[#allocation2 + $0x160] sm:$0xf] %v1968
      %2669 = vst [vmem:[#allocation2 + $0x16c] sm:$0xf] %v1969
      %2670 = vst [vmem:[#allocation2 + $0x178] sm:$0xf] %v1970
      %2671 = vst [vmem:[#allocation2 + $0x184] sm:$0xf] %v1971
      %2672 = vst [vmem:[#allocation2 + $0x190] sm:$0xf] %v1972
      %2673 = vst [vmem:[#allocation2 + $0x19c] sm:$0xf] %v1973
      %2674 = vst [vmem:[#allocation2 + $0x1a8] sm:$0xf] %v1974
      %2675 = vst [vmem:[#allocation2 + $0x1b4] sm:$0xf] %v1975
      %2676 = vst [vmem:[#allocation2 + $0x1c0] sm:$0xf] %v1976
      %2677 = vst [vmem:[#allocation2 + $0x1cc] sm:$0xf] %v1977
      %2678 = vst [vmem:[#allocation2 + $0x1d8] sm:$0xf] %v1978
      %2679 = vst [vmem:[#allocation2 + $0x1e4] sm:$0xf] %v1979
      %2680 = vst [vmem:[#allocation2 + $0x1f0] sm:$0xf] %v1980
      %2681 = vst [vmem:[#allocation2 + $0x1fc] sm:$0xf] %v1981
      %2682 = vst [vmem:[#allocation2 + $0x208] sm:$0xf] %v1982
      %2683 = vst [vmem:[#allocation2 + $0x214] sm:$0xf] %v1983
      %2684 = vst [vmem:[#allocation2 + $0x220] sm:$0xf] %v1984
      %2685 = vst [vmem:[#allocation2 + $0x22c] sm:$0xf] %v1985
      %2686 = vst [vmem:[#allocation2 + $0x238] sm:$0xf] %v1986
      %2687 = vst [vmem:[#allocation2 + $0x244] sm:$0xf] %v1987
      %2688 = vst [vmem:[#allocation2 + $0x250] sm:$0xf] %v1988
      %2689 = vst [vmem:[#allocation2 + $0x25c] sm:$0xf] %v1989
      %2690 = vst [vmem:[#allocation2 + $0x268] sm:$0xf] %v1990
      %2691 = vst [vmem:[#allocation2 + $0x274] sm:$0xf] %v1991
      %2692 = vst [vmem:[#allocation2 + $0x280] sm:$0xf] %v1992
      %2693 = vst [vmem:[#allocation2 + $0x28c] sm:$0xf] %v1993
      %2694 = vst [vmem:[#allocation2 + $0x298] sm:$0xf] %v1994
      %2695 = vst [vmem:[#allocation2 + $0x2a4] sm:$0xf] %v1995
      %2696 = vst [vmem:[#allocation2 + $0x2b0] sm:$0xf] %v1996
      %vm2697 = vsmask.f32 3328
      %vm2698 = vsmask.f32 7440
      %vm2699 = vmor %vm2697, %vm2698
      %v2700 = vrot.slane %v2045, 5
      %v2701 = vrot.slane %v2042, 4
      %v2702 = vor.u32 %v2701, %v2700
      %v2703 = vrot.slane %v2702, 4
      %v2704 = vrot.slane %v2053, 5
      %v2705 = vsel %vm2699, %v2703, %v2704
      %v2706 = vrot.slane %v2050, 4
      %v2707 = vor.u32 %v2706, %v2704
      %v2708 = vrot.slane %v2707, 4
      %v2709 = vrot.slane %v2062, 5
      %v2710 = vsel %vm2699, %v2708, %v2709
      %v2711 = vrot.slane %v2059, 4
      %v2712 = vor.u32 %v2711, %v2709
      %v2713 = vrot.slane %v2712, 4
      %v2714 = vrot.slane %v2071, 5
      %v2715 = vsel %vm2699, %v2713, %v2714
      %v2716 = vrot.slane %v2068, 4
      %v2717 = vor.u32 %v2716, %v2714
      %v2718 = vrot.slane %v2717, 4
      %v2719 = vrot.slane %v2080, 5
      %v2720 = vsel %vm2699, %v2718, %v2719
      %v2721 = vrot.slane %v2077, 4
      %v2722 = vor.u32 %v2721, %v2719
      %v2723 = vrot.slane %v2722, 4
      %v2724 = vrot.slane %v2089, 5
      %v2725 = vsel %vm2699, %v2723, %v2724
      %v2726 = vrot.slane %v2086, 4
      %v2727 = vor.u32 %v2726, %v2724
      %v2728 = vrot.slane %v2727, 4
      %v2729 = vrot.slane %v2098, 5
      %v2730 = vsel %vm2699, %v2728, %v2729
      %v2731 = vrot.slane %v2095, 4
      %v2732 = vor.u32 %v2731, %v2729
      %v2733 = vrot.slane %v2732, 4
      %v2734 = vrot.slane %v2107, 5
      %v2735 = vsel %vm2699, %v2733, %v2734
      %v2736 = vrot.slane %v2104, 4
      %v2737 = vor.u32 %v2736, %v2734
      %v2738 = vrot.slane %v2737, 4
      %v2739 = vrot.slane %v2116, 5
      %v2740 = vsel %vm2699, %v2738, %v2739
      %v2741 = vrot.slane %v2113, 4
      %v2742 = vor.u32 %v2741, %v2739
      %v2743 = vrot.slane %v2742, 4
      %v2744 = vrot.slane %v2125, 5
      %v2745 = vsel %vm2699, %v2743, %v2744
      %v2746 = vrot.slane %v2122, 4
      %v2747 = vor.u32 %v2746, %v2744
      %v2748 = vrot.slane %v2747, 4
      %v2749 = vrot.slane %v2134, 5
      %v2750 = vsel %vm2699, %v2748, %v2749
      %v2751 = vrot.slane %v2131, 4
      %v2752 = vor.u32 %v2751, %v2749
      %v2753 = vrot.slane %v2752, 4
      %v2754 = vrot.slane %v2143, 5
      %v2755 = vsel %vm2699, %v2753, %v2754
      %v2756 = vrot.slane %v2140, 4
      %v2757 = vor.u32 %v2756, %v2754
      %v2758 = vrot.slane %v2757, 4
      %v2759 = vrot.slane %v2152, 5
      %v2760 = vsel %vm2699, %v2758, %v2759
      %v2761 = vrot.slane %v2149, 4
      %v2762 = vor.u32 %v2761, %v2759
      %v2763 = vrot.slane %v2762, 4
      %v2764 = vrot.slane %v2161, 5
      %v2765 = vsel %vm2699, %v2763, %v2764
      %v2766 = vrot.slane %v2158, 4
      %v2767 = vor.u32 %v2766, %v2764
      %v2768 = vrot.slane %v2767, 4
      %v2769 = vrot.slane %v2170, 5
      %v2770 = vsel %vm2699, %v2768, %v2769
      %v2771 = vrot.slane %v2167, 4
      %v2772 = vor.u32 %v2771, %v2769
      %v2773 = vrot.slane %v2772, 4
      %v2774 = vrot.slane %v2179, 5
      %v2775 = vsel %vm2699, %v2773, %v2774
      %v2776 = vrot.slane %v2176, 4
      %v2777 = vor.u32 %v2776, %v2774
      %v2778 = vrot.slane %v2777, 4
      %v2779 = vrot.slane %v2188, 5
      %v2780 = vsel %vm2699, %v2778, %v2779
      %v2781 = vrot.slane %v2185, 4
      %v2782 = vor.u32 %v2781, %v2779
      %v2783 = vrot.slane %v2782, 4
      %v2784 = vrot.slane %v2197, 5
      %v2785 = vsel %vm2699, %v2783, %v2784
      %v2786 = vrot.slane %v2194, 4
      %v2787 = vor.u32 %v2786, %v2784
      %v2788 = vrot.slane %v2787, 4
      %v2789 = vrot.slane %v2206, 5
      %v2790 = vsel %vm2699, %v2788, %v2789
      %v2791 = vrot.slane %v2203, 4
      %v2792 = vor.u32 %v2791, %v2789
      %v2793 = vrot.slane %v2792, 4
      %v2794 = vrot.slane %v2215, 5
      %v2795 = vsel %vm2699, %v2793, %v2794
      %v2796 = vrot.slane %v2212, 4
      %v2797 = vor.u32 %v2796, %v2794
      %v2798 = vrot.slane %v2797, 4
      %v2799 = vrot.slane %v2224, 5
      %v2800 = vsel %vm2699, %v2798, %v2799
      %v2801 = vrot.slane %v2221, 4
      %v2802 = vor.u32 %v2801, %v2799
      %v2803 = vrot.slane %v2802, 4
      %v2804 = vrot.slane %v2233, 5
      %v2805 = vsel %vm2699, %v2803, %v2804
      %v2806 = vrot.slane %v2230, 4
      %v2807 = vor.u32 %v2806, %v2804
      %v2808 = vrot.slane %v2807, 4
      %v2809 = vrot.slane %v2242, 5
      %v2810 = vsel %vm2699, %v2808, %v2809
      %v2811 = vrot.slane %v2239, 4
      %v2812 = vor.u32 %v2811, %v2809
      %v2813 = vrot.slane %v2812, 4
      %v2814 = vrot.slane %v2251, 5
      %v2815 = vsel %vm2699, %v2813, %v2814
      %v2816 = vrot.slane %v2248, 4
      %v2817 = vor.u32 %v2816, %v2814
      %v2818 = vrot.slane %v2817, 4
      %v2819 = vrot.slane %v2260, 5
      %v2820 = vsel %vm2699, %v2818, %v2819
      %v2821 = vrot.slane %v2257, 4
      %v2822 = vor.u32 %v2821, %v2819
      %v2823 = vrot.slane %v2822, 4
      %v2824 = vrot.slane %v2269, 5
      %v2825 = vsel %vm2699, %v2823, %v2824
      %v2826 = vrot.slane %v2266, 4
      %v2827 = vor.u32 %v2826, %v2824
      %v2828 = vrot.slane %v2827, 4
      %v2829 = vrot.slane %v2278, 5
      %v2830 = vsel %vm2699, %v2828, %v2829
      %v2831 = vrot.slane %v2275, 4
      %v2832 = vor.u32 %v2831, %v2829
      %v2833 = vrot.slane %v2832, 4
      %v2834 = vrot.slane %v2287, 5
      %v2835 = vsel %vm2699, %v2833, %v2834
      %v2836 = vrot.slane %v2284, 4
      %v2837 = vor.u32 %v2836, %v2834
      %v2838 = vrot.slane %v2837, 4
      %v2839 = vrot.slane %v2296, 5
      %v2840 = vsel %vm2699, %v2838, %v2839
      %v2841 = vrot.slane %v2293, 4
      %v2842 = vor.u32 %v2841, %v2839
      %v2843 = vrot.slane %v2842, 4
      %v2844 = vrot.slane %v2305, 5
      %v2845 = vsel %vm2699, %v2843, %v2844
      %v2846 = vrot.slane %v2302, 4
      %v2847 = vor.u32 %v2846, %v2844
      %v2848 = vrot.slane %v2847, 4
      %v2849 = vrot.slane %v2314, 5
      %v2850 = vsel %vm2699, %v2848, %v2849
      %v2851 = vrot.slane %v2311, 4
      %v2852 = vor.u32 %v2851, %v2849
      %v2853 = vrot.slane %v2852, 4
      %v2854 = vrot.slane %v2323, 5
      %v2855 = vsel %vm2699, %v2853, %v2854
      %v2856 = vrot.slane %v2320, 4
      %v2857 = vor.u32 %v2856, %v2854
      %v2858 = vrot.slane %v2857, 4
      %v2859 = vrot.slane %v2332, 5
      %v2860 = vsel %vm2699, %v2858, %v2859
      %v2861 = vrot.slane %v2329, 4
      %v2862 = vor.u32 %v2861, %v2859
      %v2863 = vrot.slane %v2862, 4
      %v2864 = vrot.slane %v2341, 5
      %v2865 = vsel %vm2699, %v2863, %v2864
      %v2866 = vrot.slane %v2338, 4
      %v2867 = vor.u32 %v2866, %v2864
      %v2868 = vrot.slane %v2867, 4
      %v2869 = vrot.slane %v2350, 5
      %v2870 = vsel %vm2699, %v2868, %v2869
      %v2871 = vrot.slane %v2347, 4
      %v2872 = vor.u32 %v2871, %v2869
      %v2873 = vrot.slane %v2872, 4
      %v2874 = vrot.slane %v2359, 5
      %v2875 = vsel %vm2699, %v2873, %v2874
      %v2876 = vrot.slane %v2356, 4
      %v2877 = vor.u32 %v2876, %v2874
      %v2878 = vrot.slane %v2877, 4
      %v2879 = vrot.slane %v2368, 5
      %v2880 = vsel %vm2699, %v2878, %v2879
      %v2881 = vrot.slane %v2365, 4
      %v2882 = vor.u32 %v2881, %v2879
      %v2883 = vrot.slane %v2882, 4
      %v2884 = vrot.slane %v2377, 5
      %v2885 = vsel %vm2699, %v2883, %v2884
      %v2886 = vrot.slane %v2374, 4
      %v2887 = vor.u32 %v2886, %v2884
      %v2888 = vrot.slane %v2887, 4
      %v2889 = vrot.slane %v2386, 5
      %v2890 = vsel %vm2699, %v2888, %v2889
      %v2891 = vrot.slane %v2383, 4
      %v2892 = vor.u32 %v2891, %v2889
      %v2893 = vrot.slane %v2892, 4
      %v2894 = vrot.slane %v2395, 5
      %v2895 = vsel %vm2699, %v2893, %v2894
      %v2896 = vrot.slane %v2392, 4
      %v2897 = vor.u32 %v2896, %v2894
      %v2898 = vrot.slane %v2897, 4
      %v2899 = vrot.slane %v2404, 5
      %v2900 = vsel %vm2699, %v2898, %v2899
      %v2901 = vrot.slane %v2401, 4
      %v2902 = vor.u32 %v2901, %v2899
      %v2903 = vrot.slane %v2902, 4
      %v2904 = vrot.slane %v2413, 5
      %v2905 = vsel %vm2699, %v2903, %v2904
      %v2906 = vrot.slane %v2410, 4
      %v2907 = vor.u32 %v2906, %v2904
      %v2908 = vrot.slane %v2907, 4
      %v2909 = vrot.slane %v2422, 5
      %v2910 = vsel %vm2699, %v2908, %v2909
      %v2911 = vrot.slane %v2419, 4
      %v2912 = vor.u32 %v2911, %v2909
      %v2913 = vrot.slane %v2912, 4
      %v2914 = vrot.slane %v2431, 5
      %v2915 = vsel %vm2699, %v2913, %v2914
      %v2916 = vrot.slane %v2428, 4
      %v2917 = vor.u32 %v2916, %v2914
      %v2918 = vrot.slane %v2917, 4
      %v2919 = vrot.slane %v2440, 5
      %v2920 = vsel %vm2699, %v2918, %v2919
      %v2921 = vrot.slane %v2437, 4
      %v2922 = vor.u32 %v2921, %v2919
      %v2923 = vrot.slane %v2922, 4
      %v2924 = vrot.slane %v2449, 5
      %v2925 = vsel %vm2699, %v2923, %v2924
      %v2926 = vrot.slane %v2446, 4
      %v2927 = vor.u32 %v2926, %v2924
      %v2928 = vrot.slane %v2927, 4
      %v2929 = vrot.slane %v2458, 5
      %v2930 = vsel %vm2699, %v2928, %v2929
      %v2931 = vrot.slane %v2455, 4
      %v2932 = vor.u32 %v2931, %v2929
      %v2933 = vrot.slane %v2932, 4
      %v2934 = vrot.slane %v2467, 5
      %v2935 = vsel %vm2699, %v2933, %v2934
      %v2936 = vrot.slane %v2464, 4
      %v2937 = vor.u32 %v2936, %v2934
      %v2938 = vrot.slane %v2937, 4
      %v2939 = vrot.slane %v2476, 5
      %v2940 = vsel %vm2699, %v2938, %v2939
      %v2941 = vrot.slane %v2473, 4
      %v2942 = vor.u32 %v2941, %v2939
      %v2943 = vrot.slane %v2942, 4
      %v2944 = vrot.slane %v2485, 5
      %v2945 = vsel %vm2699, %v2943, %v2944
      %v2946 = vrot.slane %v2482, 4
      %v2947 = vor.u32 %v2946, %v2944
      %v2948 = vrot.slane %v2947, 4
      %v2949 = vrot.slane %v2494, 5
      %v2950 = vsel %vm2699, %v2948, %v2949
      %v2951 = vrot.slane %v2491, 4
      %v2952 = vor.u32 %v2951, %v2949
      %v2953 = vrot.slane %v2952, 4
      %v2954 = vrot.slane %v2503, 5
      %v2955 = vsel %vm2699, %v2953, %v2954
      %v2956 = vrot.slane %v2500, 4
      %v2957 = vor.u32 %v2956, %v2954
      %v2958 = vrot.slane %v2957, 4
      %v2959 = vrot.slane %v2512, 5
      %v2960 = vsel %vm2699, %v2958, %v2959
      %v2961 = vrot.slane %v2509, 4
      %v2962 = vor.u32 %v2961, %v2959
      %v2963 = vrot.slane %v2962, 4
      %v2964 = vrot.slane %v2521, 5
      %v2965 = vsel %vm2699, %v2963, %v2964
      %v2966 = vrot.slane %v2518, 4
      %v2967 = vor.u32 %v2966, %v2964
      %v2968 = vrot.slane %v2967, 4
      %v3024 = vld [vmem:[#allocation2 + $0x2c] sm:$0x8]
      %v3025 = vsel %vm2020, %v2700, %v3024
      %3026 = vst [vmem:[#allocation2 + $0x2c] sm:$0x8] %v3025
      %3027 = vst [vmem:[#allocation2 + $0x38] sm:$0xf] %v2705
      %3028 = vst [vmem:[#allocation2 + $0x44] sm:$0xf] %v2710
      %3029 = vst [vmem:[#allocation2 + $0x50] sm:$0xf] %v2715
      %3030 = vst [vmem:[#allocation2 + $0x5c] sm:$0xf] %v2720
      %3031 = vst [vmem:[#allocation2 + $0x68] sm:$0xf] %v2725
      %3032 = vst [vmem:[#allocation2 + $0x74] sm:$0xf] %v2730
      %3033 = vst [vmem:[#allocation2 + $0x80] sm:$0xf] %v2735
      %3034 = vst [vmem:[#allocation2 + $0x8c] sm:$0xf] %v2740
      %3035 = vst [vmem:[#allocation2 + $0x98] sm:$0xf] %v2745
      %3036 = vst [vmem:[#allocation2 + $0xa4] sm:$0xf] %v2750
      %3037 = vst [vmem:[#allocation2 + $0xb0] sm:$0xf] %v2755
      %3038 = vst [vmem:[#allocation2 + $0xbc] sm:$0xf] %v2760
      %3039 = vst [vmem:[#allocation2 + $0xc8] sm:$0xf] %v2765
      %3040 = vst [vmem:[#allocation2 + $0xd4] sm:$0xf] %v2770
      %3041 = vst [vmem:[#allocation2 + $0xe0] sm:$0xf] %v2775
      %3042 = vst [vmem:[#allocation2 + $0xec] sm:$0xf] %v2780
      %3043 = vst [vmem:[#allocation2 + $0xf8] sm:$0xf] %v2785
      %3044 = vst [vmem:[#allocation2 + $0x104] sm:$0xf] %v2790
      %3045 = vst [vmem:[#allocation2 + $0x110] sm:$0xf] %v2795
      %3046 = vst [vmem:[#allocation2 + $0x11c] sm:$0xf] %v2800
      %3047 = vst [vmem:[#allocation2 + $0x128] sm:$0xf] %v2805
      %3048 = vst [vmem:[#allocation2 + $0x134] sm:$0xf] %v2810
      %3049 = vst [vmem:[#allocation2 + $0x140] sm:$0xf] %v2815
      %3050 = vst [vmem:[#allocation2 + $0x14c] sm:$0xf] %v2820
      %3051 = vst [vmem:[#allocation2 + $0x158] sm:$0xf] %v2825
      %3052 = vst [vmem:[#allocation2 + $0x164] sm:$0xf] %v2830
      %3053 = vst [vmem:[#allocation2 + $0x170] sm:$0xf] %v2835
      %3054 = vst [vmem:[#allocation2 + $0x17c] sm:$0xf] %v2840
      %3055 = vst [vmem:[#allocation2 + $0x188] sm:$0xf] %v2845
      %3056 = vst [vmem:[#allocation2 + $0x194] sm:$0xf] %v2850
      %3057 = vst [vmem:[#allocation2 + $0x1a0] sm:$0xf] %v2855
      %3058 = vst [vmem:[#allocation2 + $0x1ac] sm:$0xf] %v2860
      %3059 = vst [vmem:[#allocation2 + $0x1b8] sm:$0xf] %v2865
      %3060 = vst [vmem:[#allocation2 + $0x1c4] sm:$0xf] %v2870
      %3061 = vst [vmem:[#allocation2 + $0x1d0] sm:$0xf] %v2875
      %3062 = vst [vmem:[#allocation2 + $0x1dc] sm:$0xf] %v2880
      %3063 = vst [vmem:[#allocation2 + $0x1e8] sm:$0xf] %v2885
      %3064 = vst [vmem:[#allocation2 + $0x1f4] sm:$0xf] %v2890
      %3065 = vst [vmem:[#allocation2 + $0x200] sm:$0xf] %v2895
      %3066 = vst [vmem:[#allocation2 + $0x20c] sm:$0xf] %v2900
      %3067 = vst [vmem:[#allocation2 + $0x218] sm:$0xf] %v2905
      %3068 = vst [vmem:[#allocation2 + $0x224] sm:$0xf] %v2910
      %3069 = vst [vmem:[#allocation2 + $0x230] sm:$0xf] %v2915
      %3070 = vst [vmem:[#allocation2 + $0x23c] sm:$0xf] %v2920
      %3071 = vst [vmem:[#allocation2 + $0x248] sm:$0xf] %v2925
      %3072 = vst [vmem:[#allocation2 + $0x254] sm:$0xf] %v2930
      %3073 = vst [vmem:[#allocation2 + $0x260] sm:$0xf] %v2935
      %3074 = vst [vmem:[#allocation2 + $0x26c] sm:$0xf] %v2940
      %3075 = vst [vmem:[#allocation2 + $0x278] sm:$0xf] %v2945
      %3076 = vst [vmem:[#allocation2 + $0x284] sm:$0xf] %v2950
      %3077 = vst [vmem:[#allocation2 + $0x290] sm:$0xf] %v2955
      %3078 = vst [vmem:[#allocation2 + $0x29c] sm:$0xf] %v2960
      %3079 = vst [vmem:[#allocation2 + $0x2a8] sm:$0xf] %v2965
      %vm3080 = vmand %vm2581, %vm2697
      %v3081 = vld [vmem:[#allocation2 + $0x2b4] sm:$0xf]
      %v3082 = vsel %vm3080, %v2968, %v3081
      %3083 = vst [vmem:[#allocation2 + $0x2b4] sm:$0xf] %v3082
      %v3084 = vld [vmem:[#allocation2 + $0xc] sm:$0xff]
      %v3085 = vld [vmem:[#allocation2 + $0x14] sm:$0xf]
      %v3086 = vld [vmem:[#allocation2 + $0x18] sm:$0xff]
      %v3087 = vld [vmem:[#allocation2 + $0x20] sm:$0xf]
      %v3088 = vld [vmem:[#allocation2 + $0x24] sm:$0xff]
      %v3089 = vld [vmem:[#allocation2 + $0x2c] sm:$0xf]
      %v3090 = vld [vmem:[#allocation2 + $0x30] sm:$0xff]
      %v3091 = vld [vmem:[#allocation2 + $0x38] sm:$0xf]
      %v3092 = vld [vmem:[#allocation2 + $0x3c] sm:$0xff]
      %v3093 = vld [vmem:[#allocation2 + $0x44] sm:$0xf]
      %v3094 = vld [vmem:[#allocation2 + $0x48] sm:$0xff]
      %v3095 = vld [vmem:[#allocation2 + $0x50] sm:$0xf]
      %v3096 = vld [vmem:[#allocation2 + $0x54] sm:$0xff]
      %v3097 = vld [vmem:[#allocation2 + $0x5c] sm:$0xf]
      %v3098 = vld [vmem:[#allocation2 + $0x60] sm:$0xff]
      %v3099 = vld [vmem:[#allocation2 + $0x68] sm:$0xf]
      %v3100 = vld [vmem:[#allocation2 + $0x6c] sm:$0xff]
      %v3101 = vld [vmem:[#allocation2 + $0x74] sm:$0xf]
      %v3102 = vld [vmem:[#allocation2 + $0x78] sm:$0xff]
      %v3103 = vld [vmem:[#allocation2 + $0x80] sm:$0xf]
      %v3104 = vld [vmem:[#allocation2 + $0x84] sm:$0xff]
      %v3105 = vld [vmem:[#allocation2 + $0x8c] sm:$0xf]
      %v3106 = vld [vmem:[#allocation2 + $0x90] sm:$0xff]
      %v3107 = vld [vmem:[#allocation2 + $0x98] sm:$0xf]
      %v3108 = vld [vmem:[#allocation2 + $0x9c] sm:$0xff]
      %v3109 = vld [vmem:[#allocation2 + $0xa4] sm:$0xf]
      %v3110 = vld [vmem:[#allocation2 + $0xa8] sm:$0xff]
      %v3111 = vld [vmem:[#allocation2 + $0xb0] sm:$0xf]
      %v3112 = vld [vmem:[#allocation2 + $0xb4] sm:$0xff]
      %v3113 = vld [vmem:[#allocation2 + $0xbc] sm:$0xf]
      %v3114 = vld [vmem:[#allocation2 + $0xc0] sm:$0xff]
      %v3115 = vld [vmem:[#allocation2 + $0xc8] sm:$0xf]
      %v3116 = vld [vmem:[#allocation2 + $0xcc] sm:$0xff]
      %v3117 = vld [vmem:[#allocation2 + $0xd4] sm:$0xf]
      %v3118 = vld [vmem:[#allocation2 + $0xd8] sm:$0xff]
      %v3119 = vld [vmem:[#allocation2 + $0xe0] sm:$0xf]
      %v3120 = vld [vmem:[#allocation2 + $0xe4] sm:$0xff]
      %v3121 = vld [vmem:[#allocation2 + $0xec] sm:$0xf]
      %v3122 = vld [vmem:[#allocation2 + $0xf0] sm:$0xff]
      %v3123 = vld [vmem:[#allocation2 + $0xf8] sm:$0xf]
      %v3124 = vld [vmem:[#allocation2 + $0xfc] sm:$0xff]
      %v3125 = vld [vmem:[#allocation2 + $0x104] sm:$0xf]
      %v3126 = vld [vmem:[#allocation2 + $0x108] sm:$0xff]
      %v3127 = vld [vmem:[#allocation2 + $0x110] sm:$0xf]
      %v3128 = vld [vmem:[#allocation2 + $0x114] sm:$0xff]
      %v3129 = vld [vmem:[#allocation2 + $0x11c] sm:$0xf]
      %v3130 = vld [vmem:[#allocation2 + $0x120] sm:$0xff]
      %v3131 = vld [vmem:[#allocation2 + $0x128] sm:$0xf]
      %v3132 = vld [vmem:[#allocation2 + $0x12c] sm:$0xff]
      %v3133 = vld [vmem:[#allocation2 + $0x134] sm:$0xf]
      %v3134 = vld [vmem:[#allocation2 + $0x138] sm:$0xff]
      %v3135 = vld [vmem:[#allocation2 + $0x140] sm:$0xf]
      %v3136 = vld [vmem:[#allocation2 + $0x144] sm:$0xff]
      %v3137 = vld [vmem:[#allocation2 + $0x14c] sm:$0xf]
      %v3138 = vld [vmem:[#allocation2 + $0x150] sm:$0xff]
      %v3139 = vld [vmem:[#allocation2 + $0x158] sm:$0xf]
      %v3140 = vld [vmem:[#allocation2 + $0x15c] sm:$0xff]
      %v3141 = vld [vmem:[#allocation2 + $0x164] sm:$0xf]
      %v3142 = vld [vmem:[#allocation2 + $0x168] sm:$0xff]
      %v3143 = vld [vmem:[#allocation2 + $0x170] sm:$0xf]
      %v3144 = vld [vmem:[#allocation2 + $0x174] sm:$0xff]
      %v3145 = vld [vmem:[#allocation2 + $0x17c] sm:$0xf]
      %v3146 = vld [vmem:[#allocation2 + $0x180] sm:$0xff]
      %v3147 = vld [vmem:[#allocation2 + $0x188] sm:$0xf]
      %v3148 = vld [vmem:[#allocation2 + $0x18c] sm:$0xff]
      %v3149 = vld [vmem:[#allocation2 + $0x194] sm:$0xf]
      %v3150 = vld [vmem:[#allocation2 + $0x198] sm:$0xff]
      %v3151 = vld [vmem:[#allocation2 + $0x1a0] sm:$0xf]
      %v3152 = vld [vmem:[#allocation2 + $0x1a4] sm:$0xff]
      %v3153 = vld [vmem:[#allocation2 + $0x1ac] sm:$0xf]
      %v3154 = vld [vmem:[#allocation2 + $0x1b0] sm:$0xff]
      %v3155 = vld [vmem:[#allocation2 + $0x1b8] sm:$0xf]
      %v3156 = vld [vmem:[#allocation2 + $0x1bc] sm:$0xff]
      %v3157 = vld [vmem:[#allocation2 + $0x1c4] sm:$0xf]
      %v3158 = vld [vmem:[#allocation2 + $0x1c8] sm:$0xff]
      %v3159 = vld [vmem:[#allocation2 + $0x1d0] sm:$0xf]
      %v3160 = vld [vmem:[#allocation2 + $0x1d4] sm:$0xff]
      %v3161 = vld [vmem:[#allocation2 + $0x1dc] sm:$0xf]
      %v3162 = vld [vmem:[#allocation2 + $0x1e0] sm:$0xff]
      %v3163 = vld [vmem:[#allocation2 + $0x1e8] sm:$0xf]
      %v3164 = vld [vmem:[#allocation2 + $0x1ec] sm:$0xff]
      %v3165 = vld [vmem:[#allocation2 + $0x1f4] sm:$0xf]
      %v3166 = vld [vmem:[#allocation2 + $0x1f8] sm:$0xff]
      %v3167 = vld [vmem:[#allocation2 + $0x200] sm:$0xf]
      %v3168 = vld [vmem:[#allocation2 + $0x204] sm:$0xff]
      %v3169 = vld [vmem:[#allocation2 + $0x20c] sm:$0xf]
      %v3170 = vld [vmem:[#allocation2 + $0x210] sm:$0xff]
      %v3171 = vld [vmem:[#allocation2 + $0x218] sm:$0xf]
      %v3172 = vld [vmem:[#allocation2 + $0x21c] sm:$0xff]
      %v3173 = vld [vmem:[#allocation2 + $0x224] sm:$0xf]
      %v3174 = vld [vmem:[#allocation2 + $0x228] sm:$0xff]
      %v3175 = vld [vmem:[#allocation2 + $0x230] sm:$0xf]
      %v3176 = vld [vmem:[#allocation2 + $0x234] sm:$0xff]
      %v3177 = vld [vmem:[#allocation2 + $0x23c] sm:$0xf]
      %v3178 = vld [vmem:[#allocation2 + $0x240] sm:$0xff]
      %v3179 = vld [vmem:[#allocation2 + $0x248] sm:$0xf]
      %v3180 = vld [vmem:[#allocation2 + $0x24c] sm:$0xff]
      %v3181 = vld [vmem:[#allocation2 + $0x254] sm:$0xf]
      %v3182 = vld [vmem:[#allocation2 + $0x258] sm:$0xff]
      %v3183 = vld [vmem:[#allocation2 + $0x260] sm:$0xf]
      %v3184 = vld [vmem:[#allocation2 + $0x264] sm:$0xff]
      %v3185 = vld [vmem:[#allocation2 + $0x26c] sm:$0xf]
      %v3186 = vld [vmem:[#allocation2 + $0x270] sm:$0xff]
      %v3187 = vld [vmem:[#allocation2 + $0x278] sm:$0xf]
      %v3188 = vld [vmem:[#allocation2 + $0x27c] sm:$0xff]
      %v3189 = vld [vmem:[#allocation2 + $0x284] sm:$0xf]
      %v3190 = vld [vmem:[#allocation2 + $0x288] sm:$0xff]
      %v3191 = vld [vmem:[#allocation2 + $0x290] sm:$0xf]
      %v3192 = vld [vmem:[%s4] sm:$0xf]
      %v3193 = vld [vmem:[%s4 + $0x4] sm:$0xf]
      %v3194 = vld [vmem:[%s4 + $0x8] sm:$0xf]
      %v3195 = vld [vmem:[%s4 + $0xc] sm:$0xf]
      %v3196 = vld [vmem:[%s4 + $0x10] sm:$0xf]
      %v3197 = vld [vmem:[%s4 + $0x14] sm:$0xf]
      %v3198 = vld [vmem:[%s4 + $0x18] sm:$0xf]
      %v3199 = vld [vmem:[%s4 + $0x1c] sm:$0xf]
      %v3200 = vld [vmem:[%s4 + $0x20] sm:$0xf]
      %v3201 = vld [vmem:[%s4 + $0x24] sm:$0xf]
      %v3202 = vld [vmem:[%s4 + $0x28] sm:$0xf]
      %v3203 = vld [vmem:[%s4 + $0x2c] sm:$0xf]
      %v3204 = vld [vmem:[%s4 + $0x30] sm:$0xf]
      %v3205 = vld [vmem:[%s4 + $0x34] sm:$0xf]
      %v3206 = vld [vmem:[%s4 + $0x38] sm:$0xf]
      %v3207 = vld [vmem:[%s4 + $0x3c] sm:$0xf]
      %v3208 = vld [vmem:[%s4 + $0x40] sm:$0xf]
      %v3209 = vld [vmem:[%s4 + $0x44] sm:$0xf]
      %v3210 = vld [vmem:[%s4 + $0x48] sm:$0xf]
      %v3211 = vld [vmem:[%s4 + $0x4c] sm:$0xf]
      %v3212 = vld [vmem:[%s4 + $0x50] sm:$0xf]
      %v3213 = vld [vmem:[%s4 + $0x54] sm:$0xf]
      %v3214 = vld [vmem:[%s4 + $0x58] sm:$0xf]
      %v3215 = vld [vmem:[%s4 + $0x5c] sm:$0xf]
      %v3216 = vld [vmem:[%s4 + $0x60] sm:$0xf]
      %v3217 = vld [vmem:[%s4 + $0x64] sm:$0xf]
      %v3218 = vld [vmem:[%s4 + $0x68] sm:$0xf]
      %v3219 = vld [vmem:[%s4 + $0x6c] sm:$0xf]
      %v3220 = vld [vmem:[%s4 + $0x70] sm:$0xf]
      %v3221 = vld [vmem:[%s4 + $0x74] sm:$0xf]
      %v3222 = vld [vmem:[%s4 + $0x78] sm:$0xf]
      %v3223 = vld [vmem:[%s4 + $0x7c] sm:$0xf]
      %v3224 = vld [vmem:[%s4 + $0x80] sm:$0xf]
      %v3225 = vld [vmem:[%s4 + $0x84] sm:$0xf]
      %v3226 = vld [vmem:[%s4 + $0x88] sm:$0xf]
      %v3227 = vld [vmem:[%s4 + $0x8c] sm:$0xf]
      %v3228 = vld [vmem:[%s4 + $0x90] sm:$0xf]
      %v3229 = vld [vmem:[%s4 + $0x94] sm:$0xf]
      %v3230 = vld [vmem:[%s4 + $0x98] sm:$0xf]
      %v3231 = vld [vmem:[%s4 + $0x9c] sm:$0xf]
      %v3232 = vld [vmem:[%s4 + $0xa0] sm:$0xf]
      %v3233 = vld [vmem:[%s4 + $0xa4] sm:$0xf]
      %v3234 = vld [vmem:[%s4 + $0xa8] sm:$0xf]
      %v3235 = vld [vmem:[%s4 + $0xac] sm:$0xf]
      %v3236 = vld [vmem:[%s4 + $0xb0] sm:$0xf]
      %v3237 = vld [vmem:[%s4 + $0xb4] sm:$0xf]
      %v3238 = vld [vmem:[%s4 + $0xb8] sm:$0xf]
      %v3239 = vld [vmem:[%s4 + $0xbc] sm:$0xf]
      %v3240 = vld [vmem:[#allocation2 + $0x294] sm:$0xff]
      %v3241 = vld [vmem:[#allocation2 + $0x29c] sm:$0xf]
      %v3242 = vld [vmem:[#allocation2 + $0x2a0] sm:$0xff]
      %v3243 = vld [vmem:[#allocation2 + $0x2a8] sm:$0xf]
      %v3244 = vld [vmem:[#allocation2 + $0x2ac] sm:$0xff]
      %v3245 = vld [vmem:[#allocation2 + $0x2b4] sm:$0xf]
      %s3246 = scalar_lea.vmem %s4, 192
      %v3247 = vld [vmem:[%s3246] sm:$0xf]
      %v3248 = vld [vmem:[%s3246 + $0x4] sm:$0xf]
      %v3249 = vld [vmem:[%s3246 + $0x8] sm:$0xf]
      %v3250 = vld [vmem:[%s3246 + $0xc] sm:$0xf]
      %v3251 = vld [vmem:[%s3246 + $0x10] sm:$0xf]
      %v3252 = vld [vmem:[%s3246 + $0x14] sm:$0xf]
      %v3253 = vld [vmem:[%s3246 + $0x18] sm:$0xf]
      %v3254 = vld [vmem:[%s3246 + $0x1c] sm:$0xf]
      %v3255 = vld [vmem:[%s3246 + $0x20] sm:$0xf]
      %v3256 = vld [vmem:[%s3246 + $0x24] sm:$0xf]
      %v3257 = vld [vmem:[%s3246 + $0x28] sm:$0xf]
      %v3258 = vld [vmem:[%s3246 + $0x2c] sm:$0xf]
      %v3259 = vld [vmem:[%s3246 + $0x30] sm:$0xf]
      %v3260 = vld [vmem:[%s3246 + $0x34] sm:$0xf]
      %v3261 = vld [vmem:[%s3246 + $0x38] sm:$0xf]
      %v3262 = vld [vmem:[%s3246 + $0x3c] sm:$0xf]
      %v3263 = vld [vmem:[%s3246 + $0x40] sm:$0xf]
      %v3264 = vld [vmem:[%s3246 + $0x44] sm:$0xf]
      %v3265 = vld [vmem:[%s3246 + $0x48] sm:$0xf]
      %v3266 = vld [vmem:[%s3246 + $0x4c] sm:$0xf]
      %v3267 = vld [vmem:[%s3246 + $0x50] sm:$0xf]
      %v3268 = vld [vmem:[%s3246 + $0x54] sm:$0xf]
      %v3269 = vld [vmem:[%s3246 + $0x58] sm:$0xf]
      %v3270 = vld [vmem:[%s3246 + $0x5c] sm:$0xf]
      %v3271 = vld [vmem:[%s3246 + $0x60] sm:$0xf]
      %v3272 = vld [vmem:[%s3246 + $0x64] sm:$0xf]
      %v3273 = vld [vmem:[%s3246 + $0x68] sm:$0xf]
      %v3274 = vld [vmem:[%s3246 + $0x6c] sm:$0xf]
      %v3275 = vld [vmem:[%s3246 + $0x70] sm:$0xf]
      %v3276 = vld [vmem:[%s3246 + $0x74] sm:$0xf]
      %v3277 = vld [vmem:[%s3246 + $0x78] sm:$0xf]
      %v3278 = vld [vmem:[%s3246 + $0x7c] sm:$0xf]
      %v3279 = vld [vmem:[%s3246 + $0x80] sm:$0xf]
      %v3280 = vld [vmem:[%s3246 + $0x84] sm:$0xf]
      %v3281 = vld [vmem:[%s3246 + $0x88] sm:$0xf]
      %v3282 = vld [vmem:[%s3246 + $0x8c] sm:$0xf]
      %v3283 = vld [vmem:[%s3246 + $0x90] sm:$0xf]
      %v3284 = vld [vmem:[%s3246 + $0x94] sm:$0xf]
      %v3285 = vld [vmem:[%s3246 + $0x98] sm:$0xf]
      %v3286 = vld [vmem:[%s3246 + $0x9c] sm:$0xf]
      %v3287 = vld [vmem:[%s3246 + $0xa0] sm:$0xf]
      %v3288 = vld [vmem:[%s3246 + $0xa4] sm:$0xf]
      %v3289 = vld [vmem:[%s3246 + $0xa8] sm:$0xf]
      %v3290 = vld [vmem:[%s3246 + $0xac] sm:$0xf]
      %v3291 = vld [vmem:[%s3246 + $0xb0] sm:$0xf]
      %v3292 = vld [vmem:[%s3246 + $0xb4] sm:$0xf]
      %v3293 = vld [vmem:[%s3246 + $0xb8] sm:$0xf]
      %v3294 = vld [vmem:[%s3246 + $0xbc] sm:$0xf]
      %v3403 = vunpack.c.l.b16 %v3090
      %v3404 = vunpack.c.h.b16 %v3090
      %v3405 = vunpack.c.l.b16 %v3091
      %v3406 = vunpack.c.l.b16 %v3092
      %v3407 = vunpack.c.h.b16 %v3092
      %v3408 = vunpack.c.l.b16 %v3093
      %v3409 = vunpack.c.l.b16 %v3094
      %v3410 = vunpack.c.h.b16 %v3094
      %v3411 = vunpack.c.l.b16 %v3095
      %v3412 = vunpack.c.l.b16 %v3096
      %v3413 = vunpack.c.h.b16 %v3096
      %v3414 = vunpack.c.l.b16 %v3097
      %v3415 = vunpack.c.l.b16 %v3098
      %v3416 = vunpack.c.h.b16 %v3098
      %v3417 = vunpack.c.l.b16 %v3099
      %v3418 = vunpack.c.l.b16 %v3100
      %v3419 = vunpack.c.h.b16 %v3100
      %v3420 = vunpack.c.l.b16 %v3101
      %v3421 = vunpack.c.l.b16 %v3102
      %v3422 = vunpack.c.h.b16 %v3102
      %v3423 = vunpack.c.l.b16 %v3103
      %v3424 = vunpack.c.l.b16 %v3104
      %v3425 = vunpack.c.h.b16 %v3104
      %v3426 = vunpack.c.l.b16 %v3105
      %v3427 = vunpack.c.l.b16 %v3106
      %v3428 = vunpack.c.h.b16 %v3106
      %v3429 = vunpack.c.l.b16 %v3107
      %v3430 = vunpack.c.l.b16 %v3108
      %v3431 = vunpack.c.h.b16 %v3108
      %v3432 = vunpack.c.l.b16 %v3109
      %v3433 = vunpack.c.l.b16 %v3110
      %v3434 = vunpack.c.h.b16 %v3110
      %v3435 = vunpack.c.l.b16 %v3111
      %v3436 = vunpack.c.l.b16 %v3112
      %v3437 = vunpack.c.h.b16 %v3112
      %v3438 = vunpack.c.l.b16 %v3113
      %v3439 = vunpack.c.l.b16 %v3114
      %v3440 = vunpack.c.h.b16 %v3114
      %v3441 = vunpack.c.l.b16 %v3115
      %v3442 = vunpack.c.l.b16 %v3116
      %v3443 = vunpack.c.h.b16 %v3116
      %v3444 = vunpack.c.l.b16 %v3117
      %v3445 = vunpack.c.l.b16 %v3118
      %v3446 = vunpack.c.h.b16 %v3118
      %v3447 = vunpack.c.l.b16 %v3119
      %v3448 = vunpack.c.l.b16 %v3120
      %v3449 = vunpack.c.h.b16 %v3120
      %v3450 = vunpack.c.l.b16 %v3121
      %v3451 = vunpack.c.l.b16 %v3122
      %v3452 = vunpack.c.h.b16 %v3122
      %v3453 = vunpack.c.l.b16 %v3123
      %v3454 = vunpack.c.l.b16 %v3124
      %v3455 = vunpack.c.h.b16 %v3124
      %v3456 = vunpack.c.l.b16 %v3125
      %v3457 = vunpack.c.l.b16 %v3126
      %v3458 = vunpack.c.h.b16 %v3126
      %v3459 = vunpack.c.l.b16 %v3127
      %v3460 = vunpack.c.l.b16 %v3128
      %v3461 = vunpack.c.h.b16 %v3128
      %v3462 = vunpack.c.l.b16 %v3129
      %v3463 = vunpack.c.l.b16 %v3130
      %v3464 = vunpack.c.h.b16 %v3130
      %v3465 = vunpack.c.l.b16 %v3131
      %v3466 = vunpack.c.l.b16 %v3132
      %v3467 = vunpack.c.h.b16 %v3132
      %v3468 = vunpack.c.l.b16 %v3133
      %v3469 = vunpack.c.l.b16 %v3134
      %v3470 = vunpack.c.h.b16 %v3134
      %v3471 = vunpack.c.l.b16 %v3135
      %v3472 = vunpack.c.l.b16 %v3136
      %v3473 = vunpack.c.h.b16 %v3136
      %v3474 = vunpack.c.l.b16 %v3137
      %v3475 = vunpack.c.l.b16 %v3138
      %v3476 = vunpack.c.h.b16 %v3138
      %v3477 = vunpack.c.l.b16 %v3139
      %v3478 = vunpack.c.l.b16 %v3140
      %v3479 = vunpack.c.h.b16 %v3140
      %v3480 = vunpack.c.l.b16 %v3141
      %v3481 = vunpack.c.l.b16 %v3142
      %v3482 = vunpack.c.h.b16 %v3142
      %v3483 = vunpack.c.l.b16 %v3143
      %v3484 = vunpack.c.l.b16 %v3144
      %v3485 = vunpack.c.h.b16 %v3144
      %v3486 = vunpack.c.l.b16 %v3145
      %v3487 = vunpack.c.l.b16 %v3146
      %v3488 = vunpack.c.h.b16 %v3146
      %v3489 = vunpack.c.l.b16 %v3147
      %v3490 = vunpack.c.l.b16 %v3148
      %v3491 = vunpack.c.h.b16 %v3148
      %v3492 = vunpack.c.l.b16 %v3149
      %v3493 = vunpack.c.l.b16 %v3150
      %v3494 = vunpack.c.h.b16 %v3150
      %v3495 = vunpack.c.l.b16 %v3151
      %v3496 = vunpack.c.l.b16 %v3152
      %v3497 = vunpack.c.h.b16 %v3152
      %v3498 = vunpack.c.l.b16 %v3153
      %v3499 = vunpack.c.l.b16 %v3154
      %v3500 = vunpack.c.h.b16 %v3154
      %v3501 = vunpack.c.l.b16 %v3155
      %v3502 = vunpack.c.l.b16 %v3156
      %v3503 = vunpack.c.h.b16 %v3156
      %v3504 = vunpack.c.l.b16 %v3157
      %v3505 = vunpack.c.l.b16 %v3158
      %v3506 = vunpack.c.h.b16 %v3158
      %v3507 = vunpack.c.l.b16 %v3159
      %v3508 = vunpack.c.l.b16 %v3160
      %v3509 = vunpack.c.h.b16 %v3160
      %v3510 = vunpack.c.l.b16 %v3161
      %v3511 = vunpack.c.l.b16 %v3162
      %v3512 = vunpack.c.h.b16 %v3162
      %v3513 = vunpack.c.l.b16 %v3163
      %v3514 = vunpack.c.l.b16 %v3164
      %v3515 = vunpack.c.h.b16 %v3164
      %v3516 = vunpack.c.l.b16 %v3165
      %v3517 = vunpack.c.l.b16 %v3166
      %v3518 = vunpack.c.h.b16 %v3166
      %v3519 = vunpack.c.l.b16 %v3167
      %v3520 = vunpack.c.l.b16 %v3168
      %v3521 = vunpack.c.h.b16 %v3168
      %v3522 = vunpack.c.l.b16 %v3169
      %v3523 = vunpack.c.l.b16 %v3170
      %v3524 = vunpack.c.h.b16 %v3170
      %v3525 = vunpack.c.l.b16 %v3171
      %v3526 = vunpack.c.l.b16 %v3172
      %v3527 = vunpack.c.h.b16 %v3172
      %v3528 = vunpack.c.l.b16 %v3173
      %v3529 = vunpack.c.l.b16 %v3174
      %v3530 = vunpack.c.h.b16 %v3174
      %v3531 = vunpack.c.l.b16 %v3175
      %v3532 = vunpack.c.l.b16 %v3176
      %v3533 = vunpack.c.h.b16 %v3176
      %v3534 = vunpack.c.l.b16 %v3177
      %v3535 = vunpack.c.l.b16 %v3178
      %v3536 = vunpack.c.h.b16 %v3178
      %v3537 = vunpack.c.l.b16 %v3179
      %v3538 = vunpack.c.l.b16 %v3180
      %v3539 = vunpack.c.h.b16 %v3180
      %v3540 = vunpack.c.l.b16 %v3181
      %v3541 = vunpack.c.l.b16 %v3182
      %v3542 = vunpack.c.h.b16 %v3182
      %v3543 = vunpack.c.l.b16 %v3183
      %v3544 = vunpack.c.l.b16 %v3184
      %v3545 = vunpack.c.h.b16 %v3184
      %v3546 = vunpack.c.l.b16 %v3185
      %v3547 = vunpack.c.l.b16 %v3186
      %v3548 = vunpack.c.h.b16 %v3186
      %v3549 = vunpack.c.l.b16 %v3187
      %v3550 = vunpack.c.l.b16 %v3188
      %v3551 = vunpack.c.h.b16 %v3188
      %v3552 = vunpack.c.l.b16 %v3189
      %v3553 = vunpack.c.l.b16 %v3190
      %v3554 = vunpack.c.h.b16 %v3190
      %v3555 = vunpack.c.l.b16 %v3191
      %v3556 = vunpack.c.l.b16 %v3240
      %v3557 = vunpack.c.h.b16 %v3240
      %v3558 = vunpack.c.l.b16 %v3241
      %v3559 = vunpack.c.l.b16 %v3242
      %v3560 = vunpack.c.h.b16 %v3242
      %v3561 = vunpack.c.l.b16 %v3243
      %v3562 = vunpack.c.l.b16 %v3244
      %v3563 = vunpack.c.h.b16 %v3244
      %v3564 = vunpack.c.l.b16 %v3245
      %v3565 = vpack.c.b16 %v3406, %v3403
      %v3566 = vpack.c.b16 %v3407, %v3404
      %v3567 = vpack.c.b16 %v3408, %v3405
      %v3568 = vpack.c.b16 %v3412, %v3409
      %v3569 = vpack.c.b16 %v3413, %v3410
      %v3570 = vpack.c.b16 %v3414, %v3411
      %v3571 = vpack.c.b16 %v3418, %v3415
      %v3572 = vpack.c.b16 %v3419, %v3416
      %v3573 = vpack.c.b16 %v3420, %v3417
      %v3574 = vpack.c.b16 %v3424, %v3421
      %v3575 = vpack.c.b16 %v3425, %v3422
      %v3576 = vpack.c.b16 %v3426, %v3423
      %v3577 = vpack.c.b16 %v3430, %v3427
      %v3578 = vpack.c.b16 %v3431, %v3428
      %v3579 = vpack.c.b16 %v3432, %v3429
      %v3580 = vpack.c.b16 %v3436, %v3433
      %v3581 = vpack.c.b16 %v3437, %v3434
      %v3582 = vpack.c.b16 %v3438, %v3435
      %v3583 = vpack.c.b16 %v3442, %v3439
      %v3584 = vpack.c.b16 %v3443, %v3440
      %v3585 = vpack.c.b16 %v3444, %v3441
      %v3586 = vpack.c.b16 %v3448, %v3445
      %v3587 = vpack.c.b16 %v3449, %v3446
      %v3588 = vpack.c.b16 %v3450, %v3447
      %v3589 = vpack.c.b16 %v3454, %v3451
      %v3590 = vpack.c.b16 %v3455, %v3452
      %v3591 = vpack.c.b16 %v3456, %v3453
      %v3592 = vpack.c.b16 %v3460, %v3457
      %v3593 = vpack.c.b16 %v3461, %v3458
      %v3594 = vpack.c.b16 %v3462, %v3459
      %v3595 = vpack.c.b16 %v3466, %v3463
      %v3596 = vpack.c.b16 %v3467, %v3464
      %v3597 = vpack.c.b16 %v3468, %v3465
      %v3598 = vpack.c.b16 %v3472, %v3469
      %v3599 = vpack.c.b16 %v3473, %v3470
      %v3600 = vpack.c.b16 %v3474, %v3471
      %v3601 = vpack.c.b16 %v3478, %v3475
      %v3602 = vpack.c.b16 %v3479, %v3476
      %v3603 = vpack.c.b16 %v3480, %v3477
      %v3604 = vpack.c.b16 %v3484, %v3481
      %v3605 = vpack.c.b16 %v3485, %v3482
      %v3606 = vpack.c.b16 %v3486, %v3483
      %v3607 = vpack.c.b16 %v3490, %v3487
      %v3608 = vpack.c.b16 %v3491, %v3488
      %v3609 = vpack.c.b16 %v3492, %v3489
      %v3610 = vpack.c.b16 %v3496, %v3493
      %v3611 = vpack.c.b16 %v3497, %v3494
      %v3612 = vpack.c.b16 %v3498, %v3495
      %v3613 = vpack.c.b16 %v3502, %v3499
      %v3614 = vpack.c.b16 %v3503, %v3500
      %v3615 = vpack.c.b16 %v3504, %v3501
      %v3616 = vpack.c.b16 %v3508, %v3505
      %v3617 = vpack.c.b16 %v3509, %v3506
      %v3618 = vpack.c.b16 %v3510, %v3507
      %v3619 = vpack.c.b16 %v3514, %v3511
      %v3620 = vpack.c.b16 %v3515, %v3512
      %v3621 = vpack.c.b16 %v3516, %v3513
      %v3622 = vpack.c.b16 %v3520, %v3517
      %v3623 = vpack.c.b16 %v3521, %v3518
      %v3624 = vpack.c.b16 %v3522, %v3519
      %v3625 = vpack.c.b16 %v3526, %v3523
      %v3626 = vpack.c.b16 %v3527, %v3524
      %v3627 = vpack.c.b16 %v3528, %v3525
      %v3628 = vpack.c.b16 %v3532, %v3529
      %v3629 = vpack.c.b16 %v3533, %v3530
      %v3630 = vpack.c.b16 %v3534, %v3531
      %v3631 = vpack.c.b16 %v3538, %v3535
      %v3632 = vpack.c.b16 %v3539, %v3536
      %v3633 = vpack.c.b16 %v3540, %v3537
      %v3634 = vpack.c.b16 %v3544, %v3541
      %v3635 = vpack.c.b16 %v3545, %v3542
      %v3636 = vpack.c.b16 %v3546, %v3543
      %v3637 = vpack.c.b16 %v3550, %v3547
      %v3638 = vpack.c.b16 %v3551, %v3548
      %v3639 = vpack.c.b16 %v3552, %v3549
      %v3640 = vpack.c.b16 %v3556, %v3553
      %v3641 = vpack.c.b16 %v3557, %v3554
      %v3642 = vpack.c.b16 %v3558, %v3555
      %v3643 = vpack.c.b16 %v3562, %v3559
      %v3644 = vpack.c.b16 %v3563, %v3560
      %v3645 = vpack.c.b16 %v3564, %v3561
      %v3775 = vunpack.c.l.b16 %v3247
      %v3776 = vunpack.c.l.b16 %v3248
      %v3777 = vunpack.c.l.b16 %v3249
      %v3778 = vunpack.c.l.b16 %v3250
      %v3779 = vunpack.c.l.b16 %v3251
      %v3780 = vunpack.c.l.b16 %v3252
      %v3781 = vunpack.c.l.b16 %v3253
      %v3782 = vunpack.c.l.b16 %v3254
      %v3783 = vunpack.c.l.b16 %v3255
      %v3784 = vunpack.c.l.b16 %v3256
      %v3785 = vunpack.c.l.b16 %v3257
      %v3786 = vunpack.c.l.b16 %v3258
      %v3787 = vunpack.c.l.b16 %v3259
      %v3788 = vunpack.c.l.b16 %v3260
      %v3789 = vunpack.c.l.b16 %v3261
      %v3790 = vunpack.c.l.b16 %v3262
      %v3791 = vunpack.c.l.b16 %v3263
      %v3792 = vunpack.c.l.b16 %v3264
      %v3793 = vunpack.c.l.b16 %v3265
      %v3794 = vunpack.c.l.b16 %v3266
      %v3795 = vunpack.c.l.b16 %v3267
      %v3796 = vunpack.c.l.b16 %v3268
      %v3797 = vunpack.c.l.b16 %v3269
      %v3798 = vunpack.c.l.b16 %v3270
      %v3799 = vunpack.c.l.b16 %v3271
      %v3800 = vunpack.c.l.b16 %v3272
      %v3801 = vunpack.c.l.b16 %v3273
      %v3802 = vunpack.c.l.b16 %v3274
      %v3803 = vunpack.c.l.b16 %v3275
      %v3804 = vunpack.c.l.b16 %v3276
      %v3805 = vunpack.c.l.b16 %v3277
      %v3806 = vunpack.c.l.b16 %v3278
      %v3807 = vunpack.c.l.b16 %v3279
      %v3808 = vunpack.c.l.b16 %v3280
      %v3809 = vunpack.c.l.b16 %v3281
      %v3810 = vunpack.c.l.b16 %v3282
      %v3811 = vunpack.c.l.b16 %v3283
      %v3812 = vunpack.c.l.b16 %v3284
      %v3813 = vunpack.c.l.b16 %v3285
      %v3814 = vunpack.c.l.b16 %v3286
      %v3815 = vunpack.c.l.b16 %v3287
      %v3816 = vunpack.c.l.b16 %v3288
      %v3817 = vunpack.c.l.b16 %v3289
      %v3818 = vunpack.c.l.b16 %v3290
      %v3819 = vunpack.c.l.b16 %v3291
      %v3820 = vunpack.c.l.b16 %v3292
      %v3821 = vunpack.c.l.b16 %v3293
      %v3822 = vunpack.c.l.b16 %v3294
      %v3823 = vpack.c.b16 %v3776, %v3775
      %v3824 = vpack.c.b16 %v3778, %v3777
      %v3825 = vpack.c.b16 %v3780, %v3779
      %v3826 = vpack.c.b16 %v3782, %v3781
      %v3827 = vpack.c.b16 %v3784, %v3783
      %v3828 = vpack.c.b16 %v3786, %v3785
      %v3829 = vpack.c.b16 %v3788, %v3787
      %v3830 = vpack.c.b16 %v3790, %v3789
      %v3831 = vpack.c.b16 %v3792, %v3791
      %v3832 = vpack.c.b16 %v3794, %v3793
      %v3833 = vpack.c.b16 %v3796, %v3795
      %v3834 = vpack.c.b16 %v3798, %v3797
      %v3835 = vpack.c.b16 %v3800, %v3799
      %v3836 = vpack.c.b16 %v3802, %v3801
      %v3837 = vpack.c.b16 %v3804, %v3803
      %v3838 = vpack.c.b16 %v3806, %v3805
      %v3839 = vpack.c.b16 %v3808, %v3807
      %v3840 = vpack.c.b16 %v3810, %v3809
      %v3841 = vpack.c.b16 %v3812, %v3811
      %v3842 = vpack.c.b16 %v3814, %v3813
      %v3843 = vpack.c.b16 %v3816, %v3815
      %v3844 = vpack.c.b16 %v3818, %v3817
      %v3845 = vpack.c.b16 %v3820, %v3819
      %v3846 = vpack.c.b16 %v3822, %v3821
      %3871 = vmatpush.bf16.msra.mxu0 %v3830
      %3872 = vmatpush.bf16.msra.mxu0 %v3829
      %3873 = vmatpush.bf16.msra.mxu0 %v3828
      %3874 = vmatpush.bf16.msra.mxu0 %v3827
      %3875 = vmatpush.bf16.msra.mxu0 %v3826
      %3876 = vmatpush.bf16.msra.mxu0 %v3825
      %3877 = vmatpush.bf16.msra.mxu0 %v3824
      %3878 = vmatpush.bf16.msra.mxu0 %v3823
      %3879 = vmatmul.bf16.gmra.mxu0 %v3565
      %v3880 = vpop.f32.mrf.mxu0
      %v3881 = vadd.f32 0.0, %v3880
      %v3882 = vpop.f32.mrf.mxu0
      %v3883 = vadd.f32 0.0, %v3882
      %3884 = vmatmul.bf16.gmra.mxu0 %v3568
      %v3885 = vpop.f32.mrf.mxu0
      %v3886 = vadd.f32 0.0, %v3885
      %v3887 = vpop.f32.mrf.mxu0
      %v3888 = vadd.f32 0.0, %v3887
      %3889 = vmatmul.bf16.gmra.mxu0 %v3571
      %v3890 = vpop.f32.mrf.mxu0
      %v3891 = vadd.f32 0.0, %v3890
      %v3892 = vpop.f32.mrf.mxu0
      %v3893 = vadd.f32 0.0, %v3892
      %3894 = vmatmul.bf16.gmra.mxu0 %v3574
      %v3895 = vpop.f32.mrf.mxu0
      %v3896 = vadd.f32 0.0, %v3895
      %v3897 = vpop.f32.mrf.mxu0
      %v3898 = vadd.f32 0.0, %v3897
      %3899 = vmatmul.bf16.gmra.mxu0 %v3577
      %v3900 = vpop.f32.mrf.mxu0
      %v3901 = vadd.f32 0.0, %v3900
      %v3902 = vpop.f32.mrf.mxu0
      %v3903 = vadd.f32 0.0, %v3902
      %3904 = vmatmul.bf16.gmra.mxu0 %v3580
      %v3905 = vpop.f32.mrf.mxu0
      %v3906 = vadd.f32 0.0, %v3905
      %v3907 = vpop.f32.mrf.mxu0
      %v3908 = vadd.f32 0.0, %v3907
      %3909 = vmatmul.bf16.gmra.mxu0 %v3583
      %v3910 = vpop.f32.mrf.mxu0
      %v3911 = vadd.f32 0.0, %v3910
      %v3912 = vpop.f32.mrf.mxu0
      %v3913 = vadd.f32 0.0, %v3912
      %3914 = vmatmul.bf16.gmra.mxu0 %v3586
      %v3915 = vpop.f32.mrf.mxu0
      %v3916 = vadd.f32 0.0, %v3915
      %v3917 = vpop.f32.mrf.mxu0
      %v3918 = vadd.f32 0.0, %v3917
      %3919 = vmatmul.bf16.gmra.mxu0 %v3589
      %v3920 = vpop.f32.mrf.mxu0
      %v3921 = vadd.f32 0.0, %v3920
      %v3922 = vpop.f32.mrf.mxu0
      %v3923 = vadd.f32 0.0, %v3922
      %3924 = vmatmul.bf16.gmra.mxu0 %v3592
      %v3925 = vpop.f32.mrf.mxu0
      %v3926 = vadd.f32 0.0, %v3925
      %v3927 = vpop.f32.mrf.mxu0
      %v3928 = vadd.f32 0.0, %v3927
      %3929 = vmatmul.bf16.gmra.mxu0 %v3595
      %v3930 = vpop.f32.mrf.mxu0
      %v3931 = vadd.f32 0.0, %v3930
      %v3932 = vpop.f32.mrf.mxu0
      %v3933 = vadd.f32 0.0, %v3932
      %3934 = vmatmul.bf16.gmra.mxu0 %v3598
      %v3935 = vpop.f32.mrf.mxu0
      %v3936 = vadd.f32 0.0, %v3935
      %v3937 = vpop.f32.mrf.mxu0
      %v3938 = vadd.f32 0.0, %v3937
      %3939 = vmatmul.bf16.gmra.mxu0 %v3601
      %v3940 = vpop.f32.mrf.mxu0
      %v3941 = vadd.f32 0.0, %v3940
      %v3942 = vpop.f32.mrf.mxu0
      %v3943 = vadd.f32 0.0, %v3942
      %3944 = vmatmul.bf16.gmra.mxu0 %v3604
      %v3945 = vpop.f32.mrf.mxu0
      %v3946 = vadd.f32 0.0, %v3945
      %v3947 = vpop.f32.mrf.mxu0
      %v3948 = vadd.f32 0.0, %v3947
      %3949 = vmatmul.bf16.gmra.mxu0 %v3607
      %v3950 = vpop.f32.mrf.mxu0
      %v3951 = vadd.f32 0.0, %v3950
      %v3952 = vpop.f32.mrf.mxu0
      %v3953 = vadd.f32 0.0, %v3952
      %3954 = vmatmul.bf16.gmra.mxu0 %v3610
      %v3955 = vpop.f32.mrf.mxu0
      %v3956 = vadd.f32 0.0, %v3955
      %v3957 = vpop.f32.mrf.mxu0
      %v3958 = vadd.f32 0.0, %v3957
      %3959 = vmatmul.bf16.gmra.mxu0 %v3613
      %v3960 = vpop.f32.mrf.mxu0
      %v3961 = vadd.f32 0.0, %v3960
      %v3962 = vpop.f32.mrf.mxu0
      %v3963 = vadd.f32 0.0, %v3962
      %3964 = vmatmul.bf16.gmra.mxu0 %v3616
      %v3965 = vpop.f32.mrf.mxu0
      %v3966 = vadd.f32 0.0, %v3965
      %v3967 = vpop.f32.mrf.mxu0
      %v3968 = vadd.f32 0.0, %v3967
      %3969 = vmatmul.bf16.gmra.mxu0 %v3619
      %v3970 = vpop.f32.mrf.mxu0
      %v3971 = vadd.f32 0.0, %v3970
      %v3972 = vpop.f32.mrf.mxu0
      %v3973 = vadd.f32 0.0, %v3972
      %3974 = vmatmul.bf16.gmra.mxu0 %v3622
      %v3975 = vpop.f32.mrf.mxu0
      %v3976 = vadd.f32 0.0, %v3975
      %v3977 = vpop.f32.mrf.mxu0
      %v3978 = vadd.f32 0.0, %v3977
      %3979 = vmatmul.bf16.gmra.mxu0 %v3625
      %v3980 = vpop.f32.mrf.mxu0
      %v3981 = vadd.f32 0.0, %v3980
      %v3982 = vpop.f32.mrf.mxu0
      %v3983 = vadd.f32 0.0, %v3982
      %3984 = vmatmul.bf16.gmra.mxu0 %v3628
      %v3985 = vpop.f32.mrf.mxu0
      %v3986 = vadd.f32 0.0, %v3985
      %v3987 = vpop.f32.mrf.mxu0
      %v3988 = vadd.f32 0.0, %v3987
      %3989 = vmatmul.bf16.gmra.mxu0 %v3631
      %v3990 = vpop.f32.mrf.mxu0
      %v3991 = vadd.f32 0.0, %v3990
      %v3992 = vpop.f32.mrf.mxu0
      %v3993 = vadd.f32 0.0, %v3992
      %3994 = vmatmul.bf16.gmra.mxu0 %v3634
      %v3995 = vpop.f32.mrf.mxu0
      %v3996 = vadd.f32 0.0, %v3995
      %v3997 = vpop.f32.mrf.mxu0
      %v3998 = vadd.f32 0.0, %v3997
      %3999 = vmatmul.bf16.gmra.mxu0 %v3637
      %v4000 = vpop.f32.mrf.mxu0
      %v4001 = vadd.f32 0.0, %v4000
      %v4002 = vpop.f32.mrf.mxu0
      %v4003 = vadd.f32 0.0, %v4002
      %4004 = vmatmul.bf16.gmra.mxu0 %v3640
      %v4005 = vpop.f32.mrf.mxu0
      %v4006 = vadd.f32 0.0, %v4005
      %v4007 = vpop.f32.mrf.mxu0
      %v4008 = vadd.f32 0.0, %v4007
      %4009 = vmatmul.bf16.gmra.mxu0 %v3643
      %v4010 = vpop.f32.mrf.mxu0
      %v4011 = vadd.f32 0.0, %v4010
      %v4012 = vpop.f32.mrf.mxu0
      %v4013 = vadd.f32 0.0, %v4012
      %4014 = vdwg.mxu0
      %4015 = vmatpush.bf16.msra.mxu0 %v3838
      %4016 = vmatpush.bf16.msra.mxu0 %v3837
      %4017 = vmatpush.bf16.msra.mxu0 %v3836
      %4018 = vmatpush.bf16.msra.mxu0 %v3835
      %4019 = vmatpush.bf16.msra.mxu0 %v3834
      %4020 = vmatpush.bf16.msra.mxu0 %v3833
      %4021 = vmatpush.bf16.msra.mxu0 %v3832
      %4022 = vmatpush.bf16.msra.mxu0 %v3831
      %4023 = vmatmul.bf16.gmra.mxu0 %v3566
      %v4024 = vpop.f32.mrf.mxu0
      %v4025 = vadd.f32 %v3881, %v4024
      %v4026 = vpop.f32.mrf.mxu0
      %v4027 = vadd.f32 %v3883, %v4026
      %4028 = vmatmul.bf16.gmra.mxu0 %v3569
      %v4029 = vpop.f32.mrf.mxu0
      %v4030 = vadd.f32 %v3886, %v4029
      %v4031 = vpop.f32.mrf.mxu0
      %v4032 = vadd.f32 %v3888, %v4031
      %4033 = vmatmul.bf16.gmra.mxu0 %v3572
      %v4034 = vpop.f32.mrf.mxu0
      %v4035 = vadd.f32 %v3891, %v4034
      %v4036 = vpop.f32.mrf.mxu0
      %v4037 = vadd.f32 %v3893, %v4036
      %4038 = vmatmul.bf16.gmra.mxu0 %v3575
      %v4039 = vpop.f32.mrf.mxu0
      %v4040 = vadd.f32 %v3896, %v4039
      %v4041 = vpop.f32.mrf.mxu0
      %v4042 = vadd.f32 %v3898, %v4041
      %4043 = vmatmul.bf16.gmra.mxu0 %v3578
      %v4044 = vpop.f32.mrf.mxu0
      %v4045 = vadd.f32 %v3901, %v4044
      %v4046 = vpop.f32.mrf.mxu0
      %v4047 = vadd.f32 %v3903, %v4046
      %4048 = vmatmul.bf16.gmra.mxu0 %v3581
      %v4049 = vpop.f32.mrf.mxu0
      %v4050 = vadd.f32 %v3906, %v4049
      %v4051 = vpop.f32.mrf.mxu0
      %v4052 = vadd.f32 %v3908, %v4051
      %4053 = vmatmul.bf16.gmra.mxu0 %v3584
      %v4054 = vpop.f32.mrf.mxu0
      %v4055 = vadd.f32 %v3911, %v4054
      %v4056 = vpop.f32.mrf.mxu0
      %v4057 = vadd.f32 %v3913, %v4056
      %4058 = vmatmul.bf16.gmra.mxu0 %v3587
      %v4059 = vpop.f32.mrf.mxu0
      %v4060 = vadd.f32 %v3916, %v4059
      %v4061 = vpop.f32.mrf.mxu0
      %v4062 = vadd.f32 %v3918, %v4061
      %4063 = vmatmul.bf16.gmra.mxu0 %v3590
      %v4064 = vpop.f32.mrf.mxu0
      %v4065 = vadd.f32 %v3921, %v4064
      %v4066 = vpop.f32.mrf.mxu0
      %v4067 = vadd.f32 %v3923, %v4066
      %4068 = vmatmul.bf16.gmra.mxu0 %v3593
      %v4069 = vpop.f32.mrf.mxu0
      %v4070 = vadd.f32 %v3926, %v4069
      %v4071 = vpop.f32.mrf.mxu0
      %v4072 = vadd.f32 %v3928, %v4071
      %4073 = vmatmul.bf16.gmra.mxu0 %v3596
      %v4074 = vpop.f32.mrf.mxu0
      %v4075 = vadd.f32 %v3931, %v4074
      %v4076 = vpop.f32.mrf.mxu0
      %v4077 = vadd.f32 %v3933, %v4076
      %4078 = vmatmul.bf16.gmra.mxu0 %v3599
      %v4079 = vpop.f32.mrf.mxu0
      %v4080 = vadd.f32 %v3936, %v4079
      %v4081 = vpop.f32.mrf.mxu0
      %v4082 = vadd.f32 %v3938, %v4081
      %4083 = vmatmul.bf16.gmra.mxu0 %v3602
      %v4084 = vpop.f32.mrf.mxu0
      %v4085 = vadd.f32 %v3941, %v4084
      %v4086 = vpop.f32.mrf.mxu0
      %v4087 = vadd.f32 %v3943, %v4086
      %4088 = vmatmul.bf16.gmra.mxu0 %v3605
      %v4089 = vpop.f32.mrf.mxu0
      %v4090 = vadd.f32 %v3946, %v4089
      %v4091 = vpop.f32.mrf.mxu0
      %v4092 = vadd.f32 %v3948, %v4091
      %4093 = vmatmul.bf16.gmra.mxu0 %v3608
      %v4094 = vpop.f32.mrf.mxu0
      %v4095 = vadd.f32 %v3951, %v4094
      %v4096 = vpop.f32.mrf.mxu0
      %v4097 = vadd.f32 %v3953, %v4096
      %4098 = vmatmul.bf16.gmra.mxu0 %v3611
      %v4099 = vpop.f32.mrf.mxu0
      %v4100 = vadd.f32 %v3956, %v4099
      %v4101 = vpop.f32.mrf.mxu0
      %v4102 = vadd.f32 %v3958, %v4101
      %4103 = vmatmul.bf16.gmra.mxu0 %v3614
      %v4104 = vpop.f32.mrf.mxu0
      %v4105 = vadd.f32 %v3961, %v4104
      %v4106 = vpop.f32.mrf.mxu0
      %v4107 = vadd.f32 %v3963, %v4106
      %4108 = vmatmul.bf16.gmra.mxu0 %v3617
      %v4109 = vpop.f32.mrf.mxu0
      %v4110 = vadd.f32 %v3966, %v4109
      %v4111 = vpop.f32.mrf.mxu0
      %v4112 = vadd.f32 %v3968, %v4111
      %4113 = vmatmul.bf16.gmra.mxu0 %v3620
      %v4114 = vpop.f32.mrf.mxu0
      %v4115 = vadd.f32 %v3971, %v4114
      %v4116 = vpop.f32.mrf.mxu0
      %v4117 = vadd.f32 %v3973, %v4116
      %4118 = vmatmul.bf16.gmra.mxu0 %v3623
      %v4119 = vpop.f32.mrf.mxu0
      %v4120 = vadd.f32 %v3976, %v4119
      %v4121 = vpop.f32.mrf.mxu0
      %v4122 = vadd.f32 %v3978, %v4121
      %4123 = vmatmul.bf16.gmra.mxu0 %v3626
      %v4124 = vpop.f32.mrf.mxu0
      %v4125 = vadd.f32 %v3981, %v4124
      %v4126 = vpop.f32.mrf.mxu0
      %v4127 = vadd.f32 %v3983, %v4126
      %4128 = vmatmul.bf16.gmra.mxu0 %v3629
      %v4129 = vpop.f32.mrf.mxu0
      %v4130 = vadd.f32 %v3986, %v4129
      %v4131 = vpop.f32.mrf.mxu0
      %v4132 = vadd.f32 %v3988, %v4131
      %4133 = vmatmul.bf16.gmra.mxu0 %v3632
      %v4134 = vpop.f32.mrf.mxu0
      %v4135 = vadd.f32 %v3991, %v4134
      %v4136 = vpop.f32.mrf.mxu0
      %v4137 = vadd.f32 %v3993, %v4136
      %4138 = vmatmul.bf16.gmra.mxu0 %v3635
      %v4139 = vpop.f32.mrf.mxu0
      %v4140 = vadd.f32 %v3996, %v4139
      %v4141 = vpop.f32.mrf.mxu0
      %v4142 = vadd.f32 %v3998, %v4141
      %4143 = vmatmul.bf16.gmra.mxu0 %v3638
      %v4144 = vpop.f32.mrf.mxu0
      %v4145 = vadd.f32 %v4001, %v4144
      %v4146 = vpop.f32.mrf.mxu0
      %v4147 = vadd.f32 %v4003, %v4146
      %4148 = vmatmul.bf16.gmra.mxu0 %v3641
      %v4149 = vpop.f32.mrf.mxu0
      %v4150 = vadd.f32 %v4006, %v4149
      %v4151 = vpop.f32.mrf.mxu0
      %v4152 = vadd.f32 %v4008, %v4151
      %4153 = vmatmul.bf16.gmra.mxu0 %v3644
      %v4154 = vpop.f32.mrf.mxu0
      %v4155 = vadd.f32 %v4011, %v4154
      %v4156 = vpop.f32.mrf.mxu0
      %v4157 = vadd.f32 %v4013, %v4156
      %4158 = vdwg.mxu0
      %4159 = vmatpush.bf16.msra.mxu0 %v3846
      %4160 = vmatpush.bf16.msra.mxu0 %v3845
      %4161 = vmatpush.bf16.msra.mxu0 %v3844
      %4162 = vmatpush.bf16.msra.mxu0 %v3843
      %4163 = vmatpush.bf16.msra.mxu0 %v3842
      %4164 = vmatpush.bf16.msra.mxu0 %v3841
      %4165 = vmatpush.bf16.msra.mxu0 %v3840
      %4166 = vmatpush.bf16.msra.mxu0 %v3839
      %4167 = vmatmul.bf16.gmra.mxu0 %v3567
      %v4168 = vpop.f32.mrf.mxu0
      %v4169 = vadd.f32 %v4025, %v4168
      %v4170 = vpop.f32.mrf.mxu0
      %v4171 = vadd.f32 %v4027, %v4170
      %4172 = vmatmul.bf16.gmra.mxu0 %v3570
      %v4173 = vpop.f32.mrf.mxu0
      %v4174 = vadd.f32 %v4030, %v4173
      %v4175 = vpop.f32.mrf.mxu0
      %v4176 = vadd.f32 %v4032, %v4175
      %4177 = vmatmul.bf16.gmra.mxu0 %v3573
      %v4178 = vpop.f32.mrf.mxu0
      %v4179 = vadd.f32 %v4035, %v4178
      %v4180 = vpop.f32.mrf.mxu0
      %v4181 = vadd.f32 %v4037, %v4180
      %4182 = vmatmul.bf16.gmra.mxu0 %v3576
      %v4183 = vpop.f32.mrf.mxu0
      %v4184 = vadd.f32 %v4040, %v4183
      %v4185 = vpop.f32.mrf.mxu0
      %v4186 = vadd.f32 %v4042, %v4185
      %4187 = vmatmul.bf16.gmra.mxu0 %v3579
      %v4188 = vpop.f32.mrf.mxu0
      %v4189 = vadd.f32 %v4045, %v4188
      %v4190 = vpop.f32.mrf.mxu0
      %v4191 = vadd.f32 %v4047, %v4190
      %4192 = vmatmul.bf16.gmra.mxu0 %v3582
      %v4193 = vpop.f32.mrf.mxu0
      %v4194 = vadd.f32 %v4050, %v4193
      %v4195 = vpop.f32.mrf.mxu0
      %v4196 = vadd.f32 %v4052, %v4195
      %4197 = vmatmul.bf16.gmra.mxu0 %v3585
      %v4198 = vpop.f32.mrf.mxu0
      %v4199 = vadd.f32 %v4055, %v4198
      %v4200 = vpop.f32.mrf.mxu0
      %v4201 = vadd.f32 %v4057, %v4200
      %4202 = vmatmul.bf16.gmra.mxu0 %v3588
      %v4203 = vpop.f32.mrf.mxu0
      %v4204 = vadd.f32 %v4060, %v4203
      %v4205 = vpop.f32.mrf.mxu0
      %v4206 = vadd.f32 %v4062, %v4205
      %4207 = vmatmul.bf16.gmra.mxu0 %v3591
      %v4208 = vpop.f32.mrf.mxu0
      %v4209 = vadd.f32 %v4065, %v4208
      %v4210 = vpop.f32.mrf.mxu0
      %v4211 = vadd.f32 %v4067, %v4210
      %4212 = vmatmul.bf16.gmra.mxu0 %v3594
      %v4213 = vpop.f32.mrf.mxu0
      %v4214 = vadd.f32 %v4070, %v4213
      %v4215 = vpop.f32.mrf.mxu0
      %v4216 = vadd.f32 %v4072, %v4215
      %4217 = vmatmul.bf16.gmra.mxu0 %v3597
      %v4218 = vpop.f32.mrf.mxu0
      %v4219 = vadd.f32 %v4075, %v4218
      %v4220 = vpop.f32.mrf.mxu0
      %v4221 = vadd.f32 %v4077, %v4220
      %4222 = vmatmul.bf16.gmra.mxu0 %v3600
      %v4223 = vpop.f32.mrf.mxu0
      %v4224 = vadd.f32 %v4080, %v4223
      %v4225 = vpop.f32.mrf.mxu0
      %v4226 = vadd.f32 %v4082, %v4225
      %4227 = vmatmul.bf16.gmra.mxu0 %v3603
      %v4228 = vpop.f32.mrf.mxu0
      %v4229 = vadd.f32 %v4085, %v4228
      %v4230 = vpop.f32.mrf.mxu0
      %v4231 = vadd.f32 %v4087, %v4230
      %4232 = vmatmul.bf16.gmra.mxu0 %v3606
      %v4233 = vpop.f32.mrf.mxu0
      %v4234 = vadd.f32 %v4090, %v4233
      %v4235 = vpop.f32.mrf.mxu0
      %v4236 = vadd.f32 %v4092, %v4235
      %4237 = vmatmul.bf16.gmra.mxu0 %v3609
      %v4238 = vpop.f32.mrf.mxu0
      %v4239 = vadd.f32 %v4095, %v4238
      %v4240 = vpop.f32.mrf.mxu0
      %v4241 = vadd.f32 %v4097, %v4240
      %4242 = vmatmul.bf16.gmra.mxu0 %v3612
      %v4243 = vpop.f32.mrf.mxu0
      %v4244 = vadd.f32 %v4100, %v4243
      %v4245 = vpop.f32.mrf.mxu0
      %v4246 = vadd.f32 %v4102, %v4245
      %4247 = vmatmul.bf16.gmra.mxu0 %v3615
      %v4248 = vpop.f32.mrf.mxu0
      %v4249 = vadd.f32 %v4105, %v4248
      %v4250 = vpop.f32.mrf.mxu0
      %v4251 = vadd.f32 %v4107, %v4250
      %4252 = vmatmul.bf16.gmra.mxu0 %v3618
      %v4253 = vpop.f32.mrf.mxu0
      %v4254 = vadd.f32 %v4110, %v4253
      %v4255 = vpop.f32.mrf.mxu0
      %v4256 = vadd.f32 %v4112, %v4255
      %4257 = vmatmul.bf16.gmra.mxu0 %v3621
      %v4258 = vpop.f32.mrf.mxu0
      %v4259 = vadd.f32 %v4115, %v4258
      %v4260 = vpop.f32.mrf.mxu0
      %v4261 = vadd.f32 %v4117, %v4260
      %4262 = vmatmul.bf16.gmra.mxu0 %v3624
      %v4263 = vpop.f32.mrf.mxu0
      %v4264 = vadd.f32 %v4120, %v4263
      %v4265 = vpop.f32.mrf.mxu0
      %v4266 = vadd.f32 %v4122, %v4265
      %4267 = vmatmul.bf16.gmra.mxu0 %v3627
      %v4268 = vpop.f32.mrf.mxu0
      %v4269 = vadd.f32 %v4125, %v4268
      %v4270 = vpop.f32.mrf.mxu0
      %v4271 = vadd.f32 %v4127, %v4270
      %4272 = vmatmul.bf16.gmra.mxu0 %v3630
      %v4273 = vpop.f32.mrf.mxu0
      %v4274 = vadd.f32 %v4130, %v4273
      %v4275 = vpop.f32.mrf.mxu0
      %v4276 = vadd.f32 %v4132, %v4275
      %4277 = vmatmul.bf16.gmra.mxu0 %v3633
      %v4278 = vpop.f32.mrf.mxu0
      %v4279 = vadd.f32 %v4135, %v4278
      %v4280 = vpop.f32.mrf.mxu0
      %v4281 = vadd.f32 %v4137, %v4280
      %4282 = vmatmul.bf16.gmra.mxu0 %v3636
      %v4283 = vpop.f32.mrf.mxu0
      %v4284 = vadd.f32 %v4140, %v4283
      %v4285 = vpop.f32.mrf.mxu0
      %v4286 = vadd.f32 %v4142, %v4285
      %4287 = vmatmul.bf16.gmra.mxu0 %v3639
      %v4288 = vpop.f32.mrf.mxu0
      %v4289 = vadd.f32 %v4145, %v4288
      %v4290 = vpop.f32.mrf.mxu0
      %v4291 = vadd.f32 %v4147, %v4290
      %4292 = vmatmul.bf16.gmra.mxu0 %v3642
      %v4293 = vpop.f32.mrf.mxu0
      %v4294 = vadd.f32 %v4150, %v4293
      %v4295 = vpop.f32.mrf.mxu0
      %v4296 = vadd.f32 %v4152, %v4295
      %4297 = vmatmul.bf16.gmra.mxu0 %v3645
      %v4298 = vpop.f32.mrf.mxu0
      %v4299 = vadd.f32 %v4155, %v4298
      %v4300 = vpop.f32.mrf.mxu0
      %v4301 = vadd.f32 %v4157, %v4300
      %4302 = vdwg.mxu0
      %v4309 = vunpack.c.l.b16 %v3084
      %v4310 = vunpack.c.h.b16 %v3084
      %v4311 = vunpack.c.l.b16 %v3085
      %v4312 = vunpack.c.l.b16 %v3086
      %v4313 = vunpack.c.h.b16 %v3086
      %v4314 = vunpack.c.l.b16 %v3087
      %v4315 = vunpack.c.l.b16 %v3088
      %v4316 = vunpack.c.h.b16 %v3088
      %v4317 = vunpack.c.l.b16 %v3089
      %v4318 = vpack.c.b16 %v4312, %v4309
      %v4319 = vpack.c.b16 %v4313, %v4310
      %v4320 = vpack.c.b16 %v4314, %v4311
      %v4321 = vpack.c.b16 %v3403, %v4315
      %v4322 = vpack.c.b16 %v3404, %v4316
      %v4323 = vpack.c.b16 %v3405, %v4317
      %v4324 = vpack.c.b16 %v3409, %v3406
      %v4325 = vpack.c.b16 %v3410, %v3407
      %v4326 = vpack.c.b16 %v3411, %v3408
      %v4327 = vpack.c.b16 %v3415, %v3412
      %v4328 = vpack.c.b16 %v3416, %v3413
      %v4329 = vpack.c.b16 %v3417, %v3414
      %v4330 = vpack.c.b16 %v3421, %v3418
      %v4331 = vpack.c.b16 %v3422, %v3419
      %v4332 = vpack.c.b16 %v3423, %v3420
      %v4333 = vpack.c.b16 %v3427, %v3424
      %v4334 = vpack.c.b16 %v3428, %v3425
      %v4335 = vpack.c.b16 %v3429, %v3426
      %v4336 = vpack.c.b16 %v3433, %v3430
      %v4337 = vpack.c.b16 %v3434, %v3431
      %v4338 = vpack.c.b16 %v3435, %v3432
      %v4339 = vpack.c.b16 %v3439, %v3436
      %v4340 = vpack.c.b16 %v3440, %v3437
      %v4341 = vpack.c.b16 %v3441, %v3438
      %v4342 = vpack.c.b16 %v3445, %v3442
      %v4343 = vpack.c.b16 %v3446, %v3443
      %v4344 = vpack.c.b16 %v3447, %v3444
      %v4345 = vpack.c.b16 %v3451, %v3448
      %v4346 = vpack.c.b16 %v3452, %v3449
      %v4347 = vpack.c.b16 %v3453, %v3450
      %v4348 = vpack.c.b16 %v3457, %v3454
      %v4349 = vpack.c.b16 %v3458, %v3455
      %v4350 = vpack.c.b16 %v3459, %v3456
      %v4351 = vpack.c.b16 %v3463, %v3460
      %v4352 = vpack.c.b16 %v3464, %v3461
      %v4353 = vpack.c.b16 %v3465, %v3462
      %v4354 = vpack.c.b16 %v3469, %v3466
      %v4355 = vpack.c.b16 %v3470, %v3467
      %v4356 = vpack.c.b16 %v3471, %v3468
      %v4357 = vpack.c.b16 %v3475, %v3472
      %v4358 = vpack.c.b16 %v3476, %v3473
      %v4359 = vpack.c.b16 %v3477, %v3474
      %v4360 = vpack.c.b16 %v3481, %v3478
      %v4361 = vpack.c.b16 %v3482, %v3479
      %v4362 = vpack.c.b16 %v3483, %v3480
      %v4363 = vpack.c.b16 %v3487, %v3484
      %v4364 = vpack.c.b16 %v3488, %v3485
      %v4365 = vpack.c.b16 %v3489, %v3486
      %v4366 = vpack.c.b16 %v3493, %v3490
      %v4367 = vpack.c.b16 %v3494, %v3491
      %v4368 = vpack.c.b16 %v3495, %v3492
      %v4369 = vpack.c.b16 %v3499, %v3496
      %v4370 = vpack.c.b16 %v3500, %v3497
      %v4371 = vpack.c.b16 %v3501, %v3498
      %v4372 = vpack.c.b16 %v3505, %v3502
      %v4373 = vpack.c.b16 %v3506, %v3503
      %v4374 = vpack.c.b16 %v3507, %v3504
      %v4375 = vpack.c.b16 %v3511, %v3508
      %v4376 = vpack.c.b16 %v3512, %v3509
      %v4377 = vpack.c.b16 %v3513, %v3510
      %v4378 = vpack.c.b16 %v3517, %v3514
      %v4379 = vpack.c.b16 %v3518, %v3515
      %v4380 = vpack.c.b16 %v3519, %v3516
      %v4381 = vpack.c.b16 %v3523, %v3520
      %v4382 = vpack.c.b16 %v3524, %v3521
      %v4383 = vpack.c.b16 %v3525, %v3522
      %v4384 = vpack.c.b16 %v3529, %v3526
      %v4385 = vpack.c.b16 %v3530, %v3527
      %v4386 = vpack.c.b16 %v3531, %v3528
      %v4387 = vpack.c.b16 %v3535, %v3532
      %v4388 = vpack.c.b16 %v3536, %v3533
      %v4389 = vpack.c.b16 %v3537, %v3534
      %v4390 = vpack.c.b16 %v3541, %v3538
      %v4391 = vpack.c.b16 %v3542, %v3539
      %v4392 = vpack.c.b16 %v3543, %v3540
      %v4393 = vpack.c.b16 %v3547, %v3544
      %v4394 = vpack.c.b16 %v3548, %v3545
      %v4395 = vpack.c.b16 %v3549, %v3546
      %v4396 = vpack.c.b16 %v3553, %v3550
      %v4397 = vpack.c.b16 %v3554, %v3551
      %v4398 = vpack.c.b16 %v3555, %v3552
      %v4528 = vunpack.c.l.b16 %v3192
      %v4529 = vunpack.c.l.b16 %v3193
      %v4530 = vunpack.c.l.b16 %v3194
      %v4531 = vunpack.c.l.b16 %v3195
      %v4532 = vunpack.c.l.b16 %v3196
      %v4533 = vunpack.c.l.b16 %v3197
      %v4534 = vunpack.c.l.b16 %v3198
      %v4535 = vunpack.c.l.b16 %v3199
      %v4536 = vunpack.c.l.b16 %v3200
      %v4537 = vunpack.c.l.b16 %v3201
      %v4538 = vunpack.c.l.b16 %v3202
      %v4539 = vunpack.c.l.b16 %v3203
      %v4540 = vunpack.c.l.b16 %v3204
      %v4541 = vunpack.c.l.b16 %v3205
      %v4542 = vunpack.c.l.b16 %v3206
      %v4543 = vunpack.c.l.b16 %v3207
      %v4544 = vunpack.c.l.b16 %v3208
      %v4545 = vunpack.c.l.b16 %v3209
      %v4546 = vunpack.c.l.b16 %v3210
      %v4547 = vunpack.c.l.b16 %v3211
      %v4548 = vunpack.c.l.b16 %v3212
      %v4549 = vunpack.c.l.b16 %v3213
      %v4550 = vunpack.c.l.b16 %v3214
      %v4551 = vunpack.c.l.b16 %v3215
      %v4552 = vunpack.c.l.b16 %v3216
      %v4553 = vunpack.c.l.b16 %v3217
      %v4554 = vunpack.c.l.b16 %v3218
      %v4555 = vunpack.c.l.b16 %v3219
      %v4556 = vunpack.c.l.b16 %v3220
      %v4557 = vunpack.c.l.b16 %v3221
      %v4558 = vunpack.c.l.b16 %v3222
      %v4559 = vunpack.c.l.b16 %v3223
      %v4560 = vunpack.c.l.b16 %v3224
      %v4561 = vunpack.c.l.b16 %v3225
      %v4562 = vunpack.c.l.b16 %v3226
      %v4563 = vunpack.c.l.b16 %v3227
      %v4564 = vunpack.c.l.b16 %v3228
      %v4565 = vunpack.c.l.b16 %v3229
      %v4566 = vunpack.c.l.b16 %v3230
      %v4567 = vunpack.c.l.b16 %v3231
      %v4568 = vunpack.c.l.b16 %v3232
      %v4569 = vunpack.c.l.b16 %v3233
      %v4570 = vunpack.c.l.b16 %v3234
      %v4571 = vunpack.c.l.b16 %v3235
      %v4572 = vunpack.c.l.b16 %v3236
      %v4573 = vunpack.c.l.b16 %v3237
      %v4574 = vunpack.c.l.b16 %v3238
      %v4575 = vunpack.c.l.b16 %v3239
      %v4576 = vpack.c.b16 %v4529, %v4528
      %v4577 = vpack.c.b16 %v4531, %v4530
      %v4578 = vpack.c.b16 %v4533, %v4532
      %v4579 = vpack.c.b16 %v4535, %v4534
      %v4580 = vpack.c.b16 %v4537, %v4536
      %v4581 = vpack.c.b16 %v4539, %v4538
      %v4582 = vpack.c.b16 %v4541, %v4540
      %v4583 = vpack.c.b16 %v4543, %v4542
      %v4584 = vpack.c.b16 %v4545, %v4544
      %v4585 = vpack.c.b16 %v4547, %v4546
      %v4586 = vpack.c.b16 %v4549, %v4548
      %v4587 = vpack.c.b16 %v4551, %v4550
      %v4588 = vpack.c.b16 %v4553, %v4552
      %v4589 = vpack.c.b16 %v4555, %v4554
      %v4590 = vpack.c.b16 %v4557, %v4556
      %v4591 = vpack.c.b16 %v4559, %v4558
      %v4592 = vpack.c.b16 %v4561, %v4560
      %v4593 = vpack.c.b16 %v4563, %v4562
      %v4594 = vpack.c.b16 %v4565, %v4564
      %v4595 = vpack.c.b16 %v4567, %v4566
      %v4596 = vpack.c.b16 %v4569, %v4568
      %v4597 = vpack.c.b16 %v4571, %v4570
      %v4598 = vpack.c.b16 %v4573, %v4572
      %v4599 = vpack.c.b16 %v4575, %v4574
      %4624 = vmatpush.bf16.msra.mxu0 %v4583
      %4625 = vmatpush.bf16.msra.mxu0 %v4582
      %4626 = vmatpush.bf16.msra.mxu0 %v4581
      %4627 = vmatpush.bf16.msra.mxu0 %v4580
      %4628 = vmatpush.bf16.msra.mxu0 %v4579
      %4629 = vmatpush.bf16.msra.mxu0 %v4578
      %4630 = vmatpush.bf16.msra.mxu0 %v4577
      %4631 = vmatpush.bf16.msra.mxu0 %v4576
      %4632 = vmatmul.bf16.gmra.mxu0 %v4318
      %v4633 = vpop.f32.mrf.mxu0
      %v4634 = vadd.f32 %v4169, %v4633
      %v4635 = vpop.f32.mrf.mxu0
      %v4636 = vadd.f32 %v4171, %v4635
      %4637 = vmatmul.bf16.gmra.mxu0 %v4321
      %v4638 = vpop.f32.mrf.mxu0
      %v4639 = vadd.f32 %v4174, %v4638
      %v4640 = vpop.f32.mrf.mxu0
      %v4641 = vadd.f32 %v4176, %v4640
      %4642 = vmatmul.bf16.gmra.mxu0 %v4324
      %v4643 = vpop.f32.mrf.mxu0
      %v4644 = vadd.f32 %v4179, %v4643
      %v4645 = vpop.f32.mrf.mxu0
      %v4646 = vadd.f32 %v4181, %v4645
      %4647 = vmatmul.bf16.gmra.mxu0 %v4327
      %v4648 = vpop.f32.mrf.mxu0
      %v4649 = vadd.f32 %v4184, %v4648
      %v4650 = vpop.f32.mrf.mxu0
      %v4651 = vadd.f32 %v4186, %v4650
      %4652 = vmatmul.bf16.gmra.mxu0 %v4330
      %v4653 = vpop.f32.mrf.mxu0
      %v4654 = vadd.f32 %v4189, %v4653
      %v4655 = vpop.f32.mrf.mxu0
      %v4656 = vadd.f32 %v4191, %v4655
      %4657 = vmatmul.bf16.gmra.mxu0 %v4333
      %v4658 = vpop.f32.mrf.mxu0
      %v4659 = vadd.f32 %v4194, %v4658
      %v4660 = vpop.f32.mrf.mxu0
      %v4661 = vadd.f32 %v4196, %v4660
      %4662 = vmatmul.bf16.gmra.mxu0 %v4336
      %v4663 = vpop.f32.mrf.mxu0
      %v4664 = vadd.f32 %v4199, %v4663
      %v4665 = vpop.f32.mrf.mxu0
      %v4666 = vadd.f32 %v4201, %v4665
      %4667 = vmatmul.bf16.gmra.mxu0 %v4339
      %v4668 = vpop.f32.mrf.mxu0
      %v4669 = vadd.f32 %v4204, %v4668
      %v4670 = vpop.f32.mrf.mxu0
      %v4671 = vadd.f32 %v4206, %v4670
      %4672 = vmatmul.bf16.gmra.mxu0 %v4342
      %v4673 = vpop.f32.mrf.mxu0
      %v4674 = vadd.f32 %v4209, %v4673
      %v4675 = vpop.f32.mrf.mxu0
      %v4676 = vadd.f32 %v4211, %v4675
      %4677 = vmatmul.bf16.gmra.mxu0 %v4345
      %v4678 = vpop.f32.mrf.mxu0
      %v4679 = vadd.f32 %v4214, %v4678
      %v4680 = vpop.f32.mrf.mxu0
      %v4681 = vadd.f32 %v4216, %v4680
      %4682 = vmatmul.bf16.gmra.mxu0 %v4348
      %v4683 = vpop.f32.mrf.mxu0
      %v4684 = vadd.f32 %v4219, %v4683
      %v4685 = vpop.f32.mrf.mxu0
      %v4686 = vadd.f32 %v4221, %v4685
      %4687 = vmatmul.bf16.gmra.mxu0 %v4351
      %v4688 = vpop.f32.mrf.mxu0
      %v4689 = vadd.f32 %v4224, %v4688
      %v4690 = vpop.f32.mrf.mxu0
      %v4691 = vadd.f32 %v4226, %v4690
      %4692 = vmatmul.bf16.gmra.mxu0 %v4354
      %v4693 = vpop.f32.mrf.mxu0
      %v4694 = vadd.f32 %v4229, %v4693
      %v4695 = vpop.f32.mrf.mxu0
      %v4696 = vadd.f32 %v4231, %v4695
      %4697 = vmatmul.bf16.gmra.mxu0 %v4357
      %v4698 = vpop.f32.mrf.mxu0
      %v4699 = vadd.f32 %v4234, %v4698
      %v4700 = vpop.f32.mrf.mxu0
      %v4701 = vadd.f32 %v4236, %v4700
      %4702 = vmatmul.bf16.gmra.mxu0 %v4360
      %v4703 = vpop.f32.mrf.mxu0
      %v4704 = vadd.f32 %v4239, %v4703
      %v4705 = vpop.f32.mrf.mxu0
      %v4706 = vadd.f32 %v4241, %v4705
      %4707 = vmatmul.bf16.gmra.mxu0 %v4363
      %v4708 = vpop.f32.mrf.mxu0
      %v4709 = vadd.f32 %v4244, %v4708
      %v4710 = vpop.f32.mrf.mxu0
      %v4711 = vadd.f32 %v4246, %v4710
      %4712 = vmatmul.bf16.gmra.mxu0 %v4366
      %v4713 = vpop.f32.mrf.mxu0
      %v4714 = vadd.f32 %v4249, %v4713
      %v4715 = vpop.f32.mrf.mxu0
      %v4716 = vadd.f32 %v4251, %v4715
      %4717 = vmatmul.bf16.gmra.mxu0 %v4369
      %v4718 = vpop.f32.mrf.mxu0
      %v4719 = vadd.f32 %v4254, %v4718
      %v4720 = vpop.f32.mrf.mxu0
      %v4721 = vadd.f32 %v4256, %v4720
      %4722 = vmatmul.bf16.gmra.mxu0 %v4372
      %v4723 = vpop.f32.mrf.mxu0
      %v4724 = vadd.f32 %v4259, %v4723
      %v4725 = vpop.f32.mrf.mxu0
      %v4726 = vadd.f32 %v4261, %v4725
      %4727 = vmatmul.bf16.gmra.mxu0 %v4375
      %v4728 = vpop.f32.mrf.mxu0
      %v4729 = vadd.f32 %v4264, %v4728
      %v4730 = vpop.f32.mrf.mxu0
      %v4731 = vadd.f32 %v4266, %v4730
      %4732 = vmatmul.bf16.gmra.mxu0 %v4378
      %v4733 = vpop.f32.mrf.mxu0
      %v4734 = vadd.f32 %v4269, %v4733
      %v4735 = vpop.f32.mrf.mxu0
      %v4736 = vadd.f32 %v4271, %v4735
      %4737 = vmatmul.bf16.gmra.mxu0 %v4381
      %v4738 = vpop.f32.mrf.mxu0
      %v4739 = vadd.f32 %v4274, %v4738
      %v4740 = vpop.f32.mrf.mxu0
      %v4741 = vadd.f32 %v4276, %v4740
      %4742 = vmatmul.bf16.gmra.mxu0 %v4384
      %v4743 = vpop.f32.mrf.mxu0
      %v4744 = vadd.f32 %v4279, %v4743
      %v4745 = vpop.f32.mrf.mxu0
      %v4746 = vadd.f32 %v4281, %v4745
      %4747 = vmatmul.bf16.gmra.mxu0 %v4387
      %v4748 = vpop.f32.mrf.mxu0
      %v4749 = vadd.f32 %v4284, %v4748
      %v4750 = vpop.f32.mrf.mxu0
      %v4751 = vadd.f32 %v4286, %v4750
      %4752 = vmatmul.bf16.gmra.mxu0 %v4390
      %v4753 = vpop.f32.mrf.mxu0
      %v4754 = vadd.f32 %v4289, %v4753
      %v4755 = vpop.f32.mrf.mxu0
      %v4756 = vadd.f32 %v4291, %v4755
      %4757 = vmatmul.bf16.gmra.mxu0 %v4393
      %v4758 = vpop.f32.mrf.mxu0
      %v4759 = vadd.f32 %v4294, %v4758
      %v4760 = vpop.f32.mrf.mxu0
      %v4761 = vadd.f32 %v4296, %v4760
      %4762 = vmatmul.bf16.gmra.mxu0 %v4396
      %v4763 = vpop.f32.mrf.mxu0
      %v4764 = vadd.f32 %v4299, %v4763
      %v4765 = vpop.f32.mrf.mxu0
      %v4766 = vadd.f32 %v4301, %v4765
      %4767 = vdwg.mxu0
      %4768 = vmatpush.bf16.msra.mxu0 %v4591
      %4769 = vmatpush.bf16.msra.mxu0 %v4590
      %4770 = vmatpush.bf16.msra.mxu0 %v4589
      %4771 = vmatpush.bf16.msra.mxu0 %v4588
      %4772 = vmatpush.bf16.msra.mxu0 %v4587
      %4773 = vmatpush.bf16.msra.mxu0 %v4586
      %4774 = vmatpush.bf16.msra.mxu0 %v4585
      %4775 = vmatpush.bf16.msra.mxu0 %v4584
      %4776 = vmatmul.bf16.gmra.mxu0 %v4319
      %v4777 = vpop.f32.mrf.mxu0
      %v4778 = vadd.f32 %v4634, %v4777
      %v4779 = vpop.f32.mrf.mxu0
      %v4780 = vadd.f32 %v4636, %v4779
      %4781 = vmatmul.bf16.gmra.mxu0 %v4322
      %v4782 = vpop.f32.mrf.mxu0
      %v4783 = vadd.f32 %v4639, %v4782
      %v4784 = vpop.f32.mrf.mxu0
      %v4785 = vadd.f32 %v4641, %v4784
      %4786 = vmatmul.bf16.gmra.mxu0 %v4325
      %v4787 = vpop.f32.mrf.mxu0
      %v4788 = vadd.f32 %v4644, %v4787
      %v4789 = vpop.f32.mrf.mxu0
      %v4790 = vadd.f32 %v4646, %v4789
      %4791 = vmatmul.bf16.gmra.mxu0 %v4328
      %v4792 = vpop.f32.mrf.mxu0
      %v4793 = vadd.f32 %v4649, %v4792
      %v4794 = vpop.f32.mrf.mxu0
      %v4795 = vadd.f32 %v4651, %v4794
      %4796 = vmatmul.bf16.gmra.mxu0 %v4331
      %v4797 = vpop.f32.mrf.mxu0
      %v4798 = vadd.f32 %v4654, %v4797
      %v4799 = vpop.f32.mrf.mxu0
      %v4800 = vadd.f32 %v4656, %v4799
      %4801 = vmatmul.bf16.gmra.mxu0 %v4334
      %v4802 = vpop.f32.mrf.mxu0
      %v4803 = vadd.f32 %v4659, %v4802
      %v4804 = vpop.f32.mrf.mxu0
      %v4805 = vadd.f32 %v4661, %v4804
      %4806 = vmatmul.bf16.gmra.mxu0 %v4337
      %v4807 = vpop.f32.mrf.mxu0
      %v4808 = vadd.f32 %v4664, %v4807
      %v4809 = vpop.f32.mrf.mxu0
      %v4810 = vadd.f32 %v4666, %v4809
      %4811 = vmatmul.bf16.gmra.mxu0 %v4340
      %v4812 = vpop.f32.mrf.mxu0
      %v4813 = vadd.f32 %v4669, %v4812
      %v4814 = vpop.f32.mrf.mxu0
      %v4815 = vadd.f32 %v4671, %v4814
      %4816 = vmatmul.bf16.gmra.mxu0 %v4343
      %v4817 = vpop.f32.mrf.mxu0
      %v4818 = vadd.f32 %v4674, %v4817
      %v4819 = vpop.f32.mrf.mxu0
      %v4820 = vadd.f32 %v4676, %v4819
      %4821 = vmatmul.bf16.gmra.mxu0 %v4346
      %v4822 = vpop.f32.mrf.mxu0
      %v4823 = vadd.f32 %v4679, %v4822
      %v4824 = vpop.f32.mrf.mxu0
      %v4825 = vadd.f32 %v4681, %v4824
      %4826 = vmatmul.bf16.gmra.mxu0 %v4349
      %v4827 = vpop.f32.mrf.mxu0
      %v4828 = vadd.f32 %v4684, %v4827
      %v4829 = vpop.f32.mrf.mxu0
      %v4830 = vadd.f32 %v4686, %v4829
      %4831 = vmatmul.bf16.gmra.mxu0 %v4352
      %v4832 = vpop.f32.mrf.mxu0
      %v4833 = vadd.f32 %v4689, %v4832
      %v4834 = vpop.f32.mrf.mxu0
      %v4835 = vadd.f32 %v4691, %v4834
      %4836 = vmatmul.bf16.gmra.mxu0 %v4355
      %v4837 = vpop.f32.mrf.mxu0
      %v4838 = vadd.f32 %v4694, %v4837
      %v4839 = vpop.f32.mrf.mxu0
      %v4840 = vadd.f32 %v4696, %v4839
      %4841 = vmatmul.bf16.gmra.mxu0 %v4358
      %v4842 = vpop.f32.mrf.mxu0
      %v4843 = vadd.f32 %v4699, %v4842
      %v4844 = vpop.f32.mrf.mxu0
      %v4845 = vadd.f32 %v4701, %v4844
      %4846 = vmatmul.bf16.gmra.mxu0 %v4361
      %v4847 = vpop.f32.mrf.mxu0
      %v4848 = vadd.f32 %v4704, %v4847
      %v4849 = vpop.f32.mrf.mxu0
      %v4850 = vadd.f32 %v4706, %v4849
      %4851 = vmatmul.bf16.gmra.mxu0 %v4364
      %v4852 = vpop.f32.mrf.mxu0
      %v4853 = vadd.f32 %v4709, %v4852
      %v4854 = vpop.f32.mrf.mxu0
      %v4855 = vadd.f32 %v4711, %v4854
      %4856 = vmatmul.bf16.gmra.mxu0 %v4367
      %v4857 = vpop.f32.mrf.mxu0
      %v4858 = vadd.f32 %v4714, %v4857
      %v4859 = vpop.f32.mrf.mxu0
      %v4860 = vadd.f32 %v4716, %v4859
      %4861 = vmatmul.bf16.gmra.mxu0 %v4370
      %v4862 = vpop.f32.mrf.mxu0
      %v4863 = vadd.f32 %v4719, %v4862
      %v4864 = vpop.f32.mrf.mxu0
      %v4865 = vadd.f32 %v4721, %v4864
      %4866 = vmatmul.bf16.gmra.mxu0 %v4373
      %v4867 = vpop.f32.mrf.mxu0
      %v4868 = vadd.f32 %v4724, %v4867
      %v4869 = vpop.f32.mrf.mxu0
      %v4870 = vadd.f32 %v4726, %v4869
      %4871 = vmatmul.bf16.gmra.mxu0 %v4376
      %v4872 = vpop.f32.mrf.mxu0
      %v4873 = vadd.f32 %v4729, %v4872
      %v4874 = vpop.f32.mrf.mxu0
      %v4875 = vadd.f32 %v4731, %v4874
      %4876 = vmatmul.bf16.gmra.mxu0 %v4379
      %v4877 = vpop.f32.mrf.mxu0
      %v4878 = vadd.f32 %v4734, %v4877
      %v4879 = vpop.f32.mrf.mxu0
      %v4880 = vadd.f32 %v4736, %v4879
      %4881 = vmatmul.bf16.gmra.mxu0 %v4382
      %v4882 = vpop.f32.mrf.mxu0
      %v4883 = vadd.f32 %v4739, %v4882
      %v4884 = vpop.f32.mrf.mxu0
      %v4885 = vadd.f32 %v4741, %v4884
      %4886 = vmatmul.bf16.gmra.mxu0 %v4385
      %v4887 = vpop.f32.mrf.mxu0
      %v4888 = vadd.f32 %v4744, %v4887
      %v4889 = vpop.f32.mrf.mxu0
      %v4890 = vadd.f32 %v4746, %v4889
      %4891 = vmatmul.bf16.gmra.mxu0 %v4388
      %v4892 = vpop.f32.mrf.mxu0
      %v4893 = vadd.f32 %v4749, %v4892
      %v4894 = vpop.f32.mrf.mxu0
      %v4895 = vadd.f32 %v4751, %v4894
      %4896 = vmatmul.bf16.gmra.mxu0 %v4391
      %v4897 = vpop.f32.mrf.mxu0
      %v4898 = vadd.f32 %v4754, %v4897
      %v4899 = vpop.f32.mrf.mxu0
      %v4900 = vadd.f32 %v4756, %v4899
      %4901 = vmatmul.bf16.gmra.mxu0 %v4394
      %v4902 = vpop.f32.mrf.mxu0
      %v4903 = vadd.f32 %v4759, %v4902
      %v4904 = vpop.f32.mrf.mxu0
      %v4905 = vadd.f32 %v4761, %v4904
      %4906 = vmatmul.bf16.gmra.mxu0 %v4397
      %v4907 = vpop.f32.mrf.mxu0
      %v4908 = vadd.f32 %v4764, %v4907
      %v4909 = vpop.f32.mrf.mxu0
      %v4910 = vadd.f32 %v4766, %v4909
      %4911 = vdwg.mxu0
      %4912 = vmatpush.bf16.msra.mxu0 %v4599
      %4913 = vmatpush.bf16.msra.mxu0 %v4598
      %4914 = vmatpush.bf16.msra.mxu0 %v4597
      %4915 = vmatpush.bf16.msra.mxu0 %v4596
      %4916 = vmatpush.bf16.msra.mxu0 %v4595
      %4917 = vmatpush.bf16.msra.mxu0 %v4594
      %4918 = vmatpush.bf16.msra.mxu0 %v4593
      %4919 = vmatpush.bf16.msra.mxu0 %v4592
      %4920 = vmatmul.bf16.gmra.mxu0 %v4320
      %v4921 = vpop.f32.mrf.mxu0
      %v4922 = vadd.f32 %v4778, %v4921
      %v4923 = vpop.f32.mrf.mxu0
      %v4924 = vadd.f32 %v4780, %v4923
      %4925 = vmatmul.bf16.gmra.mxu0 %v4323
      %v4926 = vpop.f32.mrf.mxu0
      %v4927 = vadd.f32 %v4783, %v4926
      %v4928 = vpop.f32.mrf.mxu0
      %v4929 = vadd.f32 %v4785, %v4928
      %4930 = vmatmul.bf16.gmra.mxu0 %v4326
      %v4931 = vpop.f32.mrf.mxu0
      %v4932 = vadd.f32 %v4788, %v4931
      %v4933 = vpop.f32.mrf.mxu0
      %v4934 = vadd.f32 %v4790, %v4933
      %4935 = vmatmul.bf16.gmra.mxu0 %v4329
      %v4936 = vpop.f32.mrf.mxu0
      %v4937 = vadd.f32 %v4793, %v4936
      %v4938 = vpop.f32.mrf.mxu0
      %v4939 = vadd.f32 %v4795, %v4938
      %4940 = vmatmul.bf16.gmra.mxu0 %v4332
      %v4941 = vpop.f32.mrf.mxu0
      %v4942 = vadd.f32 %v4798, %v4941
      %v4943 = vpop.f32.mrf.mxu0
      %v4944 = vadd.f32 %v4800, %v4943
      %4945 = vmatmul.bf16.gmra.mxu0 %v4335
      %v4946 = vpop.f32.mrf.mxu0
      %v4947 = vadd.f32 %v4803, %v4946
      %v4948 = vpop.f32.mrf.mxu0
      %v4949 = vadd.f32 %v4805, %v4948
      %4950 = vmatmul.bf16.gmra.mxu0 %v4338
      %v4951 = vpop.f32.mrf.mxu0
      %v4952 = vadd.f32 %v4808, %v4951
      %v4953 = vpop.f32.mrf.mxu0
      %v4954 = vadd.f32 %v4810, %v4953
      %4955 = vmatmul.bf16.gmra.mxu0 %v4341
      %v4956 = vpop.f32.mrf.mxu0
      %v4957 = vadd.f32 %v4813, %v4956
      %v4958 = vpop.f32.mrf.mxu0
      %v4959 = vadd.f32 %v4815, %v4958
      %4960 = vmatmul.bf16.gmra.mxu0 %v4344
      %v4961 = vpop.f32.mrf.mxu0
      %v4962 = vadd.f32 %v4818, %v4961
      %v4963 = vpop.f32.mrf.mxu0
      %v4964 = vadd.f32 %v4820, %v4963
      %4965 = vmatmul.bf16.gmra.mxu0 %v4347
      %v4966 = vpop.f32.mrf.mxu0
      %v4967 = vadd.f32 %v4823, %v4966
      %v4968 = vpop.f32.mrf.mxu0
      %v4969 = vadd.f32 %v4825, %v4968
      %4970 = vmatmul.bf16.gmra.mxu0 %v4350
      %v4971 = vpop.f32.mrf.mxu0
      %v4972 = vadd.f32 %v4828, %v4971
      %v4973 = vpop.f32.mrf.mxu0
      %v4974 = vadd.f32 %v4830, %v4973
      %4975 = vmatmul.bf16.gmra.mxu0 %v4353
      %v4976 = vpop.f32.mrf.mxu0
      %v4977 = vadd.f32 %v4833, %v4976
      %v4978 = vpop.f32.mrf.mxu0
      %v4979 = vadd.f32 %v4835, %v4978
      %4980 = vmatmul.bf16.gmra.mxu0 %v4356
      %v4981 = vpop.f32.mrf.mxu0
      %v4982 = vadd.f32 %v4838, %v4981
      %v4983 = vpop.f32.mrf.mxu0
      %v4984 = vadd.f32 %v4840, %v4983
      %4985 = vmatmul.bf16.gmra.mxu0 %v4359
      %v4986 = vpop.f32.mrf.mxu0
      %v4987 = vadd.f32 %v4843, %v4986
      %v4988 = vpop.f32.mrf.mxu0
      %v4989 = vadd.f32 %v4845, %v4988
      %4990 = vmatmul.bf16.gmra.mxu0 %v4362
      %v4991 = vpop.f32.mrf.mxu0
      %v4992 = vadd.f32 %v4848, %v4991
      %v4993 = vpop.f32.mrf.mxu0
      %v4994 = vadd.f32 %v4850, %v4993
      %4995 = vmatmul.bf16.gmra.mxu0 %v4365
      %v4996 = vpop.f32.mrf.mxu0
      %v4997 = vadd.f32 %v4853, %v4996
      %v4998 = vpop.f32.mrf.mxu0
      %v4999 = vadd.f32 %v4855, %v4998
      %5000 = vmatmul.bf16.gmra.mxu0 %v4368
      %v5001 = vpop.f32.mrf.mxu0
      %v5002 = vadd.f32 %v4858, %v5001
      %v5003 = vpop.f32.mrf.mxu0
      %v5004 = vadd.f32 %v4860, %v5003
      %5005 = vmatmul.bf16.gmra.mxu0 %v4371
      %v5006 = vpop.f32.mrf.mxu0
      %v5007 = vadd.f32 %v4863, %v5006
      %v5008 = vpop.f32.mrf.mxu0
      %v5009 = vadd.f32 %v4865, %v5008
      %5010 = vmatmul.bf16.gmra.mxu0 %v4374
      %v5011 = vpop.f32.mrf.mxu0
      %v5012 = vadd.f32 %v4868, %v5011
      %v5013 = vpop.f32.mrf.mxu0
      %v5014 = vadd.f32 %v4870, %v5013
      %5015 = vmatmul.bf16.gmra.mxu0 %v4377
      %v5016 = vpop.f32.mrf.mxu0
      %v5017 = vadd.f32 %v4873, %v5016
      %v5018 = vpop.f32.mrf.mxu0
      %v5019 = vadd.f32 %v4875, %v5018
      %5020 = vmatmul.bf16.gmra.mxu0 %v4380
      %v5021 = vpop.f32.mrf.mxu0
      %v5022 = vadd.f32 %v4878, %v5021
      %v5023 = vpop.f32.mrf.mxu0
      %v5024 = vadd.f32 %v4880, %v5023
      %5025 = vmatmul.bf16.gmra.mxu0 %v4383
      %v5026 = vpop.f32.mrf.mxu0
      %v5027 = vadd.f32 %v4883, %v5026
      %v5028 = vpop.f32.mrf.mxu0
      %v5029 = vadd.f32 %v4885, %v5028
      %5030 = vmatmul.bf16.gmra.mxu0 %v4386
      %v5031 = vpop.f32.mrf.mxu0
      %v5032 = vadd.f32 %v4888, %v5031
      %v5033 = vpop.f32.mrf.mxu0
      %v5034 = vadd.f32 %v4890, %v5033
      %5035 = vmatmul.bf16.gmra.mxu0 %v4389
      %v5036 = vpop.f32.mrf.mxu0
      %v5037 = vadd.f32 %v4893, %v5036
      %v5038 = vpop.f32.mrf.mxu0
      %v5039 = vadd.f32 %v4895, %v5038
      %5040 = vmatmul.bf16.gmra.mxu0 %v4392
      %v5041 = vpop.f32.mrf.mxu0
      %v5042 = vadd.f32 %v4898, %v5041
      %v5043 = vpop.f32.mrf.mxu0
      %v5044 = vadd.f32 %v4900, %v5043
      %5045 = vmatmul.bf16.gmra.mxu0 %v4395
      %v5046 = vpop.f32.mrf.mxu0
      %v5047 = vadd.f32 %v4903, %v5046
      %v5048 = vpop.f32.mrf.mxu0
      %v5049 = vadd.f32 %v4905, %v5048
      %5050 = vmatmul.bf16.gmra.mxu0 %v4398
      %v5051 = vpop.f32.mrf.mxu0
      %v5052 = vadd.f32 %v4908, %v5051
      %v5053 = vpop.f32.mrf.mxu0
      %v5054 = vadd.f32 %v4910, %v5053
      %5055 = vdwg.mxu0
      %v5056 = vld [vmem:[#allocation2 + $0x54] sm:$0xff]
      %v5057 = vld [vmem:[#allocation2 + $0x5c] sm:$0xf]
      %v5058 = vld [vmem:[#allocation2 + $0x60] sm:$0xff]
      %v5059 = vld [vmem:[#allocation2 + $0x68] sm:$0xf]
      %v5060 = vld [vmem:[#allocation2 + $0x6c] sm:$0xff]
      %v5061 = vld [vmem:[#allocation2 + $0x74] sm:$0xf]
      %v5062 = vld [vmem:[#allocation2 + $0x78] sm:$0xff]
      %v5063 = vld [vmem:[#allocation2 + $0x80] sm:$0xf]
      %v5064 = vld [vmem:[#allocation2 + $0x84] sm:$0xff]
      %v5065 = vld [vmem:[#allocation2 + $0x8c] sm:$0xf]
      %v5066 = vld [vmem:[#allocation2 + $0x90] sm:$0xff]
      %v5067 = vld [vmem:[#allocation2 + $0x98] sm:$0xf]
      %v5068 = vld [vmem:[#allocation2 + $0x9c] sm:$0xff]
      %v5069 = vld [vmem:[#allocation2 + $0xa4] sm:$0xf]
      %v5070 = vld [vmem:[#allocation2 + $0xa8] sm:$0xff]
      %v5071 = vld [vmem:[#allocation2 + $0xb0] sm:$0xf]
      %v5072 = vld [vmem:[#allocation2 + $0xb4] sm:$0xff]
      %v5073 = vld [vmem:[#allocation2 + $0xbc] sm:$0xf]
      %v5074 = vld [vmem:[#allocation2 + $0xc0] sm:$0xff]
      %v5075 = vld [vmem:[#allocation2 + $0xc8] sm:$0xf]
      %v5076 = vld [vmem:[#allocation2 + $0xcc] sm:$0xff]
      %v5077 = vld [vmem:[#allocation2 + $0xd4] sm:$0xf]
      %v5078 = vld [vmem:[#allocation2 + $0xd8] sm:$0xff]
      %v5079 = vld [vmem:[#allocation2 + $0xe0] sm:$0xf]
      %v5080 = vld [vmem:[#allocation2 + $0xe4] sm:$0xff]
      %v5081 = vld [vmem:[#allocation2 + $0xec] sm:$0xf]
      %v5082 = vld [vmem:[#allocation2 + $0xf0] sm:$0xff]
      %v5083 = vld [vmem:[#allocation2 + $0xf8] sm:$0xf]
      %v5084 = vld [vmem:[#allocation2 + $0xfc] sm:$0xff]
      %v5085 = vld [vmem:[#allocation2 + $0x104] sm:$0xf]
      %v5086 = vld [vmem:[#allocation2 + $0x108] sm:$0xff]
      %v5087 = vld [vmem:[#allocation2 + $0x110] sm:$0xf]
      %v5088 = vld [vmem:[#allocation2 + $0x114] sm:$0xff]
      %v5089 = vld [vmem:[#allocation2 + $0x11c] sm:$0xf]
      %v5090 = vld [vmem:[#allocation2 + $0x120] sm:$0xff]
      %v5091 = vld [vmem:[#allocation2 + $0x128] sm:$0xf]
      %v5092 = vld [vmem:[#allocation2 + $0x12c] sm:$0xff]
      %v5093 = vld [vmem:[#allocation2 + $0x134] sm:$0xf]
      %v5094 = vld [vmem:[#allocation2 + $0x138] sm:$0xff]
      %v5095 = vld [vmem:[#allocation2 + $0x140] sm:$0xf]
      %v5096 = vld [vmem:[#allocation2 + $0x144] sm:$0xff]
      %v5097 = vld [vmem:[#allocation2 + $0x14c] sm:$0xf]
      %v5098 = vld [vmem:[#allocation2 + $0x150] sm:$0xff]
      %v5099 = vld [vmem:[#allocation2 + $0x158] sm:$0xf]
      %v5100 = vld [vmem:[#allocation2 + $0x15c] sm:$0xff]
      %v5101 = vld [vmem:[#allocation2 + $0x164] sm:$0xf]
      %v5102 = vld [vmem:[#allocation2 + $0x168] sm:$0xff]
      %v5103 = vld [vmem:[#allocation2 + $0x170] sm:$0xf]
      %v5104 = vld [vmem:[#allocation2 + $0x174] sm:$0xff]
      %v5105 = vld [vmem:[#allocation2 + $0x17c] sm:$0xf]
      %v5106 = vld [vmem:[#allocation2 + $0x180] sm:$0xff]
      %v5107 = vld [vmem:[#allocation2 + $0x188] sm:$0xf]
      %v5108 = vld [vmem:[#allocation2 + $0x18c] sm:$0xff]
      %v5109 = vld [vmem:[#allocation2 + $0x194] sm:$0xf]
      %v5110 = vld [vmem:[#allocation2 + $0x198] sm:$0xff]
      %v5111 = vld [vmem:[#allocation2 + $0x1a0] sm:$0xf]
      %v5112 = vld [vmem:[#allocation2 + $0x1a4] sm:$0xff]
      %v5113 = vld [vmem:[#allocation2 + $0x1ac] sm:$0xf]
      %v5114 = vld [vmem:[#allocation2 + $0x1b0] sm:$0xff]
      %v5115 = vld [vmem:[#allocation2 + $0x1b8] sm:$0xf]
      %v5116 = vld [vmem:[#allocation2 + $0x1bc] sm:$0xff]
      %v5117 = vld [vmem:[#allocation2 + $0x1c4] sm:$0xf]
      %v5118 = vld [vmem:[#allocation2 + $0x1c8] sm:$0xff]
      %v5119 = vld [vmem:[#allocation2 + $0x1d0] sm:$0xf]
      %v5120 = vld [vmem:[#allocation2 + $0x1d4] sm:$0xff]
      %v5121 = vld [vmem:[#allocation2 + $0x1dc] sm:$0xf]
      %v5122 = vld [vmem:[#allocation2 + $0x1e0] sm:$0xff]
      %v5123 = vld [vmem:[#allocation2 + $0x1e8] sm:$0xf]
      %v5124 = vld [vmem:[#allocation2 + $0x1ec] sm:$0xff]
      %v5125 = vld [vmem:[#allocation2 + $0x1f4] sm:$0xf]
      %v5126 = vld [vmem:[#allocation2 + $0x1f8] sm:$0xff]
      %v5127 = vld [vmem:[#allocation2 + $0x200] sm:$0xf]
      %v5128 = vld [vmem:[#allocation2 + $0x204] sm:$0xff]
      %v5129 = vld [vmem:[#allocation2 + $0x20c] sm:$0xf]
      %v5130 = vld [vmem:[#allocation2 + $0x210] sm:$0xff]
      %v5131 = vld [vmem:[#allocation2 + $0x218] sm:$0xf]
      %v5132 = vld [vmem:[#allocation2 + $0x21c] sm:$0xff]
      %v5133 = vld [vmem:[#allocation2 + $0x224] sm:$0xf]
      %v5134 = vld [vmem:[#allocation2 + $0x228] sm:$0xff]
      %v5135 = vld [vmem:[#allocation2 + $0x230] sm:$0xf]
      %v5136 = vld [vmem:[#allocation2 + $0x234] sm:$0xff]
      %v5137 = vld [vmem:[#allocation2 + $0x23c] sm:$0xf]
      %v5138 = vld [vmem:[#allocation2 + $0x240] sm:$0xff]
      %v5139 = vld [vmem:[#allocation2 + $0x248] sm:$0xf]
      %v5140 = vld [vmem:[#allocation2 + $0x24c] sm:$0xff]
      %v5141 = vld [vmem:[#allocation2 + $0x254] sm:$0xf]
      %v5142 = vld [vmem:[#allocation2 + $0x258] sm:$0xff]
      %v5143 = vld [vmem:[#allocation2 + $0x260] sm:$0xf]
      %v5144 = vld [vmem:[#allocation2 + $0x264] sm:$0xff]
      %v5145 = vld [vmem:[#allocation2 + $0x26c] sm:$0xf]
      %v5146 = vld [vmem:[#allocation2 + $0x270] sm:$0xff]
      %v5147 = vld [vmem:[#allocation2 + $0x278] sm:$0xf]
      %v5148 = vld [vmem:[#allocation2 + $0x27c] sm:$0xff]
      %v5149 = vld [vmem:[#allocation2 + $0x284] sm:$0xf]
      %v5150 = vld [vmem:[#allocation2 + $0x288] sm:$0xff]
      %v5151 = vld [vmem:[#allocation2 + $0x290] sm:$0xf]
      %v5152 = vld [vmem:[#allocation2 + $0x294] sm:$0xff]
      %v5153 = vld [vmem:[#allocation2 + $0x29c] sm:$0xf]
      %v5154 = vld [vmem:[#allocation2 + $0x2a0] sm:$0xff]
      %v5155 = vld [vmem:[#allocation2 + $0x2a8] sm:$0xf]
      %v5156 = vld [vmem:[#allocation2 + $0x2ac] sm:$0xff]
      %v5157 = vld [vmem:[#allocation2 + $0x2b4] sm:$0xf]
      %v5158 = vld [vmem:[#allocation2 + $0x2b8] sm:$0xff]
      %v5159 = vld [vmem:[#allocation2 + $0x2c0] sm:$0xf]
      %v5160 = vld [vmem:[#allocation2 + $0x2c4] sm:$0xff]
      %v5161 = vld [vmem:[#allocation2 + $0x2cc] sm:$0xf]
      %v5162 = vld [vmem:[#allocation2 + $0x2d0] sm:$0xff]
      %v5163 = vld [vmem:[#allocation2 + $0x2d8] sm:$0xf]
      %s5164 = scalar_lea.vmem %s4, 384
      %v5165 = vld [vmem:[%s5164] sm:$0xf]
      %v5166 = vld [vmem:[%s5164 + $0x4] sm:$0xf]
      %v5167 = vld [vmem:[%s5164 + $0x8] sm:$0xf]
      %v5168 = vld [vmem:[%s5164 + $0xc] sm:$0xf]
      %v5169 = vld [vmem:[%s5164 + $0x10] sm:$0xf]
      %v5170 = vld [vmem:[%s5164 + $0x14] sm:$0xf]
      %v5171 = vld [vmem:[%s5164 + $0x18] sm:$0xf]
      %v5172 = vld [vmem:[%s5164 + $0x1c] sm:$0xf]
      %v5173 = vld [vmem:[%s5164 + $0x20] sm:$0xf]
      %v5174 = vld [vmem:[%s5164 + $0x24] sm:$0xf]
      %v5175 = vld [vmem:[%s5164 + $0x28] sm:$0xf]
      %v5176 = vld [vmem:[%s5164 + $0x2c] sm:$0xf]
      %v5177 = vld [vmem:[%s5164 + $0x30] sm:$0xf]
      %v5178 = vld [vmem:[%s5164 + $0x34] sm:$0xf]
      %v5179 = vld [vmem:[%s5164 + $0x38] sm:$0xf]
      %v5180 = vld [vmem:[%s5164 + $0x3c] sm:$0xf]
      %v5181 = vld [vmem:[%s5164 + $0x40] sm:$0xf]
      %v5182 = vld [vmem:[%s5164 + $0x44] sm:$0xf]
      %v5183 = vld [vmem:[%s5164 + $0x48] sm:$0xf]
      %v5184 = vld [vmem:[%s5164 + $0x4c] sm:$0xf]
      %v5185 = vld [vmem:[%s5164 + $0x50] sm:$0xf]
      %v5186 = vld [vmem:[%s5164 + $0x54] sm:$0xf]
      %v5187 = vld [vmem:[%s5164 + $0x58] sm:$0xf]
      %v5188 = vld [vmem:[%s5164 + $0x5c] sm:$0xf]
      %v5189 = vld [vmem:[%s5164 + $0x60] sm:$0xf]
      %v5190 = vld [vmem:[%s5164 + $0x64] sm:$0xf]
      %v5191 = vld [vmem:[%s5164 + $0x68] sm:$0xf]
      %v5192 = vld [vmem:[%s5164 + $0x6c] sm:$0xf]
      %v5193 = vld [vmem:[%s5164 + $0x70] sm:$0xf]
      %v5194 = vld [vmem:[%s5164 + $0x74] sm:$0xf]
      %v5195 = vld [vmem:[%s5164 + $0x78] sm:$0xf]
      %v5196 = vld [vmem:[%s5164 + $0x7c] sm:$0xf]
      %v5197 = vld [vmem:[%s5164 + $0x80] sm:$0xf]
      %v5198 = vld [vmem:[%s5164 + $0x84] sm:$0xf]
      %v5199 = vld [vmem:[%s5164 + $0x88] sm:$0xf]
      %v5200 = vld [vmem:[%s5164 + $0x8c] sm:$0xf]
      %v5201 = vld [vmem:[%s5164 + $0x90] sm:$0xf]
      %v5202 = vld [vmem:[%s5164 + $0x94] sm:$0xf]
      %v5203 = vld [vmem:[%s5164 + $0x98] sm:$0xf]
      %v5204 = vld [vmem:[%s5164 + $0x9c] sm:$0xf]
      %v5205 = vld [vmem:[%s5164 + $0xa0] sm:$0xf]
      %v5206 = vld [vmem:[%s5164 + $0xa4] sm:$0xf]
      %v5207 = vld [vmem:[%s5164 + $0xa8] sm:$0xf]
      %v5208 = vld [vmem:[%s5164 + $0xac] sm:$0xf]
      %v5209 = vld [vmem:[%s5164 + $0xb0] sm:$0xf]
      %v5210 = vld [vmem:[%s5164 + $0xb4] sm:$0xf]
      %v5211 = vld [vmem:[%s5164 + $0xb8] sm:$0xf]
      %v5212 = vld [vmem:[%s5164 + $0xbc] sm:$0xf]
      %v5321 = vunpack.c.l.b16 %v5056
      %v5322 = vunpack.c.h.b16 %v5056
      %v5323 = vunpack.c.l.b16 %v5057
      %v5324 = vunpack.c.l.b16 %v5058
      %v5325 = vunpack.c.h.b16 %v5058
      %v5326 = vunpack.c.l.b16 %v5059
      %v5327 = vunpack.c.l.b16 %v5060
      %v5328 = vunpack.c.h.b16 %v5060
      %v5329 = vunpack.c.l.b16 %v5061
      %v5330 = vunpack.c.l.b16 %v5062
      %v5331 = vunpack.c.h.b16 %v5062
      %v5332 = vunpack.c.l.b16 %v5063
      %v5333 = vunpack.c.l.b16 %v5064
      %v5334 = vunpack.c.h.b16 %v5064
      %v5335 = vunpack.c.l.b16 %v5065
      %v5336 = vunpack.c.l.b16 %v5066
      %v5337 = vunpack.c.h.b16 %v5066
      %v5338 = vunpack.c.l.b16 %v5067
      %v5339 = vunpack.c.l.b16 %v5068
      %v5340 = vunpack.c.h.b16 %v5068
      %v5341 = vunpack.c.l.b16 %v5069
      %v5342 = vunpack.c.l.b16 %v5070
      %v5343 = vunpack.c.h.b16 %v5070
      %v5344 = vunpack.c.l.b16 %v5071
      %v5345 = vunpack.c.l.b16 %v5072
      %v5346 = vunpack.c.h.b16 %v5072
      %v5347 = vunpack.c.l.b16 %v5073
      %v5348 = vunpack.c.l.b16 %v5074
      %v5349 = vunpack.c.h.b16 %v5074
      %v5350 = vunpack.c.l.b16 %v5075
      %v5351 = vunpack.c.l.b16 %v5076
      %v5352 = vunpack.c.h.b16 %v5076
      %v5353 = vunpack.c.l.b16 %v5077
      %v5354 = vunpack.c.l.b16 %v5078
      %v5355 = vunpack.c.h.b16 %v5078
      %v5356 = vunpack.c.l.b16 %v5079
      %v5357 = vunpack.c.l.b16 %v5080
      %v5358 = vunpack.c.h.b16 %v5080
      %v5359 = vunpack.c.l.b16 %v5081
      %v5360 = vunpack.c.l.b16 %v5082
      %v5361 = vunpack.c.h.b16 %v5082
      %v5362 = vunpack.c.l.b16 %v5083
      %v5363 = vunpack.c.l.b16 %v5084
      %v5364 = vunpack.c.h.b16 %v5084
      %v5365 = vunpack.c.l.b16 %v5085
      %v5366 = vunpack.c.l.b16 %v5086
      %v5367 = vunpack.c.h.b16 %v5086
      %v5368 = vunpack.c.l.b16 %v5087
      %v5369 = vunpack.c.l.b16 %v5088
      %v5370 = vunpack.c.h.b16 %v5088
      %v5371 = vunpack.c.l.b16 %v5089
      %v5372 = vunpack.c.l.b16 %v5090
      %v5373 = vunpack.c.h.b16 %v5090
      %v5374 = vunpack.c.l.b16 %v5091
      %v5375 = vunpack.c.l.b16 %v5092
      %v5376 = vunpack.c.h.b16 %v5092
      %v5377 = vunpack.c.l.b16 %v5093
      %v5378 = vunpack.c.l.b16 %v5094
      %v5379 = vunpack.c.h.b16 %v5094
      %v5380 = vunpack.c.l.b16 %v5095
      %v5381 = vunpack.c.l.b16 %v5096
      %v5382 = vunpack.c.h.b16 %v5096
      %v5383 = vunpack.c.l.b16 %v5097
      %v5384 = vunpack.c.l.b16 %v5098
      %v5385 = vunpack.c.h.b16 %v5098
      %v5386 = vunpack.c.l.b16 %v5099
      %v5387 = vunpack.c.l.b16 %v5100
      %v5388 = vunpack.c.h.b16 %v5100
      %v5389 = vunpack.c.l.b16 %v5101
      %v5390 = vunpack.c.l.b16 %v5102
      %v5391 = vunpack.c.h.b16 %v5102
      %v5392 = vunpack.c.l.b16 %v5103
      %v5393 = vunpack.c.l.b16 %v5104
      %v5394 = vunpack.c.h.b16 %v5104
      %v5395 = vunpack.c.l.b16 %v5105
      %v5396 = vunpack.c.l.b16 %v5106
      %v5397 = vunpack.c.h.b16 %v5106
      %v5398 = vunpack.c.l.b16 %v5107
      %v5399 = vunpack.c.l.b16 %v5108
      %v5400 = vunpack.c.h.b16 %v5108
      %v5401 = vunpack.c.l.b16 %v5109
      %v5402 = vunpack.c.l.b16 %v5110
      %v5403 = vunpack.c.h.b16 %v5110
      %v5404 = vunpack.c.l.b16 %v5111
      %v5405 = vunpack.c.l.b16 %v5112
      %v5406 = vunpack.c.h.b16 %v5112
      %v5407 = vunpack.c.l.b16 %v5113
      %v5408 = vunpack.c.l.b16 %v5114
      %v5409 = vunpack.c.h.b16 %v5114
      %v5410 = vunpack.c.l.b16 %v5115
      %v5411 = vunpack.c.l.b16 %v5116
      %v5412 = vunpack.c.h.b16 %v5116
      %v5413 = vunpack.c.l.b16 %v5117
      %v5414 = vunpack.c.l.b16 %v5118
      %v5415 = vunpack.c.h.b16 %v5118
      %v5416 = vunpack.c.l.b16 %v5119
      %v5417 = vunpack.c.l.b16 %v5120
      %v5418 = vunpack.c.h.b16 %v5120
      %v5419 = vunpack.c.l.b16 %v5121
      %v5420 = vunpack.c.l.b16 %v5122
      %v5421 = vunpack.c.h.b16 %v5122
      %v5422 = vunpack.c.l.b16 %v5123
      %v5423 = vunpack.c.l.b16 %v5124
      %v5424 = vunpack.c.h.b16 %v5124
      %v5425 = vunpack.c.l.b16 %v5125
      %v5426 = vunpack.c.l.b16 %v5126
      %v5427 = vunpack.c.h.b16 %v5126
      %v5428 = vunpack.c.l.b16 %v5127
      %v5429 = vunpack.c.l.b16 %v5128
      %v5430 = vunpack.c.h.b16 %v5128
      %v5431 = vunpack.c.l.b16 %v5129
      %v5432 = vunpack.c.l.b16 %v5130
      %v5433 = vunpack.c.h.b16 %v5130
      %v5434 = vunpack.c.l.b16 %v5131
      %v5435 = vunpack.c.l.b16 %v5132
      %v5436 = vunpack.c.h.b16 %v5132
      %v5437 = vunpack.c.l.b16 %v5133
      %v5438 = vunpack.c.l.b16 %v5134
      %v5439 = vunpack.c.h.b16 %v5134
      %v5440 = vunpack.c.l.b16 %v5135
      %v5441 = vunpack.c.l.b16 %v5136
      %v5442 = vunpack.c.h.b16 %v5136
      %v5443 = vunpack.c.l.b16 %v5137
      %v5444 = vunpack.c.l.b16 %v5138
      %v5445 = vunpack.c.h.b16 %v5138
      %v5446 = vunpack.c.l.b16 %v5139
      %v5447 = vunpack.c.l.b16 %v5140
      %v5448 = vunpack.c.h.b16 %v5140
      %v5449 = vunpack.c.l.b16 %v5141
      %v5450 = vunpack.c.l.b16 %v5142
      %v5451 = vunpack.c.h.b16 %v5142
      %v5452 = vunpack.c.l.b16 %v5143
      %v5453 = vunpack.c.l.b16 %v5144
      %v5454 = vunpack.c.h.b16 %v5144
      %v5455 = vunpack.c.l.b16 %v5145
      %v5456 = vunpack.c.l.b16 %v5146
      %v5457 = vunpack.c.h.b16 %v5146
      %v5458 = vunpack.c.l.b16 %v5147
      %v5459 = vunpack.c.l.b16 %v5148
      %v5460 = vunpack.c.h.b16 %v5148
      %v5461 = vunpack.c.l.b16 %v5149
      %v5462 = vunpack.c.l.b16 %v5150
      %v5463 = vunpack.c.h.b16 %v5150
      %v5464 = vunpack.c.l.b16 %v5151
      %v5465 = vunpack.c.l.b16 %v5152
      %v5466 = vunpack.c.h.b16 %v5152
      %v5467 = vunpack.c.l.b16 %v5153
      %v5468 = vunpack.c.l.b16 %v5154
      %v5469 = vunpack.c.h.b16 %v5154
      %v5470 = vunpack.c.l.b16 %v5155
      %v5471 = vunpack.c.l.b16 %v5156
      %v5472 = vunpack.c.h.b16 %v5156
      %v5473 = vunpack.c.l.b16 %v5157
      %v5474 = vunpack.c.l.b16 %v5158
      %v5475 = vunpack.c.h.b16 %v5158
      %v5476 = vunpack.c.l.b16 %v5159
      %v5477 = vunpack.c.l.b16 %v5160
      %v5478 = vunpack.c.h.b16 %v5160
      %v5479 = vunpack.c.l.b16 %v5161
      %v5480 = vunpack.c.l.b16 %v5162
      %v5481 = vunpack.c.h.b16 %v5162
      %v5482 = vunpack.c.l.b16 %v5163
      %v5483 = vpack.c.b16 %v5324, %v5321
      %v5484 = vpack.c.b16 %v5325, %v5322
      %v5485 = vpack.c.b16 %v5326, %v5323
      %v5486 = vpack.c.b16 %v5330, %v5327
      %v5487 = vpack.c.b16 %v5331, %v5328
      %v5488 = vpack.c.b16 %v5332, %v5329
      %v5489 = vpack.c.b16 %v5336, %v5333
      %v5490 = vpack.c.b16 %v5337, %v5334
      %v5491 = vpack.c.b16 %v5338, %v5335
      %v5492 = vpack.c.b16 %v5342, %v5339
      %v5493 = vpack.c.b16 %v5343, %v5340
      %v5494 = vpack.c.b16 %v5344, %v5341
      %v5495 = vpack.c.b16 %v5348, %v5345
      %v5496 = vpack.c.b16 %v5349, %v5346
      %v5497 = vpack.c.b16 %v5350, %v5347
      %v5498 = vpack.c.b16 %v5354, %v5351
      %v5499 = vpack.c.b16 %v5355, %v5352
      %v5500 = vpack.c.b16 %v5356, %v5353
      %v5501 = vpack.c.b16 %v5360, %v5357
      %v5502 = vpack.c.b16 %v5361, %v5358
      %v5503 = vpack.c.b16 %v5362, %v5359
      %v5504 = vpack.c.b16 %v5366, %v5363
      %v5505 = vpack.c.b16 %v5367, %v5364
      %v5506 = vpack.c.b16 %v5368, %v5365
      %v5507 = vpack.c.b16 %v5372, %v5369
      %v5508 = vpack.c.b16 %v5373, %v5370
      %v5509 = vpack.c.b16 %v5374, %v5371
      %v5510 = vpack.c.b16 %v5378, %v5375
      %v5511 = vpack.c.b16 %v5379, %v5376
      %v5512 = vpack.c.b16 %v5380, %v5377
      %v5513 = vpack.c.b16 %v5384, %v5381
      %v5514 = vpack.c.b16 %v5385, %v5382
      %v5515 = vpack.c.b16 %v5386, %v5383
      %v5516 = vpack.c.b16 %v5390, %v5387
      %v5517 = vpack.c.b16 %v5391, %v5388
      %v5518 = vpack.c.b16 %v5392, %v5389
      %v5519 = vpack.c.b16 %v5396, %v5393
      %v5520 = vpack.c.b16 %v5397, %v5394
      %v5521 = vpack.c.b16 %v5398, %v5395
      %v5522 = vpack.c.b16 %v5402, %v5399
      %v5523 = vpack.c.b16 %v5403, %v5400
      %v5524 = vpack.c.b16 %v5404, %v5401
      %v5525 = vpack.c.b16 %v5408, %v5405
      %v5526 = vpack.c.b16 %v5409, %v5406
      %v5527 = vpack.c.b16 %v5410, %v5407
      %v5528 = vpack.c.b16 %v5414, %v5411
      %v5529 = vpack.c.b16 %v5415, %v5412
      %v5530 = vpack.c.b16 %v5416, %v5413
      %v5531 = vpack.c.b16 %v5420, %v5417
      %v5532 = vpack.c.b16 %v5421, %v5418
      %v5533 = vpack.c.b16 %v5422, %v5419
      %v5534 = vpack.c.b16 %v5426, %v5423
      %v5535 = vpack.c.b16 %v5427, %v5424
      %v5536 = vpack.c.b16 %v5428, %v5425
      %v5537 = vpack.c.b16 %v5432, %v5429
      %v5538 = vpack.c.b16 %v5433, %v5430
      %v5539 = vpack.c.b16 %v5434, %v5431
      %v5540 = vpack.c.b16 %v5438, %v5435
      %v5541 = vpack.c.b16 %v5439, %v5436
      %v5542 = vpack.c.b16 %v5440, %v5437
      %v5543 = vpack.c.b16 %v5444, %v5441
      %v5544 = vpack.c.b16 %v5445, %v5442
      %v5545 = vpack.c.b16 %v5446, %v5443
      %v5546 = vpack.c.b16 %v5450, %v5447
      %v5547 = vpack.c.b16 %v5451, %v5448
      %v5548 = vpack.c.b16 %v5452, %v5449
      %v5549 = vpack.c.b16 %v5456, %v5453
      %v5550 = vpack.c.b16 %v5457, %v5454
      %v5551 = vpack.c.b16 %v5458, %v5455
      %v5552 = vpack.c.b16 %v5462, %v5459
      %v5553 = vpack.c.b16 %v5463, %v5460
      %v5554 = vpack.c.b16 %v5464, %v5461
      %v5555 = vpack.c.b16 %v5468, %v5465
      %v5556 = vpack.c.b16 %v5469, %v5466
      %v5557 = vpack.c.b16 %v5470, %v5467
      %v5558 = vpack.c.b16 %v5474, %v5471
      %v5559 = vpack.c.b16 %v5475, %v5472
      %v5560 = vpack.c.b16 %v5476, %v5473
      %v5561 = vpack.c.b16 %v5480, %v5477
      %v5562 = vpack.c.b16 %v5481, %v5478
      %v5563 = vpack.c.b16 %v5482, %v5479
      %v5693 = vunpack.c.l.b16 %v5165
      %v5694 = vunpack.c.l.b16 %v5166
      %v5695 = vunpack.c.l.b16 %v5167
      %v5696 = vunpack.c.l.b16 %v5168
      %v5697 = vunpack.c.l.b16 %v5169
      %v5698 = vunpack.c.l.b16 %v5170
      %v5699 = vunpack.c.l.b16 %v5171
      %v5700 = vunpack.c.l.b16 %v5172
      %v5701 = vunpack.c.l.b16 %v5173
      %v5702 = vunpack.c.l.b16 %v5174
      %v5703 = vunpack.c.l.b16 %v5175
      %v5704 = vunpack.c.l.b16 %v5176
      %v5705 = vunpack.c.l.b16 %v5177
      %v5706 = vunpack.c.l.b16 %v5178
      %v5707 = vunpack.c.l.b16 %v5179
      %v5708 = vunpack.c.l.b16 %v5180
      %v5709 = vunpack.c.l.b16 %v5181
      %v5710 = vunpack.c.l.b16 %v5182
      %v5711 = vunpack.c.l.b16 %v5183
      %v5712 = vunpack.c.l.b16 %v5184
      %v5713 = vunpack.c.l.b16 %v5185
      %v5714 = vunpack.c.l.b16 %v5186
      %v5715 = vunpack.c.l.b16 %v5187
      %v5716 = vunpack.c.l.b16 %v5188
      %v5717 = vunpack.c.l.b16 %v5189
      %v5718 = vunpack.c.l.b16 %v5190
      %v5719 = vunpack.c.l.b16 %v5191
      %v5720 = vunpack.c.l.b16 %v5192
      %v5721 = vunpack.c.l.b16 %v5193
      %v5722 = vunpack.c.l.b16 %v5194
      %v5723 = vunpack.c.l.b16 %v5195
      %v5724 = vunpack.c.l.b16 %v5196
      %v5725 = vunpack.c.l.b16 %v5197
      %v5726 = vunpack.c.l.b16 %v5198
      %v5727 = vunpack.c.l.b16 %v5199
      %v5728 = vunpack.c.l.b16 %v5200
      %v5729 = vunpack.c.l.b16 %v5201
      %v5730 = vunpack.c.l.b16 %v5202
      %v5731 = vunpack.c.l.b16 %v5203
      %v5732 = vunpack.c.l.b16 %v5204
      %v5733 = vunpack.c.l.b16 %v5205
      %v5734 = vunpack.c.l.b16 %v5206
      %v5735 = vunpack.c.l.b16 %v5207
      %v5736 = vunpack.c.l.b16 %v5208
      %v5737 = vunpack.c.l.b16 %v5209
      %v5738 = vunpack.c.l.b16 %v5210
      %v5739 = vunpack.c.l.b16 %v5211
      %v5740 = vunpack.c.l.b16 %v5212
      %v5741 = vpack.c.b16 %v5694, %v5693
      %v5742 = vpack.c.b16 %v5696, %v5695
      %v5743 = vpack.c.b16 %v5698, %v5697
      %v5744 = vpack.c.b16 %v5700, %v5699
      %v5745 = vpack.c.b16 %v5702, %v5701
      %v5746 = vpack.c.b16 %v5704, %v5703
      %v5747 = vpack.c.b16 %v5706, %v5705
      %v5748 = vpack.c.b16 %v5708, %v5707
      %v5749 = vpack.c.b16 %v5710, %v5709
      %v5750 = vpack.c.b16 %v5712, %v5711
      %v5751 = vpack.c.b16 %v5714, %v5713
      %v5752 = vpack.c.b16 %v5716, %v5715
      %v5753 = vpack.c.b16 %v5718, %v5717
      %v5754 = vpack.c.b16 %v5720, %v5719
      %v5755 = vpack.c.b16 %v5722, %v5721
      %v5756 = vpack.c.b16 %v5724, %v5723
      %v5757 = vpack.c.b16 %v5726, %v5725
      %v5758 = vpack.c.b16 %v5728, %v5727
      %v5759 = vpack.c.b16 %v5730, %v5729
      %v5760 = vpack.c.b16 %v5732, %v5731
      %v5761 = vpack.c.b16 %v5734, %v5733
      %v5762 = vpack.c.b16 %v5736, %v5735
      %v5763 = vpack.c.b16 %v5738, %v5737
      %v5764 = vpack.c.b16 %v5740, %v5739
      %5789 = vmatpush.bf16.msra.mxu0 %v5748
      %5790 = vmatpush.bf16.msra.mxu0 %v5747
      %5791 = vmatpush.bf16.msra.mxu0 %v5746
      %5792 = vmatpush.bf16.msra.mxu0 %v5745
      %5793 = vmatpush.bf16.msra.mxu0 %v5744
      %5794 = vmatpush.bf16.msra.mxu0 %v5743
      %5795 = vmatpush.bf16.msra.mxu0 %v5742
      %5796 = vmatpush.bf16.msra.mxu0 %v5741
      %5797 = vmatmul.bf16.gmra.mxu0 %v5483
      %v5798 = vpop.f32.mrf.mxu0
      %v5799 = vadd.f32 0.0, %v5798
      %v5800 = vpop.f32.mrf.mxu0
      %v5801 = vadd.f32 0.0, %v5800
      %5802 = vmatmul.bf16.gmra.mxu0 %v5486
      %v5803 = vpop.f32.mrf.mxu0
      %v5804 = vadd.f32 0.0, %v5803
      %v5805 = vpop.f32.mrf.mxu0
      %v5806 = vadd.f32 0.0, %v5805
      %5807 = vmatmul.bf16.gmra.mxu0 %v5489
      %v5808 = vpop.f32.mrf.mxu0
      %v5809 = vadd.f32 0.0, %v5808
      %v5810 = vpop.f32.mrf.mxu0
      %v5811 = vadd.f32 0.0, %v5810
      %5812 = vmatmul.bf16.gmra.mxu0 %v5492
      %v5813 = vpop.f32.mrf.mxu0
      %v5814 = vadd.f32 0.0, %v5813
      %v5815 = vpop.f32.mrf.mxu0
      %v5816 = vadd.f32 0.0, %v5815
      %5817 = vmatmul.bf16.gmra.mxu0 %v5495
      %v5818 = vpop.f32.mrf.mxu0
      %v5819 = vadd.f32 0.0, %v5818
      %v5820 = vpop.f32.mrf.mxu0
      %v5821 = vadd.f32 0.0, %v5820
      %5822 = vmatmul.bf16.gmra.mxu0 %v5498
      %v5823 = vpop.f32.mrf.mxu0
      %v5824 = vadd.f32 0.0, %v5823
      %v5825 = vpop.f32.mrf.mxu0
      %v5826 = vadd.f32 0.0, %v5825
      %5827 = vmatmul.bf16.gmra.mxu0 %v5501
      %v5828 = vpop.f32.mrf.mxu0
      %v5829 = vadd.f32 0.0, %v5828
      %v5830 = vpop.f32.mrf.mxu0
      %v5831 = vadd.f32 0.0, %v5830
      %5832 = vmatmul.bf16.gmra.mxu0 %v5504
      %v5833 = vpop.f32.mrf.mxu0
      %v5834 = vadd.f32 0.0, %v5833
      %v5835 = vpop.f32.mrf.mxu0
      %v5836 = vadd.f32 0.0, %v5835
      %5837 = vmatmul.bf16.gmra.mxu0 %v5507
      %v5838 = vpop.f32.mrf.mxu0
      %v5839 = vadd.f32 0.0, %v5838
      %v5840 = vpop.f32.mrf.mxu0
      %v5841 = vadd.f32 0.0, %v5840
      %5842 = vmatmul.bf16.gmra.mxu0 %v5510
      %v5843 = vpop.f32.mrf.mxu0
      %v5844 = vadd.f32 0.0, %v5843
      %v5845 = vpop.f32.mrf.mxu0
      %v5846 = vadd.f32 0.0, %v5845
      %5847 = vmatmul.bf16.gmra.mxu0 %v5513
      %v5848 = vpop.f32.mrf.mxu0
      %v5849 = vadd.f32 0.0, %v5848
      %v5850 = vpop.f32.mrf.mxu0
      %v5851 = vadd.f32 0.0, %v5850
      %5852 = vmatmul.bf16.gmra.mxu0 %v5516
      %v5853 = vpop.f32.mrf.mxu0
      %v5854 = vadd.f32 0.0, %v5853
      %v5855 = vpop.f32.mrf.mxu0
      %v5856 = vadd.f32 0.0, %v5855
      %5857 = vmatmul.bf16.gmra.mxu0 %v5519
      %v5858 = vpop.f32.mrf.mxu0
      %v5859 = vadd.f32 0.0, %v5858
      %v5860 = vpop.f32.mrf.mxu0
      %v5861 = vadd.f32 0.0, %v5860
      %5862 = vmatmul.bf16.gmra.mxu0 %v5522
      %v5863 = vpop.f32.mrf.mxu0
      %v5864 = vadd.f32 0.0, %v5863
      %v5865 = vpop.f32.mrf.mxu0
      %v5866 = vadd.f32 0.0, %v5865
      %5867 = vmatmul.bf16.gmra.mxu0 %v5525
      %v5868 = vpop.f32.mrf.mxu0
      %v5869 = vadd.f32 0.0, %v5868
      %v5870 = vpop.f32.mrf.mxu0
      %v5871 = vadd.f32 0.0, %v5870
      %5872 = vmatmul.bf16.gmra.mxu0 %v5528
      %v5873 = vpop.f32.mrf.mxu0
      %v5874 = vadd.f32 0.0, %v5873
      %v5875 = vpop.f32.mrf.mxu0
      %v5876 = vadd.f32 0.0, %v5875
      %5877 = vmatmul.bf16.gmra.mxu0 %v5531
      %v5878 = vpop.f32.mrf.mxu0
      %v5879 = vadd.f32 0.0, %v5878
      %v5880 = vpop.f32.mrf.mxu0
      %v5881 = vadd.f32 0.0, %v5880
      %5882 = vmatmul.bf16.gmra.mxu0 %v5534
      %v5883 = vpop.f32.mrf.mxu0
      %v5884 = vadd.f32 0.0, %v5883
      %v5885 = vpop.f32.mrf.mxu0
      %v5886 = vadd.f32 0.0, %v5885
      %5887 = vmatmul.bf16.gmra.mxu0 %v5537
      %v5888 = vpop.f32.mrf.mxu0
      %v5889 = vadd.f32 0.0, %v5888
      %v5890 = vpop.f32.mrf.mxu0
      %v5891 = vadd.f32 0.0, %v5890
      %5892 = vmatmul.bf16.gmra.mxu0 %v5540
      %v5893 = vpop.f32.mrf.mxu0
      %v5894 = vadd.f32 0.0, %v5893
      %v5895 = vpop.f32.mrf.mxu0
      %v5896 = vadd.f32 0.0, %v5895
      %5897 = vmatmul.bf16.gmra.mxu0 %v5543
      %v5898 = vpop.f32.mrf.mxu0
      %v5899 = vadd.f32 0.0, %v5898
      %v5900 = vpop.f32.mrf.mxu0
      %v5901 = vadd.f32 0.0, %v5900
      %5902 = vmatmul.bf16.gmra.mxu0 %v5546
      %v5903 = vpop.f32.mrf.mxu0
      %v5904 = vadd.f32 0.0, %v5903
      %v5905 = vpop.f32.mrf.mxu0
      %v5906 = vadd.f32 0.0, %v5905
      %5907 = vmatmul.bf16.gmra.mxu0 %v5549
      %v5908 = vpop.f32.mrf.mxu0
      %v5909 = vadd.f32 0.0, %v5908
      %v5910 = vpop.f32.mrf.mxu0
      %v5911 = vadd.f32 0.0, %v5910
      %5912 = vmatmul.bf16.gmra.mxu0 %v5552
      %v5913 = vpop.f32.mrf.mxu0
      %v5914 = vadd.f32 0.0, %v5913
      %v5915 = vpop.f32.mrf.mxu0
      %v5916 = vadd.f32 0.0, %v5915
      %5917 = vmatmul.bf16.gmra.mxu0 %v5555
      %v5918 = vpop.f32.mrf.mxu0
      %v5919 = vadd.f32 0.0, %v5918
      %v5920 = vpop.f32.mrf.mxu0
      %v5921 = vadd.f32 0.0, %v5920
      %5922 = vmatmul.bf16.gmra.mxu0 %v5558
      %v5923 = vpop.f32.mrf.mxu0
      %v5924 = vadd.f32 0.0, %v5923
      %v5925 = vpop.f32.mrf.mxu0
      %v5926 = vadd.f32 0.0, %v5925
      %5927 = vmatmul.bf16.gmra.mxu0 %v5561
      %v5928 = vpop.f32.mrf.mxu0
      %v5929 = vadd.f32 0.0, %v5928
      %v5930 = vpop.f32.mrf.mxu0
      %v5931 = vadd.f32 0.0, %v5930
      %5932 = vdwg.mxu0
      %5933 = vmatpush.bf16.msra.mxu0 %v5756
      %5934 = vmatpush.bf16.msra.mxu0 %v5755
      %5935 = vmatpush.bf16.msra.mxu0 %v5754
      %5936 = vmatpush.bf16.msra.mxu0 %v5753
      %5937 = vmatpush.bf16.msra.mxu0 %v5752
      %5938 = vmatpush.bf16.msra.mxu0 %v5751
      %5939 = vmatpush.bf16.msra.mxu0 %v5750
      %5940 = vmatpush.bf16.msra.mxu0 %v5749
      %5941 = vmatmul.bf16.gmra.mxu0 %v5484
      %v5942 = vpop.f32.mrf.mxu0
      %v5943 = vadd.f32 %v5799, %v5942
      %v5944 = vpop.f32.mrf.mxu0
      %v5945 = vadd.f32 %v5801, %v5944
      %5946 = vmatmul.bf16.gmra.mxu0 %v5487
      %v5947 = vpop.f32.mrf.mxu0
      %v5948 = vadd.f32 %v5804, %v5947
      %v5949 = vpop.f32.mrf.mxu0
      %v5950 = vadd.f32 %v5806, %v5949
      %5951 = vmatmul.bf16.gmra.mxu0 %v5490
      %v5952 = vpop.f32.mrf.mxu0
      %v5953 = vadd.f32 %v5809, %v5952
      %v5954 = vpop.f32.mrf.mxu0
      %v5955 = vadd.f32 %v5811, %v5954
      %5956 = vmatmul.bf16.gmra.mxu0 %v5493
      %v5957 = vpop.f32.mrf.mxu0
      %v5958 = vadd.f32 %v5814, %v5957
      %v5959 = vpop.f32.mrf.mxu0
      %v5960 = vadd.f32 %v5816, %v5959
      %5961 = vmatmul.bf16.gmra.mxu0 %v5496
      %v5962 = vpop.f32.mrf.mxu0
      %v5963 = vadd.f32 %v5819, %v5962
      %v5964 = vpop.f32.mrf.mxu0
      %v5965 = vadd.f32 %v5821, %v5964
      %5966 = vmatmul.bf16.gmra.mxu0 %v5499
      %v5967 = vpop.f32.mrf.mxu0
      %v5968 = vadd.f32 %v5824, %v5967
      %v5969 = vpop.f32.mrf.mxu0
      %v5970 = vadd.f32 %v5826, %v5969
      %5971 = vmatmul.bf16.gmra.mxu0 %v5502
      %v5972 = vpop.f32.mrf.mxu0
      %v5973 = vadd.f32 %v5829, %v5972
      %v5974 = vpop.f32.mrf.mxu0
      %v5975 = vadd.f32 %v5831, %v5974
      %5976 = vmatmul.bf16.gmra.mxu0 %v5505
      %v5977 = vpop.f32.mrf.mxu0
      %v5978 = vadd.f32 %v5834, %v5977
      %v5979 = vpop.f32.mrf.mxu0
      %v5980 = vadd.f32 %v5836, %v5979
      %5981 = vmatmul.bf16.gmra.mxu0 %v5508
      %v5982 = vpop.f32.mrf.mxu0
      %v5983 = vadd.f32 %v5839, %v5982
      %v5984 = vpop.f32.mrf.mxu0
      %v5985 = vadd.f32 %v5841, %v5984
      %5986 = vmatmul.bf16.gmra.mxu0 %v5511
      %v5987 = vpop.f32.mrf.mxu0
      %v5988 = vadd.f32 %v5844, %v5987
      %v5989 = vpop.f32.mrf.mxu0
      %v5990 = vadd.f32 %v5846, %v5989
      %5991 = vmatmul.bf16.gmra.mxu0 %v5514
      %v5992 = vpop.f32.mrf.mxu0
      %v5993 = vadd.f32 %v5849, %v5992
      %v5994 = vpop.f32.mrf.mxu0
      %v5995 = vadd.f32 %v5851, %v5994
      %5996 = vmatmul.bf16.gmra.mxu0 %v5517
      %v5997 = vpop.f32.mrf.mxu0
      %v5998 = vadd.f32 %v5854, %v5997
      %v5999 = vpop.f32.mrf.mxu0
      %v6000 = vadd.f32 %v5856, %v5999
      %6001 = vmatmul.bf16.gmra.mxu0 %v5520
      %v6002 = vpop.f32.mrf.mxu0
      %v6003 = vadd.f32 %v5859, %v6002
      %v6004 = vpop.f32.mrf.mxu0
      %v6005 = vadd.f32 %v5861, %v6004
      %6006 = vmatmul.bf16.gmra.mxu0 %v5523
      %v6007 = vpop.f32.mrf.mxu0
      %v6008 = vadd.f32 %v5864, %v6007
      %v6009 = vpop.f32.mrf.mxu0
      %v6010 = vadd.f32 %v5866, %v6009
      %6011 = vmatmul.bf16.gmra.mxu0 %v5526
      %v6012 = vpop.f32.mrf.mxu0
      %v6013 = vadd.f32 %v5869, %v6012
      %v6014 = vpop.f32.mrf.mxu0
      %v6015 = vadd.f32 %v5871, %v6014
      %6016 = vmatmul.bf16.gmra.mxu0 %v5529
      %v6017 = vpop.f32.mrf.mxu0
      %v6018 = vadd.f32 %v5874, %v6017
      %v6019 = vpop.f32.mrf.mxu0
      %v6020 = vadd.f32 %v5876, %v6019
      %6021 = vmatmul.bf16.gmra.mxu0 %v5532
      %v6022 = vpop.f32.mrf.mxu0
      %v6023 = vadd.f32 %v5879, %v6022
      %v6024 = vpop.f32.mrf.mxu0
      %v6025 = vadd.f32 %v5881, %v6024
      %6026 = vmatmul.bf16.gmra.mxu0 %v5535
      %v6027 = vpop.f32.mrf.mxu0
      %v6028 = vadd.f32 %v5884, %v6027
      %v6029 = vpop.f32.mrf.mxu0
      %v6030 = vadd.f32 %v5886, %v6029
      %6031 = vmatmul.bf16.gmra.mxu0 %v5538
      %v6032 = vpop.f32.mrf.mxu0
      %v6033 = vadd.f32 %v5889, %v6032
      %v6034 = vpop.f32.mrf.mxu0
      %v6035 = vadd.f32 %v5891, %v6034
      %6036 = vmatmul.bf16.gmra.mxu0 %v5541
      %v6037 = vpop.f32.mrf.mxu0
      %v6038 = vadd.f32 %v5894, %v6037
      %v6039 = vpop.f32.mrf.mxu0
      %v6040 = vadd.f32 %v5896, %v6039
      %6041 = vmatmul.bf16.gmra.mxu0 %v5544
      %v6042 = vpop.f32.mrf.mxu0
      %v6043 = vadd.f32 %v5899, %v6042
      %v6044 = vpop.f32.mrf.mxu0
      %v6045 = vadd.f32 %v5901, %v6044
      %6046 = vmatmul.bf16.gmra.mxu0 %v5547
      %v6047 = vpop.f32.mrf.mxu0
      %v6048 = vadd.f32 %v5904, %v6047
      %v6049 = vpop.f32.mrf.mxu0
      %v6050 = vadd.f32 %v5906, %v6049
      %6051 = vmatmul.bf16.gmra.mxu0 %v5550
      %v6052 = vpop.f32.mrf.mxu0
      %v6053 = vadd.f32 %v5909, %v6052
      %v6054 = vpop.f32.mrf.mxu0
      %v6055 = vadd.f32 %v5911, %v6054
      %6056 = vmatmul.bf16.gmra.mxu0 %v5553
      %v6057 = vpop.f32.mrf.mxu0
      %v6058 = vadd.f32 %v5914, %v6057
      %v6059 = vpop.f32.mrf.mxu0
      %v6060 = vadd.f32 %v5916, %v6059
      %6061 = vmatmul.bf16.gmra.mxu0 %v5556
      %v6062 = vpop.f32.mrf.mxu0
      %v6063 = vadd.f32 %v5919, %v6062
      %v6064 = vpop.f32.mrf.mxu0
      %v6065 = vadd.f32 %v5921, %v6064
      %6066 = vmatmul.bf16.gmra.mxu0 %v5559
      %v6067 = vpop.f32.mrf.mxu0
      %v6068 = vadd.f32 %v5924, %v6067
      %v6069 = vpop.f32.mrf.mxu0
      %v6070 = vadd.f32 %v5926, %v6069
      %6071 = vmatmul.bf16.gmra.mxu0 %v5562
      %v6072 = vpop.f32.mrf.mxu0
      %v6073 = vadd.f32 %v5929, %v6072
      %v6074 = vpop.f32.mrf.mxu0
      %v6075 = vadd.f32 %v5931, %v6074
      %6076 = vdwg.mxu0
      %6077 = vmatpush.bf16.msra.mxu0 %v5764
      %6078 = vmatpush.bf16.msra.mxu0 %v5763
      %6079 = vmatpush.bf16.msra.mxu0 %v5762
      %6080 = vmatpush.bf16.msra.mxu0 %v5761
      %6081 = vmatpush.bf16.msra.mxu0 %v5760
      %6082 = vmatpush.bf16.msra.mxu0 %v5759
      %6083 = vmatpush.bf16.msra.mxu0 %v5758
      %6084 = vmatpush.bf16.msra.mxu0 %v5757
      %6085 = vmatmul.bf16.gmra.mxu0 %v5485
      %v6086 = vpop.f32.mrf.mxu0
      %v6087 = vadd.f32 %v5943, %v6086
      %v6088 = vpop.f32.mrf.mxu0
      %v6089 = vadd.f32 %v5945, %v6088
      %6090 = vmatmul.bf16.gmra.mxu0 %v5488
      %v6091 = vpop.f32.mrf.mxu0
      %v6092 = vadd.f32 %v5948, %v6091
      %v6093 = vpop.f32.mrf.mxu0
      %v6094 = vadd.f32 %v5950, %v6093
      %6095 = vmatmul.bf16.gmra.mxu0 %v5491
      %v6096 = vpop.f32.mrf.mxu0
      %v6097 = vadd.f32 %v5953, %v6096
      %v6098 = vpop.f32.mrf.mxu0
      %v6099 = vadd.f32 %v5955, %v6098
      %6100 = vmatmul.bf16.gmra.mxu0 %v5494
      %v6101 = vpop.f32.mrf.mxu0
      %v6102 = vadd.f32 %v5958, %v6101
      %v6103 = vpop.f32.mrf.mxu0
      %v6104 = vadd.f32 %v5960, %v6103
      %6105 = vmatmul.bf16.gmra.mxu0 %v5497
      %v6106 = vpop.f32.mrf.mxu0
      %v6107 = vadd.f32 %v5963, %v6106
      %v6108 = vpop.f32.mrf.mxu0
      %v6109 = vadd.f32 %v5965, %v6108
      %6110 = vmatmul.bf16.gmra.mxu0 %v5500
      %v6111 = vpop.f32.mrf.mxu0
      %v6112 = vadd.f32 %v5968, %v6111
      %v6113 = vpop.f32.mrf.mxu0
      %v6114 = vadd.f32 %v5970, %v6113
      %6115 = vmatmul.bf16.gmra.mxu0 %v5503
      %v6116 = vpop.f32.mrf.mxu0
      %v6117 = vadd.f32 %v5973, %v6116
      %v6118 = vpop.f32.mrf.mxu0
      %v6119 = vadd.f32 %v5975, %v6118
      %6120 = vmatmul.bf16.gmra.mxu0 %v5506
      %v6121 = vpop.f32.mrf.mxu0
      %v6122 = vadd.f32 %v5978, %v6121
      %v6123 = vpop.f32.mrf.mxu0
      %v6124 = vadd.f32 %v5980, %v6123
      %6125 = vmatmul.bf16.gmra.mxu0 %v5509
      %v6126 = vpop.f32.mrf.mxu0
      %v6127 = vadd.f32 %v5983, %v6126
      %v6128 = vpop.f32.mrf.mxu0
      %v6129 = vadd.f32 %v5985, %v6128
      %6130 = vmatmul.bf16.gmra.mxu0 %v5512
      %v6131 = vpop.f32.mrf.mxu0
      %v6132 = vadd.f32 %v5988, %v6131
      %v6133 = vpop.f32.mrf.mxu0
      %v6134 = vadd.f32 %v5990, %v6133
      %6135 = vmatmul.bf16.gmra.mxu0 %v5515
      %v6136 = vpop.f32.mrf.mxu0
      %v6137 = vadd.f32 %v5993, %v6136
      %v6138 = vpop.f32.mrf.mxu0
      %v6139 = vadd.f32 %v5995, %v6138
      %6140 = vmatmul.bf16.gmra.mxu0 %v5518
      %v6141 = vpop.f32.mrf.mxu0
      %v6142 = vadd.f32 %v5998, %v6141
      %v6143 = vpop.f32.mrf.mxu0
      %v6144 = vadd.f32 %v6000, %v6143
      %6145 = vmatmul.bf16.gmra.mxu0 %v5521
      %v6146 = vpop.f32.mrf.mxu0
      %v6147 = vadd.f32 %v6003, %v6146
      %v6148 = vpop.f32.mrf.mxu0
      %v6149 = vadd.f32 %v6005, %v6148
      %6150 = vmatmul.bf16.gmra.mxu0 %v5524
      %v6151 = vpop.f32.mrf.mxu0
      %v6152 = vadd.f32 %v6008, %v6151
      %v6153 = vpop.f32.mrf.mxu0
      %v6154 = vadd.f32 %v6010, %v6153
      %6155 = vmatmul.bf16.gmra.mxu0 %v5527
      %v6156 = vpop.f32.mrf.mxu0
      %v6157 = vadd.f32 %v6013, %v6156
      %v6158 = vpop.f32.mrf.mxu0
      %v6159 = vadd.f32 %v6015, %v6158
      %6160 = vmatmul.bf16.gmra.mxu0 %v5530
      %v6161 = vpop.f32.mrf.mxu0
      %v6162 = vadd.f32 %v6018, %v6161
      %v6163 = vpop.f32.mrf.mxu0
      %v6164 = vadd.f32 %v6020, %v6163
      %6165 = vmatmul.bf16.gmra.mxu0 %v5533
      %v6166 = vpop.f32.mrf.mxu0
      %v6167 = vadd.f32 %v6023, %v6166
      %v6168 = vpop.f32.mrf.mxu0
      %v6169 = vadd.f32 %v6025, %v6168
      %6170 = vmatmul.bf16.gmra.mxu0 %v5536
      %v6171 = vpop.f32.mrf.mxu0
      %v6172 = vadd.f32 %v6028, %v6171
      %v6173 = vpop.f32.mrf.mxu0
      %v6174 = vadd.f32 %v6030, %v6173
      %6175 = vmatmul.bf16.gmra.mxu0 %v5539
      %v6176 = vpop.f32.mrf.mxu0
      %v6177 = vadd.f32 %v6033, %v6176
      %v6178 = vpop.f32.mrf.mxu0
      %v6179 = vadd.f32 %v6035, %v6178
      %6180 = vmatmul.bf16.gmra.mxu0 %v5542
      %v6181 = vpop.f32.mrf.mxu0
      %v6182 = vadd.f32 %v6038, %v6181
      %v6183 = vpop.f32.mrf.mxu0
      %v6184 = vadd.f32 %v6040, %v6183
      %6185 = vmatmul.bf16.gmra.mxu0 %v5545
      %v6186 = vpop.f32.mrf.mxu0
      %v6187 = vadd.f32 %v6043, %v6186
      %v6188 = vpop.f32.mrf.mxu0
      %v6189 = vadd.f32 %v6045, %v6188
      %6190 = vmatmul.bf16.gmra.mxu0 %v5548
      %v6191 = vpop.f32.mrf.mxu0
      %v6192 = vadd.f32 %v6048, %v6191
      %v6193 = vpop.f32.mrf.mxu0
      %v6194 = vadd.f32 %v6050, %v6193
      %6195 = vmatmul.bf16.gmra.mxu0 %v5551
      %v6196 = vpop.f32.mrf.mxu0
      %v6197 = vadd.f32 %v6053, %v6196
      %v6198 = vpop.f32.mrf.mxu0
      %v6199 = vadd.f32 %v6055, %v6198
      %6200 = vmatmul.bf16.gmra.mxu0 %v5554
      %v6201 = vpop.f32.mrf.mxu0
      %v6202 = vadd.f32 %v6058, %v6201
      %v6203 = vpop.f32.mrf.mxu0
      %v6204 = vadd.f32 %v6060, %v6203
      %6205 = vmatmul.bf16.gmra.mxu0 %v5557
      %v6206 = vpop.f32.mrf.mxu0
      %v6207 = vadd.f32 %v6063, %v6206
      %v6208 = vpop.f32.mrf.mxu0
      %v6209 = vadd.f32 %v6065, %v6208
      %6210 = vmatmul.bf16.gmra.mxu0 %v5560
      %v6211 = vpop.f32.mrf.mxu0
      %v6212 = vadd.f32 %v6068, %v6211
      %v6213 = vpop.f32.mrf.mxu0
      %v6214 = vadd.f32 %v6070, %v6213
      %6215 = vmatmul.bf16.gmra.mxu0 %v5563
      %v6216 = vpop.f32.mrf.mxu0
      %v6217 = vadd.f32 %v6073, %v6216
      %v6218 = vpop.f32.mrf.mxu0
      %v6219 = vadd.f32 %v6075, %v6218
      %6220 = vdwg.mxu0
      %v6221 = vadd.f32 %v4922, %v6087
      %v6222 = vadd.f32 %v4924, %v6089
      %v6223 = vadd.f32 %v4927, %v6092
      %v6224 = vadd.f32 %v4929, %v6094
      %v6225 = vadd.f32 %v4932, %v6097
      %v6226 = vadd.f32 %v4934, %v6099
      %v6227 = vadd.f32 %v4937, %v6102
      %v6228 = vadd.f32 %v4939, %v6104
      %v6229 = vadd.f32 %v4942, %v6107
      %v6230 = vadd.f32 %v4944, %v6109
      %v6231 = vadd.f32 %v4947, %v6112
      %v6232 = vadd.f32 %v4949, %v6114
      %v6233 = vadd.f32 %v4952, %v6117
      %v6234 = vadd.f32 %v4954, %v6119
      %v6235 = vadd.f32 %v4957, %v6122
      %v6236 = vadd.f32 %v4959, %v6124
      %v6237 = vadd.f32 %v4962, %v6127
      %v6238 = vadd.f32 %v4964, %v6129
      %v6239 = vadd.f32 %v4967, %v6132
      %v6240 = vadd.f32 %v4969, %v6134
      %v6241 = vadd.f32 %v4972, %v6137
      %v6242 = vadd.f32 %v4974, %v6139
      %v6243 = vadd.f32 %v4977, %v6142
      %v6244 = vadd.f32 %v4979, %v6144
      %v6245 = vadd.f32 %v4982, %v6147
      %v6246 = vadd.f32 %v4984, %v6149
      %v6247 = vadd.f32 %v4987, %v6152
      %v6248 = vadd.f32 %v4989, %v6154
      %v6249 = vadd.f32 %v4992, %v6157
      %v6250 = vadd.f32 %v4994, %v6159
      %v6251 = vadd.f32 %v4997, %v6162
      %v6252 = vadd.f32 %v4999, %v6164
      %v6253 = vadd.f32 %v5002, %v6167
      %v6254 = vadd.f32 %v5004, %v6169
      %v6255 = vadd.f32 %v5007, %v6172
      %v6256 = vadd.f32 %v5009, %v6174
      %v6257 = vadd.f32 %v5012, %v6177
      %v6258 = vadd.f32 %v5014, %v6179
      %v6259 = vadd.f32 %v5017, %v6182
      %v6260 = vadd.f32 %v5019, %v6184
      %v6261 = vadd.f32 %v5022, %v6187
      %v6262 = vadd.f32 %v5024, %v6189
      %v6263 = vadd.f32 %v5027, %v6192
      %v6264 = vadd.f32 %v5029, %v6194
      %v6265 = vadd.f32 %v5032, %v6197
      %v6266 = vadd.f32 %v5034, %v6199
      %v6267 = vadd.f32 %v5037, %v6202
      %v6268 = vadd.f32 %v5039, %v6204
      %v6269 = vadd.f32 %v5042, %v6207
      %v6270 = vadd.f32 %v5044, %v6209
      %v6271 = vadd.f32 %v5047, %v6212
      %v6272 = vadd.f32 %v5049, %v6214
      %v6273 = vadd.f32 %v5052, %v6217
      %v6274 = vadd.f32 %v5054, %v6219
      %v6275 = vld [vmem:[%s5] sm:$0x1]
      %v6276 = vld [vmem:[%s6] sm:$0x1]
      %v6277 = vmul.f32 %v6221, %v983
      %v6278 = vmul.f32 %v6222, %v984
      %v6279 = vmul.f32 %v6223, %v985
      %v6280 = vmul.f32 %v6224, %v986
      %v6281 = vmul.f32 %v6225, %v987
      %v6282 = vmul.f32 %v6226, %v988
      %v6283 = vmul.f32 %v6227, %v989
      %v6284 = vmul.f32 %v6228, %v990
      %v6285 = vmul.f32 %v6229, %v991
      %v6286 = vmul.f32 %v6230, %v992
      %v6287 = vmul.f32 %v6231, %v993
      %v6288 = vmul.f32 %v6232, %v994
      %v6289 = vmul.f32 %v6233, %v995
      %v6290 = vmul.f32 %v6234, %v996
      %v6291 = vmul.f32 %v6235, %v997
      %v6292 = vmul.f32 %v6236, %v998
      %v6293 = vmul.f32 %v6237, %v999
      %v6294 = vmul.f32 %v6238, %v1000
      %v6295 = vmul.f32 %v6239, %v1001
      %v6296 = vmul.f32 %v6240, %v1002
      %v6297 = vmul.f32 %v6241, %v1003
      %v6298 = vmul.f32 %v6242, %v1004
      %v6299 = vmul.f32 %v6243, %v1005
      %v6300 = vmul.f32 %v6244, %v1006
      %v6301 = vmul.f32 %v6245, %v1007
      %v6302 = vmul.f32 %v6246, %v1008
      %v6303 = vmul.f32 %v6247, %v1009
      %v6304 = vmul.f32 %v6248, %v1010
      %v6305 = vmul.f32 %v6249, %v1011
      %v6306 = vmul.f32 %v6250, %v1012
      %v6307 = vmul.f32 %v6251, %v1013
      %v6308 = vmul.f32 %v6252, %v1014
      %v6309 = vmul.f32 %v6253, %v1015
      %v6310 = vmul.f32 %v6254, %v1016
      %v6311 = vmul.f32 %v6255, %v1017
      %v6312 = vmul.f32 %v6256, %v1018
      %v6313 = vmul.f32 %v6257, %v1019
      %v6314 = vmul.f32 %v6258, %v1020
      %v6315 = vmul.f32 %v6259, %v1021
      %v6316 = vmul.f32 %v6260, %v1022
      %v6317 = vmul.f32 %v6261, %v1023
      %v6318 = vmul.f32 %v6262, %v1024
      %v6319 = vmul.f32 %v6263, %v1025
      %v6320 = vmul.f32 %v6264, %v1026
      %v6321 = vmul.f32 %v6265, %v1027
      %v6322 = vmul.f32 %v6266, %v1028
      %v6323 = vmul.f32 %v6267, %v1029
      %v6324 = vmul.f32 %v6268, %v1030
      %v6325 = vmul.f32 %v6269, %v1031
      %v6326 = vmul.f32 %v6270, %v1032
      %v6327 = vmul.f32 %v6271, %v1033
      %v6328 = vmul.f32 %v6272, %v1034
      %v6329 = vmul.f32 %v6273, %v1035
      %v6330 = vmul.f32 %v6274, %v1036
      %v6331 = vadd.f32 %v6277, %v6278
      %v6332 = vadd.f32 %v6331, %v6279
      %v6333 = vadd.f32 %v6332, %v6280
      %v6334 = vadd.f32 %v6333, %v6281
      %v6335 = vadd.f32 %v6334, %v6282
      %v6336 = vadd.f32 %v6335, %v6283
      %v6337 = vadd.f32 %v6336, %v6284
      %v6338 = vadd.f32 %v6337, %v6285
      %v6339 = vadd.f32 %v6338, %v6286
      %v6340 = vadd.f32 %v6339, %v6287
      %v6341 = vadd.f32 %v6340, %v6288
      %v6342 = vadd.f32 %v6341, %v6289
      %v6343 = vadd.f32 %v6342, %v6290
      %v6344 = vadd.f32 %v6343, %v6291
      %v6345 = vadd.f32 %v6344, %v6292
      %v6346 = vadd.f32 %v6345, %v6293
      %v6347 = vadd.f32 %v6346, %v6294
      %v6348 = vadd.f32 %v6347, %v6295
      %v6349 = vadd.f32 %v6348, %v6296
      %v6350 = vadd.f32 %v6349, %v6297
      %v6351 = vadd.f32 %v6350, %v6298
      %v6352 = vadd.f32 %v6351, %v6299
      %v6353 = vadd.f32 %v6352, %v6300
      %v6354 = vadd.f32 %v6353, %v6301
      %v6355 = vadd.f32 %v6354, %v6302
      %v6356 = vadd.f32 %v6355, %v6303
      %v6357 = vadd.f32 %v6356, %v6304
      %v6358 = vadd.f32 %v6357, %v6305
      %v6359 = vadd.f32 %v6358, %v6306
      %v6360 = vadd.f32 %v6359, %v6307
      %v6361 = vadd.f32 %v6360, %v6308
      %v6362 = vadd.f32 %v6361, %v6309
      %v6363 = vadd.f32 %v6362, %v6310
      %v6364 = vadd.f32 %v6363, %v6311
      %v6365 = vadd.f32 %v6364, %v6312
      %v6366 = vadd.f32 %v6365, %v6313
      %v6367 = vadd.f32 %v6366, %v6314
      %v6368 = vadd.f32 %v6367, %v6315
      %v6369 = vadd.f32 %v6368, %v6316
      %v6370 = vadd.f32 %v6369, %v6317
      %v6371 = vadd.f32 %v6370, %v6318
      %v6372 = vadd.f32 %v6371, %v6319
      %v6373 = vadd.f32 %v6372, %v6320
      %v6374 = vadd.f32 %v6373, %v6321
      %v6375 = vadd.f32 %v6374, %v6322
      %v6376 = vadd.f32 %v6375, %v6323
      %v6377 = vadd.f32 %v6376, %v6324
      %v6378 = vadd.f32 %v6377, %v6325
      %v6379 = vadd.f32 %v6378, %v6326
      %v6380 = vadd.f32 %v6379, %v6327
      %v6381 = vadd.f32 %v6380, %v6328
      %v6382 = vadd.f32 %v6381, %v6329
      %v6383 = vadd.f32 %v6382, %v6330
      %v6384 = vrot.slane %v6383, 4
      %v6385 = vadd.f32 %v6383, %v6384
      %v6386 = vrot.slane %v6385, 2
      %v6387 = vadd.f32 %v6385, %v6386
      %v6388 = vrot.slane %v6387, 1
      %v6389 = vadd.f32 %v6387, %v6388
      %v6390 = vmul.f32 %v6277, %v6277
      %v6391 = vmul.f32 %v6278, %v6278
      %v6392 = vmul.f32 %v6279, %v6279
      %v6393 = vmul.f32 %v6280, %v6280
      %v6394 = vmul.f32 %v6281, %v6281
      %v6395 = vmul.f32 %v6282, %v6282
      %v6396 = vmul.f32 %v6283, %v6283
      %v6397 = vmul.f32 %v6284, %v6284
      %v6398 = vmul.f32 %v6285, %v6285
      %v6399 = vmul.f32 %v6286, %v6286
      %v6400 = vmul.f32 %v6287, %v6287
      %v6401 = vmul.f32 %v6288, %v6288
      %v6402 = vmul.f32 %v6289, %v6289
      %v6403 = vmul.f32 %v6290, %v6290
      %v6404 = vmul.f32 %v6291, %v6291
      %v6405 = vmul.f32 %v6292, %v6292
      %v6406 = vmul.f32 %v6293, %v6293
      %v6407 = vmul.f32 %v6294, %v6294
      %v6408 = vmul.f32 %v6295, %v6295
      %v6409 = vmul.f32 %v6296, %v6296
      %v6410 = vmul.f32 %v6297, %v6297
      %v6411 = vmul.f32 %v6298, %v6298
      %v6412 = vmul.f32 %v6299, %v6299
      %v6413 = vmul.f32 %v6300, %v6300
      %v6414 = vmul.f32 %v6301, %v6301
      %v6415 = vmul.f32 %v6302, %v6302
      %v6416 = vmul.f32 %v6303, %v6303
      %v6417 = vmul.f32 %v6304, %v6304
      %v6418 = vmul.f32 %v6305, %v6305
      %v6419 = vmul.f32 %v6306, %v6306
      %v6420 = vmul.f32 %v6307, %v6307
      %v6421 = vmul.f32 %v6308, %v6308
      %v6422 = vmul.f32 %v6309, %v6309
      %v6423 = vmul.f32 %v6310, %v6310
      %v6424 = vmul.f32 %v6311, %v6311
      %v6425 = vmul.f32 %v6312, %v6312
      %v6426 = vmul.f32 %v6313, %v6313
      %v6427 = vmul.f32 %v6314, %v6314
      %v6428 = vmul.f32 %v6315, %v6315
      %v6429 = vmul.f32 %v6316, %v6316
      %v6430 = vmul.f32 %v6317, %v6317
      %v6431 = vmul.f32 %v6318, %v6318
      %v6432 = vmul.f32 %v6319, %v6319
      %v6433 = vmul.f32 %v6320, %v6320
      %v6434 = vmul.f32 %v6321, %v6321
      %v6435 = vmul.f32 %v6322, %v6322
      %v6436 = vmul.f32 %v6323, %v6323
      %v6437 = vmul.f32 %v6324, %v6324
      %v6438 = vmul.f32 %v6325, %v6325
      %v6439 = vmul.f32 %v6326, %v6326
      %v6440 = vmul.f32 %v6327, %v6327
      %v6441 = vmul.f32 %v6328, %v6328
      %v6442 = vmul.f32 %v6329, %v6329
      %v6443 = vmul.f32 %v6330, %v6330
      %v6444 = vadd.f32 %v6390, %v6391
      %v6445 = vadd.f32 %v6444, %v6392
      %v6446 = vadd.f32 %v6445, %v6393
      %v6447 = vadd.f32 %v6446, %v6394
      %v6448 = vadd.f32 %v6447, %v6395
      %v6449 = vadd.f32 %v6448, %v6396
      %v6450 = vadd.f32 %v6449, %v6397
      %v6451 = vadd.f32 %v6450, %v6398
      %v6452 = vadd.f32 %v6451, %v6399
      %v6453 = vadd.f32 %v6452, %v6400
      %v6454 = vadd.f32 %v6453, %v6401
      %v6455 = vadd.f32 %v6454, %v6402
      %v6456 = vadd.f32 %v6455, %v6403
      %v6457 = vadd.f32 %v6456, %v6404
      %v6458 = vadd.f32 %v6457, %v6405
      %v6459 = vadd.f32 %v6458, %v6406
      %v6460 = vadd.f32 %v6459, %v6407
      %v6461 = vadd.f32 %v6460, %v6408
      %v6462 = vadd.f32 %v6461, %v6409
      %v6463 = vadd.f32 %v6462, %v6410
      %v6464 = vadd.f32 %v6463, %v6411
      %v6465 = vadd.f32 %v6464, %v6412
      %v6466 = vadd.f32 %v6465, %v6413
      %v6467 = vadd.f32 %v6466, %v6414
      %v6468 = vadd.f32 %v6467, %v6415
      %v6469 = vadd.f32 %v6468, %v6416
      %v6470 = vadd.f32 %v6469, %v6417
      %v6471 = vadd.f32 %v6470, %v6418
      %v6472 = vadd.f32 %v6471, %v6419
      %v6473 = vadd.f32 %v6472, %v6420
      %v6474 = vadd.f32 %v6473, %v6421
      %v6475 = vadd.f32 %v6474, %v6422
      %v6476 = vadd.f32 %v6475, %v6423
      %v6477 = vadd.f32 %v6476, %v6424
      %v6478 = vadd.f32 %v6477, %v6425
      %v6479 = vadd.f32 %v6478, %v6426
      %v6480 = vadd.f32 %v6479, %v6427
      %v6481 = vadd.f32 %v6480, %v6428
      %v6482 = vadd.f32 %v6481, %v6429
      %v6483 = vadd.f32 %v6482, %v6430
      %v6484 = vadd.f32 %v6483, %v6431
      %v6485 = vadd.f32 %v6484, %v6432
      %v6486 = vadd.f32 %v6485, %v6433
      %v6487 = vadd.f32 %v6486, %v6434
      %v6488 = vadd.f32 %v6487, %v6435
      %v6489 = vadd.f32 %v6488, %v6436
      %v6490 = vadd.f32 %v6489, %v6437
      %v6491 = vadd.f32 %v6490, %v6438
      %v6492 = vadd.f32 %v6491, %v6439
      %v6493 = vadd.f32 %v6492, %v6440
      %v6494 = vadd.f32 %v6493, %v6441
      %v6495 = vadd.f32 %v6494, %v6442
      %v6496 = vadd.f32 %v6495, %v6443
      %v6497 = vrot.slane %v6496, 4
      %v6498 = vadd.f32 %v6496, %v6497
      %v6499 = vrot.slane %v6498, 2
      %v6500 = vadd.f32 %v6498, %v6499
      %v6501 = vrot.slane %v6500, 1
      %v6502 = vadd.f32 %v6500, %v6501
      %v6503 = vmul.f32 %v6389, 0.00390625
      %v6504 = vmul.f32 %v6502, 0.00390625
      %v6505 = vmul.f32 %v6503, %v6503
      %v6506 = vsub.f32 %v6504, %v6505
      %v6507 = vmax.f32 %v6506, 0.0
      %v6508 = vadd.f32 %v6507, 1e-05
      %v6509 = vrsqrt.pop %v6508
      %v6510 = vmul.f32 %v6509, %v6508
      %v6511 = vmul.f32 %v6510, %v6509
      %v6512 = vmul.f32 0.5, %v6511
      %v6513 = vsub.f32 1.5, %v6512
      %v6514 = vmul.f32 %v6509, %v6513
      %vm6515 = vweird.f32 %v6508
      %vm6516 = vweird.f32 %v6509
      %vm6517 = vmor %vm6515, %vm6516
      %v6518 = vsel %vm6517, %v6509, %v6514
      %v6519 = vmul.f32 %v6518, %v6275
      %v6520 = vmul.f32 %v6503, %v6519
      %v6521 = vsub.f32 %v6276, %v6520
      %v6522 = vperm.slane %v6519, 0
      %v6523 = vmul.f32 %v6224, %v6522
      %v6524 = vmul.f32 %v6225, %v6522
      %v6525 = vmul.f32 %v6226, %v6522
      %v6526 = vmul.f32 %v6227, %v6522
      %v6527 = vmul.f32 %v6228, %v6522
      %v6528 = vmul.f32 %v6229, %v6522
      %v6529 = vmul.f32 %v6230, %v6522
      %v6530 = vmul.f32 %v6231, %v6522
      %v6531 = vmul.f32 %v6232, %v6522
      %v6532 = vmul.f32 %v6233, %v6522
      %v6533 = vmul.f32 %v6234, %v6522
      %v6534 = vmul.f32 %v6235, %v6522
      %v6535 = vmul.f32 %v6236, %v6522
      %v6536 = vmul.f32 %v6237, %v6522
      %v6537 = vmul.f32 %v6238, %v6522
      %v6538 = vmul.f32 %v6239, %v6522
      %v6539 = vmul.f32 %v6240, %v6522
      %v6540 = vmul.f32 %v6241, %v6522
      %v6541 = vmul.f32 %v6242, %v6522
      %v6542 = vmul.f32 %v6243, %v6522
      %v6543 = vmul.f32 %v6244, %v6522
      %v6544 = vmul.f32 %v6245, %v6522
      %v6545 = vmul.f32 %v6246, %v6522
      %v6546 = vmul.f32 %v6247, %v6522
      %v6547 = vmul.f32 %v6248, %v6522
      %v6548 = vmul.f32 %v6249, %v6522
      %v6549 = vmul.f32 %v6250, %v6522
      %v6550 = vmul.f32 %v6251, %v6522
      %v6551 = vmul.f32 %v6252, %v6522
      %v6552 = vmul.f32 %v6253, %v6522
      %v6553 = vmul.f32 %v6254, %v6522
      %v6554 = vmul.f32 %v6255, %v6522
      %v6555 = vmul.f32 %v6256, %v6522
      %v6556 = vmul.f32 %v6257, %v6522
      %v6557 = vmul.f32 %v6258, %v6522
      %v6558 = vmul.f32 %v6259, %v6522
      %v6559 = vmul.f32 %v6260, %v6522
      %v6560 = vmul.f32 %v6261, %v6522
      %v6561 = vmul.f32 %v6262, %v6522
      %v6562 = vmul.f32 %v6263, %v6522
      %v6563 = vmul.f32 %v6264, %v6522
      %v6564 = vmul.f32 %v6265, %v6522
      %v6565 = vmul.f32 %v6266, %v6522
      %v6566 = vmul.f32 %v6267, %v6522
      %v6567 = vmul.f32 %v6268, %v6522
      %v6568 = vmul.f32 %v6269, %v6522
      %v6569 = vmul.f32 %v6270, %v6522
      %v6570 = vmul.f32 %v6271, %v6522
      %v6572 = vperm.slane %v6521, 0
      %v6574 = vadd.f32 %v6523, %v6572
      %v6575 = vadd.f32 %v6524, %v6572
      %v6576 = vadd.f32 %v6525, %v6572
      %v6577 = vadd.f32 %v6526, %v6572
      %v6578 = vadd.f32 %v6527, %v6572
      %v6579 = vadd.f32 %v6528, %v6572
      %v6580 = vadd.f32 %v6529, %v6572
      %v6581 = vadd.f32 %v6530, %v6572
      %v6582 = vadd.f32 %v6531, %v6572
      %v6583 = vadd.f32 %v6532, %v6572
      %v6584 = vadd.f32 %v6533, %v6572
      %v6585 = vadd.f32 %v6534, %v6572
      %v6586 = vadd.f32 %v6535, %v6572
      %v6587 = vadd.f32 %v6536, %v6572
      %v6588 = vadd.f32 %v6537, %v6572
      %v6589 = vadd.f32 %v6538, %v6572
      %v6590 = vadd.f32 %v6539, %v6572
      %v6591 = vadd.f32 %v6540, %v6572
      %v6592 = vadd.f32 %v6541, %v6572
      %v6593 = vadd.f32 %v6542, %v6572
      %v6594 = vadd.f32 %v6543, %v6572
      %v6595 = vadd.f32 %v6544, %v6572
      %v6596 = vadd.f32 %v6545, %v6572
      %v6597 = vadd.f32 %v6546, %v6572
      %v6598 = vadd.f32 %v6547, %v6572
      %v6599 = vadd.f32 %v6548, %v6572
      %v6600 = vadd.f32 %v6549, %v6572
      %v6601 = vadd.f32 %v6550, %v6572
      %v6602 = vadd.f32 %v6551, %v6572
      %v6603 = vadd.f32 %v6552, %v6572
      %v6604 = vadd.f32 %v6553, %v6572
      %v6605 = vadd.f32 %v6554, %v6572
      %v6606 = vadd.f32 %v6555, %v6572
      %v6607 = vadd.f32 %v6556, %v6572
      %v6608 = vadd.f32 %v6557, %v6572
      %v6609 = vadd.f32 %v6558, %v6572
      %v6610 = vadd.f32 %v6559, %v6572
      %v6611 = vadd.f32 %v6560, %v6572
      %v6612 = vadd.f32 %v6561, %v6572
      %v6613 = vadd.f32 %v6562, %v6572
      %v6614 = vadd.f32 %v6563, %v6572
      %v6615 = vadd.f32 %v6564, %v6572
      %v6616 = vadd.f32 %v6565, %v6572
      %v6617 = vadd.f32 %v6566, %v6572
      %v6618 = vadd.f32 %v6567, %v6572
      %v6619 = vadd.f32 %v6568, %v6572
      %v6620 = vadd.f32 %v6569, %v6572
      %v6621 = vadd.f32 %v6570, %v6572
      %v6622 = vmax.f32 %v6574, 0.0
      %v6623 = vmax.f32 %v6575, 0.0
      %v6624 = vmax.f32 %v6576, 0.0
      %v6625 = vmax.f32 %v6577, 0.0
      %v6626 = vmax.f32 %v6578, 0.0
      %v6627 = vmax.f32 %v6579, 0.0
      %v6628 = vmax.f32 %v6580, 0.0
      %v6629 = vmax.f32 %v6581, 0.0
      %v6630 = vmax.f32 %v6582, 0.0
      %v6631 = vmax.f32 %v6583, 0.0
      %v6632 = vmax.f32 %v6584, 0.0
      %v6633 = vmax.f32 %v6585, 0.0
      %v6634 = vmax.f32 %v6586, 0.0
      %v6635 = vmax.f32 %v6587, 0.0
      %v6636 = vmax.f32 %v6588, 0.0
      %v6637 = vmax.f32 %v6589, 0.0
      %v6638 = vmax.f32 %v6590, 0.0
      %v6639 = vmax.f32 %v6591, 0.0
      %v6640 = vmax.f32 %v6592, 0.0
      %v6641 = vmax.f32 %v6593, 0.0
      %v6642 = vmax.f32 %v6594, 0.0
      %v6643 = vmax.f32 %v6595, 0.0
      %v6644 = vmax.f32 %v6596, 0.0
      %v6645 = vmax.f32 %v6597, 0.0
      %v6646 = vmax.f32 %v6598, 0.0
      %v6647 = vmax.f32 %v6599, 0.0
      %v6648 = vmax.f32 %v6600, 0.0
      %v6649 = vmax.f32 %v6601, 0.0
      %v6650 = vmax.f32 %v6602, 0.0
      %v6651 = vmax.f32 %v6603, 0.0
      %v6652 = vmax.f32 %v6604, 0.0
      %v6653 = vmax.f32 %v6605, 0.0
      %v6654 = vmax.f32 %v6606, 0.0
      %v6655 = vmax.f32 %v6607, 0.0
      %v6656 = vmax.f32 %v6608, 0.0
      %v6657 = vmax.f32 %v6609, 0.0
      %v6658 = vmax.f32 %v6610, 0.0
      %v6659 = vmax.f32 %v6611, 0.0
      %v6660 = vmax.f32 %v6612, 0.0
      %v6661 = vmax.f32 %v6613, 0.0
      %v6662 = vmax.f32 %v6614, 0.0
      %v6663 = vmax.f32 %v6615, 0.0
      %v6664 = vmax.f32 %v6616, 0.0
      %v6665 = vmax.f32 %v6617, 0.0
      %v6666 = vmax.f32 %v6618, 0.0
      %v6667 = vmax.f32 %v6619, 0.0
      %v6668 = vmax.f32 %v6620, 0.0
      %v6669 = vmax.f32 %v6621, 0.0
      %v6670 = vpack.c.bf16 %v6623, %v6622
      %v6671 = vpack.c.bf16 %v6625, %v6624
      %v6672 = vpack.c.bf16 %v6627, %v6626
      %v6673 = vpack.c.bf16 %v6629, %v6628
      %v6674 = vpack.c.bf16 %v6631, %v6630
      %v6675 = vpack.c.bf16 %v6633, %v6632
      %v6676 = vpack.c.bf16 %v6635, %v6634
      %v6677 = vpack.c.bf16 %v6637, %v6636
      %v6678 = vpack.c.bf16 %v6639, %v6638
      %v6679 = vpack.c.bf16 %v6641, %v6640
      %v6680 = vpack.c.bf16 %v6643, %v6642
      %v6681 = vpack.c.bf16 %v6645, %v6644
      %v6682 = vpack.c.bf16 %v6647, %v6646
      %v6683 = vpack.c.bf16 %v6649, %v6648
      %v6684 = vpack.c.bf16 %v6651, %v6650
      %v6685 = vpack.c.bf16 %v6653, %v6652
      %v6686 = vpack.c.bf16 %v6655, %v6654
      %v6687 = vpack.c.bf16 %v6657, %v6656
      %v6688 = vpack.c.bf16 %v6659, %v6658
      %v6689 = vpack.c.bf16 %v6661, %v6660
      %v6690 = vpack.c.bf16 %v6663, %v6662
      %v6691 = vpack.c.bf16 %v6665, %v6664
      %v6692 = vpack.c.bf16 %v6667, %v6666
      %v6693 = vpack.c.bf16 %v6669, %v6668
      %v6694 = vld [vmem:[%s7] sm:$0xff]
      %v6695 = vld [vmem:[%s7 + $0x8] sm:$0xff]
      %v6696 = vld [vmem:[%s7 + $0x10] sm:$0xff]
      %v6697 = vld [vmem:[%s7 + $0x18] sm:$0xff]
      %v6698 = vld [vmem:[%s7 + $0x20] sm:$0xff]
      %v6699 = vld [vmem:[%s7 + $0x28] sm:$0xff]
      %v6700 = vld [vmem:[%s7 + $0x30] sm:$0xff]
      %v6701 = vld [vmem:[%s7 + $0x38] sm:$0xff]
      %v6702 = vld [vmem:[%s7 + $0x40] sm:$0xff]
      %v6703 = vld [vmem:[%s7 + $0x48] sm:$0xff]
      %v6704 = vld [vmem:[%s7 + $0x50] sm:$0xff]
      %v6705 = vld [vmem:[%s7 + $0x58] sm:$0xff]
      %v6706 = vld [vmem:[%s7 + $0x60] sm:$0xff]
      %v6707 = vld [vmem:[%s7 + $0x68] sm:$0xff]
      %v6708 = vld [vmem:[%s7 + $0x70] sm:$0xff]
      %v6709 = vld [vmem:[%s7 + $0x78] sm:$0xff]
      %v6710 = vld [vmem:[%s8] sm:$0x3]
      %v6712 = vperm.slane %v6710, 0
      %v6713 = vperm.slane %v6710, 1
      %v6732 = vunpack.c.l.b16 %v6694
      %v6733 = vunpack.c.h.b16 %v6694
      %v6734 = vunpack.c.l.b16 %v6695
      %v6735 = vunpack.c.h.b16 %v6695
      %v6736 = vunpack.c.l.b16 %v6696
      %v6737 = vunpack.c.h.b16 %v6696
      %v6738 = vunpack.c.l.b16 %v6697
      %v6739 = vunpack.c.h.b16 %v6697
      %v6740 = vunpack.c.l.b16 %v6698
      %v6741 = vunpack.c.h.b16 %v6698
      %v6742 = vunpack.c.l.b16 %v6699
      %v6743 = vunpack.c.h.b16 %v6699
      %v6744 = vunpack.c.l.b16 %v6700
      %v6745 = vunpack.c.h.b16 %v6700
      %v6746 = vunpack.c.l.b16 %v6701
      %v6747 = vunpack.c.h.b16 %v6701
      %v6748 = vunpack.c.l.b16 %v6702
      %v6749 = vunpack.c.h.b16 %v6702
      %v6750 = vunpack.c.l.b16 %v6703
      %v6751 = vunpack.c.h.b16 %v6703
      %v6752 = vunpack.c.l.b16 %v6704
      %v6753 = vunpack.c.h.b16 %v6704
      %v6754 = vunpack.c.l.b16 %v6705
      %v6755 = vunpack.c.h.b16 %v6705
      %v6756 = vunpack.c.l.b16 %v6706
      %v6757 = vunpack.c.h.b16 %v6706
      %v6758 = vunpack.c.l.b16 %v6707
      %v6759 = vunpack.c.h.b16 %v6707
      %v6760 = vunpack.c.l.b16 %v6708
      %v6761 = vunpack.c.h.b16 %v6708
      %v6762 = vunpack.c.l.b16 %v6709
      %v6763 = vunpack.c.h.b16 %v6709
      %v6764 = vpack.c.b16 %v6734, %v6732
      %v6765 = vpack.c.b16 %v6735, %v6733
      %v6766 = vpack.c.b16 %v6738, %v6736
      %v6767 = vpack.c.b16 %v6739, %v6737
      %v6768 = vpack.c.b16 %v6742, %v6740
      %v6769 = vpack.c.b16 %v6743, %v6741
      %v6770 = vpack.c.b16 %v6746, %v6744
      %v6771 = vpack.c.b16 %v6747, %v6745
      %v6772 = vpack.c.b16 %v6750, %v6748
      %v6773 = vpack.c.b16 %v6751, %v6749
      %v6774 = vpack.c.b16 %v6754, %v6752
      %v6775 = vpack.c.b16 %v6755, %v6753
      %v6776 = vpack.c.b16 %v6758, %v6756
      %v6777 = vpack.c.b16 %v6759, %v6757
      %v6778 = vpack.c.b16 %v6762, %v6760
      %v6779 = vpack.c.b16 %v6763, %v6761
      %6796 = vmatpush.bf16.msra.mxu0 %v6778
      %6797 = vmatpush.bf16.msra.mxu0 %v6776
      %6798 = vmatpush.bf16.msra.mxu0 %v6774
      %6799 = vmatpush.bf16.msra.mxu0 %v6772
      %6800 = vmatpush.bf16.msra.mxu0 %v6770
      %6801 = vmatpush.bf16.msra.mxu0 %v6768
      %6802 = vmatpush.bf16.msra.mxu0 %v6766
      %6803 = vmatpush.bf16.msra.mxu0 %v6764
      %6804 = vmatmul.bf16.gmra.mxu0 %v6670
      %v6805 = vpop.f32.mrf.mxu0
      %v6806 = vadd.f32 %v6712, %v6805
      %v6807 = vpop.f32.mrf.mxu0
      %v6808 = vadd.f32 %v6712, %v6807
      %6809 = vmatmul.bf16.gmra.mxu0 %v6671
      %v6810 = vpop.f32.mrf.mxu0
      %v6811 = vpop.f32.mrf.mxu0
      %v6812 = vadd.f32 %v6712, %v6811
      %6813 = vmatmul.bf16.gmra.mxu0 %v6672
      %v6814 = vpop.f32.mrf.mxu0
      %v6815 = vadd.f32 %v6712, %v6814
      %v6816 = vpop.f32.mrf.mxu0
      %6817 = vmatmul.bf16.gmra.mxu0 %v6673
      %v6818 = vpop.f32.mrf.mxu0
      %v6819 = vadd.f32 %v6712, %v6818
      %v6820 = vpop.f32.mrf.mxu0
      %v6821 = vadd.f32 %v6712, %v6820
      %6822 = vmatmul.bf16.gmra.mxu0 %v6674
      %v6823 = vpop.f32.mrf.mxu0
      %v6824 = vpop.f32.mrf.mxu0
      %v6825 = vadd.f32 %v6712, %v6824
      %6826 = vmatmul.bf16.gmra.mxu0 %v6675
      %v6827 = vpop.f32.mrf.mxu0
      %v6828 = vadd.f32 %v6712, %v6827
      %v6829 = vpop.f32.mrf.mxu0
      %6830 = vmatmul.bf16.gmra.mxu0 %v6676
      %v6831 = vpop.f32.mrf.mxu0
      %v6832 = vadd.f32 %v6712, %v6831
      %v6833 = vpop.f32.mrf.mxu0
      %v6834 = vadd.f32 %v6712, %v6833
      %6835 = vmatmul.bf16.gmra.mxu0 %v6677
      %v6836 = vpop.f32.mrf.mxu0
      %v6837 = vpop.f32.mrf.mxu0
      %v6838 = vadd.f32 %v6712, %v6837
      %6839 = vmatmul.bf16.gmra.mxu0 %v6678
      %v6840 = vpop.f32.mrf.mxu0
      %v6841 = vadd.f32 %v6712, %v6840
      %v6842 = vpop.f32.mrf.mxu0
      %6843 = vmatmul.bf16.gmra.mxu0 %v6679
      %v6844 = vpop.f32.mrf.mxu0
      %v6845 = vadd.f32 %v6712, %v6844
      %v6846 = vpop.f32.mrf.mxu0
      %v6847 = vadd.f32 %v6712, %v6846
      %6848 = vmatmul.bf16.gmra.mxu0 %v6680
      %v6849 = vpop.f32.mrf.mxu0
      %v6850 = vpop.f32.mrf.mxu0
      %v6851 = vadd.f32 %v6712, %v6850
      %6852 = vmatmul.bf16.gmra.mxu0 %v6681
      %v6853 = vpop.f32.mrf.mxu0
      %v6854 = vadd.f32 %v6712, %v6853
      %v6855 = vpop.f32.mrf.mxu0
      %6856 = vmatmul.bf16.gmra.mxu0 %v6682
      %v6857 = vpop.f32.mrf.mxu0
      %v6858 = vadd.f32 %v6712, %v6857
      %v6859 = vpop.f32.mrf.mxu0
      %v6860 = vadd.f32 %v6712, %v6859
      %6861 = vmatmul.bf16.gmra.mxu0 %v6683
      %v6862 = vpop.f32.mrf.mxu0
      %v6863 = vpop.f32.mrf.mxu0
      %v6864 = vadd.f32 %v6712, %v6863
      %6865 = vmatmul.bf16.gmra.mxu0 %v6684
      %v6866 = vpop.f32.mrf.mxu0
      %v6867 = vadd.f32 %v6712, %v6866
      %v6868 = vpop.f32.mrf.mxu0
      %6869 = vmatmul.bf16.gmra.mxu0 %v6685
      %v6870 = vpop.f32.mrf.mxu0
      %v6871 = vadd.f32 %v6712, %v6870
      %v6872 = vpop.f32.mrf.mxu0
      %v6873 = vadd.f32 %v6712, %v6872
      %6874 = vmatmul.bf16.gmra.mxu0 %v6686
      %v6875 = vpop.f32.mrf.mxu0
      %v6876 = vpop.f32.mrf.mxu0
      %v6877 = vadd.f32 %v6712, %v6876
      %6878 = vmatmul.bf16.gmra.mxu0 %v6687
      %v6879 = vpop.f32.mrf.mxu0
      %v6880 = vadd.f32 %v6712, %v6879
      %v6881 = vpop.f32.mrf.mxu0
      %6882 = vmatmul.bf16.gmra.mxu0 %v6688
      %v6883 = vpop.f32.mrf.mxu0
      %v6884 = vadd.f32 %v6712, %v6883
      %v6885 = vpop.f32.mrf.mxu0
      %v6886 = vadd.f32 %v6712, %v6885
      %6887 = vmatmul.bf16.gmra.mxu0 %v6689
      %v6888 = vpop.f32.mrf.mxu0
      %v6889 = vpop.f32.mrf.mxu0
      %v6890 = vadd.f32 %v6712, %v6889
      %6891 = vmatmul.bf16.gmra.mxu0 %v6690
      %v6892 = vpop.f32.mrf.mxu0
      %v6893 = vadd.f32 %v6712, %v6892
      %v6894 = vpop.f32.mrf.mxu0
      %6895 = vmatmul.bf16.gmra.mxu0 %v6691
      %v6896 = vpop.f32.mrf.mxu0
      %v6897 = vadd.f32 %v6712, %v6896
      %v6898 = vpop.f32.mrf.mxu0
      %v6899 = vadd.f32 %v6712, %v6898
      %6900 = vmatmul.bf16.gmra.mxu0 %v6692
      %v6901 = vpop.f32.mrf.mxu0
      %v6902 = vpop.f32.mrf.mxu0
      %v6903 = vadd.f32 %v6712, %v6902
      %6904 = vmatmul.bf16.gmra.mxu0 %v6693
      %v6905 = vpop.f32.mrf.mxu0
      %v6906 = vadd.f32 %v6712, %v6905
      %v6907 = vpop.f32.mrf.mxu0
      %6908 = vdwg.mxu0
      %6909 = vmatpush.bf16.msra.mxu0 %v6779
      %6910 = vmatpush.bf16.msra.mxu0 %v6777
      %6911 = vmatpush.bf16.msra.mxu0 %v6775
      %6912 = vmatpush.bf16.msra.mxu0 %v6773
      %6913 = vmatpush.bf16.msra.mxu0 %v6771
      %6914 = vmatpush.bf16.msra.mxu0 %v6769
      %6915 = vmatpush.bf16.msra.mxu0 %v6767
      %6916 = vmatpush.bf16.msra.mxu0 %v6765
      %6917 = vmatmul.bf16.gmra.mxu0 %v6670
      %v6918 = vpop.f32.mrf.mxu0
      %v6919 = vadd.f32 %v6713, %v6918
      %v6920 = vpop.f32.mrf.mxu0
      %v6921 = vadd.f32 %v6713, %v6920
      %6922 = vmatmul.bf16.gmra.mxu0 %v6671
      %v6923 = vpop.f32.mrf.mxu0
      %v6924 = vpop.f32.mrf.mxu0
      %v6925 = vadd.f32 %v6713, %v6924
      %6926 = vmatmul.bf16.gmra.mxu0 %v6672
      %v6927 = vpop.f32.mrf.mxu0
      %v6928 = vadd.f32 %v6713, %v6927
      %v6929 = vpop.f32.mrf.mxu0
      %6930 = vmatmul.bf16.gmra.mxu0 %v6673
      %v6931 = vpop.f32.mrf.mxu0
      %v6932 = vadd.f32 %v6713, %v6931
      %v6933 = vpop.f32.mrf.mxu0
      %v6934 = vadd.f32 %v6713, %v6933
      %6935 = vmatmul.bf16.gmra.mxu0 %v6674
      %v6936 = vpop.f32.mrf.mxu0
      %v6937 = vpop.f32.mrf.mxu0
      %v6938 = vadd.f32 %v6713, %v6937
      %6939 = vmatmul.bf16.gmra.mxu0 %v6675
      %v6940 = vpop.f32.mrf.mxu0
      %v6941 = vadd.f32 %v6713, %v6940
      %v6942 = vpop.f32.mrf.mxu0
      %6943 = vmatmul.bf16.gmra.mxu0 %v6676
      %v6944 = vpop.f32.mrf.mxu0
      %v6945 = vadd.f32 %v6713, %v6944
      %v6946 = vpop.f32.mrf.mxu0
      %v6947 = vadd.f32 %v6713, %v6946
      %6948 = vmatmul.bf16.gmra.mxu0 %v6677
      %v6949 = vpop.f32.mrf.mxu0
      %v6950 = vpop.f32.mrf.mxu0
      %v6951 = vadd.f32 %v6713, %v6950
      %6952 = vmatmul.bf16.gmra.mxu0 %v6678
      %v6953 = vpop.f32.mrf.mxu0
      %v6954 = vadd.f32 %v6713, %v6953
      %v6955 = vpop.f32.mrf.mxu0
      %6956 = vmatmul.bf16.gmra.mxu0 %v6679
      %v6957 = vpop.f32.mrf.mxu0
      %v6958 = vadd.f32 %v6713, %v6957
      %v6959 = vpop.f32.mrf.mxu0
      %v6960 = vadd.f32 %v6713, %v6959
      %6961 = vmatmul.bf16.gmra.mxu0 %v6680
      %v6962 = vpop.f32.mrf.mxu0
      %v6963 = vpop.f32.mrf.mxu0
      %v6964 = vadd.f32 %v6713, %v6963
      %6965 = vmatmul.bf16.gmra.mxu0 %v6681
      %v6966 = vpop.f32.mrf.mxu0
      %v6967 = vadd.f32 %v6713, %v6966
      %v6968 = vpop.f32.mrf.mxu0
      %6969 = vmatmul.bf16.gmra.mxu0 %v6682
      %v6970 = vpop.f32.mrf.mxu0
      %v6971 = vadd.f32 %v6713, %v6970
      %v6972 = vpop.f32.mrf.mxu0
      %v6973 = vadd.f32 %v6713, %v6972
      %6974 = vmatmul.bf16.gmra.mxu0 %v6683
      %v6975 = vpop.f32.mrf.mxu0
      %v6976 = vpop.f32.mrf.mxu0
      %v6977 = vadd.f32 %v6713, %v6976
      %6978 = vmatmul.bf16.gmra.mxu0 %v6684
      %v6979 = vpop.f32.mrf.mxu0
      %v6980 = vadd.f32 %v6713, %v6979
      %v6981 = vpop.f32.mrf.mxu0
      %6982 = vmatmul.bf16.gmra.mxu0 %v6685
      %v6983 = vpop.f32.mrf.mxu0
      %v6984 = vadd.f32 %v6713, %v6983
      %v6985 = vpop.f32.mrf.mxu0
      %v6986 = vadd.f32 %v6713, %v6985
      %6987 = vmatmul.bf16.gmra.mxu0 %v6686
      %v6988 = vpop.f32.mrf.mxu0
      %v6989 = vpop.f32.mrf.mxu0
      %v6990 = vadd.f32 %v6713, %v6989
      %6991 = vmatmul.bf16.gmra.mxu0 %v6687
      %v6992 = vpop.f32.mrf.mxu0
      %v6993 = vadd.f32 %v6713, %v6992
      %v6994 = vpop.f32.mrf.mxu0
      %6995 = vmatmul.bf16.gmra.mxu0 %v6688
      %v6996 = vpop.f32.mrf.mxu0
      %v6997 = vadd.f32 %v6713, %v6996
      %v6998 = vpop.f32.mrf.mxu0
      %v6999 = vadd.f32 %v6713, %v6998
      %7000 = vmatmul.bf16.gmra.mxu0 %v6689
      %v7001 = vpop.f32.mrf.mxu0
      %v7002 = vpop.f32.mrf.mxu0
      %v7003 = vadd.f32 %v6713, %v7002
      %7004 = vmatmul.bf16.gmra.mxu0 %v6690
      %v7005 = vpop.f32.mrf.mxu0
      %v7006 = vadd.f32 %v6713, %v7005
      %v7007 = vpop.f32.mrf.mxu0
      %7008 = vmatmul.bf16.gmra.mxu0 %v6691
      %v7009 = vpop.f32.mrf.mxu0
      %v7010 = vadd.f32 %v6713, %v7009
      %v7011 = vpop.f32.mrf.mxu0
      %v7012 = vadd.f32 %v6713, %v7011
      %7013 = vmatmul.bf16.gmra.mxu0 %v6692
      %v7014 = vpop.f32.mrf.mxu0
      %v7015 = vpop.f32.mrf.mxu0
      %v7016 = vadd.f32 %v6713, %v7015
      %7017 = vmatmul.bf16.gmra.mxu0 %v6693
      %v7018 = vpop.f32.mrf.mxu0
      %v7019 = vadd.f32 %v6713, %v7018
      %v7020 = vpop.f32.mrf.mxu0
      %7021 = vdwg.mxu0
      %7022 = vst [vmem:[%s332] sm:$0xff] %v6806
      %7023 = vst [vmem:[%s332 + $0x8] sm:$0xff] %v6808
      %s7024 = scalar_lea.vmem %s332, 16
      %7025 = vst [vmem:[%s7024] sm:$0xff] %v6919
      %7026 = vst [vmem:[%s7024 + $0x8] sm:$0xff] %v6921
      %s7027 = scalar_lea.vmem %s332, 32
      %7028 = vst [vmem:[%s7027] sm:$0xff] %v6812
      %7029 = vst [vmem:[%s7027 + $0x8] sm:$0xff] %v6815
      %s7030 = scalar_lea.vmem %s332, 48
      %7031 = vst [vmem:[%s7030] sm:$0xff] %v6925
      %7032 = vst [vmem:[%s7030 + $0x8] sm:$0xff] %v6928
      %s7033 = scalar_lea.vmem %s332, 64
      %7034 = vst [vmem:[%s7033] sm:$0xff] %v6819
      %7035 = vst [vmem:[%s7033 + $0x8] sm:$0xff] %v6821
      %s7036 = scalar_lea.vmem %s332, 80
      %7037 = vst [vmem:[%s7036] sm:$0xff] %v6932
      %7038 = vst [vmem:[%s7036 + $0x8] sm:$0xff] %v6934
      %s7039 = scalar_lea.vmem %s332, 96
      %7040 = vst [vmem:[%s7039] sm:$0xff] %v6825
      %7041 = vst [vmem:[%s7039 + $0x8] sm:$0xff] %v6828
      %s7042 = scalar_lea.vmem %s332, 112
      %7043 = vst [vmem:[%s7042] sm:$0xff] %v6938
      %7044 = vst [vmem:[%s7042 + $0x8] sm:$0xff] %v6941
      %s7045 = scalar_lea.vmem %s332, 128
      %7046 = vst [vmem:[%s7045] sm:$0xff] %v6832
      %7047 = vst [vmem:[%s7045 + $0x8] sm:$0xff] %v6834
      %s7048 = scalar_lea.vmem %s332, 144
      %7049 = vst [vmem:[%s7048] sm:$0xff] %v6945
      %7050 = vst [vmem:[%s7048 + $0x8] sm:$0xff] %v6947
      %s7051 = scalar_lea.vmem %s332, 160
      %7052 = vst [vmem:[%s7051] sm:$0xff] %v6838
      %7053 = vst [vmem:[%s7051 + $0x8] sm:$0xff] %v6841
      %s7054 = scalar_lea.vmem %s332, 176
      %7055 = vst [vmem:[%s7054] sm:$0xff] %v6951
      %7056 = vst [vmem:[%s7054 + $0x8] sm:$0xff] %v6954
      %s7057 = scalar_lea.vmem %s332, 192
      %7058 = vst [vmem:[%s7057] sm:$0xff] %v6845
      %7059 = vst [vmem:[%s7057 + $0x8] sm:$0xff] %v6847
      %s7060 = scalar_lea.vmem %s332, 208
      %7061 = vst [vmem:[%s7060] sm:$0xff] %v6958
      %7062 = vst [vmem:[%s7060 + $0x8] sm:$0xff] %v6960
      %s7063 = scalar_lea.vmem %s332, 224
      %7064 = vst [vmem:[%s7063] sm:$0xff] %v6851
      %7065 = vst [vmem:[%s7063 + $0x8] sm:$0xff] %v6854
      %s7066 = scalar_lea.vmem %s332, 240
      %7067 = vst [vmem:[%s7066] sm:$0xff] %v6964
      %7068 = vst [vmem:[%s7066 + $0x8] sm:$0xff] %v6967
      %s7069 = scalar_lea.vmem %s332, 256
      %7070 = vst [vmem:[%s7069] sm:$0xff] %v6858
      %7071 = vst [vmem:[%s7069 + $0x8] sm:$0xff] %v6860
      %s7072 = scalar_lea.vmem %s332, 272
      %7073 = vst [vmem:[%s7072] sm:$0xff] %v6971
      %7074 = vst [vmem:[%s7072 + $0x8] sm:$0xff] %v6973
      %s7075 = scalar_lea.vmem %s332, 288
      %7076 = vst [vmem:[%s7075] sm:$0xff] %v6864
      %7077 = vst [vmem:[%s7075 + $0x8] sm:$0xff] %v6867
      %s7078 = scalar_lea.vmem %s332, 304
      %7079 = vst [vmem:[%s7078] sm:$0xff] %v6977
      %7080 = vst [vmem:[%s7078 + $0x8] sm:$0xff] %v6980
      %s7081 = scalar_lea.vmem %s332, 320
      %7082 = vst [vmem:[%s7081] sm:$0xff] %v6871
      %7083 = vst [vmem:[%s7081 + $0x8] sm:$0xff] %v6873
      %s7084 = scalar_lea.vmem %s332, 336
      %7085 = vst [vmem:[%s7084] sm:$0xff] %v6984
      %7086 = vst [vmem:[%s7084 + $0x8] sm:$0xff] %v6986
      %s7087 = scalar_lea.vmem %s332, 352
      %7088 = vst [vmem:[%s7087] sm:$0xff] %v6877
      %7089 = vst [vmem:[%s7087 + $0x8] sm:$0xff] %v6880
      %s7090 = scalar_lea.vmem %s332, 368
      %7091 = vst [vmem:[%s7090] sm:$0xff] %v6990
      %7092 = vst [vmem:[%s7090 + $0x8] sm:$0xff] %v6993
      %s7093 = scalar_lea.vmem %s332, 384
      %7094 = vst [vmem:[%s7093] sm:$0xff] %v6884
      %7095 = vst [vmem:[%s7093 + $0x8] sm:$0xff] %v6886
      %s7096 = scalar_lea.vmem %s332, 400
      %7097 = vst [vmem:[%s7096] sm:$0xff] %v6997
      %7098 = vst [vmem:[%s7096 + $0x8] sm:$0xff] %v6999
      %s7099 = scalar_lea.vmem %s332, 416
      %7100 = vst [vmem:[%s7099] sm:$0xff] %v6890
      %7101 = vst [vmem:[%s7099 + $0x8] sm:$0xff] %v6893
      %s7102 = scalar_lea.vmem %s332, 432
      %7103 = vst [vmem:[%s7102] sm:$0xff] %v7003
      %7104 = vst [vmem:[%s7102 + $0x8] sm:$0xff] %v7006
      %s7105 = scalar_lea.vmem %s332, 448
      %7106 = vst [vmem:[%s7105] sm:$0xff] %v6897
      %7107 = vst [vmem:[%s7105 + $0x8] sm:$0xff] %v6899
      %s7108 = scalar_lea.vmem %s332, 464
      %7109 = vst [vmem:[%s7108] sm:$0xff] %v7010
      %7110 = vst [vmem:[%s7108 + $0x8] sm:$0xff] %v7012
      %s7111 = scalar_lea.vmem %s332, 480
      %7112 = vst [vmem:[%s7111] sm:$0xff] %v6903
      %7113 = vst [vmem:[%s7111 + $0x8] sm:$0xff] %v6906
      %s7114 = scalar_lea.vmem %s332, 496
      %7115 = vst [vmem:[%s7114] sm:$0xff] %v7016
      %7116 = vst [vmem:[%s7114 + $0x8] sm:$0xff] %v7019
      %p7117 = scmp.lt.s32.totalorder %s20, 1
      %s7118 = scalar_select %p7117, %s20, 1
      %s7119 = smul.addr %s7118, 64
      %s7120 = smul.addr %s7119, 8
      %s7121 = scalar_lea.vmem %s9, %s7120
      // Predicated region
      $region57: #{upsampling_unit_forward.1} parent=55 // pred_check
        %p7122 = pneg %p232
      $region58: #{upsampling_unit_forward.1} parent=55 // pred_check_branch
        %7124 = sbr.rel (%p7122) target = $region60
      $region59: #{upsampling_unit_forward.1} parent=55 // pred_region
        _
      $region60: #{upsampling_unit_forward.1} parent=55 // pred_fallthru
        _
    $region56: #{upsampling_unit_forward.1} parent=5 // pred_fallthru
      _
    %p7125 = scmp.le.s32.totalorder 2, %s15
    // Predicated region
    $region61: #{upsampling_unit_forward.1} parent=5 // pred_check
      %p7126 = pneg %p7125
    $region62: #{upsampling_unit_forward.1} parent=5 // pred_check_branch
      %7128 = sbr.rel (%p7126) target = $region64
    $region63: #{upsampling_unit_forward.1} parent=5 // pred_region
      %s7129 = ssub.s32 %s15, 2
      // Predicated region
      $region65: #{upsampling_unit_forward.1} parent=63 // pred_check
        %p7130 = pneg %p238
      $region66: #{upsampling_unit_forward.1} parent=63 // pred_check_branch
        %7132 = sbr.rel (%p7130) target = $region68
      $region67: #{upsampling_unit_forward.1} parent=63 // pred_region
        %p7133 = scmp.lt.s32.totalorder %s21, 1
        %s7134 = scalar_select %p7133, %s21, 1
        %s7135 = smul.addr %s7134, 64
        %s7136 = smul.addr %s7135, 8
        %s7137 = scalar_lea.vmem %s9, %s7136
      $region68: #{upsampling_unit_forward.1} parent=63 // pred_fallthru
        _
    $region64: #{upsampling_unit_forward.1} parent=5 // pred_fallthru
      _
  $region6: #{upsampling_unit_forward.1} parent=0 // loop_footer
    %s19 = sadd.s32 1, %s15
  $region7: #{upsampling_unit_forward.1} parent=0 // loop_footer_branch
    %14 = sbr.rel target = $region3
  $region8: #{upsampling_unit_forward.1} parent=0 // loop_exit
    _

</llo_original>
